<compile_context>
chip_gen: v7x
topology: tpu7x:2x2x1
jax: 0.10.0
libtpu: 0.0.40
codegen_flags: <defaults>
</compile_context>

<pallas_src>
import functools

import jax
import jax.numpy as jnp
from jax.experimental import pallas as pl
from jax.experimental.pallas import tpu as pltpu


def _round_up(x, m):
    return (x + m - 1) // m * m


def _shifted_softplus(x):
    # softplus(x) - log(2), numerically stable
    return (jnp.maximum(x, 0.0)
            + jnp.log1p(jnp.exp(-jnp.abs(x)))
            - jnp.log(2.0).astype(x.dtype))


def interaction_block_kernel(
    # --- scalar prefetch (SMEM) ---
    tile_ids_ref,           # [T] i32  node-tile id per edge tile (non-decreasing)
    firsts_ref,             # [T] i32  1 iff first edge tile of its node-tile group
    lasts_ref,              # [T] i32  1 iff last edge tile of its node-tile group
    # --- tiled / resident inputs ---
    src_ref,                # [E_blk, 1]  i32  source node per edge (-1 = padding)
    tgt_ref,                # [1, E_blk]  i32  LOCAL target index in node tile (-1 = padding)
    ef_ref,                 # [E_blk, Gp] cdt  [C*gauss | C | 0]   (cutoff prefolded)
    h_hbm_ref,              # [Np, Fp]    cdt  conv.input(x), all nodes (HBM; copied once)
    w_nn_ref,               # [Gp, Fp]    cdt  conv.nn weight, b_nn appended as row G
    w_out_ref, b_out_ref,   # [Fp, Hp] cdt, [1, Hp] f32   conv.output
    w_lin_ref, b_lin_ref,   # [Hp, Hp] cdt, [1, Hp] f32   final lin
    # --- output ---
    o_ref,                  # [n_blk, Hp] f32  output tile of the current node-tile group
    # --- scratch ---
    h_vmem,                 # [Np, Fp]    cdt  single-buffered resident copy of h
    agg_scr,                # [n_blk, Fp] f32  scatter-add accumulator
    h_sem,                  # DMA semaphore for the one-time h copy
    *, mxu_precision,
):
    ei = pl.program_id(0)
    cdt = h_vmem.dtype
    e_blk = src_ref.shape[0]
    n_all = h_vmem.shape[0]
    n_blk = agg_scr.shape[0]
    one = jnp.ones((), cdt)
    zero = jnp.zeros((), cdt)

    # One-time copy of h into a single-buffered VMEM resident (no double buffer).
    @pl.when(ei == 0)
    def _load_h():
        cp = pltpu.make_async_copy(h_hbm_ref, h_vmem, h_sem)
        cp.start()
        cp.wait()

    # Start of a new node-tile group: reset the accumulator.
    @pl.when(firsts_ref[ei] == 1)
    def _init():
        agg_scr[...] = jnp.zeros_like(agg_scr)

    # W = conv.nn(gauss) * C — cutoff and bias were folded into ef / w_nn.
    Wf = jnp.dot(ef_ref[...], w_nn_ref[...],
                 preferred_element_type=jnp.float32, precision=mxu_precision)

    # Gather x_j = h[src] via in-register one-hot contracted on the MXU.
    src = src_ref[...]                                           # [E_blk, 1]
    gather_oh = jnp.where(
        jax.lax.broadcasted_iota(jnp.int32, (e_blk, n_all), 1) == src, one, zero)
    x_j = jnp.dot(gather_oh, h_vmem[...],
                  preferred_element_type=jnp.float32, precision=mxu_precision)
    msg = x_j * Wf                                               # message(): x_j * W

    # aggr='add': scatter messages onto local targets of the current node tile.
    tgt = tgt_ref[...]                                           # [1, E_blk] local idx
    scat_oh = jnp.where(
        jax.lax.broadcasted_iota(jnp.int32, (n_blk, e_blk), 0) == tgt, one, zero)
    # NOTE: bf16 mode quantizes msg here (~1e-2 rel per message); for very
    # high-degree nodes use use_bf16=False (HIGHEST precision path).
    agg_scr[...] += jnp.dot(scat_oh, msg.astype(cdt),
                            preferred_element_type=jnp.float32,
                            precision=mxu_precision)

    # End of the group: conv.output -> ShiftedSoftplus -> lin, write the tile.
    @pl.when(lasts_ref[ei] == 1)
    def _finish():
        y = jnp.dot(agg_scr[...].astype(cdt), w_out_ref[...],
                    preferred_element_type=jnp.float32,
                    precision=mxu_precision) + b_out_ref[...]
        y = _shifted_softplus(y)
        out = jnp.dot(y.astype(cdt), w_lin_ref[...],
                      preferred_element_type=jnp.float32,
                      precision=mxu_precision) + b_lin_ref[...]
        o_ref[...] = out.astype(o_ref.dtype)


def interaction_block(x, edge_index, edge_attr, gauss_exp, params, cutoff,
                      *, use_bf16=True, e_block=512, n_block=256,
                      vmem_limit_bytes=48 * 1024 * 1024):
    """x: [N, H] f32; edge_index: [2, E] i32 (row 0 = source j, row 1 = target i);
    edge_attr: [E] f32 distances; gauss_exp: [E, G] f32."""
    N, H = x.shape
    E, G = gauss_exp.shape
    F_ = params["w_in"].shape[1]
    cdt = jnp.bfloat16 if use_bf16 else jnp.float32
    mxu_precision = None if use_bf16 else jax.lax.Precision.HIGHEST

    # Lane-dense padding of feature dims; +1 gaussian slot carries the cutoff C.
    Hp = _round_up(H, 128)
    Fp = _round_up(F_, 128)
    Gp = _round_up(G + 1, 128)
    Np = _round_up(N, n_block)
    n_tiles = Np // n_block
    E_blk = int(min(e_block, _round_up(max(E, 1), 128)))
    # Static upper bound on padded edge tiles: every node-tile group gets >= 1
    # tile (empty groups still emit their bias-only output) and wastes < 1 tile.
    T = n_tiles + pl.cdiv(E, E_blk)
    E_slots = T * E_blk

    # ---------------- plain-JAX packing / routing glue ----------------
    # conv.input hoisted out of the kernel (previously recomputed per node tile).
    h = x @ params["w_in"] + params["b_in"]                      # [N, F]
    h_p = jnp.zeros((Np, Fp), cdt).at[:N, :F_].set(h.astype(cdt))

    # Sort edges by target node tile so each group is a contiguous slot range.
    src_g = edge_index[0].astype(jnp.int32)
    tgt_g = edge_index[1].astype(jnp.int32)
    group = tgt_g // n_block
    order = jnp.argsort(group)
    src_s, tgt_s, grp_s = src_g[order], tgt_g[order], group[order]

    counts = jnp.zeros((n_tiles,), jnp.int32).at[grp_s].add(1)
    tiles_per = jnp.maximum(counts + (E_blk - 1), E_blk) // E_blk   # max(1, ceil(c/E_blk))
    tile_start = jnp.concatenate(
        [jnp.zeros((1,), jnp.int32), jnp.cumsum(tiles_per, dtype=jnp.int32)])
    edge_start = jnp.concatenate(
        [jnp.zeros((1,), jnp.int32), jnp.cumsum(counts, dtype=jnp.int32)])
    pos = jnp.arange(E, dtype=jnp.int32) - edge_start[grp_s]
    slot = tile_start[grp_s] * E_blk + pos                          # padded slot per edge

    # Cosine cutoff folded into the edge slab: columns [C*gauss | C | 0].
    C = 0.5 * (jnp.cos(edge_attr[order] * (jnp.pi / cutoff)) + 1.0)
    ef_rows = jnp.zeros((E, Gp), jnp.float32)
    ef_rows = ef_rows.at[:, :G].set(gauss_exp[order] * C[:, None])
    ef_rows = ef_rows.at[:, G].set(C)
    ef = jnp.zeros((E_slots, Gp), cdt).at[slot].set(ef_rows.astype(cdt))

    # Padded edges get -1 so they match no node (zero one-hot row / column).
    src_pad = jnp.full((E_slots, 1), -1, jnp.int32).at[slot, 0].set(src_s)
    tgt_loc = jnp.full((1, E_slots), -1, jnp.int32).at[0, slot].set(
        tgt_s - grp_s * n_block)

    # Per-edge-tile routing metadata (scalar-prefetched into SMEM).
    t_idx = jnp.arange(T, dtype=jnp.int32)
    tile_ids = jnp.clip(
        jnp.searchsorted(tile_start[1:], t_idx, side="right"),
        0, n_tiles - 1).astype(jnp.int32)
    n_used = tile_start[-1]
    firsts = ((t_idx == tile_start[tile_ids]) & (t_idx < n_used)).astype(jnp.int32)
    lasts = ((t_idx == tile_start[tile_ids + 1] - 1) & (t_idx < n_used)).astype(jnp.int32)

    def pad_w(w, r, c):
        return jnp.zeros((r, c), cdt).at[:w.shape[0], :w.shape[1]].set(w.astype(cdt))

    def pad_b(b, c):
        b = b.reshape(1, -1).astype(jnp.float32)
        return jnp.zeros((1, c), jnp.float32).at[:, :b.shape[1]].set(b)

    # conv.nn weight with its bias folded in as row G (multiplied by ef's C column).
    w_nn_aug = jnp.zeros((Gp, Fp), cdt)
    w_nn_aug = w_nn_aug.at[:G, :F_].set(params["w_nn"].astype(cdt))
    w_nn_aug = w_nn_aug.at[G, :F_].set(params["b_nn"].reshape(-1).astype(cdt))
    w_out, b_out = pad_w(params["w_out"], Fp, Hp), pad_b(params["b_out"], Hp)
    w_lin, b_lin = pad_w(params["w_lin"], Hp, Hp), pad_b(params["b_lin"], Hp)

    kernel = functools.partial(interaction_block_kernel, mxu_precision=mxu_precision)

    edge_row = lambda ei, tids, fr, ls: (ei, 0)
    edge_col = lambda ei, tids, fr, ls: (0, ei)
    const = lambda ei, tids, fr, ls: (0, 0)
    in_specs = [
        pl.BlockSpec((E_blk, 1), edge_row),            # src indices
        pl.BlockSpec((1, E_blk), edge_col),            # local tgt indices
        pl.BlockSpec((E_blk, Gp), edge_row),           # packed edge features
        pl.BlockSpec(memory_space=pl.ANY),             # h (copied once to VMEM)
        pl.BlockSpec((Gp, Fp), const),                 # conv.nn (+bias row)
        pl.BlockSpec((Fp, Hp), const), pl.BlockSpec((1, Hp), const),   # conv.output
        pl.BlockSpec((Hp, Hp), const), pl.BlockSpec((1, Hp), const),   # lin
    ]

    operands = (tile_ids, firsts, lasts,
                src_pad, tgt_loc, ef, h_p, w_nn_aug, w_out, b_out, w_lin, b_lin)
    nbytes = lambda a: a.size * a.dtype.itemsize
    cost = pl.CostEstimate(
        flops=int(2 * (T * E_blk * (Gp * Fp + Np * Fp + n_block * Fp)
                       + n_tiles * n_block * (Fp * Hp + Hp * Hp))),
        transcendentals=int(n_tiles * n_block * Hp),
        bytes_accessed=int(sum(nbytes(a) for a in operands) + Np * Hp * 4),
    )

    out_p = pl.pallas_call(
        kernel,
        out_shape=jax.ShapeDtypeStruct((Np, Hp), jnp.float32),
        grid_spec=pltpu.PrefetchScalarGridSpec(
            num_scalar_prefetch=3,
            grid=(T,),
            in_specs=in_specs,
            out_specs=pl.BlockSpec((n_block, Hp),
                                   lambda ei, tids, fr, ls: (tids[ei], 0)),
            scratch_shapes=[
                pltpu.VMEM((Np, Fp), cdt),                # resident h (single copy)
                pltpu.VMEM((n_block, Fp), jnp.float32),   # f32 scatter accumulator
                pltpu.SemaphoreType.DMA(()),              # one-time h copy semaphore
            ],
        ),
        compiler_params=pltpu.CompilerParams(
            # Output block index is data-dependent (revisited within a group),
            # so the single grid axis must be "arbitrary".
            dimension_semantics=("arbitrary",),
            vmem_limit_bytes=vmem_limit_bytes,
        ),
        cost_estimate=cost,
    )(*operands)
    return out_p[:N, :H]


def _reference(x, edge_index, edge_attr, gauss_exp, params, cutoff):
    h = x @ params["w_in"] + params["b_in"]
    C = 0.5 * (jnp.cos(edge_attr * jnp.pi / cutoff) + 1.0)
    Wf = (gauss_exp @ params["w_nn"] + params["b_nn"]) * C[:, None]
    x_j = h[edge_index[0]]
    msg = x_j * Wf
    agg = jnp.zeros_like(h).at[edge_index[1]].add(msg)
    y = agg @ params["w_out"] + params["b_out"]
    y = jax.nn.softplus(y) - jnp.log(2.0)
    return y @ params["w_lin"] + params["b_lin"]


if __name__ == "__main__":
    # small shapes consistent with the module
    N = 8            # nodes
    H = 32           # hidden_channels
    G = 16           # num_gaussians
    F_ = 32          # num_filters
    E = 16           # edges
    cutoff = 10.0

    key = jax.random.PRNGKey(0)
    keys = jax.random.split(key, 12)

    x = jax.random.normal(keys[0], (N, H), dtype=jnp.float32)
    edge_src = jax.random.randint(keys[1], (E,), 0, N, dtype=jnp.int32)
    edge_tgt = jax.random.randint(keys[2], (E,), 0, N, dtype=jnp.int32)
    edge_index = jnp.stack([edge_src, edge_tgt], axis=0)          # [2, E]
    edge_attr = jax.random.uniform(keys[3], (E,), dtype=jnp.float32) * cutoff
    gauss_exp = jax.random.normal(keys[4], (E, G), dtype=jnp.float32)

    def lin_init(k, fan_in, fan_out):
        bound = 1.0 / jnp.sqrt(fan_in)
        kw, kb = jax.random.split(k)
        w = jax.random.uniform(kw, (fan_in, fan_out), minval=-bound, maxval=bound,
                               dtype=jnp.float32)
        b = jax.random.uniform(kb, (1, fan_out), minval=-bound, maxval=bound,
                               dtype=jnp.float32)
        return w, b

    w_in, b_in = lin_init(keys[5], H, F_)      # conv.input
    w_nn, b_nn = lin_init(keys[6], G, F_)      # conv.nn[0]
    w_out, b_out = lin_init(keys[7], F_, H)    # conv.output
    w_lin, b_lin = lin_init(keys[8], H, H)     # lin

    params = dict(w_in=w_in, b_in=b_in, w_nn=w_nn, b_nn=b_nn,
                  w_out=w_out, b_out=b_out, w_lin=w_lin, b_lin=b_lin)

    ref = _reference(x, edge_index, edge_attr, gauss_exp, params, cutoff)

    # f32 mode (HIGHEST-precision dots): tight validation of the kernel structure.
    out_f32 = jax.block_until_ready(
        interaction_block(x, edge_index, edge_attr, gauss_exp, params, cutoff,
                          use_bf16=False))
    assert out_f32.shape == (N, H)
    assert jnp.allclose(out_f32, ref, atol=1e-4, rtol=1e-4), "f32 mismatch vs reference"

    # bf16 MXU operands / f32 accumulate: the fast path (looser tolerance).
    out_bf16 = jax.block_until_ready(
        interaction_block(x, edge_index, edge_attr, gauss_exp, params, cutoff,
                          use_bf16=True))
    assert out_bf16.shape == (N, H)
    assert jnp.allclose(out_bf16, ref, atol=5e-2, rtol=5e-2), "bf16 mismatch vs reference"

    print("KERNEL_OK")
</pallas_src>

<mosaic_0001>
module attributes {stable_mosaic.version = 11 : i64} {
  func.func @interaction_block_kernel(%arg0: i32, %arg1: memref<2xi32, #tpu.memory_space<smem>>, %arg2: memref<2xi32, #tpu.memory_space<smem>>, %arg3: memref<2xi32, #tpu.memory_space<smem>>, %arg4: memref<128x1xi32, #tpu.memory_space<vmem>>, %arg5: memref<1x128xi32, #tpu.memory_space<vmem>>, %arg6: memref<128x128xf32, #tpu.memory_space<vmem>>, %arg7: memref<256x128xf32, #tpu.memory_space<any>>, %arg8: memref<128x128xf32, #tpu.memory_space<vmem>>, %arg9: memref<128x128xf32, #tpu.memory_space<vmem>>, %arg10: memref<1x128xf32, #tpu.memory_space<vmem>>, %arg11: memref<128x128xf32, #tpu.memory_space<vmem>>, %arg12: memref<1x128xf32, #tpu.memory_space<vmem>>, %arg13: memref<256x128xf32, #tpu.memory_space<vmem>>, %arg14: memref<256x128xf32, #tpu.memory_space<vmem>>, %arg15: memref<256x128xf32, #tpu.memory_space<vmem>>, %arg16: memref<!tpu.dma_semaphore, #tpu.memory_space<semaphore_mem>>) attributes {dimension_semantics = [#tpu.dimension_semantics<arbitrary>], iteration_bounds = array<i64: 2>, scalar_prefetch = 3 : i64, scratch_operands = 3 : i64, tpu.core_type = #tpu.core_type<tc>, window_params = [{transform_indices = @transform_0, window_bounds = array<i64: 128, 1>}, {transform_indices = @transform_1, window_bounds = array<i64: 1, 128>}, {transform_indices = @transform_2, window_bounds = array<i64: 128, 128>}, {}, {pipeline_mode = #tpu.pipeline_mode<synchronous>, transform_indices = @transform_4, window_bounds = array<i64: 128, 128>}, {pipeline_mode = #tpu.pipeline_mode<synchronous>, transform_indices = @transform_5, window_bounds = array<i64: 128, 128>}, {pipeline_mode = #tpu.pipeline_mode<synchronous>, transform_indices = @transform_6, window_bounds = array<i64: 1, 128>}, {pipeline_mode = #tpu.pipeline_mode<synchronous>, transform_indices = @transform_7, window_bounds = array<i64: 128, 128>}, {pipeline_mode = #tpu.pipeline_mode<synchronous>, transform_indices = @transform_8, window_bounds = array<i64: 1, 128>}, {transform_indices = @transform_9, window_bounds = array<i64: 256, 128>}]} {
    %c0_i32 = arith.constant 0 : i32
    %0 = arith.cmpi eq, %arg0, %c0_i32 : i32
    %1 = arith.extui %0 : i1 to i32
    %c0_i32_0 = arith.constant 0 : i32
    %2 = arith.cmpi ne, %1, %c0_i32_0 : i32
    scf.if %2 {
      tpu.enqueue_dma source(%arg7 : memref<256x128xf32, #tpu.memory_space<any>>) target(%arg14 : memref<256x128xf32, #tpu.memory_space<vmem>>) target_semaphore(%arg16 : memref<!tpu.dma_semaphore, #tpu.memory_space<semaphore_mem>>)
      tpu.wait_dma2 semaphore(%arg16 : memref<!tpu.dma_semaphore, #tpu.memory_space<semaphore_mem>>) src(%arg7 : memref<256x128xf32, #tpu.memory_space<any>>) dst(%arg14 : memref<256x128xf32, #tpu.memory_space<vmem>>)
    } else {
    }
    %3 = arith.index_cast %arg0 : i32 to index
    %4 = memref.load %arg2[%3] : memref<2xi32, #tpu.memory_space<smem>>
    %c1_i32 = arith.constant 1 : i32
    %5 = arith.cmpi eq, %4, %c1_i32 : i32
    %6 = arith.extui %5 : i1 to i32
    %c0_i32_1 = arith.constant 0 : i32
    %7 = arith.cmpi ne, %6, %c0_i32_1 : i32
    scf.if %7 {
      %cst_23 = arith.constant 0.000000e+00 : f32
      %37 = vector.broadcast %cst_23 : f32 to vector<256x128xf32>
      %c0_24 = arith.constant 0 : index
      %c0_25 = arith.constant 0 : index
      %38 = vector.load %arg15[%c0_24, %c0_25] : memref<256x128xf32, #tpu.memory_space<vmem>>, vector<256x128xf32>
      tpu.vector_store %arg15[%c0_24, %c0_25], %37 {strides = array<i32>} : memref<256x128xf32, #tpu.memory_space<vmem>>, vector<256x128xf32>,
    } else {
    }
    %c0 = arith.constant 0 : index
    %c0_2 = arith.constant 0 : index
    %8 = vector.load %arg6[%c0, %c0_2] : memref<128x128xf32, #tpu.memory_space<vmem>>, vector<128x128xf32>
    %c0_3 = arith.constant 0 : index
    %c0_4 = arith.constant 0 : index
    %9 = vector.load %arg8[%c0_3, %c0_4] : memref<128x128xf32, #tpu.memory_space<vmem>>, vector<128x128xf32>
    %cst = arith.constant dense<0.000000e+00> : vector<128x128xf32>
    %10 = tpu.matmul %8, %9, %cst {dimension_numbers = #tpu.dot_dimension_numbers<[1], [0], [0], [1], [0, 0, 1, 1], [], []>, precision = #tpu.contract_precision<fp32>} : vector<128x128xf32>, vector<128x128xf32>, vector<128x128xf32> -> vector<128x128xf32>
    %c0_5 = arith.constant 0 : index
    %c0_6 = arith.constant 0 : index
    %11 = vector.load %arg4[%c0_5, %c0_6] : memref<128x1xi32, #tpu.memory_space<vmem>>, vector<128x1xi32>
    %12 = tpu.iota {dimensions = array<i32: 1>} : vector<128x256xi32>
    %13 = vector.broadcast %11 : vector<128x1xi32> to vector<128x256xi32>
    %14 = arith.cmpi eq, %12, %13 : vector<128x256xi32>
    %cst_7 = arith.constant 1.000000e+00 : f32
    %cst_8 = arith.constant 0.000000e+00 : f32
    %15 = vector.broadcast %cst_7 : f32 to vector<128x256xf32>
    %16 = vector.broadcast %cst_8 : f32 to vector<128x256xf32>
    %17 = arith.select %14, %15, %16 : vector<128x256xi1>, vector<128x256xf32>
    %c0_9 = arith.constant 0 : index
    %c0_10 = arith.constant 0 : index
    %18 = vector.load %arg14[%c0_9, %c0_10] : memref<256x128xf32, #tpu.memory_space<vmem>>, vector<256x128xf32>
    %cst_11 = arith.constant dense<0.000000e+00> : vector<128x128xf32>
    %19 = tpu.matmul %17, %18, %cst_11 {dimension_numbers = #tpu.dot_dimension_numbers<[1], [0], [0], [1], [0, 0, 1, 1], [], []>, precision = #tpu.contract_precision<fp32>} : vector<128x256xf32>, vector<256x128xf32>, vector<128x128xf32> -> vector<128x128xf32>
    %20 = arith.mulf %19, %10 : vector<128x128xf32>
    %c0_12 = arith.constant 0 : index
    %c0_13 = arith.constant 0 : index
    %21 = vector.load %arg5[%c0_12, %c0_13] : memref<1x128xi32, #tpu.memory_space<vmem>>, vector<1x128xi32>
    %22 = tpu.iota {dimensions = array<i32: 0>} : vector<256x128xi32>
    %23 = vector.broadcast %21 : vector<1x128xi32> to vector<256x128xi32>
    %24 = arith.cmpi eq, %22, %23 : vector<256x128xi32>
    %cst_14 = arith.constant 1.000000e+00 : f32
    %cst_15 = arith.constant 0.000000e+00 : f32
    %25 = vector.broadcast %cst_14 : f32 to vector<256x128xf32>
    %26 = vector.broadcast %cst_15 : f32 to vector<256x128xf32>
    %27 = arith.select %24, %25, %26 : vector<256x128xi1>, vector<256x128xf32>
    %c0_16 = arith.constant 0 : index
    %c0_17 = arith.constant 0 : index
    %28 = vector.load %arg15[%c0_16, %c0_17] : memref<256x128xf32, #tpu.memory_space<vmem>>, vector<256x128xf32>
    %cst_18 = arith.constant dense<0.000000e+00> : vector<256x128xf32>
    %29 = tpu.matmul %27, %20, %cst_18 {dimension_numbers = #tpu.dot_dimension_numbers<[1], [0], [0], [1], [0, 0, 1, 1], [], []>, precision = #tpu.contract_precision<fp32>} : vector<256x128xf32>, vector<128x128xf32>, vector<256x128xf32> -> vector<256x128xf32>
    %30 = arith.addf %28, %29 : vector<256x128xf32>
    %c0_19 = arith.constant 0 : index
    %c0_20 = arith.constant 0 : index
    %31 = vector.load %arg15[%c0_19, %c0_20] : memref<256x128xf32, #tpu.memory_space<vmem>>, vector<256x128xf32>
    tpu.vector_store %arg15[%c0_19, %c0_20], %30 {strides = array<i32>} : memref<256x128xf32, #tpu.memory_space<vmem>>, vector<256x128xf32>,
    %32 = arith.index_cast %arg0 : i32 to index
    %33 = memref.load %arg3[%32] : memref<2xi32, #tpu.memory_space<smem>>
    %c1_i32_21 = arith.constant 1 : i32
    %34 = arith.cmpi eq, %33, %c1_i32_21 : i32
    %35 = arith.extui %34 : i1 to i32
    %c0_i32_22 = arith.constant 0 : i32
    %36 = arith.cmpi ne, %35, %c0_i32_22 : i32
    scf.if %36 {
      %c0_23 = arith.constant 0 : index
      %c0_24 = arith.constant 0 : index
      %37 = vector.load %arg15[%c0_23, %c0_24] : memref<256x128xf32, #tpu.memory_space<vmem>>, vector<256x128xf32>
      %c0_25 = arith.constant 0 : index
      %c0_26 = arith.constant 0 : index
      %38 = vector.load %arg9[%c0_25, %c0_26] : memref<128x128xf32, #tpu.memory_space<vmem>>, vector<128x128xf32>
      %cst_27 = arith.constant dense<0.000000e+00> : vector<256x128xf32>
      %39 = tpu.matmul %37, %38, %cst_27 {dimension_numbers = #tpu.dot_dimension_numbers<[1], [0], [0], [1], [0, 0, 1, 1], [], []>, precision = #tpu.contract_precision<fp32>} : vector<256x128xf32>, vector<128x128xf32>, vector<256x128xf32> -> vector<256x128xf32>
      %c0_28 = arith.constant 0 : index
      %c0_29 = arith.constant 0 : index
      %40 = vector.load %arg10[%c0_28, %c0_29] : memref<1x128xf32, #tpu.memory_space<vmem>>, vector<1x128xf32>
      %41 = vector.broadcast %40 : vector<1x128xf32> to vector<256x128xf32>
      %42 = arith.addf %39, %41 : vector<256x128xf32>
      %cst_30 = arith.constant 0.000000e+00 : f32
      %43 = vector.broadcast %cst_30 : f32 to vector<256x128xf32>
      %44 = arith.maximumf %42, %43 : vector<256x128xf32>
      %45 = math.absf %42 : vector<256x128xf32>
      %cst_31 = arith.constant 0.000000e+00 : f32
      %46 = vector.broadcast %cst_31 : f32 to vector<256x128xf32>
      %47 = arith.subf %46, %45 : vector<256x128xf32>
      %48 = math.exp %47 : vector<256x128xf32>
      %49 = math.log1p %48 : vector<256x128xf32>
      %50 = arith.addf %44, %49 : vector<256x128xf32>
      %cst_32 = arith.constant 2.000000e+00 : f32
      %51 = math.log %cst_32 : f32
      %52 = vector.broadcast %51 : f32 to vector<256x128xf32>
      %53 = arith.subf %50, %52 : vector<256x128xf32>
      %c0_33 = arith.constant 0 : index
      %c0_34 = arith.constant 0 : index
      %54 = vector.load %arg11[%c0_33, %c0_34] : memref<128x128xf32, #tpu.memory_space<vmem>>, vector<128x128xf32>
      %cst_35 = arith.constant dense<0.000000e+00> : vector<256x128xf32>
      %55 = tpu.matmul %53, %54, %cst_35 {dimension_numbers = #tpu.dot_dimension_numbers<[1], [0], [0], [1], [0, 0, 1, 1], [], []>, precision = #tpu.contract_precision<fp32>} : vector<256x128xf32>, vector<128x128xf32>, vector<256x128xf32> -> vector<256x128xf32>
      %c0_36 = arith.constant 0 : index
      %c0_37 = arith.constant 0 : index
      %56 = vector.load %arg12[%c0_36, %c0_37] : memref<1x128xf32, #tpu.memory_space<vmem>>, vector<1x128xf32>
      %57 = vector.broadcast %56 : vector<1x128xf32> to vector<256x128xf32>
      %58 = arith.addf %55, %57 : vector<256x128xf32>
      %c0_38 = arith.constant 0 : index
      %c0_39 = arith.constant 0 : index
      %59 = vector.load %arg13[%c0_38, %c0_39] : memref<256x128xf32, #tpu.memory_space<vmem>>, vector<256x128xf32>
      tpu.vector_store %arg13[%c0_38, %c0_39], %58 {strides = array<i32>} : memref<256x128xf32, #tpu.memory_space<vmem>>, vector<256x128xf32>,
    } else {
    }
    return
  }
  func.func @transform_0(%arg0: i32, %arg1: memref<2xi32, #tpu.memory_space<smem>>, %arg2: memref<2xi32, #tpu.memory_space<smem>>, %arg3: memref<2xi32, #tpu.memory_space<smem>>) -> (i32, i32) {
    %c0_i32 = arith.constant 0 : i32
    %c0_i32_0 = arith.constant 0 : i32
    return %arg0, %c0_i32 : i32, i32
  }
  func.func @transform_1(%arg0: i32, %arg1: memref<2xi32, #tpu.memory_space<smem>>, %arg2: memref<2xi32, #tpu.memory_space<smem>>, %arg3: memref<2xi32, #tpu.memory_space<smem>>) -> (i32, i32) {
    %c0_i32 = arith.constant 0 : i32
    %c0_i32_0 = arith.constant 0 : i32
    return %c0_i32, %arg0 : i32, i32
  }
  func.func @transform_2(%arg0: i32, %arg1: memref<2xi32, #tpu.memory_space<smem>>, %arg2: memref<2xi32, #tpu.memory_space<smem>>, %arg3: memref<2xi32, #tpu.memory_space<smem>>) -> (i32, i32) {
    %c0_i32 = arith.constant 0 : i32
    %c0_i32_0 = arith.constant 0 : i32
    return %arg0, %c0_i32 : i32, i32
  }
  func.func @transform_4(%arg0: i32, %arg1: memref<2xi32, #tpu.memory_space<smem>>, %arg2: memref<2xi32, #tpu.memory_space<smem>>, %arg3: memref<2xi32, #tpu.memory_space<smem>>) -> (i32, i32) {
    %c0_i32 = arith.constant 0 : i32
    %c0_i32_0 = arith.constant 0 : i32
    %c0_i32_1 = arith.constant 0 : i32
    return %c0_i32, %c0_i32_0 : i32, i32
  }
  func.func @transform_5(%arg0: i32, %arg1: memref<2xi32, #tpu.memory_space<smem>>, %arg2: memref<2xi32, #tpu.memory_space<smem>>, %arg3: memref<2xi32, #tpu.memory_space<smem>>) -> (i32, i32) {
    %c0_i32 = arith.constant 0 : i32
    %c0_i32_0 = arith.constant 0 : i32
    %c0_i32_1 = arith.constant 0 : i32
    return %c0_i32, %c0_i32_0 : i32, i32
  }
  func.func @transform_6(%arg0: i32, %arg1: memref<2xi32, #tpu.memory_space<smem>>, %arg2: memref<2xi32, #tpu.memory_space<smem>>, %arg3: memref<2xi32, #tpu.memory_space<smem>>) -> (i32, i32) {
    %c0_i32 = arith.constant 0 : i32
    %c0_i32_0 = arith.constant 0 : i32
    %c0_i32_1 = arith.constant 0 : i32
    return %c0_i32, %c0_i32_0 : i32, i32
  }
  func.func @transform_7(%arg0: i32, %arg1: memref<2xi32, #tpu.memory_space<smem>>, %arg2: memref<2xi32, #tpu.memory_space<smem>>, %arg3: memref<2xi32, #tpu.memory_space<smem>>) -> (i32, i32) {
    %c0_i32 = arith.constant 0 : i32
    %c0_i32_0 = arith.constant 0 : i32
    %c0_i32_1 = arith.constant 0 : i32
    return %c0_i32, %c0_i32_0 : i32, i32
  }
  func.func @transform_8(%arg0: i32, %arg1: memref<2xi32, #tpu.memory_space<smem>>, %arg2: memref<2xi32, #tpu.memory_space<smem>>, %arg3: memref<2xi32, #tpu.memory_space<smem>>) -> (i32, i32) {
    %c0_i32 = arith.constant 0 : i32
    %c0_i32_0 = arith.constant 0 : i32
    %c0_i32_1 = arith.constant 0 : i32
    return %c0_i32, %c0_i32_0 : i32, i32
  }
  func.func @transform_9(%arg0: i32, %arg1: memref<2xi32, #tpu.memory_space<smem>>, %arg2: memref<2xi32, #tpu.memory_space<smem>>, %arg3: memref<2xi32, #tpu.memory_space<smem>>) -> (i32, i32) {
    %0 = arith.index_cast %arg0 : i32 to index
    %1 = memref.load %arg1[%0] : memref<2xi32, #tpu.memory_space<smem>>
    %c0_i32 = arith.constant 0 : i32
    %c0_i32_0 = arith.constant 0 : i32
    return %1, %c0_i32 : i32, i32
  }
}

</mosaic_0001>

<llo_original>
// kernel: tpu_custom_call.1
$region0: #{tpu_custom_call.1}
  #allocation0 [shape = 'u32[]', space=smem, size = 0x4, offset = 0x4, fixed_abs, tag = 'smem constant byte address 0x4 - core index']
  #allocation1 [shape = 'u32[144,128]{1,0:T(1,128)}', space=vmem, size = 0x12000, scoped, tag = 'internal scratch']
  #allocation2 [shape = 'f32[256,128]{1,0:T(8,128)}', space=vmem, size = 0x20000, scoped, tag = 'scratch operand']
  #allocation3 [shape = 'f32[256,128]{1,0:T(8,128)}', space=vmem, size = 0x20000, scoped, tag = 'scratch operand']
  #allocation4 [shape = 's32[1]{0}', space=sflag, size = 0x4, scoped, tag = 'scratch operand']
  #allocation5 [shape = 's32[1]{0}', space=sflag, size = 0x4, scoped, tag = 'scoped memory for tpu_custom_call.1']
  #allocation6 [shape = 'u8[512]{0}', space=smem, size = 0x200, scoped, tag = 'prefetched SMEM operand 0']
  #allocation7 [shape = 'u8[512]{0}', space=smem, size = 0x200, scoped, tag = 'prefetched SMEM operand 1']
  #allocation8 [shape = 'u8[512]{0}', space=smem, size = 0x200, scoped, tag = 'prefetched SMEM operand 2']
  #allocation16 [shape = 's32[]', space=sflag, size = 0x4, offset = 0, fixed_abs, tag = 'sflag constant byte address 0x0 - dummy sync flag']
  #allocation17 [shape = 's32[]', space=sflag, size = 0x4, offset = 0, fixed_abs, tag = 'sflag constant byte address 0x0 - dummy sync flag']
  #allocation18 [shape = 'u32[]', space=smem, size = 0x4, offset = 0x44, fixed_abs, tag = 'smem constant byte address 0x44 - assertion arg 0']
  #allocation19 [shape = 'u32[]', space=smem, size = 0x4, offset = 0x48, fixed_abs, tag = 'smem constant byte address 0x48 - assertion arg 1']
  %s0 = inlined_call_operand.vmem [shape: s32[2], index: 0, kind: input, shape index: {}]
  %s1 = inlined_call_operand.vmem [shape: s32[2], index: 1, kind: input, shape index: {}]
  %s2 = inlined_call_operand.vmem [shape: s32[2], index: 2, kind: input, shape index: {}]
  %s3 = inlined_call_operand.vmem [shape: s32[256,1], index: 3, kind: input, shape index: {}]
  %s4 = inlined_call_operand.vmem [shape: s32[1,256], index: 4, kind: input, shape index: {}]
  %s5 = inlined_call_operand.vmem [shape: f32[256,128], index: 5, kind: input, shape index: {}]
  %s6 = inlined_call_operand.hbm [shape: f32[256,128], index: 6, kind: input, shape index: {}]
  %s7 = inlined_call_operand.hbm [shape: f32[128,128], index: 7, kind: input, shape index: {}]
  %s8 = inlined_call_operand.hbm [shape: f32[128,128], index: 8, kind: input, shape index: {}]
  %s9 = inlined_call_operand.vmem [shape: f32[1,128], index: 9, kind: input, shape index: {}]
  %s10 = inlined_call_operand.hbm [shape: f32[128,128], index: 10, kind: input, shape index: {}]
  %s11 = inlined_call_operand.vmem [shape: f32[1,128], index: 11, kind: input, shape index: {}]
  %s12 = inlined_call_operand.hbm [shape: f32[256,128], index: 12, kind: output, shape index: {}]
  %s13 = sld [smem:[#allocation0]]
  $region93: #{tpu_custom_call.1} parent=0
    _
  %s15 = ssub.s32 1, %s13
  %s16 = scalar_select 0, %s15, %s13
  %s17 = sshll.u32 %s0, 4
  %s18 = int_to_ptr.vmem [resolvable:$true] %s17
  %20 = dma.vmem_to_smem %s18, 16, [#allocation6], [#allocation5]
  %s21 = sshll.u32 %s1, 4
  %s22 = int_to_ptr.vmem [resolvable:$true] %s21
  %24 = dma.vmem_to_smem %s22, 16, [#allocation7], [#allocation5]
  %s25 = sshll.u32 %s2, 4
  %s26 = int_to_ptr.vmem [resolvable:$true] %s25
  %28 = dma.vmem_to_smem %s26, 16, [#allocation8], [#allocation5]
  %29 = dma.done [#allocation5], 48
  %30 = sfence
  $region1: #{tpu_custom_call.1} parent=0
    #allocation9 [shape = 'u8[65536]{0}', space=vmem, size = 0x10000, scoped, tag = 'input window, operand 7, single buffered']
    #allocation10 [shape = 's32[2]{0}', space=sflag, size = 0x8, scoped, tag = 'scoped memory for tpu_custom_call.1']
    #allocation11 [shape = 's32[2]{0}', space=sflag, size = 0x8, scoped, tag = 'scoped memory for tpu_custom_call.1']
    #allocation12 [shape = 'u8[65536]{0}', space=vmem, size = 0x10000, scoped, tag = 'input window, operand 8, single buffered']
    #allocation13 [shape = 's32[1]{0}', space=sflag, size = 0x4, scoped, tag = 'scoped memory for tpu_custom_call.1']
    #allocation14 [shape = 'u8[65536]{0}', space=vmem, size = 0x10000, scoped, tag = 'input window, operand 10, single buffered']
    #allocation15 [shape = 'u8[262144]{0}', space=vmem, size = 0x40000, scoped, tag = 'output window, operand 0']
    %31 = vsyncpa [#allocation10], 0
    %32 = vsyncpa [#allocation13], 0
    %33 = vsyncpa [#allocation11], 0
    %s34 = scalar_lea.sflag [#allocation11], 1
    %35 = vsyncpa %s34, 0
    loop: start=0, step=1, limit=4
    $region2: #{tpu_custom_call.1} parent=1 // loop_pre_header
      _
    $region3: #{tpu_custom_call.1} parent=1 // loop_header
      %s37 = sphi 0, %s41
      %p38 = scmp.ge.s32.totalorder %s37, 4
      %s47 = sphi 0, %s49
      %s50 = sphi 0, %s47
      %s51 = sphi 0, %s50
      %s67 = sphi 0, %s51
      %s73 = sphi 0, %s75
      %s76 = sphi 0, %s73
      %s77 = sphi 0, %s76
      %s93 = sphi 0, %s77
      %s99 = sphi 0, %s101
      %s102 = sphi 0, %s99
      %s103 = sphi 0, %s102
      %s119 = sphi 0, %s103
      %s123 = sphi 0, %s123
      %s125 = sphi 0, %s123
      %s126 = sphi 0, %s125
      %s140 = sphi 0, %s126
      %s144 = sphi 0, %s144
      %s146 = sphi 0, %s144
      %s147 = sphi 0, %s146
      %s161 = sphi 0, %s147
      %s165 = sphi 0, %s165
      %s167 = sphi 0, %s165
      %s168 = sphi 0, %s167
      %s182 = sphi 0, %s168
      %s186 = sphi 0, %s186
      %s188 = sphi 0, %s186
      %s189 = sphi 0, %s188
      %s203 = sphi 0, %s189
      %s207 = sphi 0, %s207
      %s209 = sphi 0, %s207
      %s210 = sphi 0, %s209
      %s224 = sphi 0, %s210
      %s232 = sphi 0, %s234
      %s235 = sphi 0, %s232
      %s236 = sphi 0, %s235
      %s252 = sphi 0, %s236
    $region4: #{tpu_custom_call.1} parent=1 // loop_header_branch
      %40 = sbr.rel (%p38) target = $region8
    $region5: #{tpu_custom_call.1} parent=1 // loop_body
      %s42 = ssub.s32 %s37, 1
      %s43 = ssub.s32 %s37, 2
      %s44 = sadd.s32 %s37, 1
      %s45 = ssub.s32 %s37, %s44
      %p46 = scmp.eq.s32.totalorder %s45, 0
      %s48 = sadd.s32 %s47, 1
      %s49 = scalar_select %p46, %s47, %s48
      %p52 = pneg %p46
      %p53 = scmp.eq.s32.totalorder %s37, 1
      %p54 = por %p52, %p53
      %p55 = scmp.ne.s32.totalorder %s47, %s50
      %p56 = scmp.eq.s32.totalorder %s37, 0
      %p57 = por %p55, %p56
      %p58 = scmp.ne.s32.totalorder %s47, %s50
      %p59 = scmp.eq.s32.totalorder %s42, 1
      %p60 = por %p58, %p59
      %p61 = scmp.ne.s32.totalorder %s50, %s51
      %p62 = scmp.eq.s32.totalorder %s42, 0
      %p63 = por %p61, %p62
      %p64 = scmp.ne.s32.totalorder %s50, %s51
      %p65 = scmp.eq.s32.totalorder %s43, 1
      %p66 = por %p64, %p65
      %p68 = scmp.ne.s32.totalorder %s51, %s67
      %p69 = scmp.eq.s32.totalorder %s43, 0
      %p70 = por %p68, %p69
      %s71 = ssub.s32 %s37, %s44
      %p72 = scmp.eq.s32.totalorder %s71, 0
      %s74 = sadd.s32 %s73, 1
      %s75 = scalar_select %p72, %s73, %s74
      %p78 = pneg %p72
      %p79 = scmp.eq.s32.totalorder %s37, 1
      %p80 = por %p78, %p79
      %p81 = scmp.ne.s32.totalorder %s73, %s76
      %p82 = scmp.eq.s32.totalorder %s37, 0
      %p83 = por %p81, %p82
      %p84 = scmp.ne.s32.totalorder %s73, %s76
      %p85 = scmp.eq.s32.totalorder %s42, 1
      %p86 = por %p84, %p85
      %p87 = scmp.ne.s32.totalorder %s76, %s77
      %p88 = scmp.eq.s32.totalorder %s42, 0
      %p89 = por %p87, %p88
      %p90 = scmp.ne.s32.totalorder %s76, %s77
      %p91 = scmp.eq.s32.totalorder %s43, 1
      %p92 = por %p90, %p91
      %p94 = scmp.ne.s32.totalorder %s77, %s93
      %p95 = scmp.eq.s32.totalorder %s43, 0
      %p96 = por %p94, %p95
      %s97 = ssub.s32 %s37, %s44
      %p98 = scmp.eq.s32.totalorder %s97, 0
      %s100 = sadd.s32 %s99, 1
      %s101 = scalar_select %p98, %s99, %s100
      %p104 = pneg %p98
      %p105 = scmp.eq.s32.totalorder %s37, 1
      %p106 = por %p104, %p105
      %p107 = scmp.ne.s32.totalorder %s99, %s102
      %p108 = scmp.eq.s32.totalorder %s37, 0
      %p109 = por %p107, %p108
      %p110 = scmp.ne.s32.totalorder %s99, %s102
      %p111 = scmp.eq.s32.totalorder %s42, 1
      %p112 = por %p110, %p111
      %p113 = scmp.ne.s32.totalorder %s102, %s103
      %p114 = scmp.eq.s32.totalorder %s42, 0
      %p115 = por %p113, %p114
      %p116 = scmp.ne.s32.totalorder %s102, %s103
      %p117 = scmp.eq.s32.totalorder %s43, 1
      %p118 = por %p116, %p117
      %p120 = scmp.ne.s32.totalorder %s103, %s119
      %p121 = scmp.eq.s32.totalorder %s43, 0
      %p122 = por %p120, %p121
      %s124 = sadd.s32 %s123, 1
      %p127 = scmp.eq.s32.totalorder %s37, 1
      %p128 = scmp.ne.s32.totalorder %s123, %s125
      %p129 = scmp.eq.s32.totalorder %s37, 0
      %p130 = por %p128, %p129
      %p131 = scmp.ne.s32.totalorder %s123, %s125
      %p132 = scmp.eq.s32.totalorder %s42, 1
      %p133 = por %p131, %p132
      %p134 = scmp.ne.s32.totalorder %s125, %s126
      %p135 = scmp.eq.s32.totalorder %s42, 0
      %p136 = por %p134, %p135
      %p137 = scmp.ne.s32.totalorder %s125, %s126
      %p138 = scmp.eq.s32.totalorder %s43, 1
      %p139 = por %p137, %p138
      %p141 = scmp.ne.s32.totalorder %s126, %s140
      %p142 = scmp.eq.s32.totalorder %s43, 0
      %p143 = por %p141, %p142
      %s145 = sadd.s32 %s144, 1
      %p148 = scmp.eq.s32.totalorder %s37, 1
      %p149 = scmp.ne.s32.totalorder %s144, %s146
      %p150 = scmp.eq.s32.totalorder %s37, 0
      %p151 = por %p149, %p150
      %p152 = scmp.ne.s32.totalorder %s144, %s146
      %p153 = scmp.eq.s32.totalorder %s42, 1
      %p154 = por %p152, %p153
      %p155 = scmp.ne.s32.totalorder %s146, %s147
      %p156 = scmp.eq.s32.totalorder %s42, 0
      %p157 = por %p155, %p156
      %p158 = scmp.ne.s32.totalorder %s146, %s147
      %p159 = scmp.eq.s32.totalorder %s43, 1
      %p160 = por %p158, %p159
      %p162 = scmp.ne.s32.totalorder %s147, %s161
      %p163 = scmp.eq.s32.totalorder %s43, 0
      %p164 = por %p162, %p163
      %s166 = sadd.s32 %s165, 1
      %p169 = scmp.eq.s32.totalorder %s37, 1
      %p170 = scmp.ne.s32.totalorder %s165, %s167
      %p171 = scmp.eq.s32.totalorder %s37, 0
      %p172 = por %p170, %p171
      %p173 = scmp.ne.s32.totalorder %s165, %s167
      %p174 = scmp.eq.s32.totalorder %s42, 1
      %p175 = por %p173, %p174
      %p176 = scmp.ne.s32.totalorder %s167, %s168
      %p177 = scmp.eq.s32.totalorder %s42, 0
      %p178 = por %p176, %p177
      %p179 = scmp.ne.s32.totalorder %s167, %s168
      %p180 = scmp.eq.s32.totalorder %s43, 1
      %p181 = por %p179, %p180
      %p183 = scmp.ne.s32.totalorder %s168, %s182
      %p184 = scmp.eq.s32.totalorder %s43, 0
      %p185 = por %p183, %p184
      %s187 = sadd.s32 %s186, 1
      %p190 = scmp.eq.s32.totalorder %s37, 1
      %p191 = scmp.ne.s32.totalorder %s186, %s188
      %p192 = scmp.eq.s32.totalorder %s37, 0
      %p193 = por %p191, %p192
      %p194 = scmp.ne.s32.totalorder %s186, %s188
      %p195 = scmp.eq.s32.totalorder %s42, 1
      %p196 = por %p194, %p195
      %p197 = scmp.ne.s32.totalorder %s188, %s189
      %p198 = scmp.eq.s32.totalorder %s42, 0
      %p199 = por %p197, %p198
      %p200 = scmp.ne.s32.totalorder %s188, %s189
      %p201 = scmp.eq.s32.totalorder %s43, 1
      %p202 = por %p200, %p201
      %p204 = scmp.ne.s32.totalorder %s189, %s203
      %p205 = scmp.eq.s32.totalorder %s43, 0
      %p206 = por %p204, %p205
      %s208 = sadd.s32 %s207, 1
      %p211 = scmp.eq.s32.totalorder %s37, 1
      %p212 = scmp.ne.s32.totalorder %s207, %s209
      %p213 = scmp.eq.s32.totalorder %s37, 0
      %p214 = por %p212, %p213
      %p215 = scmp.ne.s32.totalorder %s207, %s209
      %p216 = scmp.eq.s32.totalorder %s42, 1
      %p217 = por %p215, %p216
      %p218 = scmp.ne.s32.totalorder %s209, %s210
      %p219 = scmp.eq.s32.totalorder %s42, 0
      %p220 = por %p218, %p219
      %p221 = scmp.ne.s32.totalorder %s209, %s210
      %p222 = scmp.eq.s32.totalorder %s43, 1
      %p223 = por %p221, %p222
      %p225 = scmp.ne.s32.totalorder %s210, %s224
      %p226 = scmp.eq.s32.totalorder %s43, 0
      %p227 = por %p225, %p226
      %s228 = sld [smem:[#allocation6 + %s37]]
      %s229 = sld [smem:[#allocation6 + %s44]]
      %s230 = ssub.s32 %s228, %s229
      %p231 = scmp.eq.s32.totalorder %s230, 0
      %s233 = sadd.s32 %s232, 1
      %s234 = scalar_select %p231, %s232, %s233
      %p237 = pneg %p231
      %p238 = scmp.eq.s32.totalorder %s37, 1
      %p239 = por %p237, %p238
      %p240 = scmp.ne.s32.totalorder %s232, %s235
      %p241 = scmp.eq.s32.totalorder %s37, 0
      %p242 = por %p240, %p241
      %p243 = scmp.ne.s32.totalorder %s232, %s235
      %p244 = scmp.eq.s32.totalorder %s42, 1
      %p245 = por %p243, %p244
      %p246 = scmp.ne.s32.totalorder %s235, %s236
      %p247 = scmp.eq.s32.totalorder %s42, 0
      %p248 = por %p246, %p247
      %p249 = scmp.ne.s32.totalorder %s235, %s236
      %p250 = scmp.eq.s32.totalorder %s43, 1
      %p251 = por %p249, %p250
      %p253 = scmp.ne.s32.totalorder %s236, %s252
      %p254 = scmp.eq.s32.totalorder %s43, 0
      %p255 = por %p253, %p254
      %p256 = scmp.le.s32.totalorder 1, %s37
      %p257 = scmp.lt.s32.totalorder %s37, 3
      %p258 = pnand %p256, %p257
      %p259 = pneg %p258
      // Predicated region
      $region9: #{tpu_custom_call.1} parent=5 // pred_check
        _
      $region10: #{tpu_custom_call.1} parent=5 // pred_check_branch
        %261 = sbr.rel (%p258) target = $region12
      $region11: #{tpu_custom_call.1} parent=5 // pred_region
        %s262 = ssub.s32 %s37, 1
        // Predicated region
        $region13: #{tpu_custom_call.1} parent=11 // pred_check
          %p263 = pneg %p136
        $region14: #{tpu_custom_call.1} parent=11 // pred_check_branch
          %265 = sbr.rel (%p263) target = $region16
        $region15: #{tpu_custom_call.1} parent=11 // pred_region
          %s267 = ssub.s32 2048, 2048
          %268 = vsyncadd [#allocation10], %s267
          %s269 = sshll.u32 [#allocation9], 4
          %s270 = int_to_ptr.vmem [resolvable:$true] %s269
          %275 = dma.hbm_to_vmem [thread:$0]  %s7, 2048, %s270, [#allocation10], 128, 128, 8
        $region16: #{tpu_custom_call.1} parent=11 // pred_fallthru
          _
        // Predicated region
        $region17: #{tpu_custom_call.1} parent=11 // pred_check
          %p276 = pneg %p157
        $region18: #{tpu_custom_call.1} parent=11 // pred_check_branch
          %278 = sbr.rel (%p276) target = $region20
        $region19: #{tpu_custom_call.1} parent=11 // pred_region
          %s280 = ssub.s32 2048, 2048
          %281 = vsyncadd [#allocation13], %s280
          %s282 = sshll.u32 [#allocation12], 4
          %s283 = int_to_ptr.vmem [resolvable:$true] %s282
          %288 = dma.hbm_to_vmem [thread:$0]  %s8, 2048, %s283, [#allocation13], 128, 128, 8
        $region20: #{tpu_custom_call.1} parent=11 // pred_fallthru
          _
        // Predicated region
        $region21: #{tpu_custom_call.1} parent=11 // pred_check
          %p289 = pneg %p178
        $region22: #{tpu_custom_call.1} parent=11 // pred_check_branch
          %291 = sbr.rel (%p289) target = $region24
        $region23: #{tpu_custom_call.1} parent=11 // pred_region
          _
        $region24: #{tpu_custom_call.1} parent=11 // pred_fallthru
          _
        // Predicated region
        $region25: #{tpu_custom_call.1} parent=11 // pred_check
          %p292 = pneg %p199
        $region26: #{tpu_custom_call.1} parent=11 // pred_check_branch
          %294 = sbr.rel (%p292) target = $region28
        $region27: #{tpu_custom_call.1} parent=11 // pred_region
          %s296 = ssub.s32 2048, 2048
          %297 = vsyncadd [#allocation13], %s296
          %s298 = sshll.u32 [#allocation14], 4
          %s299 = int_to_ptr.vmem [resolvable:$true] %s298
          %304 = dma.hbm_to_vmem [thread:$0]  %s10, 2048, %s299, [#allocation13], 128, 128, 8
        $region28: #{tpu_custom_call.1} parent=11 // pred_fallthru
          _
        // Predicated region
        $region29: #{tpu_custom_call.1} parent=11 // pred_check
          %p305 = pneg %p220
        $region30: #{tpu_custom_call.1} parent=11 // pred_check_branch
          %307 = sbr.rel (%p305) target = $region32
        $region31: #{tpu_custom_call.1} parent=11 // pred_region
          _
        $region32: #{tpu_custom_call.1} parent=11 // pred_fallthru
          _
      $region12: #{tpu_custom_call.1} parent=5 // pred_fallthru
        _
      %p308 = scmp.lt.s32.totalorder %s37, 2
      // Predicated region
      $region33: #{tpu_custom_call.1} parent=5 // pred_check
        %p309 = pneg %p308
      $region34: #{tpu_custom_call.1} parent=5 // pred_check_branch
        %311 = sbr.rel (%p309) target = $region36
      $region35: #{tpu_custom_call.1} parent=5 // pred_region
        // Predicated region
        $region37: #{tpu_custom_call.1} parent=35 // pred_check
          %p312 = pneg %p57
        $region38: #{tpu_custom_call.1} parent=35 // pred_check_branch
          %314 = sbr.rel (%p312) target = $region40
        $region39: #{tpu_custom_call.1} parent=35 // pred_region
          %s315 = smul.u32 16, %s37
          %p316 = scmp.lt.s32.totalorder %s315, 31
          %s317 = scalar_select %p316, %s315, 31
          %s318 = smul.addr %s317, 8
          %s319 = scalar_lea.vmem %s3, %s318
          %s320 = smul.u32 16, %s37
        $region40: #{tpu_custom_call.1} parent=35 // pred_fallthru
          _
        // Predicated region
        $region41: #{tpu_custom_call.1} parent=35 // pred_check
          %p321 = pneg %p83
        $region42: #{tpu_custom_call.1} parent=35 // pred_check_branch
          %323 = sbr.rel (%p321) target = $region44
        $region43: #{tpu_custom_call.1} parent=35 // pred_region
          %p324 = scmp.lt.s32.totalorder %s37, 1
          %s325 = scalar_select %p324, %s37, 1
          %s326 = scalar_lea.vmem %s4, %s325
        $region44: #{tpu_custom_call.1} parent=35 // pred_fallthru
          _
        // Predicated region
        $region45: #{tpu_custom_call.1} parent=35 // pred_check
          %p327 = pneg %p109
        $region46: #{tpu_custom_call.1} parent=35 // pred_check_branch
          %329 = sbr.rel (%p327) target = $region48
        $region47: #{tpu_custom_call.1} parent=35 // pred_region
          %s330 = smul.u32 16, %s37
          %p331 = scmp.lt.s32.totalorder %s330, 31
          %s332 = scalar_select %p331, %s330, 31
          %s333 = smul.addr %s332, 8
          %s334 = scalar_lea.vmem %s5, %s333
          %s335 = smul.u32 16, %s37
        $region48: #{tpu_custom_call.1} parent=35 // pred_fallthru
          _
      $region36: #{tpu_custom_call.1} parent=5 // pred_fallthru
        _
      %p336 = scmp.le.s32.totalorder 1, %s37
      %p337 = scmp.lt.s32.totalorder %s37, 3
      %p338 = pnand %p336, %p337
      %p339 = pneg %p338
      // Predicated region
      $region49: #{tpu_custom_call.1} parent=5 // pred_check
        _
      $region50: #{tpu_custom_call.1} parent=5 // pred_check_branch
        %341 = sbr.rel (%p338) target = $region52
      $region51: #{tpu_custom_call.1} parent=5 // pred_region
        %s342 = ssub.s32 %s37, 1
        // Predicated region
        $region53: #{tpu_custom_call.1} parent=51 // pred_check
          %p343 = pneg %p136
        $region54: #{tpu_custom_call.1} parent=51 // pred_check_branch
          %345 = sbr.rel (%p343) target = $region56
        $region55: #{tpu_custom_call.1} parent=51 // pred_region
          %346 = dma.done [#allocation10], 2048
        $region56: #{tpu_custom_call.1} parent=51 // pred_fallthru
          _
        // Predicated region
        $region57: #{tpu_custom_call.1} parent=51 // pred_check
          %p347 = pneg %p157
        $region58: #{tpu_custom_call.1} parent=51 // pred_check_branch
          %349 = sbr.rel (%p347) target = $region60
        $region59: #{tpu_custom_call.1} parent=51 // pred_region
          %350 = dma.done [#allocation13], 2048
        $region60: #{tpu_custom_call.1} parent=51 // pred_fallthru
          _
        // Predicated region
        $region61: #{tpu_custom_call.1} parent=51 // pred_check
          %p351 = pneg %p199
        $region62: #{tpu_custom_call.1} parent=51 // pred_check_branch
          %353 = sbr.rel (%p351) target = $region64
        $region63: #{tpu_custom_call.1} parent=51 // pred_region
          %354 = dma.done [#allocation13], 2048
        $region64: #{tpu_custom_call.1} parent=51 // pred_fallthru
          _
        %s355 = smul.u32 16, %s42
        %p356 = scmp.lt.s32.totalorder %s355, 31
        %s357 = scalar_select %p356, %s355, 31
        %s358 = smul.addr %s357, 8
        %s359 = scalar_lea.vmem %s3, %s358
        %p360 = pneg %p63
        %p361 = pneg %p60
        %p362 = scmp.lt.s32.totalorder %s42, 1
        %s363 = scalar_select %p362, %s42, 1
        %s364 = scalar_lea.vmem %s4, %s363
        %p365 = pneg %p89
        %p366 = pneg %p86
        %s367 = smul.u32 16, %s42
        %p368 = scmp.lt.s32.totalorder %s367, 31
        %s369 = scalar_select %p368, %s367, 31
        %s370 = smul.addr %s369, 8
        %s371 = scalar_lea.vmem %s5, %s370
        %p372 = pneg %p115
        %p373 = pneg %p112
        %p374 = pneg %p136
        %p375 = pneg %p133
        %p376 = pneg %p157
        %p377 = pneg %p154
        %p378 = pneg %p178
        %p379 = pneg %p175
        %p380 = pneg %p199
        %p381 = pneg %p196
        %p382 = pneg %p220
        %p383 = pneg %p217
        %p384 = pneg %p248
        %p385 = pneg %p245
        %s386 = sand.u32 %s235, 1
        %s387 = scalar_lea.sflag [#allocation11], %s386
        %s388 = sand.u32 %s235, 1
        %s389 = smul.addr %s388, 256
        %s390 = scalar_lea.vmem [#allocation15], %s389
        %s391 = smul.u32 16, %s42
        %p392 = scmp.lt.s32.totalorder %s391, 31
        %s393 = scalar_select %p392, %s391, 31
        %s394 = smul.addr %s393, 8
        %s395 = scalar_lea.vmem %s3, %s394
        %s396 = smul.u32 16, %s42
        %p397 = scmp.lt.s32.totalorder %s42, 1
        %s398 = scalar_select %p397, %s42, 1
        %s399 = scalar_lea.vmem %s4, %s398
        %s400 = smul.u32 16, %s42
        %p401 = scmp.lt.s32.totalorder %s400, 31
        %s402 = scalar_select %p401, %s400, 31
        %s403 = smul.addr %s402, 8
        %s404 = scalar_lea.vmem %s5, %s403
        %s405 = smul.u32 16, %s42
        %s406 = sld [smem:[#allocation6 + %s42]]
        %s407 = smul.u32 32, %s406
        %p408 = scmp.eq.s32.totalorder %s42, 0
        // Predicated region
        $region65: #{tpu_custom_call.1} parent=51 // pred_check
          %p409 = pneg %p408
        $region66: #{tpu_custom_call.1} parent=51 // pred_check_branch
          %411 = sbr.rel (%p409) target = $region68
        $region67: #{tpu_custom_call.1} parent=51 // pred_region
          // Predicated region
          $region69: #{tpu_custom_call.1} parent=67 // pred_check
            _
          $region70: #{tpu_custom_call.1} parent=67 // pred_check_branch
            %413 = sbr.rel target = $region72
          $region71: #{tpu_custom_call.1} parent=67 // pred_region
            %414 = sst [smem:[#allocation18]] [#allocation17]
            %415 = sst [smem:[#allocation19]] [#allocation16]
          $region72: #{tpu_custom_call.1} parent=67 // pred_fallthru
            _
          %417 = shalt.err (0)
          %s419 = sshll.u32 [#allocation2], 4
          %s420 = int_to_ptr.vmem [resolvable:$true] %s419
          %422 = dma.hbm_to_vmem [thread:$0]  %s6, 4096, %s420, [#allocation4]
          %s423 = smul.u32 256, 1
          %s424 = sshll.u32 %s423, 4
          %425 = dma.done [#allocation4], %s424
        $region68: #{tpu_custom_call.1} parent=51 // pred_fallthru
          _
        %s426 = sld [smem:[#allocation7 + %s42]]
        %p427 = scmp.eq.s32.totalorder %s426, 1
        // Predicated region
        $region73: #{tpu_custom_call.1} parent=51 // pred_check
          %p428 = pneg %p427
        $region74: #{tpu_custom_call.1} parent=51 // pred_check_branch
          %430 = sbr.rel (%p428) target = $region76
        $region75: #{tpu_custom_call.1} parent=51 // pred_region
          %431 = vst [vmem:[#allocation3] sm:$0xff] 0.0
          %432 = vst [vmem:[#allocation3 + $0x8] sm:$0xff] 0.0
          %433 = vst [vmem:[#allocation3 + $0x10] sm:$0xff] 0.0
          %434 = vst [vmem:[#allocation3 + $0x18] sm:$0xff] 0.0
          %435 = vst [vmem:[#allocation3 + $0x20] sm:$0xff] 0.0
          %436 = vst [vmem:[#allocation3 + $0x28] sm:$0xff] 0.0
          %437 = vst [vmem:[#allocation3 + $0x30] sm:$0xff] 0.0
          %438 = vst [vmem:[#allocation3 + $0x38] sm:$0xff] 0.0
          %439 = vst [vmem:[#allocation3 + $0x40] sm:$0xff] 0.0
          %440 = vst [vmem:[#allocation3 + $0x48] sm:$0xff] 0.0
          %441 = vst [vmem:[#allocation3 + $0x50] sm:$0xff] 0.0
          %442 = vst [vmem:[#allocation3 + $0x58] sm:$0xff] 0.0
          %443 = vst [vmem:[#allocation3 + $0x60] sm:$0xff] 0.0
          %444 = vst [vmem:[#allocation3 + $0x68] sm:$0xff] 0.0
          %445 = vst [vmem:[#allocation3 + $0x70] sm:$0xff] 0.0
          %446 = vst [vmem:[#allocation3 + $0x78] sm:$0xff] 0.0
          %447 = vst [vmem:[#allocation3 + $0x80] sm:$0xff] 0.0
          %448 = vst [vmem:[#allocation3 + $0x88] sm:$0xff] 0.0
          %449 = vst [vmem:[#allocation3 + $0x90] sm:$0xff] 0.0
          %450 = vst [vmem:[#allocation3 + $0x98] sm:$0xff] 0.0
          %451 = vst [vmem:[#allocation3 + $0xa0] sm:$0xff] 0.0
          %452 = vst [vmem:[#allocation3 + $0xa8] sm:$0xff] 0.0
          %453 = vst [vmem:[#allocation3 + $0xb0] sm:$0xff] 0.0
          %454 = vst [vmem:[#allocation3 + $0xb8] sm:$0xff] 0.0
          %455 = vst [vmem:[#allocation3 + $0xc0] sm:$0xff] 0.0
          %456 = vst [vmem:[#allocation3 + $0xc8] sm:$0xff] 0.0
          %457 = vst [vmem:[#allocation3 + $0xd0] sm:$0xff] 0.0
          %458 = vst [vmem:[#allocation3 + $0xd8] sm:$0xff] 0.0
          %459 = vst [vmem:[#allocation3 + $0xe0] sm:$0xff] 0.0
          %460 = vst [vmem:[#allocation3 + $0xe8] sm:$0xff] 0.0
          %461 = vst [vmem:[#allocation3 + $0xf0] sm:$0xff] 0.0
          %462 = vst [vmem:[#allocation3 + $0xf8] sm:$0xff] 0.0
        $region76: #{tpu_custom_call.1} parent=51 // pred_fallthru
          _
        %v463 = vld [vmem:[%s404] sm:$0xff]
        %v464 = vld [vmem:[%s404 + $0x8] sm:$0xff]
        %v465 = vld [vmem:[%s404 + $0x10] sm:$0xff]
        %v466 = vld [vmem:[%s404 + $0x18] sm:$0xff]
        %v467 = vld [vmem:[%s404 + $0x20] sm:$0xff]
        %v468 = vld [vmem:[%s404 + $0x28] sm:$0xff]
        %v469 = vld [vmem:[%s404 + $0x30] sm:$0xff]
        %v470 = vld [vmem:[%s404 + $0x38] sm:$0xff]
        %v471 = vld [vmem:[%s404 + $0x40] sm:$0xff]
        %v472 = vld [vmem:[%s404 + $0x48] sm:$0xff]
        %v473 = vld [vmem:[%s404 + $0x50] sm:$0xff]
        %v474 = vld [vmem:[%s404 + $0x58] sm:$0xff]
        %v475 = vld [vmem:[%s404 + $0x60] sm:$0xff]
        %v476 = vld [vmem:[%s404 + $0x68] sm:$0xff]
        %v477 = vld [vmem:[%s404 + $0x70] sm:$0xff]
        %v478 = vld [vmem:[%s404 + $0x78] sm:$0xff]
        %v479 = vld [vmem:[#allocation9] sm:$0xff]
        %v480 = vld [vmem:[#allocation9 + $0x8] sm:$0xff]
        %v481 = vld [vmem:[#allocation9 + $0x10] sm:$0xff]
        %v482 = vld [vmem:[#allocation9 + $0x18] sm:$0xff]
        %v483 = vld [vmem:[#allocation9 + $0x20] sm:$0xff]
        %v484 = vld [vmem:[#allocation9 + $0x28] sm:$0xff]
        %v485 = vld [vmem:[#allocation9 + $0x30] sm:$0xff]
        %v486 = vld [vmem:[#allocation9 + $0x38] sm:$0xff]
        %v487 = vld [vmem:[#allocation9 + $0x40] sm:$0xff]
        %v488 = vld [vmem:[#allocation9 + $0x48] sm:$0xff]
        %v489 = vld [vmem:[#allocation9 + $0x50] sm:$0xff]
        %v490 = vld [vmem:[#allocation9 + $0x58] sm:$0xff]
        %v491 = vld [vmem:[#allocation9 + $0x60] sm:$0xff]
        %v492 = vld [vmem:[#allocation9 + $0x68] sm:$0xff]
        %v493 = vld [vmem:[#allocation9 + $0x70] sm:$0xff]
        %v494 = vld [vmem:[#allocation9 + $0x78] sm:$0xff]
        %495 = vmatprep.subr.mxu0 0.0
        %v496 = vand.u32 %v479, 4294901760
        %497 = vmatpush1.msra.mxu0 %v496
        %498 = vmatprep.subr.mxu0 0.0
        %v499 = vand.u32 %v480, 4294901760
        %500 = vmatpush1.msra.mxu0 %v499
        %501 = vmatprep.subr.mxu0 0.0
        %v502 = vand.u32 %v481, 4294901760
        %503 = vmatpush1.msra.mxu0 %v502
        %504 = vmatprep.subr.mxu0 0.0
        %v505 = vand.u32 %v482, 4294901760
        %506 = vmatpush1.msra.mxu0 %v505
        %507 = vmatprep.subr.mxu0 0.0
        %v508 = vand.u32 %v483, 4294901760
        %509 = vmatpush1.msra.mxu0 %v508
        %510 = vmatprep.subr.mxu0 0.0
        %v511 = vand.u32 %v484, 4294901760
        %512 = vmatpush1.msra.mxu0 %v511
        %513 = vmatprep.subr.mxu0 0.0
        %v514 = vand.u32 %v485, 4294901760
        %515 = vmatpush1.msra.mxu0 %v514
        %516 = vmatprep.subr.mxu0 0.0
        %v517 = vand.u32 %v486, 4294901760
        %518 = vmatpush1.msra.mxu0 %v517
        %519 = vmatprep.subr.mxu0 0.0
        %v520 = vand.u32 %v487, 4294901760
        %521 = vmatpush1.msra.mxu0 %v520
        %522 = vmatprep.subr.mxu0 0.0
        %v523 = vand.u32 %v488, 4294901760
        %524 = vmatpush1.msra.mxu0 %v523
        %525 = vmatprep.subr.mxu0 0.0
        %v526 = vand.u32 %v489, 4294901760
        %527 = vmatpush1.msra.mxu0 %v526
        %528 = vmatprep.subr.mxu0 0.0
        %v529 = vand.u32 %v490, 4294901760
        %530 = vmatpush1.msra.mxu0 %v529
        %531 = vmatprep.subr.mxu0 0.0
        %v532 = vand.u32 %v491, 4294901760
        %533 = vmatpush1.msra.mxu0 %v532
        %534 = vmatprep.subr.mxu0 0.0
        %v535 = vand.u32 %v492, 4294901760
        %536 = vmatpush1.msra.mxu0 %v535
        %537 = vmatprep.subr.mxu0 0.0
        %v538 = vand.u32 %v493, 4294901760
        %539 = vmatpush1.msra.mxu0 %v538
        %540 = vmatprep.subr.mxu0 0.0
        %v541 = vand.u32 %v494, 4294901760
        %542 = vmatpush1.msra.mxu0 %v541
        %543 = vmatprep.subr.mxu0 0.0
        %544 = vmatpush1.msra.mxu0 0.0
        %545 = vmatprep.subr.mxu0 0.0
        %546 = vmatpush1.msra.mxu0 0.0
        %547 = vmatprep.subr.mxu0 0.0
        %548 = vmatpush1.msra.mxu0 0.0
        %549 = vmatprep.subr.mxu0 0.0
        %550 = vmatpush1.msra.mxu0 0.0
        %551 = vmatprep.subr.mxu0 0.0
        %552 = vmatpush1.msra.mxu0 0.0
        %553 = vmatprep.subr.mxu0 0.0
        %554 = vmatpush1.msra.mxu0 0.0
        %555 = vmatprep.subr.mxu0 0.0
        %556 = vmatpush1.msra.mxu0 0.0
        %557 = vmatprep.subr.mxu0 0.0
        %558 = vmatpush1.msra.mxu0 0.0
        %559 = vmatprep.subr.mxu0 0.0
        %560 = vmatpush1.msra.mxu0 0.0
        %561 = vmatprep.subr.mxu0 0.0
        %562 = vmatpush1.msra.mxu0 0.0
        %563 = vmatprep.subr.mxu0 0.0
        %564 = vmatpush1.msra.mxu0 0.0
        %565 = vmatprep.subr.mxu0 0.0
        %566 = vmatpush1.msra.mxu0 0.0
        %567 = vmatprep.subr.mxu0 0.0
        %568 = vmatpush1.msra.mxu0 0.0
        %569 = vmatprep.subr.mxu0 0.0
        %570 = vmatpush1.msra.mxu0 0.0
        %571 = vmatprep.subr.mxu0 0.0
        %572 = vmatpush1.msra.mxu0 0.0
        %573 = vmatprep.subr.mxu0 0.0
        %574 = vmatpush1.msra.mxu0 0.0
        %575 = vmatprep.mubr.f32.mxu0 0.0
        %v576 = vand.u32 %v463, 4294901760
        %v577 = vsub.f32 %v463, %v576
        %v578 = vand.u32 %v577, 4294901760
        %v579 = vsub.f32 %v577, %v578
        %v580 = vand.u32 %v579, 4294901760
        %581 = vmatmul.mubr.f32.gmra.mrb[0].mxu0 %v580
        %v582 = vpop.f32.mrb[0].mxu0
        %v583 = vadd.f32 0.0, %v582
        %v584 = vpop.f32.mrb[0].mxu0
        %585 = vmatprep.mubr.f32.mxu0 0.0
        %v586 = vand.u32 %v464, 4294901760
        %v587 = vsub.f32 %v464, %v586
        %v588 = vand.u32 %v587, 4294901760
        %v589 = vsub.f32 %v587, %v588
        %v590 = vand.u32 %v589, 4294901760
        %591 = vmatmul.mubr.f32.gmra.mrb[0].mxu0 %v590
        %v592 = vpop.f32.mrb[0].mxu0
        %v593 = vadd.f32 0.0, %v592
        %v594 = vpop.f32.mrb[0].mxu0
        %595 = vmatprep.mubr.f32.mxu0 0.0
        %v596 = vand.u32 %v465, 4294901760
        %v597 = vsub.f32 %v465, %v596
        %v598 = vand.u32 %v597, 4294901760
        %v599 = vsub.f32 %v597, %v598
        %v600 = vand.u32 %v599, 4294901760
        %601 = vmatmul.mubr.f32.gmra.mrb[0].mxu0 %v600
        %v602 = vpop.f32.mrb[0].mxu0
        %v603 = vadd.f32 0.0, %v602
        %v604 = vpop.f32.mrb[0].mxu0
        %605 = vmatprep.mubr.f32.mxu0 0.0
        %v606 = vand.u32 %v466, 4294901760
        %v607 = vsub.f32 %v466, %v606
        %v608 = vand.u32 %v607, 4294901760
        %v609 = vsub.f32 %v607, %v608
        %v610 = vand.u32 %v609, 4294901760
        %611 = vmatmul.mubr.f32.gmra.mrb[0].mxu0 %v610
        %v612 = vpop.f32.mrb[0].mxu0
        %v613 = vadd.f32 0.0, %v612
        %v614 = vpop.f32.mrb[0].mxu0
        %615 = vmatprep.mubr.f32.mxu0 0.0
        %v616 = vand.u32 %v467, 4294901760
        %v617 = vsub.f32 %v467, %v616
        %v618 = vand.u32 %v617, 4294901760
        %v619 = vsub.f32 %v617, %v618
        %v620 = vand.u32 %v619, 4294901760
        %621 = vmatmul.mubr.f32.gmra.mrb[0].mxu0 %v620
        %v622 = vpop.f32.mrb[0].mxu0
        %v623 = vadd.f32 0.0, %v622
        %v624 = vpop.f32.mrb[0].mxu0
        %625 = vmatprep.mubr.f32.mxu0 0.0
        %v626 = vand.u32 %v468, 4294901760
        %v627 = vsub.f32 %v468, %v626
        %v628 = vand.u32 %v627, 4294901760
        %v629 = vsub.f32 %v627, %v628
        %v630 = vand.u32 %v629, 4294901760
        %631 = vmatmul.mubr.f32.gmra.mrb[0].mxu0 %v630
        %v632 = vpop.f32.mrb[0].mxu0
        %v633 = vadd.f32 0.0, %v632
        %v634 = vpop.f32.mrb[0].mxu0
        %635 = vmatprep.mubr.f32.mxu0 0.0
        %v636 = vand.u32 %v469, 4294901760
        %v637 = vsub.f32 %v469, %v636
        %v638 = vand.u32 %v637, 4294901760
        %v639 = vsub.f32 %v637, %v638
        %v640 = vand.u32 %v639, 4294901760
        %641 = vmatmul.mubr.f32.gmra.mrb[0].mxu0 %v640
        %v642 = vpop.f32.mrb[0].mxu0
        %v643 = vadd.f32 0.0, %v642
        %v644 = vpop.f32.mrb[0].mxu0
        %645 = vmatprep.mubr.f32.mxu0 0.0
        %v646 = vand.u32 %v470, 4294901760
        %v647 = vsub.f32 %v470, %v646
        %v648 = vand.u32 %v647, 4294901760
        %v649 = vsub.f32 %v647, %v648
        %v650 = vand.u32 %v649, 4294901760
        %651 = vmatmul.mubr.f32.gmra.mrb[0].mxu0 %v650
        %v652 = vpop.f32.mrb[0].mxu0
        %v653 = vadd.f32 0.0, %v652
        %v654 = vpop.f32.mrb[0].mxu0
        %655 = vmatprep.mubr.f32.mxu0 0.0
        %v656 = vand.u32 %v471, 4294901760
        %v657 = vsub.f32 %v471, %v656
        %v658 = vand.u32 %v657, 4294901760
        %v659 = vsub.f32 %v657, %v658
        %v660 = vand.u32 %v659, 4294901760
        %661 = vmatmul.mubr.f32.gmra.mrb[0].mxu0 %v660
        %v662 = vpop.f32.mrb[0].mxu0
        %v663 = vadd.f32 0.0, %v662
        %v664 = vpop.f32.mrb[0].mxu0
        %665 = vmatprep.mubr.f32.mxu0 0.0
        %v666 = vand.u32 %v472, 4294901760
        %v667 = vsub.f32 %v472, %v666
        %v668 = vand.u32 %v667, 4294901760
        %v669 = vsub.f32 %v667, %v668
        %v670 = vand.u32 %v669, 4294901760
        %671 = vmatmul.mubr.f32.gmra.mrb[0].mxu0 %v670
        %v672 = vpop.f32.mrb[0].mxu0
        %v673 = vadd.f32 0.0, %v672
        %v674 = vpop.f32.mrb[0].mxu0
        %675 = vmatprep.mubr.f32.mxu0 0.0
        %v676 = vand.u32 %v473, 4294901760
        %v677 = vsub.f32 %v473, %v676
        %v678 = vand.u32 %v677, 4294901760
        %v679 = vsub.f32 %v677, %v678
        %v680 = vand.u32 %v679, 4294901760
        %681 = vmatmul.mubr.f32.gmra.mrb[0].mxu0 %v680
        %v682 = vpop.f32.mrb[0].mxu0
        %v683 = vadd.f32 0.0, %v682
        %v684 = vpop.f32.mrb[0].mxu0
        %685 = vmatprep.mubr.f32.mxu0 0.0
        %v686 = vand.u32 %v474, 4294901760
        %v687 = vsub.f32 %v474, %v686
        %v688 = vand.u32 %v687, 4294901760
        %v689 = vsub.f32 %v687, %v688
        %v690 = vand.u32 %v689, 4294901760
        %691 = vmatmul.mubr.f32.gmra.mrb[0].mxu0 %v690
        %v692 = vpop.f32.mrb[0].mxu0
        %v693 = vadd.f32 0.0, %v692
        %v694 = vpop.f32.mrb[0].mxu0
        %695 = vmatprep.mubr.f32.mxu0 0.0
        %v696 = vand.u32 %v475, 4294901760
        %v697 = vsub.f32 %v475, %v696
        %v698 = vand.u32 %v697, 4294901760
        %v699 = vsub.f32 %v697, %v698
        %v700 = vand.u32 %v699, 4294901760
        %701 = vmatmul.mubr.f32.gmra.mrb[0].mxu0 %v700
        %v702 = vpop.f32.mrb[0].mxu0
        %v703 = vadd.f32 0.0, %v702
        %v704 = vpop.f32.mrb[0].mxu0
        %705 = vmatprep.mubr.f32.mxu0 0.0
        %v706 = vand.u32 %v476, 4294901760
        %v707 = vsub.f32 %v476, %v706
        %v708 = vand.u32 %v707, 4294901760
        %v709 = vsub.f32 %v707, %v708
        %v710 = vand.u32 %v709, 4294901760
        %711 = vmatmul.mubr.f32.gmra.mrb[0].mxu0 %v710
        %v712 = vpop.f32.mrb[0].mxu0
        %v713 = vadd.f32 0.0, %v712
        %v714 = vpop.f32.mrb[0].mxu0
        %715 = vmatprep.mubr.f32.mxu0 0.0
        %v716 = vand.u32 %v477, 4294901760
        %v717 = vsub.f32 %v477, %v716
        %v718 = vand.u32 %v717, 4294901760
        %v719 = vsub.f32 %v717, %v718
        %v720 = vand.u32 %v719, 4294901760
        %721 = vmatmul.mubr.f32.gmra.mrb[0].mxu0 %v720
        %v722 = vpop.f32.mrb[0].mxu0
        %v723 = vadd.f32 0.0, %v722
        %v724 = vpop.f32.mrb[0].mxu0
        %725 = vmatprep.mubr.f32.mxu0 0.0
        %v726 = vand.u32 %v478, 4294901760
        %v727 = vsub.f32 %v478, %v726
        %v728 = vand.u32 %v727, 4294901760
        %v729 = vsub.f32 %v727, %v728
        %v730 = vand.u32 %v729, 4294901760
        %731 = vmatmul.mubr.f32.gmra.mrb[0].mxu0 %v730
        %v732 = vpop.f32.mrb[0].mxu0
        %v733 = vadd.f32 0.0, %v732
        %v734 = vpop.f32.mrb[0].mxu0
        %735 = vdwg.mxu0
        %736 = vmatprep.subr.mxu0 0.0
        %v737 = vand.u32 %v479, 4294901760
        %v738 = vsub.f32 %v479, %v737
        %v739 = vand.u32 %v738, 4294901760
        %v740 = vsub.f32 %v738, %v739
        %v741 = vand.u32 %v740, 4294901760
        %742 = vmatpush1.msra.mxu0 %v741
        %743 = vmatprep.subr.mxu0 0.0
        %v744 = vand.u32 %v480, 4294901760
        %v745 = vsub.f32 %v480, %v744
        %v746 = vand.u32 %v745, 4294901760
        %v747 = vsub.f32 %v745, %v746
        %v748 = vand.u32 %v747, 4294901760
        %749 = vmatpush1.msra.mxu0 %v748
        %750 = vmatprep.subr.mxu0 0.0
        %v751 = vand.u32 %v481, 4294901760
        %v752 = vsub.f32 %v481, %v751
        %v753 = vand.u32 %v752, 4294901760
        %v754 = vsub.f32 %v752, %v753
        %v755 = vand.u32 %v754, 4294901760
        %756 = vmatpush1.msra.mxu0 %v755
        %757 = vmatprep.subr.mxu0 0.0
        %v758 = vand.u32 %v482, 4294901760
        %v759 = vsub.f32 %v482, %v758
        %v760 = vand.u32 %v759, 4294901760
        %v761 = vsub.f32 %v759, %v760
        %v762 = vand.u32 %v761, 4294901760
        %763 = vmatpush1.msra.mxu0 %v762
        %764 = vmatprep.subr.mxu0 0.0
        %v765 = vand.u32 %v483, 4294901760
        %v766 = vsub.f32 %v483, %v765
        %v767 = vand.u32 %v766, 4294901760
        %v768 = vsub.f32 %v766, %v767
        %v769 = vand.u32 %v768, 4294901760
        %770 = vmatpush1.msra.mxu0 %v769
        %771 = vmatprep.subr.mxu0 0.0
        %v772 = vand.u32 %v484, 4294901760
        %v773 = vsub.f32 %v484, %v772
        %v774 = vand.u32 %v773, 4294901760
        %v775 = vsub.f32 %v773, %v774
        %v776 = vand.u32 %v775, 4294901760
        %777 = vmatpush1.msra.mxu0 %v776
        %778 = vmatprep.subr.mxu0 0.0
        %v779 = vand.u32 %v485, 4294901760
        %v780 = vsub.f32 %v485, %v779
        %v781 = vand.u32 %v780, 4294901760
        %v782 = vsub.f32 %v780, %v781
        %v783 = vand.u32 %v782, 4294901760
        %784 = vmatpush1.msra.mxu0 %v783
        %785 = vmatprep.subr.mxu0 0.0
        %v786 = vand.u32 %v486, 4294901760
        %v787 = vsub.f32 %v486, %v786
        %v788 = vand.u32 %v787, 4294901760
        %v789 = vsub.f32 %v787, %v788
        %v790 = vand.u32 %v789, 4294901760
        %791 = vmatpush1.msra.mxu0 %v790
        %792 = vmatprep.subr.mxu0 0.0
        %v793 = vand.u32 %v487, 4294901760
        %v794 = vsub.f32 %v487, %v793
        %v795 = vand.u32 %v794, 4294901760
        %v796 = vsub.f32 %v794, %v795
        %v797 = vand.u32 %v796, 4294901760
        %798 = vmatpush1.msra.mxu0 %v797
        %799 = vmatprep.subr.mxu0 0.0
        %v800 = vand.u32 %v488, 4294901760
        %v801 = vsub.f32 %v488, %v800
        %v802 = vand.u32 %v801, 4294901760
        %v803 = vsub.f32 %v801, %v802
        %v804 = vand.u32 %v803, 4294901760
        %805 = vmatpush1.msra.mxu0 %v804
        %806 = vmatprep.subr.mxu0 0.0
        %v807 = vand.u32 %v489, 4294901760
        %v808 = vsub.f32 %v489, %v807
        %v809 = vand.u32 %v808, 4294901760
        %v810 = vsub.f32 %v808, %v809
        %v811 = vand.u32 %v810, 4294901760
        %812 = vmatpush1.msra.mxu0 %v811
        %813 = vmatprep.subr.mxu0 0.0
        %v814 = vand.u32 %v490, 4294901760
        %v815 = vsub.f32 %v490, %v814
        %v816 = vand.u32 %v815, 4294901760
        %v817 = vsub.f32 %v815, %v816
        %v818 = vand.u32 %v817, 4294901760
        %819 = vmatpush1.msra.mxu0 %v818
        %820 = vmatprep.subr.mxu0 0.0
        %v821 = vand.u32 %v491, 4294901760
        %v822 = vsub.f32 %v491, %v821
        %v823 = vand.u32 %v822, 4294901760
        %v824 = vsub.f32 %v822, %v823
        %v825 = vand.u32 %v824, 4294901760
        %826 = vmatpush1.msra.mxu0 %v825
        %827 = vmatprep.subr.mxu0 0.0
        %v828 = vand.u32 %v492, 4294901760
        %v829 = vsub.f32 %v492, %v828
        %v830 = vand.u32 %v829, 4294901760
        %v831 = vsub.f32 %v829, %v830
        %v832 = vand.u32 %v831, 4294901760
        %833 = vmatpush1.msra.mxu0 %v832
        %834 = vmatprep.subr.mxu0 0.0
        %v835 = vand.u32 %v493, 4294901760
        %v836 = vsub.f32 %v493, %v835
        %v837 = vand.u32 %v836, 4294901760
        %v838 = vsub.f32 %v836, %v837
        %v839 = vand.u32 %v838, 4294901760
        %840 = vmatpush1.msra.mxu0 %v839
        %841 = vmatprep.subr.mxu0 0.0
        %v842 = vand.u32 %v494, 4294901760
        %v843 = vsub.f32 %v494, %v842
        %v844 = vand.u32 %v843, 4294901760
        %v845 = vsub.f32 %v843, %v844
        %v846 = vand.u32 %v845, 4294901760
        %847 = vmatpush1.msra.mxu0 %v846
        %848 = vmatprep.subr.mxu0 0.0
        %849 = vmatpush1.msra.mxu0 0.0
        %850 = vmatprep.subr.mxu0 0.0
        %851 = vmatpush1.msra.mxu0 0.0
        %852 = vmatprep.subr.mxu0 0.0
        %853 = vmatpush1.msra.mxu0 0.0
        %854 = vmatprep.subr.mxu0 0.0
        %855 = vmatpush1.msra.mxu0 0.0
        %856 = vmatprep.subr.mxu0 0.0
        %857 = vmatpush1.msra.mxu0 0.0
        %858 = vmatprep.subr.mxu0 0.0
        %859 = vmatpush1.msra.mxu0 0.0
        %860 = vmatprep.subr.mxu0 0.0
        %861 = vmatpush1.msra.mxu0 0.0
        %862 = vmatprep.subr.mxu0 0.0
        %863 = vmatpush1.msra.mxu0 0.0
        %864 = vmatprep.subr.mxu0 0.0
        %865 = vmatpush1.msra.mxu0 0.0
        %866 = vmatprep.subr.mxu0 0.0
        %867 = vmatpush1.msra.mxu0 0.0
        %868 = vmatprep.subr.mxu0 0.0
        %869 = vmatpush1.msra.mxu0 0.0
        %870 = vmatprep.subr.mxu0 0.0
        %871 = vmatpush1.msra.mxu0 0.0
        %872 = vmatprep.subr.mxu0 0.0
        %873 = vmatpush1.msra.mxu0 0.0
        %874 = vmatprep.subr.mxu0 0.0
        %875 = vmatpush1.msra.mxu0 0.0
        %876 = vmatprep.subr.mxu0 0.0
        %877 = vmatpush1.msra.mxu0 0.0
        %878 = vmatprep.subr.mxu0 0.0
        %879 = vmatpush1.msra.mxu0 0.0
        %880 = vmatprep.mubr.f32.mxu0 0.0
        %v881 = vand.u32 %v463, 4294901760
        %882 = vmatmul.mubr.f32.gmra.mrb[0].mxu0 %v881
        %v883 = vpop.f32.mrb[0].mxu0
        %v884 = vadd.f32 %v583, %v883
        %v885 = vpop.f32.mrb[0].mxu0
        %886 = vmatprep.mubr.f32.mxu0 0.0
        %v887 = vand.u32 %v464, 4294901760
        %888 = vmatmul.mubr.f32.gmra.mrb[0].mxu0 %v887
        %v889 = vpop.f32.mrb[0].mxu0
        %v890 = vadd.f32 %v593, %v889
        %v891 = vpop.f32.mrb[0].mxu0
        %892 = vmatprep.mubr.f32.mxu0 0.0
        %v893 = vand.u32 %v465, 4294901760
        %894 = vmatmul.mubr.f32.gmra.mrb[0].mxu0 %v893
        %v895 = vpop.f32.mrb[0].mxu0
        %v896 = vadd.f32 %v603, %v895
        %v897 = vpop.f32.mrb[0].mxu0
        %898 = vmatprep.mubr.f32.mxu0 0.0
        %v899 = vand.u32 %v466, 4294901760
        %900 = vmatmul.mubr.f32.gmra.mrb[0].mxu0 %v899
        %v901 = vpop.f32.mrb[0].mxu0
        %v902 = vadd.f32 %v613, %v901
        %v903 = vpop.f32.mrb[0].mxu0
        %904 = vmatprep.mubr.f32.mxu0 0.0
        %v905 = vand.u32 %v467, 4294901760
        %906 = vmatmul.mubr.f32.gmra.mrb[0].mxu0 %v905
        %v907 = vpop.f32.mrb[0].mxu0
        %v908 = vadd.f32 %v623, %v907
        %v909 = vpop.f32.mrb[0].mxu0
        %910 = vmatprep.mubr.f32.mxu0 0.0
        %v911 = vand.u32 %v468, 4294901760
        %912 = vmatmul.mubr.f32.gmra.mrb[0].mxu0 %v911
        %v913 = vpop.f32.mrb[0].mxu0
        %v914 = vadd.f32 %v633, %v913
        %v915 = vpop.f32.mrb[0].mxu0
        %916 = vmatprep.mubr.f32.mxu0 0.0
        %v917 = vand.u32 %v469, 4294901760
        %918 = vmatmul.mubr.f32.gmra.mrb[0].mxu0 %v917
        %v919 = vpop.f32.mrb[0].mxu0
        %v920 = vadd.f32 %v643, %v919
        %v921 = vpop.f32.mrb[0].mxu0
        %922 = vmatprep.mubr.f32.mxu0 0.0
        %v923 = vand.u32 %v470, 4294901760
        %924 = vmatmul.mubr.f32.gmra.mrb[0].mxu0 %v923
        %v925 = vpop.f32.mrb[0].mxu0
        %v926 = vadd.f32 %v653, %v925
        %v927 = vpop.f32.mrb[0].mxu0
        %928 = vmatprep.mubr.f32.mxu0 0.0
        %v929 = vand.u32 %v471, 4294901760
        %930 = vmatmul.mubr.f32.gmra.mrb[0].mxu0 %v929
        %v931 = vpop.f32.mrb[0].mxu0
        %v932 = vadd.f32 %v663, %v931
        %v933 = vpop.f32.mrb[0].mxu0
        %934 = vmatprep.mubr.f32.mxu0 0.0
        %v935 = vand.u32 %v472, 4294901760
        %936 = vmatmul.mubr.f32.gmra.mrb[0].mxu0 %v935
        %v937 = vpop.f32.mrb[0].mxu0
        %v938 = vadd.f32 %v673, %v937
        %v939 = vpop.f32.mrb[0].mxu0
        %940 = vmatprep.mubr.f32.mxu0 0.0
        %v941 = vand.u32 %v473, 4294901760
        %942 = vmatmul.mubr.f32.gmra.mrb[0].mxu0 %v941
        %v943 = vpop.f32.mrb[0].mxu0
        %v944 = vadd.f32 %v683, %v943
        %v945 = vpop.f32.mrb[0].mxu0
        %946 = vmatprep.mubr.f32.mxu0 0.0
        %v947 = vand.u32 %v474, 4294901760
        %948 = vmatmul.mubr.f32.gmra.mrb[0].mxu0 %v947
        %v949 = vpop.f32.mrb[0].mxu0
        %v950 = vadd.f32 %v693, %v949
        %v951 = vpop.f32.mrb[0].mxu0
        %952 = vmatprep.mubr.f32.mxu0 0.0
        %v953 = vand.u32 %v475, 4294901760
        %954 = vmatmul.mubr.f32.gmra.mrb[0].mxu0 %v953
        %v955 = vpop.f32.mrb[0].mxu0
        %v956 = vadd.f32 %v703, %v955
        %v957 = vpop.f32.mrb[0].mxu0
        %958 = vmatprep.mubr.f32.mxu0 0.0
        %v959 = vand.u32 %v476, 4294901760
        %960 = vmatmul.mubr.f32.gmra.mrb[0].mxu0 %v959
        %v961 = vpop.f32.mrb[0].mxu0
        %v962 = vadd.f32 %v713, %v961
        %v963 = vpop.f32.mrb[0].mxu0
        %964 = vmatprep.mubr.f32.mxu0 0.0
        %v965 = vand.u32 %v477, 4294901760
        %966 = vmatmul.mubr.f32.gmra.mrb[0].mxu0 %v965
        %v967 = vpop.f32.mrb[0].mxu0
        %v968 = vadd.f32 %v723, %v967
        %v969 = vpop.f32.mrb[0].mxu0
        %970 = vmatprep.mubr.f32.mxu0 0.0
        %v971 = vand.u32 %v478, 4294901760
        %972 = vmatmul.mubr.f32.gmra.mrb[0].mxu0 %v971
        %v973 = vpop.f32.mrb[0].mxu0
        %v974 = vadd.f32 %v733, %v973
        %v975 = vpop.f32.mrb[0].mxu0
        %976 = vdwg.mxu0
        %977 = vmatprep.subr.mxu0 0.0
        %v978 = vand.u32 %v479, 4294901760
        %v979 = vsub.f32 %v479, %v978
        %980 = vmatpush1.msra.mxu0 %v979
        %981 = vmatprep.subr.mxu0 0.0
        %v982 = vand.u32 %v480, 4294901760
        %v983 = vsub.f32 %v480, %v982
        %984 = vmatpush1.msra.mxu0 %v983
        %985 = vmatprep.subr.mxu0 0.0
        %v986 = vand.u32 %v481, 4294901760
        %v987 = vsub.f32 %v481, %v986
        %988 = vmatpush1.msra.mxu0 %v987
        %989 = vmatprep.subr.mxu0 0.0
        %v990 = vand.u32 %v482, 4294901760
        %v991 = vsub.f32 %v482, %v990
        %992 = vmatpush1.msra.mxu0 %v991
        %993 = vmatprep.subr.mxu0 0.0
        %v994 = vand.u32 %v483, 4294901760
        %v995 = vsub.f32 %v483, %v994
        %996 = vmatpush1.msra.mxu0 %v995
        %997 = vmatprep.subr.mxu0 0.0
        %v998 = vand.u32 %v484, 4294901760
        %v999 = vsub.f32 %v484, %v998
        %1000 = vmatpush1.msra.mxu0 %v999
        %1001 = vmatprep.subr.mxu0 0.0
        %v1002 = vand.u32 %v485, 4294901760
        %v1003 = vsub.f32 %v485, %v1002
        %1004 = vmatpush1.msra.mxu0 %v1003
        %1005 = vmatprep.subr.mxu0 0.0
        %v1006 = vand.u32 %v486, 4294901760
        %v1007 = vsub.f32 %v486, %v1006
        %1008 = vmatpush1.msra.mxu0 %v1007
        %1009 = vmatprep.subr.mxu0 0.0
        %v1010 = vand.u32 %v487, 4294901760
        %v1011 = vsub.f32 %v487, %v1010
        %1012 = vmatpush1.msra.mxu0 %v1011
        %1013 = vmatprep.subr.mxu0 0.0
        %v1014 = vand.u32 %v488, 4294901760
        %v1015 = vsub.f32 %v488, %v1014
        %1016 = vmatpush1.msra.mxu0 %v1015
        %1017 = vmatprep.subr.mxu0 0.0
        %v1018 = vand.u32 %v489, 4294901760
        %v1019 = vsub.f32 %v489, %v1018
        %1020 = vmatpush1.msra.mxu0 %v1019
        %1021 = vmatprep.subr.mxu0 0.0
        %v1022 = vand.u32 %v490, 4294901760
        %v1023 = vsub.f32 %v490, %v1022
        %1024 = vmatpush1.msra.mxu0 %v1023
        %1025 = vmatprep.subr.mxu0 0.0
        %v1026 = vand.u32 %v491, 4294901760
        %v1027 = vsub.f32 %v491, %v1026
        %1028 = vmatpush1.msra.mxu0 %v1027
        %1029 = vmatprep.subr.mxu0 0.0
        %v1030 = vand.u32 %v492, 4294901760
        %v1031 = vsub.f32 %v492, %v1030
        %1032 = vmatpush1.msra.mxu0 %v1031
        %1033 = vmatprep.subr.mxu0 0.0
        %v1034 = vand.u32 %v493, 4294901760
        %v1035 = vsub.f32 %v493, %v1034
        %1036 = vmatpush1.msra.mxu0 %v1035
        %1037 = vmatprep.subr.mxu0 0.0
        %v1038 = vand.u32 %v494, 4294901760
        %v1039 = vsub.f32 %v494, %v1038
        %1040 = vmatpush1.msra.mxu0 %v1039
        %1041 = vmatprep.subr.mxu0 0.0
        %1042 = vmatpush1.msra.mxu0 0.0
        %1043 = vmatprep.subr.mxu0 0.0
        %1044 = vmatpush1.msra.mxu0 0.0
        %1045 = vmatprep.subr.mxu0 0.0
        %1046 = vmatpush1.msra.mxu0 0.0
        %1047 = vmatprep.subr.mxu0 0.0
        %1048 = vmatpush1.msra.mxu0 0.0
        %1049 = vmatprep.subr.mxu0 0.0
        %1050 = vmatpush1.msra.mxu0 0.0
        %1051 = vmatprep.subr.mxu0 0.0
        %1052 = vmatpush1.msra.mxu0 0.0
        %1053 = vmatprep.subr.mxu0 0.0
        %1054 = vmatpush1.msra.mxu0 0.0
        %1055 = vmatprep.subr.mxu0 0.0
        %1056 = vmatpush1.msra.mxu0 0.0
        %1057 = vmatprep.subr.mxu0 0.0
        %1058 = vmatpush1.msra.mxu0 0.0
        %1059 = vmatprep.subr.mxu0 0.0
        %1060 = vmatpush1.msra.mxu0 0.0
        %1061 = vmatprep.subr.mxu0 0.0
        %1062 = vmatpush1.msra.mxu0 0.0
        %1063 = vmatprep.subr.mxu0 0.0
        %1064 = vmatpush1.msra.mxu0 0.0
        %1065 = vmatprep.subr.mxu0 0.0
        %1066 = vmatpush1.msra.mxu0 0.0
        %1067 = vmatprep.subr.mxu0 0.0
        %1068 = vmatpush1.msra.mxu0 0.0
        %1069 = vmatprep.subr.mxu0 0.0
        %1070 = vmatpush1.msra.mxu0 0.0
        %1071 = vmatprep.subr.mxu0 0.0
        %1072 = vmatpush1.msra.mxu0 0.0
        %1073 = vmatprep.mubr.f32.mxu0 0.0
        %v1074 = vand.u32 %v463, 4294901760
        %v1075 = vsub.f32 %v463, %v1074
        %1076 = vmatmul.mubr.f32.gmra.mrb[0].mxu0 %v1075
        %v1077 = vpop.f32.mrb[0].mxu0
        %v1078 = vadd.f32 %v884, %v1077
        %v1079 = vpop.f32.mrb[0].mxu0
        %1080 = vmatprep.mubr.f32.mxu0 0.0
        %v1081 = vand.u32 %v464, 4294901760
        %v1082 = vsub.f32 %v464, %v1081
        %1083 = vmatmul.mubr.f32.gmra.mrb[0].mxu0 %v1082
        %v1084 = vpop.f32.mrb[0].mxu0
        %v1085 = vadd.f32 %v890, %v1084
        %v1086 = vpop.f32.mrb[0].mxu0
        %1087 = vmatprep.mubr.f32.mxu0 0.0
        %v1088 = vand.u32 %v465, 4294901760
        %v1089 = vsub.f32 %v465, %v1088
        %1090 = vmatmul.mubr.f32.gmra.mrb[0].mxu0 %v1089
        %v1091 = vpop.f32.mrb[0].mxu0
        %v1092 = vadd.f32 %v896, %v1091
        %v1093 = vpop.f32.mrb[0].mxu0
        %1094 = vmatprep.mubr.f32.mxu0 0.0
        %v1095 = vand.u32 %v466, 4294901760
        %v1096 = vsub.f32 %v466, %v1095
        %1097 = vmatmul.mubr.f32.gmra.mrb[0].mxu0 %v1096
        %v1098 = vpop.f32.mrb[0].mxu0
        %v1099 = vadd.f32 %v902, %v1098
        %v1100 = vpop.f32.mrb[0].mxu0
        %1101 = vmatprep.mubr.f32.mxu0 0.0
        %v1102 = vand.u32 %v467, 4294901760
        %v1103 = vsub.f32 %v467, %v1102
        %1104 = vmatmul.mubr.f32.gmra.mrb[0].mxu0 %v1103
        %v1105 = vpop.f32.mrb[0].mxu0
        %v1106 = vadd.f32 %v908, %v1105
        %v1107 = vpop.f32.mrb[0].mxu0
        %1108 = vmatprep.mubr.f32.mxu0 0.0
        %v1109 = vand.u32 %v468, 4294901760
        %v1110 = vsub.f32 %v468, %v1109
        %1111 = vmatmul.mubr.f32.gmra.mrb[0].mxu0 %v1110
        %v1112 = vpop.f32.mrb[0].mxu0
        %v1113 = vadd.f32 %v914, %v1112
        %v1114 = vpop.f32.mrb[0].mxu0
        %1115 = vmatprep.mubr.f32.mxu0 0.0
        %v1116 = vand.u32 %v469, 4294901760
        %v1117 = vsub.f32 %v469, %v1116
        %1118 = vmatmul.mubr.f32.gmra.mrb[0].mxu0 %v1117
        %v1119 = vpop.f32.mrb[0].mxu0
        %v1120 = vadd.f32 %v920, %v1119
        %v1121 = vpop.f32.mrb[0].mxu0
        %1122 = vmatprep.mubr.f32.mxu0 0.0
        %v1123 = vand.u32 %v470, 4294901760
        %v1124 = vsub.f32 %v470, %v1123
        %1125 = vmatmul.mubr.f32.gmra.mrb[0].mxu0 %v1124
        %v1126 = vpop.f32.mrb[0].mxu0
        %v1127 = vadd.f32 %v926, %v1126
        %v1128 = vpop.f32.mrb[0].mxu0
        %1129 = vmatprep.mubr.f32.mxu0 0.0
        %v1130 = vand.u32 %v471, 4294901760
        %v1131 = vsub.f32 %v471, %v1130
        %1132 = vmatmul.mubr.f32.gmra.mrb[0].mxu0 %v1131
        %v1133 = vpop.f32.mrb[0].mxu0
        %v1134 = vadd.f32 %v932, %v1133
        %v1135 = vpop.f32.mrb[0].mxu0
        %1136 = vmatprep.mubr.f32.mxu0 0.0
        %v1137 = vand.u32 %v472, 4294901760
        %v1138 = vsub.f32 %v472, %v1137
        %1139 = vmatmul.mubr.f32.gmra.mrb[0].mxu0 %v1138
        %v1140 = vpop.f32.mrb[0].mxu0
        %v1141 = vadd.f32 %v938, %v1140
        %v1142 = vpop.f32.mrb[0].mxu0
        %1143 = vmatprep.mubr.f32.mxu0 0.0
        %v1144 = vand.u32 %v473, 4294901760
        %v1145 = vsub.f32 %v473, %v1144
        %1146 = vmatmul.mubr.f32.gmra.mrb[0].mxu0 %v1145
        %v1147 = vpop.f32.mrb[0].mxu0
        %v1148 = vadd.f32 %v944, %v1147
        %v1149 = vpop.f32.mrb[0].mxu0
        %1150 = vmatprep.mubr.f32.mxu0 0.0
        %v1151 = vand.u32 %v474, 4294901760
        %v1152 = vsub.f32 %v474, %v1151
        %1153 = vmatmul.mubr.f32.gmra.mrb[0].mxu0 %v1152
        %v1154 = vpop.f32.mrb[0].mxu0
        %v1155 = vadd.f32 %v950, %v1154
        %v1156 = vpop.f32.mrb[0].mxu0
        %1157 = vmatprep.mubr.f32.mxu0 0.0
        %v1158 = vand.u32 %v475, 4294901760
        %v1159 = vsub.f32 %v475, %v1158
        %1160 = vmatmul.mubr.f32.gmra.mrb[0].mxu0 %v1159
        %v1161 = vpop.f32.mrb[0].mxu0
        %v1162 = vadd.f32 %v956, %v1161
        %v1163 = vpop.f32.mrb[0].mxu0
        %1164 = vmatprep.mubr.f32.mxu0 0.0
        %v1165 = vand.u32 %v476, 4294901760
        %v1166 = vsub.f32 %v476, %v1165
        %1167 = vmatmul.mubr.f32.gmra.mrb[0].mxu0 %v1166
        %v1168 = vpop.f32.mrb[0].mxu0
        %v1169 = vadd.f32 %v962, %v1168
        %v1170 = vpop.f32.mrb[0].mxu0
        %1171 = vmatprep.mubr.f32.mxu0 0.0
        %v1172 = vand.u32 %v477, 4294901760
        %v1173 = vsub.f32 %v477, %v1172
        %1174 = vmatmul.mubr.f32.gmra.mrb[0].mxu0 %v1173
        %v1175 = vpop.f32.mrb[0].mxu0
        %v1176 = vadd.f32 %v968, %v1175
        %v1177 = vpop.f32.mrb[0].mxu0
        %1178 = vmatprep.mubr.f32.mxu0 0.0
        %v1179 = vand.u32 %v478, 4294901760
        %v1180 = vsub.f32 %v478, %v1179
        %1181 = vmatmul.mubr.f32.gmra.mrb[0].mxu0 %v1180
        %v1182 = vpop.f32.mrb[0].mxu0
        %v1183 = vadd.f32 %v974, %v1182
        %v1184 = vpop.f32.mrb[0].mxu0
        %1185 = vdwg.mxu0
        %1186 = vmatprep.subr.mxu0 0.0
        %v1187 = vand.u32 %v479, 4294901760
        %1188 = vmatpush1.msra.mxu0 %v1187
        %1189 = vmatprep.subr.mxu0 0.0
        %v1190 = vand.u32 %v480, 4294901760
        %1191 = vmatpush1.msra.mxu0 %v1190
        %1192 = vmatprep.subr.mxu0 0.0
        %v1193 = vand.u32 %v481, 4294901760
        %1194 = vmatpush1.msra.mxu0 %v1193
        %1195 = vmatprep.subr.mxu0 0.0
        %v1196 = vand.u32 %v482, 4294901760
        %1197 = vmatpush1.msra.mxu0 %v1196
        %1198 = vmatprep.subr.mxu0 0.0
        %v1199 = vand.u32 %v483, 4294901760
        %1200 = vmatpush1.msra.mxu0 %v1199
        %1201 = vmatprep.subr.mxu0 0.0
        %v1202 = vand.u32 %v484, 4294901760
        %1203 = vmatpush1.msra.mxu0 %v1202
        %1204 = vmatprep.subr.mxu0 0.0
        %v1205 = vand.u32 %v485, 4294901760
        %1206 = vmatpush1.msra.mxu0 %v1205
        %1207 = vmatprep.subr.mxu0 0.0
        %v1208 = vand.u32 %v486, 4294901760
        %1209 = vmatpush1.msra.mxu0 %v1208
        %1210 = vmatprep.subr.mxu0 0.0
        %v1211 = vand.u32 %v487, 4294901760
        %1212 = vmatpush1.msra.mxu0 %v1211
        %1213 = vmatprep.subr.mxu0 0.0
        %v1214 = vand.u32 %v488, 4294901760
        %1215 = vmatpush1.msra.mxu0 %v1214
        %1216 = vmatprep.subr.mxu0 0.0
        %v1217 = vand.u32 %v489, 4294901760
        %1218 = vmatpush1.msra.mxu0 %v1217
        %1219 = vmatprep.subr.mxu0 0.0
        %v1220 = vand.u32 %v490, 4294901760
        %1221 = vmatpush1.msra.mxu0 %v1220
        %1222 = vmatprep.subr.mxu0 0.0
        %v1223 = vand.u32 %v491, 4294901760
        %1224 = vmatpush1.msra.mxu0 %v1223
        %1225 = vmatprep.subr.mxu0 0.0
        %v1226 = vand.u32 %v492, 4294901760
        %1227 = vmatpush1.msra.mxu0 %v1226
        %1228 = vmatprep.subr.mxu0 0.0
        %v1229 = vand.u32 %v493, 4294901760
        %1230 = vmatpush1.msra.mxu0 %v1229
        %1231 = vmatprep.subr.mxu0 0.0
        %v1232 = vand.u32 %v494, 4294901760
        %1233 = vmatpush1.msra.mxu0 %v1232
        %1234 = vmatprep.subr.mxu0 0.0
        %1235 = vmatpush1.msra.mxu0 0.0
        %1236 = vmatprep.subr.mxu0 0.0
        %1237 = vmatpush1.msra.mxu0 0.0
        %1238 = vmatprep.subr.mxu0 0.0
        %1239 = vmatpush1.msra.mxu0 0.0
        %1240 = vmatprep.subr.mxu0 0.0
        %1241 = vmatpush1.msra.mxu0 0.0
        %1242 = vmatprep.subr.mxu0 0.0
        %1243 = vmatpush1.msra.mxu0 0.0
        %1244 = vmatprep.subr.mxu0 0.0
        %1245 = vmatpush1.msra.mxu0 0.0
        %1246 = vmatprep.subr.mxu0 0.0
        %1247 = vmatpush1.msra.mxu0 0.0
        %1248 = vmatprep.subr.mxu0 0.0
        %1249 = vmatpush1.msra.mxu0 0.0
        %1250 = vmatprep.subr.mxu0 0.0
        %1251 = vmatpush1.msra.mxu0 0.0
        %1252 = vmatprep.subr.mxu0 0.0
        %1253 = vmatpush1.msra.mxu0 0.0
        %1254 = vmatprep.subr.mxu0 0.0
        %1255 = vmatpush1.msra.mxu0 0.0
        %1256 = vmatprep.subr.mxu0 0.0
        %1257 = vmatpush1.msra.mxu0 0.0
        %1258 = vmatprep.subr.mxu0 0.0
        %1259 = vmatpush1.msra.mxu0 0.0
        %1260 = vmatprep.subr.mxu0 0.0
        %1261 = vmatpush1.msra.mxu0 0.0
        %1262 = vmatprep.subr.mxu0 0.0
        %1263 = vmatpush1.msra.mxu0 0.0
        %1264 = vmatprep.subr.mxu0 0.0
        %1265 = vmatpush1.msra.mxu0 0.0
        %1266 = vmatprep.mubr.f32.mxu0 0.0
        %v1267 = vand.u32 %v463, 4294901760
        %v1268 = vsub.f32 %v463, %v1267
        %v1269 = vand.u32 %v1268, 4294901760
        %1270 = vmatmul.mubr.f32.gmra.mrb[0].mxu0 %v1269
        %v1271 = vpop.f32.mrb[0].mxu0
        %v1272 = vadd.f32 %v1078, %v1271
        %v1273 = vpop.f32.mrb[0].mxu0
        %1274 = vmatprep.mubr.f32.mxu0 0.0
        %v1275 = vand.u32 %v464, 4294901760
        %v1276 = vsub.f32 %v464, %v1275
        %v1277 = vand.u32 %v1276, 4294901760
        %1278 = vmatmul.mubr.f32.gmra.mrb[0].mxu0 %v1277
        %v1279 = vpop.f32.mrb[0].mxu0
        %v1280 = vadd.f32 %v1085, %v1279
        %v1281 = vpop.f32.mrb[0].mxu0
        %1282 = vmatprep.mubr.f32.mxu0 0.0
        %v1283 = vand.u32 %v465, 4294901760
        %v1284 = vsub.f32 %v465, %v1283
        %v1285 = vand.u32 %v1284, 4294901760
        %1286 = vmatmul.mubr.f32.gmra.mrb[0].mxu0 %v1285
        %v1287 = vpop.f32.mrb[0].mxu0
        %v1288 = vadd.f32 %v1092, %v1287
        %v1289 = vpop.f32.mrb[0].mxu0
        %1290 = vmatprep.mubr.f32.mxu0 0.0
        %v1291 = vand.u32 %v466, 4294901760
        %v1292 = vsub.f32 %v466, %v1291
        %v1293 = vand.u32 %v1292, 4294901760
        %1294 = vmatmul.mubr.f32.gmra.mrb[0].mxu0 %v1293
        %v1295 = vpop.f32.mrb[0].mxu0
        %v1296 = vadd.f32 %v1099, %v1295
        %v1297 = vpop.f32.mrb[0].mxu0
        %1298 = vmatprep.mubr.f32.mxu0 0.0
        %v1299 = vand.u32 %v467, 4294901760
        %v1300 = vsub.f32 %v467, %v1299
        %v1301 = vand.u32 %v1300, 4294901760
        %1302 = vmatmul.mubr.f32.gmra.mrb[0].mxu0 %v1301
        %v1303 = vpop.f32.mrb[0].mxu0
        %v1304 = vadd.f32 %v1106, %v1303
        %v1305 = vpop.f32.mrb[0].mxu0
        %1306 = vmatprep.mubr.f32.mxu0 0.0
        %v1307 = vand.u32 %v468, 4294901760
        %v1308 = vsub.f32 %v468, %v1307
        %v1309 = vand.u32 %v1308, 4294901760
        %1310 = vmatmul.mubr.f32.gmra.mrb[0].mxu0 %v1309
        %v1311 = vpop.f32.mrb[0].mxu0
        %v1312 = vadd.f32 %v1113, %v1311
        %v1313 = vpop.f32.mrb[0].mxu0
        %1314 = vmatprep.mubr.f32.mxu0 0.0
        %v1315 = vand.u32 %v469, 4294901760
        %v1316 = vsub.f32 %v469, %v1315
        %v1317 = vand.u32 %v1316, 4294901760
        %1318 = vmatmul.mubr.f32.gmra.mrb[0].mxu0 %v1317
        %v1319 = vpop.f32.mrb[0].mxu0
        %v1320 = vadd.f32 %v1120, %v1319
        %v1321 = vpop.f32.mrb[0].mxu0
        %1322 = vmatprep.mubr.f32.mxu0 0.0
        %v1323 = vand.u32 %v470, 4294901760
        %v1324 = vsub.f32 %v470, %v1323
        %v1325 = vand.u32 %v1324, 4294901760
        %1326 = vmatmul.mubr.f32.gmra.mrb[0].mxu0 %v1325
        %v1327 = vpop.f32.mrb[0].mxu0
        %v1328 = vadd.f32 %v1127, %v1327
        %v1329 = vpop.f32.mrb[0].mxu0
        %1330 = vmatprep.mubr.f32.mxu0 0.0
        %v1331 = vand.u32 %v471, 4294901760
        %v1332 = vsub.f32 %v471, %v1331
        %v1333 = vand.u32 %v1332, 4294901760
        %1334 = vmatmul.mubr.f32.gmra.mrb[0].mxu0 %v1333
        %v1335 = vpop.f32.mrb[0].mxu0
        %v1336 = vadd.f32 %v1134, %v1335
        %v1337 = vpop.f32.mrb[0].mxu0
        %1338 = vmatprep.mubr.f32.mxu0 0.0
        %v1339 = vand.u32 %v472, 4294901760
        %v1340 = vsub.f32 %v472, %v1339
        %v1341 = vand.u32 %v1340, 4294901760
        %1342 = vmatmul.mubr.f32.gmra.mrb[0].mxu0 %v1341
        %v1343 = vpop.f32.mrb[0].mxu0
        %v1344 = vadd.f32 %v1141, %v1343
        %v1345 = vpop.f32.mrb[0].mxu0
        %1346 = vmatprep.mubr.f32.mxu0 0.0
        %v1347 = vand.u32 %v473, 4294901760
        %v1348 = vsub.f32 %v473, %v1347
        %v1349 = vand.u32 %v1348, 4294901760
        %1350 = vmatmul.mubr.f32.gmra.mrb[0].mxu0 %v1349
        %v1351 = vpop.f32.mrb[0].mxu0
        %v1352 = vadd.f32 %v1148, %v1351
        %v1353 = vpop.f32.mrb[0].mxu0
        %1354 = vmatprep.mubr.f32.mxu0 0.0
        %v1355 = vand.u32 %v474, 4294901760
        %v1356 = vsub.f32 %v474, %v1355
        %v1357 = vand.u32 %v1356, 4294901760
        %1358 = vmatmul.mubr.f32.gmra.mrb[0].mxu0 %v1357
        %v1359 = vpop.f32.mrb[0].mxu0
        %v1360 = vadd.f32 %v1155, %v1359
        %v1361 = vpop.f32.mrb[0].mxu0
        %1362 = vmatprep.mubr.f32.mxu0 0.0
        %v1363 = vand.u32 %v475, 4294901760
        %v1364 = vsub.f32 %v475, %v1363
        %v1365 = vand.u32 %v1364, 4294901760
        %1366 = vmatmul.mubr.f32.gmra.mrb[0].mxu0 %v1365
        %v1367 = vpop.f32.mrb[0].mxu0
        %v1368 = vadd.f32 %v1162, %v1367
        %v1369 = vpop.f32.mrb[0].mxu0
        %1370 = vmatprep.mubr.f32.mxu0 0.0
        %v1371 = vand.u32 %v476, 4294901760
        %v1372 = vsub.f32 %v476, %v1371
        %v1373 = vand.u32 %v1372, 4294901760
        %1374 = vmatmul.mubr.f32.gmra.mrb[0].mxu0 %v1373
        %v1375 = vpop.f32.mrb[0].mxu0
        %v1376 = vadd.f32 %v1169, %v1375
        %v1377 = vpop.f32.mrb[0].mxu0
        %1378 = vmatprep.mubr.f32.mxu0 0.0
        %v1379 = vand.u32 %v477, 4294901760
        %v1380 = vsub.f32 %v477, %v1379
        %v1381 = vand.u32 %v1380, 4294901760
        %1382 = vmatmul.mubr.f32.gmra.mrb[0].mxu0 %v1381
        %v1383 = vpop.f32.mrb[0].mxu0
        %v1384 = vadd.f32 %v1176, %v1383
        %v1385 = vpop.f32.mrb[0].mxu0
        %1386 = vmatprep.mubr.f32.mxu0 0.0
        %v1387 = vand.u32 %v478, 4294901760
        %v1388 = vsub.f32 %v478, %v1387
        %v1389 = vand.u32 %v1388, 4294901760
        %1390 = vmatmul.mubr.f32.gmra.mrb[0].mxu0 %v1389
        %v1391 = vpop.f32.mrb[0].mxu0
        %v1392 = vadd.f32 %v1183, %v1391
        %v1393 = vpop.f32.mrb[0].mxu0
        %1394 = vdwg.mxu0
        %1395 = vmatprep.subr.mxu0 0.0
        %v1396 = vand.u32 %v479, 4294901760
        %v1397 = vsub.f32 %v479, %v1396
        %v1398 = vand.u32 %v1397, 4294901760
        %1399 = vmatpush1.msra.mxu0 %v1398
        %1400 = vmatprep.subr.mxu0 0.0
        %v1401 = vand.u32 %v480, 4294901760
        %v1402 = vsub.f32 %v480, %v1401
        %v1403 = vand.u32 %v1402, 4294901760
        %1404 = vmatpush1.msra.mxu0 %v1403
        %1405 = vmatprep.subr.mxu0 0.0
        %v1406 = vand.u32 %v481, 4294901760
        %v1407 = vsub.f32 %v481, %v1406
        %v1408 = vand.u32 %v1407, 4294901760
        %1409 = vmatpush1.msra.mxu0 %v1408
        %1410 = vmatprep.subr.mxu0 0.0
        %v1411 = vand.u32 %v482, 4294901760
        %v1412 = vsub.f32 %v482, %v1411
        %v1413 = vand.u32 %v1412, 4294901760
        %1414 = vmatpush1.msra.mxu0 %v1413
        %1415 = vmatprep.subr.mxu0 0.0
        %v1416 = vand.u32 %v483, 4294901760
        %v1417 = vsub.f32 %v483, %v1416
        %v1418 = vand.u32 %v1417, 4294901760
        %1419 = vmatpush1.msra.mxu0 %v1418
        %1420 = vmatprep.subr.mxu0 0.0
        %v1421 = vand.u32 %v484, 4294901760
        %v1422 = vsub.f32 %v484, %v1421
        %v1423 = vand.u32 %v1422, 4294901760
        %1424 = vmatpush1.msra.mxu0 %v1423
        %1425 = vmatprep.subr.mxu0 0.0
        %v1426 = vand.u32 %v485, 4294901760
        %v1427 = vsub.f32 %v485, %v1426
        %v1428 = vand.u32 %v1427, 4294901760
        %1429 = vmatpush1.msra.mxu0 %v1428
        %1430 = vmatprep.subr.mxu0 0.0
        %v1431 = vand.u32 %v486, 4294901760
        %v1432 = vsub.f32 %v486, %v1431
        %v1433 = vand.u32 %v1432, 4294901760
        %1434 = vmatpush1.msra.mxu0 %v1433
        %1435 = vmatprep.subr.mxu0 0.0
        %v1436 = vand.u32 %v487, 4294901760
        %v1437 = vsub.f32 %v487, %v1436
        %v1438 = vand.u32 %v1437, 4294901760
        %1439 = vmatpush1.msra.mxu0 %v1438
        %1440 = vmatprep.subr.mxu0 0.0
        %v1441 = vand.u32 %v488, 4294901760
        %v1442 = vsub.f32 %v488, %v1441
        %v1443 = vand.u32 %v1442, 4294901760
        %1444 = vmatpush1.msra.mxu0 %v1443
        %1445 = vmatprep.subr.mxu0 0.0
        %v1446 = vand.u32 %v489, 4294901760
        %v1447 = vsub.f32 %v489, %v1446
        %v1448 = vand.u32 %v1447, 4294901760
        %1449 = vmatpush1.msra.mxu0 %v1448
        %1450 = vmatprep.subr.mxu0 0.0
        %v1451 = vand.u32 %v490, 4294901760
        %v1452 = vsub.f32 %v490, %v1451
        %v1453 = vand.u32 %v1452, 4294901760
        %1454 = vmatpush1.msra.mxu0 %v1453
        %1455 = vmatprep.subr.mxu0 0.0
        %v1456 = vand.u32 %v491, 4294901760
        %v1457 = vsub.f32 %v491, %v1456
        %v1458 = vand.u32 %v1457, 4294901760
        %1459 = vmatpush1.msra.mxu0 %v1458
        %1460 = vmatprep.subr.mxu0 0.0
        %v1461 = vand.u32 %v492, 4294901760
        %v1462 = vsub.f32 %v492, %v1461
        %v1463 = vand.u32 %v1462, 4294901760
        %1464 = vmatpush1.msra.mxu0 %v1463
        %1465 = vmatprep.subr.mxu0 0.0
        %v1466 = vand.u32 %v493, 4294901760
        %v1467 = vsub.f32 %v493, %v1466
        %v1468 = vand.u32 %v1467, 4294901760
        %1469 = vmatpush1.msra.mxu0 %v1468
        %1470 = vmatprep.subr.mxu0 0.0
        %v1471 = vand.u32 %v494, 4294901760
        %v1472 = vsub.f32 %v494, %v1471
        %v1473 = vand.u32 %v1472, 4294901760
        %1474 = vmatpush1.msra.mxu0 %v1473
        %1475 = vmatprep.subr.mxu0 0.0
        %1476 = vmatpush1.msra.mxu0 0.0
        %1477 = vmatprep.subr.mxu0 0.0
        %1478 = vmatpush1.msra.mxu0 0.0
        %1479 = vmatprep.subr.mxu0 0.0
        %1480 = vmatpush1.msra.mxu0 0.0
        %1481 = vmatprep.subr.mxu0 0.0
        %1482 = vmatpush1.msra.mxu0 0.0
        %1483 = vmatprep.subr.mxu0 0.0
        %1484 = vmatpush1.msra.mxu0 0.0
        %1485 = vmatprep.subr.mxu0 0.0
        %1486 = vmatpush1.msra.mxu0 0.0
        %1487 = vmatprep.subr.mxu0 0.0
        %1488 = vmatpush1.msra.mxu0 0.0
        %1489 = vmatprep.subr.mxu0 0.0
        %1490 = vmatpush1.msra.mxu0 0.0
        %1491 = vmatprep.subr.mxu0 0.0
        %1492 = vmatpush1.msra.mxu0 0.0
        %1493 = vmatprep.subr.mxu0 0.0
        %1494 = vmatpush1.msra.mxu0 0.0
        %1495 = vmatprep.subr.mxu0 0.0
        %1496 = vmatpush1.msra.mxu0 0.0
        %1497 = vmatprep.subr.mxu0 0.0
        %1498 = vmatpush1.msra.mxu0 0.0
        %1499 = vmatprep.subr.mxu0 0.0
        %1500 = vmatpush1.msra.mxu0 0.0
        %1501 = vmatprep.subr.mxu0 0.0
        %1502 = vmatpush1.msra.mxu0 0.0
        %1503 = vmatprep.subr.mxu0 0.0
        %1504 = vmatpush1.msra.mxu0 0.0
        %1505 = vmatprep.subr.mxu0 0.0
        %1506 = vmatpush1.msra.mxu0 0.0
        %1507 = vmatprep.mubr.f32.mxu0 0.0
        %v1508 = vand.u32 %v463, 4294901760
        %1509 = vmatmul.mubr.f32.gmra.mrb[0].mxu0 %v1508
        %v1510 = vpop.f32.mrb[0].mxu0
        %v1511 = vadd.f32 %v1272, %v1510
        %v1512 = vpop.f32.mrb[0].mxu0
        %1513 = vmatprep.mubr.f32.mxu0 0.0
        %v1514 = vand.u32 %v464, 4294901760
        %1515 = vmatmul.mubr.f32.gmra.mrb[0].mxu0 %v1514
        %v1516 = vpop.f32.mrb[0].mxu0
        %v1517 = vadd.f32 %v1280, %v1516
        %v1518 = vpop.f32.mrb[0].mxu0
        %1519 = vmatprep.mubr.f32.mxu0 0.0
        %v1520 = vand.u32 %v465, 4294901760
        %1521 = vmatmul.mubr.f32.gmra.mrb[0].mxu0 %v1520
        %v1522 = vpop.f32.mrb[0].mxu0
        %v1523 = vadd.f32 %v1288, %v1522
        %v1524 = vpop.f32.mrb[0].mxu0
        %1525 = vmatprep.mubr.f32.mxu0 0.0
        %v1526 = vand.u32 %v466, 4294901760
        %1527 = vmatmul.mubr.f32.gmra.mrb[0].mxu0 %v1526
        %v1528 = vpop.f32.mrb[0].mxu0
        %v1529 = vadd.f32 %v1296, %v1528
        %v1530 = vpop.f32.mrb[0].mxu0
        %1531 = vmatprep.mubr.f32.mxu0 0.0
        %v1532 = vand.u32 %v467, 4294901760
        %1533 = vmatmul.mubr.f32.gmra.mrb[0].mxu0 %v1532
        %v1534 = vpop.f32.mrb[0].mxu0
        %v1535 = vadd.f32 %v1304, %v1534
        %v1536 = vpop.f32.mrb[0].mxu0
        %1537 = vmatprep.mubr.f32.mxu0 0.0
        %v1538 = vand.u32 %v468, 4294901760
        %1539 = vmatmul.mubr.f32.gmra.mrb[0].mxu0 %v1538
        %v1540 = vpop.f32.mrb[0].mxu0
        %v1541 = vadd.f32 %v1312, %v1540
        %v1542 = vpop.f32.mrb[0].mxu0
        %1543 = vmatprep.mubr.f32.mxu0 0.0
        %v1544 = vand.u32 %v469, 4294901760
        %1545 = vmatmul.mubr.f32.gmra.mrb[0].mxu0 %v1544
        %v1546 = vpop.f32.mrb[0].mxu0
        %v1547 = vadd.f32 %v1320, %v1546
        %v1548 = vpop.f32.mrb[0].mxu0
        %1549 = vmatprep.mubr.f32.mxu0 0.0
        %v1550 = vand.u32 %v470, 4294901760
        %1551 = vmatmul.mubr.f32.gmra.mrb[0].mxu0 %v1550
        %v1552 = vpop.f32.mrb[0].mxu0
        %v1553 = vadd.f32 %v1328, %v1552
        %v1554 = vpop.f32.mrb[0].mxu0
        %1555 = vmatprep.mubr.f32.mxu0 0.0
        %v1556 = vand.u32 %v471, 4294901760
        %1557 = vmatmul.mubr.f32.gmra.mrb[0].mxu0 %v1556
        %v1558 = vpop.f32.mrb[0].mxu0
        %v1559 = vadd.f32 %v1336, %v1558
        %v1560 = vpop.f32.mrb[0].mxu0
        %1561 = vmatprep.mubr.f32.mxu0 0.0
        %v1562 = vand.u32 %v472, 4294901760
        %1563 = vmatmul.mubr.f32.gmra.mrb[0].mxu0 %v1562
        %v1564 = vpop.f32.mrb[0].mxu0
        %v1565 = vadd.f32 %v1344, %v1564
        %v1566 = vpop.f32.mrb[0].mxu0
        %1567 = vmatprep.mubr.f32.mxu0 0.0
        %v1568 = vand.u32 %v473, 4294901760
        %1569 = vmatmul.mubr.f32.gmra.mrb[0].mxu0 %v1568
        %v1570 = vpop.f32.mrb[0].mxu0
        %v1571 = vadd.f32 %v1352, %v1570
        %v1572 = vpop.f32.mrb[0].mxu0
        %1573 = vmatprep.mubr.f32.mxu0 0.0
        %v1574 = vand.u32 %v474, 4294901760
        %1575 = vmatmul.mubr.f32.gmra.mrb[0].mxu0 %v1574
        %v1576 = vpop.f32.mrb[0].mxu0
        %v1577 = vadd.f32 %v1360, %v1576
        %v1578 = vpop.f32.mrb[0].mxu0
        %1579 = vmatprep.mubr.f32.mxu0 0.0
        %v1580 = vand.u32 %v475, 4294901760
        %1581 = vmatmul.mubr.f32.gmra.mrb[0].mxu0 %v1580
        %v1582 = vpop.f32.mrb[0].mxu0
        %v1583 = vadd.f32 %v1368, %v1582
        %v1584 = vpop.f32.mrb[0].mxu0
        %1585 = vmatprep.mubr.f32.mxu0 0.0
        %v1586 = vand.u32 %v476, 4294901760
        %1587 = vmatmul.mubr.f32.gmra.mrb[0].mxu0 %v1586
        %v1588 = vpop.f32.mrb[0].mxu0
        %v1589 = vadd.f32 %v1376, %v1588
        %v1590 = vpop.f32.mrb[0].mxu0
        %1591 = vmatprep.mubr.f32.mxu0 0.0
        %v1592 = vand.u32 %v477, 4294901760
        %1593 = vmatmul.mubr.f32.gmra.mrb[0].mxu0 %v1592
        %v1594 = vpop.f32.mrb[0].mxu0
        %v1595 = vadd.f32 %v1384, %v1594
        %v1596 = vpop.f32.mrb[0].mxu0
        %1597 = vmatprep.mubr.f32.mxu0 0.0
        %v1598 = vand.u32 %v478, 4294901760
        %1599 = vmatmul.mubr.f32.gmra.mrb[0].mxu0 %v1598
        %v1600 = vpop.f32.mrb[0].mxu0
        %v1601 = vadd.f32 %v1392, %v1600
        %v1602 = vpop.f32.mrb[0].mxu0
        %1603 = vdwg.mxu0
        %1604 = vmatprep.subr.mxu0 0.0
        %v1605 = vand.u32 %v479, 4294901760
        %1606 = vmatpush1.msra.mxu0 %v1605
        %1607 = vmatprep.subr.mxu0 0.0
        %v1608 = vand.u32 %v480, 4294901760
        %1609 = vmatpush1.msra.mxu0 %v1608
        %1610 = vmatprep.subr.mxu0 0.0
        %v1611 = vand.u32 %v481, 4294901760
        %1612 = vmatpush1.msra.mxu0 %v1611
        %1613 = vmatprep.subr.mxu0 0.0
        %v1614 = vand.u32 %v482, 4294901760
        %1615 = vmatpush1.msra.mxu0 %v1614
        %1616 = vmatprep.subr.mxu0 0.0
        %v1617 = vand.u32 %v483, 4294901760
        %1618 = vmatpush1.msra.mxu0 %v1617
        %1619 = vmatprep.subr.mxu0 0.0
        %v1620 = vand.u32 %v484, 4294901760
        %1621 = vmatpush1.msra.mxu0 %v1620
        %1622 = vmatprep.subr.mxu0 0.0
        %v1623 = vand.u32 %v485, 4294901760
        %1624 = vmatpush1.msra.mxu0 %v1623
        %1625 = vmatprep.subr.mxu0 0.0
        %v1626 = vand.u32 %v486, 4294901760
        %1627 = vmatpush1.msra.mxu0 %v1626
        %1628 = vmatprep.subr.mxu0 0.0
        %v1629 = vand.u32 %v487, 4294901760
        %1630 = vmatpush1.msra.mxu0 %v1629
        %1631 = vmatprep.subr.mxu0 0.0
        %v1632 = vand.u32 %v488, 4294901760
        %1633 = vmatpush1.msra.mxu0 %v1632
        %1634 = vmatprep.subr.mxu0 0.0
        %v1635 = vand.u32 %v489, 4294901760
        %1636 = vmatpush1.msra.mxu0 %v1635
        %1637 = vmatprep.subr.mxu0 0.0
        %v1638 = vand.u32 %v490, 4294901760
        %1639 = vmatpush1.msra.mxu0 %v1638
        %1640 = vmatprep.subr.mxu0 0.0
        %v1641 = vand.u32 %v491, 4294901760
        %1642 = vmatpush1.msra.mxu0 %v1641
        %1643 = vmatprep.subr.mxu0 0.0
        %v1644 = vand.u32 %v492, 4294901760
        %1645 = vmatpush1.msra.mxu0 %v1644
        %1646 = vmatprep.subr.mxu0 0.0
        %v1647 = vand.u32 %v493, 4294901760
        %1648 = vmatpush1.msra.mxu0 %v1647
        %1649 = vmatprep.subr.mxu0 0.0
        %v1650 = vand.u32 %v494, 4294901760
        %1651 = vmatpush1.msra.mxu0 %v1650
        %1652 = vmatprep.subr.mxu0 0.0
        %1653 = vmatpush1.msra.mxu0 0.0
        %1654 = vmatprep.subr.mxu0 0.0
        %1655 = vmatpush1.msra.mxu0 0.0
        %1656 = vmatprep.subr.mxu0 0.0
        %1657 = vmatpush1.msra.mxu0 0.0
        %1658 = vmatprep.subr.mxu0 0.0
        %1659 = vmatpush1.msra.mxu0 0.0
        %1660 = vmatprep.subr.mxu0 0.0
        %1661 = vmatpush1.msra.mxu0 0.0
        %1662 = vmatprep.subr.mxu0 0.0
        %1663 = vmatpush1.msra.mxu0 0.0
        %1664 = vmatprep.subr.mxu0 0.0
        %1665 = vmatpush1.msra.mxu0 0.0
        %1666 = vmatprep.subr.mxu0 0.0
        %1667 = vmatpush1.msra.mxu0 0.0
        %1668 = vmatprep.subr.mxu0 0.0
        %1669 = vmatpush1.msra.mxu0 0.0
        %1670 = vmatprep.subr.mxu0 0.0
        %1671 = vmatpush1.msra.mxu0 0.0
        %1672 = vmatprep.subr.mxu0 0.0
        %1673 = vmatpush1.msra.mxu0 0.0
        %1674 = vmatprep.subr.mxu0 0.0
        %1675 = vmatpush1.msra.mxu0 0.0
        %1676 = vmatprep.subr.mxu0 0.0
        %1677 = vmatpush1.msra.mxu0 0.0
        %1678 = vmatprep.subr.mxu0 0.0
        %1679 = vmatpush1.msra.mxu0 0.0
        %1680 = vmatprep.subr.mxu0 0.0
        %1681 = vmatpush1.msra.mxu0 0.0
        %1682 = vmatprep.subr.mxu0 0.0
        %1683 = vmatpush1.msra.mxu0 0.0
        %1684 = vmatprep.mubr.f32.mxu0 0.0
        %v1685 = vand.u32 %v463, 4294901760
        %1686 = vmatmul.mubr.f32.gmra.mrb[0].mxu0 %v1685
        %v1687 = vpop.f32.mrb[0].mxu0
        %v1688 = vadd.f32 %v1511, %v1687
        %v1689 = vpop.f32.mrb[0].mxu0
        %1690 = vmatprep.mubr.f32.mxu0 0.0
        %v1691 = vand.u32 %v464, 4294901760
        %1692 = vmatmul.mubr.f32.gmra.mrb[0].mxu0 %v1691
        %v1693 = vpop.f32.mrb[0].mxu0
        %v1694 = vadd.f32 %v1517, %v1693
        %v1695 = vpop.f32.mrb[0].mxu0
        %1696 = vmatprep.mubr.f32.mxu0 0.0
        %v1697 = vand.u32 %v465, 4294901760
        %1698 = vmatmul.mubr.f32.gmra.mrb[0].mxu0 %v1697
        %v1699 = vpop.f32.mrb[0].mxu0
        %v1700 = vadd.f32 %v1523, %v1699
        %v1701 = vpop.f32.mrb[0].mxu0
        %1702 = vmatprep.mubr.f32.mxu0 0.0
        %v1703 = vand.u32 %v466, 4294901760
        %1704 = vmatmul.mubr.f32.gmra.mrb[0].mxu0 %v1703
        %v1705 = vpop.f32.mrb[0].mxu0
        %v1706 = vadd.f32 %v1529, %v1705
        %v1707 = vpop.f32.mrb[0].mxu0
        %1708 = vmatprep.mubr.f32.mxu0 0.0
        %v1709 = vand.u32 %v467, 4294901760
        %1710 = vmatmul.mubr.f32.gmra.mrb[0].mxu0 %v1709
        %v1711 = vpop.f32.mrb[0].mxu0
        %v1712 = vadd.f32 %v1535, %v1711
        %v1713 = vpop.f32.mrb[0].mxu0
        %1714 = vmatprep.mubr.f32.mxu0 0.0
        %v1715 = vand.u32 %v468, 4294901760
        %1716 = vmatmul.mubr.f32.gmra.mrb[0].mxu0 %v1715
        %v1717 = vpop.f32.mrb[0].mxu0
        %v1718 = vadd.f32 %v1541, %v1717
        %v1719 = vpop.f32.mrb[0].mxu0
        %1720 = vmatprep.mubr.f32.mxu0 0.0
        %v1721 = vand.u32 %v469, 4294901760
        %1722 = vmatmul.mubr.f32.gmra.mrb[0].mxu0 %v1721
        %v1723 = vpop.f32.mrb[0].mxu0
        %v1724 = vadd.f32 %v1547, %v1723
        %v1725 = vpop.f32.mrb[0].mxu0
        %1726 = vmatprep.mubr.f32.mxu0 0.0
        %v1727 = vand.u32 %v470, 4294901760
        %1728 = vmatmul.mubr.f32.gmra.mrb[0].mxu0 %v1727
        %v1729 = vpop.f32.mrb[0].mxu0
        %v1730 = vadd.f32 %v1553, %v1729
        %v1731 = vpop.f32.mrb[0].mxu0
        %1732 = vmatprep.mubr.f32.mxu0 0.0
        %v1733 = vand.u32 %v471, 4294901760
        %1734 = vmatmul.mubr.f32.gmra.mrb[0].mxu0 %v1733
        %v1735 = vpop.f32.mrb[0].mxu0
        %v1736 = vadd.f32 %v1559, %v1735
        %v1737 = vpop.f32.mrb[0].mxu0
        %1738 = vmatprep.mubr.f32.mxu0 0.0
        %v1739 = vand.u32 %v472, 4294901760
        %1740 = vmatmul.mubr.f32.gmra.mrb[0].mxu0 %v1739
        %v1741 = vpop.f32.mrb[0].mxu0
        %v1742 = vadd.f32 %v1565, %v1741
        %v1743 = vpop.f32.mrb[0].mxu0
        %1744 = vmatprep.mubr.f32.mxu0 0.0
        %v1745 = vand.u32 %v473, 4294901760
        %1746 = vmatmul.mubr.f32.gmra.mrb[0].mxu0 %v1745
        %v1747 = vpop.f32.mrb[0].mxu0
        %v1748 = vadd.f32 %v1571, %v1747
        %v1749 = vpop.f32.mrb[0].mxu0
        %1750 = vmatprep.mubr.f32.mxu0 0.0
        %v1751 = vand.u32 %v474, 4294901760
        %1752 = vmatmul.mubr.f32.gmra.mrb[0].mxu0 %v1751
        %v1753 = vpop.f32.mrb[0].mxu0
        %v1754 = vadd.f32 %v1577, %v1753
        %v1755 = vpop.f32.mrb[0].mxu0
        %1756 = vmatprep.mubr.f32.mxu0 0.0
        %v1757 = vand.u32 %v475, 4294901760
        %1758 = vmatmul.mubr.f32.gmra.mrb[0].mxu0 %v1757
        %v1759 = vpop.f32.mrb[0].mxu0
        %v1760 = vadd.f32 %v1583, %v1759
        %v1761 = vpop.f32.mrb[0].mxu0
        %1762 = vmatprep.mubr.f32.mxu0 0.0
        %v1763 = vand.u32 %v476, 4294901760
        %1764 = vmatmul.mubr.f32.gmra.mrb[0].mxu0 %v1763
        %v1765 = vpop.f32.mrb[0].mxu0
        %v1766 = vadd.f32 %v1589, %v1765
        %v1767 = vpop.f32.mrb[0].mxu0
        %1768 = vmatprep.mubr.f32.mxu0 0.0
        %v1769 = vand.u32 %v477, 4294901760
        %1770 = vmatmul.mubr.f32.gmra.mrb[0].mxu0 %v1769
        %v1771 = vpop.f32.mrb[0].mxu0
        %v1772 = vadd.f32 %v1595, %v1771
        %v1773 = vpop.f32.mrb[0].mxu0
        %1774 = vmatprep.mubr.f32.mxu0 0.0
        %v1775 = vand.u32 %v478, 4294901760
        %1776 = vmatmul.mubr.f32.gmra.mrb[0].mxu0 %v1775
        %v1777 = vpop.f32.mrb[0].mxu0
        %v1778 = vadd.f32 %v1601, %v1777
        %v1779 = vpop.f32.mrb[0].mxu0
        %1780 = vdwg.mxu0
        %v1781 = vld [vmem:[%s395] sm:$0xff]
        %v1782 = vld [vmem:[%s395 + $0x8] sm:$0xff]
        %v1783 = vld [vmem:[%s395 + $0x10] sm:$0xff]
        %v1784 = vld [vmem:[%s395 + $0x18] sm:$0xff]
        %v1785 = vld [vmem:[%s395 + $0x20] sm:$0xff]
        %v1786 = vld [vmem:[%s395 + $0x28] sm:$0xff]
        %v1787 = vld [vmem:[%s395 + $0x30] sm:$0xff]
        %v1788 = vld [vmem:[%s395 + $0x38] sm:$0xff]
        %v1789 = vld [vmem:[%s395 + $0x40] sm:$0xff]
        %v1790 = vld [vmem:[%s395 + $0x48] sm:$0xff]
        %v1791 = vld [vmem:[%s395 + $0x50] sm:$0xff]
        %v1792 = vld [vmem:[%s395 + $0x58] sm:$0xff]
        %v1793 = vld [vmem:[%s395 + $0x60] sm:$0xff]
        %v1794 = vld [vmem:[%s395 + $0x68] sm:$0xff]
        %v1795 = vld [vmem:[%s395 + $0x70] sm:$0xff]
        %v1796 = vld [vmem:[%s395 + $0x78] sm:$0xff]
        %v1797 = vlaneseq
        %v1798 = vand.u32 %v1797, 127
        %v1799 = vadd.s32 %v1798, 128
        %1800 = vset.pattern.permute.xlu0 0
        %1801 = vperm.xlu0 %1800, %v1781
        %v1802 = vpop.permute.xlu0 %1801
        %1803 = vset.pattern.permute.xlu0 0
        %1804 = vperm.xlu0 %1803, %v1782
        %v1805 = vpop.permute.xlu0 %1804
        %1806 = vset.pattern.permute.xlu0 0
        %1807 = vperm.xlu0 %1806, %v1783
        %v1808 = vpop.permute.xlu0 %1807
        %1809 = vset.pattern.permute.xlu0 0
        %1810 = vperm.xlu0 %1809, %v1784
        %v1811 = vpop.permute.xlu0 %1810
        %1812 = vset.pattern.permute.xlu0 0
        %1813 = vperm.xlu0 %1812, %v1785
        %v1814 = vpop.permute.xlu0 %1813
        %1815 = vset.pattern.permute.xlu0 0
        %1816 = vperm.xlu0 %1815, %v1786
        %v1817 = vpop.permute.xlu0 %1816
        %1818 = vset.pattern.permute.xlu0 0
        %1819 = vperm.xlu0 %1818, %v1787
        %v1820 = vpop.permute.xlu0 %1819
        %1821 = vset.pattern.permute.xlu0 0
        %1822 = vperm.xlu0 %1821, %v1788
        %v1823 = vpop.permute.xlu0 %1822
        %1824 = vset.pattern.permute.xlu0 0
        %1825 = vperm.xlu0 %1824, %v1789
        %v1826 = vpop.permute.xlu0 %1825
        %1827 = vset.pattern.permute.xlu0 0
        %1828 = vperm.xlu0 %1827, %v1790
        %v1829 = vpop.permute.xlu0 %1828
        %1830 = vset.pattern.permute.xlu0 0
        %1831 = vperm.xlu0 %1830, %v1791
        %v1832 = vpop.permute.xlu0 %1831
        %1833 = vset.pattern.permute.xlu0 0
        %1834 = vperm.xlu0 %1833, %v1792
        %v1835 = vpop.permute.xlu0 %1834
        %1836 = vset.pattern.permute.xlu0 0
        %1837 = vperm.xlu0 %1836, %v1793
        %v1838 = vpop.permute.xlu0 %1837
        %1839 = vset.pattern.permute.xlu0 0
        %1840 = vperm.xlu0 %1839, %v1794
        %v1841 = vpop.permute.xlu0 %1840
        %1842 = vset.pattern.permute.xlu0 0
        %1843 = vperm.xlu0 %1842, %v1795
        %v1844 = vpop.permute.xlu0 %1843
        %1845 = vset.pattern.permute.xlu0 0
        %1846 = vperm.xlu0 %1845, %v1796
        %v1847 = vpop.permute.xlu0 %1846
        %vm1848 = vcmp.eq.s32.totalorder %v1798, %v1802
        %vm1849 = vcmp.eq.s32.totalorder %v1799, %v1802
        %vm1850 = vcmp.eq.s32.totalorder %v1798, %v1805
        %vm1851 = vcmp.eq.s32.totalorder %v1799, %v1805
        %vm1852 = vcmp.eq.s32.totalorder %v1798, %v1808
        %vm1853 = vcmp.eq.s32.totalorder %v1799, %v1808
        %vm1854 = vcmp.eq.s32.totalorder %v1798, %v1811
        %vm1855 = vcmp.eq.s32.totalorder %v1799, %v1811
        %vm1856 = vcmp.eq.s32.totalorder %v1798, %v1814
        %vm1857 = vcmp.eq.s32.totalorder %v1799, %v1814
        %vm1858 = vcmp.eq.s32.totalorder %v1798, %v1817
        %vm1859 = vcmp.eq.s32.totalorder %v1799, %v1817
        %vm1860 = vcmp.eq.s32.totalorder %v1798, %v1820
        %vm1861 = vcmp.eq.s32.totalorder %v1799, %v1820
        %vm1862 = vcmp.eq.s32.totalorder %v1798, %v1823
        %vm1863 = vcmp.eq.s32.totalorder %v1799, %v1823
        %vm1864 = vcmp.eq.s32.totalorder %v1798, %v1826
        %vm1865 = vcmp.eq.s32.totalorder %v1799, %v1826
        %vm1866 = vcmp.eq.s32.totalorder %v1798, %v1829
        %vm1867 = vcmp.eq.s32.totalorder %v1799, %v1829
        %vm1868 = vcmp.eq.s32.totalorder %v1798, %v1832
        %vm1869 = vcmp.eq.s32.totalorder %v1799, %v1832
        %vm1870 = vcmp.eq.s32.totalorder %v1798, %v1835
        %vm1871 = vcmp.eq.s32.totalorder %v1799, %v1835
        %vm1872 = vcmp.eq.s32.totalorder %v1798, %v1838
        %vm1873 = vcmp.eq.s32.totalorder %v1799, %v1838
        %vm1874 = vcmp.eq.s32.totalorder %v1798, %v1841
        %vm1875 = vcmp.eq.s32.totalorder %v1799, %v1841
        %vm1876 = vcmp.eq.s32.totalorder %v1798, %v1844
        %vm1877 = vcmp.eq.s32.totalorder %v1799, %v1844
        %vm1878 = vcmp.eq.s32.totalorder %v1798, %v1847
        %vm1879 = vcmp.eq.s32.totalorder %v1799, %v1847
        %v1880 = vsel %vm1848, 1.0, 0.0
        %v1881 = vsel %vm1849, 1.0, 0.0
        %v1882 = vsel %vm1850, 1.0, 0.0
        %v1883 = vsel %vm1851, 1.0, 0.0
        %v1884 = vsel %vm1852, 1.0, 0.0
        %v1885 = vsel %vm1853, 1.0, 0.0
        %v1886 = vsel %vm1854, 1.0, 0.0
        %v1887 = vsel %vm1855, 1.0, 0.0
        %v1888 = vsel %vm1856, 1.0, 0.0
        %v1889 = vsel %vm1857, 1.0, 0.0
        %v1890 = vsel %vm1858, 1.0, 0.0
        %v1891 = vsel %vm1859, 1.0, 0.0
        %v1892 = vsel %vm1860, 1.0, 0.0
        %v1893 = vsel %vm1861, 1.0, 0.0
        %v1894 = vsel %vm1862, 1.0, 0.0
        %v1895 = vsel %vm1863, 1.0, 0.0
        %v1896 = vsel %vm1864, 1.0, 0.0
        %v1897 = vsel %vm1865, 1.0, 0.0
        %v1898 = vsel %vm1866, 1.0, 0.0
        %v1899 = vsel %vm1867, 1.0, 0.0
        %v1900 = vsel %vm1868, 1.0, 0.0
        %v1901 = vsel %vm1869, 1.0, 0.0
        %v1902 = vsel %vm1870, 1.0, 0.0
        %v1903 = vsel %vm1871, 1.0, 0.0
        %v1904 = vsel %vm1872, 1.0, 0.0
        %v1905 = vsel %vm1873, 1.0, 0.0
        %v1906 = vsel %vm1874, 1.0, 0.0
        %v1907 = vsel %vm1875, 1.0, 0.0
        %v1908 = vsel %vm1876, 1.0, 0.0
        %v1909 = vsel %vm1877, 1.0, 0.0
        %v1910 = vsel %vm1878, 1.0, 0.0
        %v1911 = vsel %vm1879, 1.0, 0.0
        %v1912 = vld [vmem:[#allocation2] sm:$0xff]
        %v1913 = vld [vmem:[#allocation2 + $0x8] sm:$0xff]
        %v1914 = vld [vmem:[#allocation2 + $0x10] sm:$0xff]
        %v1915 = vld [vmem:[#allocation2 + $0x18] sm:$0xff]
        %v1916 = vld [vmem:[#allocation2 + $0x20] sm:$0xff]
        %v1917 = vld [vmem:[#allocation2 + $0x28] sm:$0xff]
        %v1918 = vld [vmem:[#allocation2 + $0x30] sm:$0xff]
        %v1919 = vld [vmem:[#allocation2 + $0x38] sm:$0xff]
        %v1920 = vld [vmem:[#allocation2 + $0x40] sm:$0xff]
        %v1921 = vld [vmem:[#allocation2 + $0x48] sm:$0xff]
        %v1922 = vld [vmem:[#allocation2 + $0x50] sm:$0xff]
        %v1923 = vld [vmem:[#allocation2 + $0x58] sm:$0xff]
        %v1924 = vld [vmem:[#allocation2 + $0x60] sm:$0xff]
        %v1925 = vld [vmem:[#allocation2 + $0x68] sm:$0xff]
        %v1926 = vld [vmem:[#allocation2 + $0x70] sm:$0xff]
        %v1927 = vld [vmem:[#allocation2 + $0x78] sm:$0xff]
        %v1928 = vld [vmem:[#allocation2 + $0x80] sm:$0xff]
        %v1929 = vld [vmem:[#allocation2 + $0x88] sm:$0xff]
        %v1930 = vld [vmem:[#allocation2 + $0x90] sm:$0xff]
        %v1931 = vld [vmem:[#allocation2 + $0x98] sm:$0xff]
        %v1932 = vld [vmem:[#allocation2 + $0xa0] sm:$0xff]
        %v1933 = vld [vmem:[#allocation2 + $0xa8] sm:$0xff]
        %v1934 = vld [vmem:[#allocation2 + $0xb0] sm:$0xff]
        %v1935 = vld [vmem:[#allocation2 + $0xb8] sm:$0xff]
        %v1936 = vld [vmem:[#allocation2 + $0xc0] sm:$0xff]
        %v1937 = vld [vmem:[#allocation2 + $0xc8] sm:$0xff]
        %v1938 = vld [vmem:[#allocation2 + $0xd0] sm:$0xff]
        %v1939 = vld [vmem:[#allocation2 + $0xd8] sm:$0xff]
        %v1940 = vld [vmem:[#allocation2 + $0xe0] sm:$0xff]
        %v1941 = vld [vmem:[#allocation2 + $0xe8] sm:$0xff]
        %v1942 = vld [vmem:[#allocation2 + $0xf0] sm:$0xff]
        %v1943 = vld [vmem:[#allocation2 + $0xf8] sm:$0xff]
        %1944 = vmatprep.subr.mxu0 0.0
        %v1945 = vand.u32 %v1912, 4294901760
        %1946 = vmatpush1.msra.mxu0 %v1945
        %1947 = vmatprep.subr.mxu0 0.0
        %v1948 = vand.u32 %v1913, 4294901760
        %1949 = vmatpush1.msra.mxu0 %v1948
        %1950 = vmatprep.subr.mxu0 0.0
        %v1951 = vand.u32 %v1914, 4294901760
        %1952 = vmatpush1.msra.mxu0 %v1951
        %1953 = vmatprep.subr.mxu0 0.0
        %v1954 = vand.u32 %v1915, 4294901760
        %1955 = vmatpush1.msra.mxu0 %v1954
        %1956 = vmatprep.subr.mxu0 0.0
        %v1957 = vand.u32 %v1916, 4294901760
        %1958 = vmatpush1.msra.mxu0 %v1957
        %1959 = vmatprep.subr.mxu0 0.0
        %v1960 = vand.u32 %v1917, 4294901760
        %1961 = vmatpush1.msra.mxu0 %v1960
        %1962 = vmatprep.subr.mxu0 0.0
        %v1963 = vand.u32 %v1918, 4294901760
        %1964 = vmatpush1.msra.mxu0 %v1963
        %1965 = vmatprep.subr.mxu0 0.0
        %v1966 = vand.u32 %v1919, 4294901760
        %1967 = vmatpush1.msra.mxu0 %v1966
        %1968 = vmatprep.subr.mxu0 0.0
        %v1969 = vand.u32 %v1920, 4294901760
        %1970 = vmatpush1.msra.mxu0 %v1969
        %1971 = vmatprep.subr.mxu0 0.0
        %v1972 = vand.u32 %v1921, 4294901760
        %1973 = vmatpush1.msra.mxu0 %v1972
        %1974 = vmatprep.subr.mxu0 0.0
        %v1975 = vand.u32 %v1922, 4294901760
        %1976 = vmatpush1.msra.mxu0 %v1975
        %1977 = vmatprep.subr.mxu0 0.0
        %v1978 = vand.u32 %v1923, 4294901760
        %1979 = vmatpush1.msra.mxu0 %v1978
        %1980 = vmatprep.subr.mxu0 0.0
        %v1981 = vand.u32 %v1924, 4294901760
        %1982 = vmatpush1.msra.mxu0 %v1981
        %1983 = vmatprep.subr.mxu0 0.0
        %v1984 = vand.u32 %v1925, 4294901760
        %1985 = vmatpush1.msra.mxu0 %v1984
        %1986 = vmatprep.subr.mxu0 0.0
        %v1987 = vand.u32 %v1926, 4294901760
        %1988 = vmatpush1.msra.mxu0 %v1987
        %1989 = vmatprep.subr.mxu0 0.0
        %v1990 = vand.u32 %v1927, 4294901760
        %1991 = vmatpush1.msra.mxu0 %v1990
        %1992 = vmatprep.subr.mxu0 0.0
        %v1993 = vand.u32 %v1928, 4294901760
        %1994 = vmatpush1.msra.mxu0 %v1993
        %1995 = vmatprep.subr.mxu0 0.0
        %v1996 = vand.u32 %v1929, 4294901760
        %1997 = vmatpush1.msra.mxu0 %v1996
        %1998 = vmatprep.subr.mxu0 0.0
        %v1999 = vand.u32 %v1930, 4294901760
        %2000 = vmatpush1.msra.mxu0 %v1999
        %2001 = vmatprep.subr.mxu0 0.0
        %v2002 = vand.u32 %v1931, 4294901760
        %2003 = vmatpush1.msra.mxu0 %v2002
        %2004 = vmatprep.subr.mxu0 0.0
        %v2005 = vand.u32 %v1932, 4294901760
        %2006 = vmatpush1.msra.mxu0 %v2005
        %2007 = vmatprep.subr.mxu0 0.0
        %v2008 = vand.u32 %v1933, 4294901760
        %2009 = vmatpush1.msra.mxu0 %v2008
        %2010 = vmatprep.subr.mxu0 0.0
        %v2011 = vand.u32 %v1934, 4294901760
        %2012 = vmatpush1.msra.mxu0 %v2011
        %2013 = vmatprep.subr.mxu0 0.0
        %v2014 = vand.u32 %v1935, 4294901760
        %2015 = vmatpush1.msra.mxu0 %v2014
        %2016 = vmatprep.subr.mxu0 0.0
        %v2017 = vand.u32 %v1936, 4294901760
        %2018 = vmatpush1.msra.mxu0 %v2017
        %2019 = vmatprep.subr.mxu0 0.0
        %v2020 = vand.u32 %v1937, 4294901760
        %2021 = vmatpush1.msra.mxu0 %v2020
        %2022 = vmatprep.subr.mxu0 0.0
        %v2023 = vand.u32 %v1938, 4294901760
        %2024 = vmatpush1.msra.mxu0 %v2023
        %2025 = vmatprep.subr.mxu0 0.0
        %v2026 = vand.u32 %v1939, 4294901760
        %2027 = vmatpush1.msra.mxu0 %v2026
        %2028 = vmatprep.subr.mxu0 0.0
        %v2029 = vand.u32 %v1940, 4294901760
        %2030 = vmatpush1.msra.mxu0 %v2029
        %2031 = vmatprep.subr.mxu0 0.0
        %v2032 = vand.u32 %v1941, 4294901760
        %2033 = vmatpush1.msra.mxu0 %v2032
        %2034 = vmatprep.subr.mxu0 0.0
        %v2035 = vand.u32 %v1942, 4294901760
        %2036 = vmatpush1.msra.mxu0 %v2035
        %2037 = vmatprep.subr.mxu0 0.0
        %v2038 = vand.u32 %v1943, 4294901760
        %2039 = vmatpush1.msra.mxu0 %v2038
        %v2040 = vsub.f32 %v1881, %v1881
        %v2041 = vand.u32 %v2040, 4294901760
        %v2042 = vsub.f32 %v2040, %v2041
        %v2043 = vand.u32 %v2042, 4294901760
        %2044 = vmatprep.mubr.f32.mxu0 %v2043
        %v2045 = vsub.f32 %v1880, %v1880
        %v2046 = vand.u32 %v2045, 4294901760
        %v2047 = vsub.f32 %v2045, %v2046
        %v2048 = vand.u32 %v2047, 4294901760
        %2049 = vmatmul.mubr.f32.gmra.mrb[0].mxu0 %v2048
        %v2050 = vpop.f32.mrb[0].mxu0
        %v2051 = vadd.f32 0.0, %v2050
        %v2052 = vpop.f32.mrb[0].mxu0
        %v2053 = vsub.f32 %v1883, %v1883
        %v2054 = vand.u32 %v2053, 4294901760
        %v2055 = vsub.f32 %v2053, %v2054
        %v2056 = vand.u32 %v2055, 4294901760
        %2057 = vmatprep.mubr.f32.mxu0 %v2056
        %v2058 = vsub.f32 %v1882, %v1882
        %v2059 = vand.u32 %v2058, 4294901760
        %v2060 = vsub.f32 %v2058, %v2059
        %v2061 = vand.u32 %v2060, 4294901760
        %2062 = vmatmul.mubr.f32.gmra.mrb[0].mxu0 %v2061
        %v2063 = vpop.f32.mrb[0].mxu0
        %v2064 = vadd.f32 0.0, %v2063
        %v2065 = vpop.f32.mrb[0].mxu0
        %v2066 = vsub.f32 %v1885, %v1885
        %v2067 = vand.u32 %v2066, 4294901760
        %v2068 = vsub.f32 %v2066, %v2067
        %v2069 = vand.u32 %v2068, 4294901760
        %2070 = vmatprep.mubr.f32.mxu0 %v2069
        %v2071 = vsub.f32 %v1884, %v1884
        %v2072 = vand.u32 %v2071, 4294901760
        %v2073 = vsub.f32 %v2071, %v2072
        %v2074 = vand.u32 %v2073, 4294901760
        %2075 = vmatmul.mubr.f32.gmra.mrb[0].mxu0 %v2074
        %v2076 = vpop.f32.mrb[0].mxu0
        %v2077 = vadd.f32 0.0, %v2076
        %v2078 = vpop.f32.mrb[0].mxu0
        %v2079 = vsub.f32 %v1887, %v1887
        %v2080 = vand.u32 %v2079, 4294901760
        %v2081 = vsub.f32 %v2079, %v2080
        %v2082 = vand.u32 %v2081, 4294901760
        %2083 = vmatprep.mubr.f32.mxu0 %v2082
        %v2084 = vsub.f32 %v1886, %v1886
        %v2085 = vand.u32 %v2084, 4294901760
        %v2086 = vsub.f32 %v2084, %v2085
        %v2087 = vand.u32 %v2086, 4294901760
        %2088 = vmatmul.mubr.f32.gmra.mrb[0].mxu0 %v2087
        %v2089 = vpop.f32.mrb[0].mxu0
        %v2090 = vadd.f32 0.0, %v2089
        %v2091 = vpop.f32.mrb[0].mxu0
        %v2092 = vsub.f32 %v1889, %v1889
        %v2093 = vand.u32 %v2092, 4294901760
        %v2094 = vsub.f32 %v2092, %v2093
        %v2095 = vand.u32 %v2094, 4294901760
        %2096 = vmatprep.mubr.f32.mxu0 %v2095
        %v2097 = vsub.f32 %v1888, %v1888
        %v2098 = vand.u32 %v2097, 4294901760
        %v2099 = vsub.f32 %v2097, %v2098
        %v2100 = vand.u32 %v2099, 4294901760
        %2101 = vmatmul.mubr.f32.gmra.mrb[0].mxu0 %v2100
        %v2102 = vpop.f32.mrb[0].mxu0
        %v2103 = vadd.f32 0.0, %v2102
        %v2104 = vpop.f32.mrb[0].mxu0
        %v2105 = vsub.f32 %v1891, %v1891
        %v2106 = vand.u32 %v2105, 4294901760
        %v2107 = vsub.f32 %v2105, %v2106
        %v2108 = vand.u32 %v2107, 4294901760
        %2109 = vmatprep.mubr.f32.mxu0 %v2108
        %v2110 = vsub.f32 %v1890, %v1890
        %v2111 = vand.u32 %v2110, 4294901760
        %v2112 = vsub.f32 %v2110, %v2111
        %v2113 = vand.u32 %v2112, 4294901760
        %2114 = vmatmul.mubr.f32.gmra.mrb[0].mxu0 %v2113
        %v2115 = vpop.f32.mrb[0].mxu0
        %v2116 = vadd.f32 0.0, %v2115
        %v2117 = vpop.f32.mrb[0].mxu0
        %v2118 = vsub.f32 %v1893, %v1893
        %v2119 = vand.u32 %v2118, 4294901760
        %v2120 = vsub.f32 %v2118, %v2119
        %v2121 = vand.u32 %v2120, 4294901760
        %2122 = vmatprep.mubr.f32.mxu0 %v2121
        %v2123 = vsub.f32 %v1892, %v1892
        %v2124 = vand.u32 %v2123, 4294901760
        %v2125 = vsub.f32 %v2123, %v2124
        %v2126 = vand.u32 %v2125, 4294901760
        %2127 = vmatmul.mubr.f32.gmra.mrb[0].mxu0 %v2126
        %v2128 = vpop.f32.mrb[0].mxu0
        %v2129 = vadd.f32 0.0, %v2128
        %v2130 = vpop.f32.mrb[0].mxu0
        %v2131 = vsub.f32 %v1895, %v1895
        %v2132 = vand.u32 %v2131, 4294901760
        %v2133 = vsub.f32 %v2131, %v2132
        %v2134 = vand.u32 %v2133, 4294901760
        %2135 = vmatprep.mubr.f32.mxu0 %v2134
        %v2136 = vsub.f32 %v1894, %v1894
        %v2137 = vand.u32 %v2136, 4294901760
        %v2138 = vsub.f32 %v2136, %v2137
        %v2139 = vand.u32 %v2138, 4294901760
        %2140 = vmatmul.mubr.f32.gmra.mrb[0].mxu0 %v2139
        %v2141 = vpop.f32.mrb[0].mxu0
        %v2142 = vadd.f32 0.0, %v2141
        %v2143 = vpop.f32.mrb[0].mxu0
        %v2144 = vsub.f32 %v1897, %v1897
        %v2145 = vand.u32 %v2144, 4294901760
        %v2146 = vsub.f32 %v2144, %v2145
        %v2147 = vand.u32 %v2146, 4294901760
        %2148 = vmatprep.mubr.f32.mxu0 %v2147
        %v2149 = vsub.f32 %v1896, %v1896
        %v2150 = vand.u32 %v2149, 4294901760
        %v2151 = vsub.f32 %v2149, %v2150
        %v2152 = vand.u32 %v2151, 4294901760
        %2153 = vmatmul.mubr.f32.gmra.mrb[0].mxu0 %v2152
        %v2154 = vpop.f32.mrb[0].mxu0
        %v2155 = vadd.f32 0.0, %v2154
        %v2156 = vpop.f32.mrb[0].mxu0
        %v2157 = vsub.f32 %v1899, %v1899
        %v2158 = vand.u32 %v2157, 4294901760
        %v2159 = vsub.f32 %v2157, %v2158
        %v2160 = vand.u32 %v2159, 4294901760
        %2161 = vmatprep.mubr.f32.mxu0 %v2160
        %v2162 = vsub.f32 %v1898, %v1898
        %v2163 = vand.u32 %v2162, 4294901760
        %v2164 = vsub.f32 %v2162, %v2163
        %v2165 = vand.u32 %v2164, 4294901760
        %2166 = vmatmul.mubr.f32.gmra.mrb[0].mxu0 %v2165
        %v2167 = vpop.f32.mrb[0].mxu0
        %v2168 = vadd.f32 0.0, %v2167
        %v2169 = vpop.f32.mrb[0].mxu0
        %v2170 = vsub.f32 %v1901, %v1901
        %v2171 = vand.u32 %v2170, 4294901760
        %v2172 = vsub.f32 %v2170, %v2171
        %v2173 = vand.u32 %v2172, 4294901760
        %2174 = vmatprep.mubr.f32.mxu0 %v2173
        %v2175 = vsub.f32 %v1900, %v1900
        %v2176 = vand.u32 %v2175, 4294901760
        %v2177 = vsub.f32 %v2175, %v2176
        %v2178 = vand.u32 %v2177, 4294901760
        %2179 = vmatmul.mubr.f32.gmra.mrb[0].mxu0 %v2178
        %v2180 = vpop.f32.mrb[0].mxu0
        %v2181 = vadd.f32 0.0, %v2180
        %v2182 = vpop.f32.mrb[0].mxu0
        %v2183 = vsub.f32 %v1903, %v1903
        %v2184 = vand.u32 %v2183, 4294901760
        %v2185 = vsub.f32 %v2183, %v2184
        %v2186 = vand.u32 %v2185, 4294901760
        %2187 = vmatprep.mubr.f32.mxu0 %v2186
        %v2188 = vsub.f32 %v1902, %v1902
        %v2189 = vand.u32 %v2188, 4294901760
        %v2190 = vsub.f32 %v2188, %v2189
        %v2191 = vand.u32 %v2190, 4294901760
        %2192 = vmatmul.mubr.f32.gmra.mrb[0].mxu0 %v2191
        %v2193 = vpop.f32.mrb[0].mxu0
        %v2194 = vadd.f32 0.0, %v2193
        %v2195 = vpop.f32.mrb[0].mxu0
        %v2196 = vsub.f32 %v1905, %v1905
        %v2197 = vand.u32 %v2196, 4294901760
        %v2198 = vsub.f32 %v2196, %v2197
        %v2199 = vand.u32 %v2198, 4294901760
        %2200 = vmatprep.mubr.f32.mxu0 %v2199
        %v2201 = vsub.f32 %v1904, %v1904
        %v2202 = vand.u32 %v2201, 4294901760
        %v2203 = vsub.f32 %v2201, %v2202
        %v2204 = vand.u32 %v2203, 4294901760
        %2205 = vmatmul.mubr.f32.gmra.mrb[0].mxu0 %v2204
        %v2206 = vpop.f32.mrb[0].mxu0
        %v2207 = vadd.f32 0.0, %v2206
        %v2208 = vpop.f32.mrb[0].mxu0
        %v2209 = vsub.f32 %v1907, %v1907
        %v2210 = vand.u32 %v2209, 4294901760
        %v2211 = vsub.f32 %v2209, %v2210
        %v2212 = vand.u32 %v2211, 4294901760
        %2213 = vmatprep.mubr.f32.mxu0 %v2212
        %v2214 = vsub.f32 %v1906, %v1906
        %v2215 = vand.u32 %v2214, 4294901760
        %v2216 = vsub.f32 %v2214, %v2215
        %v2217 = vand.u32 %v2216, 4294901760
        %2218 = vmatmul.mubr.f32.gmra.mrb[0].mxu0 %v2217
        %v2219 = vpop.f32.mrb[0].mxu0
        %v2220 = vadd.f32 0.0, %v2219
        %v2221 = vpop.f32.mrb[0].mxu0
        %v2222 = vsub.f32 %v1909, %v1909
        %v2223 = vand.u32 %v2222, 4294901760
        %v2224 = vsub.f32 %v2222, %v2223
        %v2225 = vand.u32 %v2224, 4294901760
        %2226 = vmatprep.mubr.f32.mxu0 %v2225
        %v2227 = vsub.f32 %v1908, %v1908
        %v2228 = vand.u32 %v2227, 4294901760
        %v2229 = vsub.f32 %v2227, %v2228
        %v2230 = vand.u32 %v2229, 4294901760
        %2231 = vmatmul.mubr.f32.gmra.mrb[0].mxu0 %v2230
        %v2232 = vpop.f32.mrb[0].mxu0
        %v2233 = vadd.f32 0.0, %v2232
        %v2234 = vpop.f32.mrb[0].mxu0
        %v2235 = vsub.f32 %v1911, %v1911
        %v2236 = vand.u32 %v2235, 4294901760
        %v2237 = vsub.f32 %v2235, %v2236
        %v2238 = vand.u32 %v2237, 4294901760
        %2239 = vmatprep.mubr.f32.mxu0 %v2238
        %v2240 = vsub.f32 %v1910, %v1910
        %v2241 = vand.u32 %v2240, 4294901760
        %v2242 = vsub.f32 %v2240, %v2241
        %v2243 = vand.u32 %v2242, 4294901760
        %2244 = vmatmul.mubr.f32.gmra.mrb[0].mxu0 %v2243
        %v2245 = vpop.f32.mrb[0].mxu0
        %v2246 = vadd.f32 0.0, %v2245
        %v2247 = vpop.f32.mrb[0].mxu0
        %2248 = vdwg.mxu0
        %2249 = vmatprep.subr.mxu0 0.0
        %v2250 = vand.u32 %v1912, 4294901760
        %v2251 = vsub.f32 %v1912, %v2250
        %v2252 = vand.u32 %v2251, 4294901760
        %v2253 = vsub.f32 %v2251, %v2252
        %v2254 = vand.u32 %v2253, 4294901760
        %2255 = vmatpush1.msra.mxu0 %v2254
        %2256 = vmatprep.subr.mxu0 0.0
        %v2257 = vand.u32 %v1913, 4294901760
        %v2258 = vsub.f32 %v1913, %v2257
        %v2259 = vand.u32 %v2258, 4294901760
        %v2260 = vsub.f32 %v2258, %v2259
        %v2261 = vand.u32 %v2260, 4294901760
        %2262 = vmatpush1.msra.mxu0 %v2261
        %2263 = vmatprep.subr.mxu0 0.0
        %v2264 = vand.u32 %v1914, 4294901760
        %v2265 = vsub.f32 %v1914, %v2264
        %v2266 = vand.u32 %v2265, 4294901760
        %v2267 = vsub.f32 %v2265, %v2266
        %v2268 = vand.u32 %v2267, 4294901760
        %2269 = vmatpush1.msra.mxu0 %v2268
        %2270 = vmatprep.subr.mxu0 0.0
        %v2271 = vand.u32 %v1915, 4294901760
        %v2272 = vsub.f32 %v1915, %v2271
        %v2273 = vand.u32 %v2272, 4294901760
        %v2274 = vsub.f32 %v2272, %v2273
        %v2275 = vand.u32 %v2274, 4294901760
        %2276 = vmatpush1.msra.mxu0 %v2275
        %2277 = vmatprep.subr.mxu0 0.0
        %v2278 = vand.u32 %v1916, 4294901760
        %v2279 = vsub.f32 %v1916, %v2278
        %v2280 = vand.u32 %v2279, 4294901760
        %v2281 = vsub.f32 %v2279, %v2280
        %v2282 = vand.u32 %v2281, 4294901760
        %2283 = vmatpush1.msra.mxu0 %v2282
        %2284 = vmatprep.subr.mxu0 0.0
        %v2285 = vand.u32 %v1917, 4294901760
        %v2286 = vsub.f32 %v1917, %v2285
        %v2287 = vand.u32 %v2286, 4294901760
        %v2288 = vsub.f32 %v2286, %v2287
        %v2289 = vand.u32 %v2288, 4294901760
        %2290 = vmatpush1.msra.mxu0 %v2289
        %2291 = vmatprep.subr.mxu0 0.0
        %v2292 = vand.u32 %v1918, 4294901760
        %v2293 = vsub.f32 %v1918, %v2292
        %v2294 = vand.u32 %v2293, 4294901760
        %v2295 = vsub.f32 %v2293, %v2294
        %v2296 = vand.u32 %v2295, 4294901760
        %2297 = vmatpush1.msra.mxu0 %v2296
        %2298 = vmatprep.subr.mxu0 0.0
        %v2299 = vand.u32 %v1919, 4294901760
        %v2300 = vsub.f32 %v1919, %v2299
        %v2301 = vand.u32 %v2300, 4294901760
        %v2302 = vsub.f32 %v2300, %v2301
        %v2303 = vand.u32 %v2302, 4294901760
        %2304 = vmatpush1.msra.mxu0 %v2303
        %2305 = vmatprep.subr.mxu0 0.0
        %v2306 = vand.u32 %v1920, 4294901760
        %v2307 = vsub.f32 %v1920, %v2306
        %v2308 = vand.u32 %v2307, 4294901760
        %v2309 = vsub.f32 %v2307, %v2308
        %v2310 = vand.u32 %v2309, 4294901760
        %2311 = vmatpush1.msra.mxu0 %v2310
        %2312 = vmatprep.subr.mxu0 0.0
        %v2313 = vand.u32 %v1921, 4294901760
        %v2314 = vsub.f32 %v1921, %v2313
        %v2315 = vand.u32 %v2314, 4294901760
        %v2316 = vsub.f32 %v2314, %v2315
        %v2317 = vand.u32 %v2316, 4294901760
        %2318 = vmatpush1.msra.mxu0 %v2317
        %2319 = vmatprep.subr.mxu0 0.0
        %v2320 = vand.u32 %v1922, 4294901760
        %v2321 = vsub.f32 %v1922, %v2320
        %v2322 = vand.u32 %v2321, 4294901760
        %v2323 = vsub.f32 %v2321, %v2322
        %v2324 = vand.u32 %v2323, 4294901760
        %2325 = vmatpush1.msra.mxu0 %v2324
        %2326 = vmatprep.subr.mxu0 0.0
        %v2327 = vand.u32 %v1923, 4294901760
        %v2328 = vsub.f32 %v1923, %v2327
        %v2329 = vand.u32 %v2328, 4294901760
        %v2330 = vsub.f32 %v2328, %v2329
        %v2331 = vand.u32 %v2330, 4294901760
        %2332 = vmatpush1.msra.mxu0 %v2331
        %2333 = vmatprep.subr.mxu0 0.0
        %v2334 = vand.u32 %v1924, 4294901760
        %v2335 = vsub.f32 %v1924, %v2334
        %v2336 = vand.u32 %v2335, 4294901760
        %v2337 = vsub.f32 %v2335, %v2336
        %v2338 = vand.u32 %v2337, 4294901760
        %2339 = vmatpush1.msra.mxu0 %v2338
        %2340 = vmatprep.subr.mxu0 0.0
        %v2341 = vand.u32 %v1925, 4294901760
        %v2342 = vsub.f32 %v1925, %v2341
        %v2343 = vand.u32 %v2342, 4294901760
        %v2344 = vsub.f32 %v2342, %v2343
        %v2345 = vand.u32 %v2344, 4294901760
        %2346 = vmatpush1.msra.mxu0 %v2345
        %2347 = vmatprep.subr.mxu0 0.0
        %v2348 = vand.u32 %v1926, 4294901760
        %v2349 = vsub.f32 %v1926, %v2348
        %v2350 = vand.u32 %v2349, 4294901760
        %v2351 = vsub.f32 %v2349, %v2350
        %v2352 = vand.u32 %v2351, 4294901760
        %2353 = vmatpush1.msra.mxu0 %v2352
        %2354 = vmatprep.subr.mxu0 0.0
        %v2355 = vand.u32 %v1927, 4294901760
        %v2356 = vsub.f32 %v1927, %v2355
        %v2357 = vand.u32 %v2356, 4294901760
        %v2358 = vsub.f32 %v2356, %v2357
        %v2359 = vand.u32 %v2358, 4294901760
        %2360 = vmatpush1.msra.mxu0 %v2359
        %2361 = vmatprep.subr.mxu0 0.0
        %v2362 = vand.u32 %v1928, 4294901760
        %v2363 = vsub.f32 %v1928, %v2362
        %v2364 = vand.u32 %v2363, 4294901760
        %v2365 = vsub.f32 %v2363, %v2364
        %v2366 = vand.u32 %v2365, 4294901760
        %2367 = vmatpush1.msra.mxu0 %v2366
        %2368 = vmatprep.subr.mxu0 0.0
        %v2369 = vand.u32 %v1929, 4294901760
        %v2370 = vsub.f32 %v1929, %v2369
        %v2371 = vand.u32 %v2370, 4294901760
        %v2372 = vsub.f32 %v2370, %v2371
        %v2373 = vand.u32 %v2372, 4294901760
        %2374 = vmatpush1.msra.mxu0 %v2373
        %2375 = vmatprep.subr.mxu0 0.0
        %v2376 = vand.u32 %v1930, 4294901760
        %v2377 = vsub.f32 %v1930, %v2376
        %v2378 = vand.u32 %v2377, 4294901760
        %v2379 = vsub.f32 %v2377, %v2378
        %v2380 = vand.u32 %v2379, 4294901760
        %2381 = vmatpush1.msra.mxu0 %v2380
        %2382 = vmatprep.subr.mxu0 0.0
        %v2383 = vand.u32 %v1931, 4294901760
        %v2384 = vsub.f32 %v1931, %v2383
        %v2385 = vand.u32 %v2384, 4294901760
        %v2386 = vsub.f32 %v2384, %v2385
        %v2387 = vand.u32 %v2386, 4294901760
        %2388 = vmatpush1.msra.mxu0 %v2387
        %2389 = vmatprep.subr.mxu0 0.0
        %v2390 = vand.u32 %v1932, 4294901760
        %v2391 = vsub.f32 %v1932, %v2390
        %v2392 = vand.u32 %v2391, 4294901760
        %v2393 = vsub.f32 %v2391, %v2392
        %v2394 = vand.u32 %v2393, 4294901760
        %2395 = vmatpush1.msra.mxu0 %v2394
        %2396 = vmatprep.subr.mxu0 0.0
        %v2397 = vand.u32 %v1933, 4294901760
        %v2398 = vsub.f32 %v1933, %v2397
        %v2399 = vand.u32 %v2398, 4294901760
        %v2400 = vsub.f32 %v2398, %v2399
        %v2401 = vand.u32 %v2400, 4294901760
        %2402 = vmatpush1.msra.mxu0 %v2401
        %2403 = vmatprep.subr.mxu0 0.0
        %v2404 = vand.u32 %v1934, 4294901760
        %v2405 = vsub.f32 %v1934, %v2404
        %v2406 = vand.u32 %v2405, 4294901760
        %v2407 = vsub.f32 %v2405, %v2406
        %v2408 = vand.u32 %v2407, 4294901760
        %2409 = vmatpush1.msra.mxu0 %v2408
        %2410 = vmatprep.subr.mxu0 0.0
        %v2411 = vand.u32 %v1935, 4294901760
        %v2412 = vsub.f32 %v1935, %v2411
        %v2413 = vand.u32 %v2412, 4294901760
        %v2414 = vsub.f32 %v2412, %v2413
        %v2415 = vand.u32 %v2414, 4294901760
        %2416 = vmatpush1.msra.mxu0 %v2415
        %2417 = vmatprep.subr.mxu0 0.0
        %v2418 = vand.u32 %v1936, 4294901760
        %v2419 = vsub.f32 %v1936, %v2418
        %v2420 = vand.u32 %v2419, 4294901760
        %v2421 = vsub.f32 %v2419, %v2420
        %v2422 = vand.u32 %v2421, 4294901760
        %2423 = vmatpush1.msra.mxu0 %v2422
        %2424 = vmatprep.subr.mxu0 0.0
        %v2425 = vand.u32 %v1937, 4294901760
        %v2426 = vsub.f32 %v1937, %v2425
        %v2427 = vand.u32 %v2426, 4294901760
        %v2428 = vsub.f32 %v2426, %v2427
        %v2429 = vand.u32 %v2428, 4294901760
        %2430 = vmatpush1.msra.mxu0 %v2429
        %2431 = vmatprep.subr.mxu0 0.0
        %v2432 = vand.u32 %v1938, 4294901760
        %v2433 = vsub.f32 %v1938, %v2432
        %v2434 = vand.u32 %v2433, 4294901760
        %v2435 = vsub.f32 %v2433, %v2434
        %v2436 = vand.u32 %v2435, 4294901760
        %2437 = vmatpush1.msra.mxu0 %v2436
        %2438 = vmatprep.subr.mxu0 0.0
        %v2439 = vand.u32 %v1939, 4294901760
        %v2440 = vsub.f32 %v1939, %v2439
        %v2441 = vand.u32 %v2440, 4294901760
        %v2442 = vsub.f32 %v2440, %v2441
        %v2443 = vand.u32 %v2442, 4294901760
        %2444 = vmatpush1.msra.mxu0 %v2443
        %2445 = vmatprep.subr.mxu0 0.0
        %v2446 = vand.u32 %v1940, 4294901760
        %v2447 = vsub.f32 %v1940, %v2446
        %v2448 = vand.u32 %v2447, 4294901760
        %v2449 = vsub.f32 %v2447, %v2448
        %v2450 = vand.u32 %v2449, 4294901760
        %2451 = vmatpush1.msra.mxu0 %v2450
        %2452 = vmatprep.subr.mxu0 0.0
        %v2453 = vand.u32 %v1941, 4294901760
        %v2454 = vsub.f32 %v1941, %v2453
        %v2455 = vand.u32 %v2454, 4294901760
        %v2456 = vsub.f32 %v2454, %v2455
        %v2457 = vand.u32 %v2456, 4294901760
        %2458 = vmatpush1.msra.mxu0 %v2457
        %2459 = vmatprep.subr.mxu0 0.0
        %v2460 = vand.u32 %v1942, 4294901760
        %v2461 = vsub.f32 %v1942, %v2460
        %v2462 = vand.u32 %v2461, 4294901760
        %v2463 = vsub.f32 %v2461, %v2462
        %v2464 = vand.u32 %v2463, 4294901760
        %2465 = vmatpush1.msra.mxu0 %v2464
        %2466 = vmatprep.subr.mxu0 0.0
        %v2467 = vand.u32 %v1943, 4294901760
        %v2468 = vsub.f32 %v1943, %v2467
        %v2469 = vand.u32 %v2468, 4294901760
        %v2470 = vsub.f32 %v2468, %v2469
        %v2471 = vand.u32 %v2470, 4294901760
        %2472 = vmatpush1.msra.mxu0 %v2471
        %2473 = vmatprep.mubr.f32.mxu0 %v1881
        %2474 = vmatmul.mubr.f32.gmra.mrb[0].mxu0 %v1880
        %v2475 = vpop.f32.mrb[0].mxu0
        %v2476 = vadd.f32 %v2051, %v2475
        %v2477 = vpop.f32.mrb[0].mxu0
        %2478 = vmatprep.mubr.f32.mxu0 %v1883
        %2479 = vmatmul.mubr.f32.gmra.mrb[0].mxu0 %v1882
        %v2480 = vpop.f32.mrb[0].mxu0
        %v2481 = vadd.f32 %v2064, %v2480
        %v2482 = vpop.f32.mrb[0].mxu0
        %2483 = vmatprep.mubr.f32.mxu0 %v1885
        %2484 = vmatmul.mubr.f32.gmra.mrb[0].mxu0 %v1884
        %v2485 = vpop.f32.mrb[0].mxu0
        %v2486 = vadd.f32 %v2077, %v2485
        %v2487 = vpop.f32.mrb[0].mxu0
        %2488 = vmatprep.mubr.f32.mxu0 %v1887
        %2489 = vmatmul.mubr.f32.gmra.mrb[0].mxu0 %v1886
        %v2490 = vpop.f32.mrb[0].mxu0
        %v2491 = vadd.f32 %v2090, %v2490
        %v2492 = vpop.f32.mrb[0].mxu0
        %2493 = vmatprep.mubr.f32.mxu0 %v1889
        %2494 = vmatmul.mubr.f32.gmra.mrb[0].mxu0 %v1888
        %v2495 = vpop.f32.mrb[0].mxu0
        %v2496 = vadd.f32 %v2103, %v2495
        %v2497 = vpop.f32.mrb[0].mxu0
        %2498 = vmatprep.mubr.f32.mxu0 %v1891
        %2499 = vmatmul.mubr.f32.gmra.mrb[0].mxu0 %v1890
        %v2500 = vpop.f32.mrb[0].mxu0
        %v2501 = vadd.f32 %v2116, %v2500
        %v2502 = vpop.f32.mrb[0].mxu0
        %2503 = vmatprep.mubr.f32.mxu0 %v1893
        %2504 = vmatmul.mubr.f32.gmra.mrb[0].mxu0 %v1892
        %v2505 = vpop.f32.mrb[0].mxu0
        %v2506 = vadd.f32 %v2129, %v2505
        %v2507 = vpop.f32.mrb[0].mxu0
        %2508 = vmatprep.mubr.f32.mxu0 %v1895
        %2509 = vmatmul.mubr.f32.gmra.mrb[0].mxu0 %v1894
        %v2510 = vpop.f32.mrb[0].mxu0
        %v2511 = vadd.f32 %v2142, %v2510
        %v2512 = vpop.f32.mrb[0].mxu0
        %2513 = vmatprep.mubr.f32.mxu0 %v1897
        %2514 = vmatmul.mubr.f32.gmra.mrb[0].mxu0 %v1896
        %v2515 = vpop.f32.mrb[0].mxu0
        %v2516 = vadd.f32 %v2155, %v2515
        %v2517 = vpop.f32.mrb[0].mxu0
        %2518 = vmatprep.mubr.f32.mxu0 %v1899
        %2519 = vmatmul.mubr.f32.gmra.mrb[0].mxu0 %v1898
        %v2520 = vpop.f32.mrb[0].mxu0
        %v2521 = vadd.f32 %v2168, %v2520
        %v2522 = vpop.f32.mrb[0].mxu0
        %2523 = vmatprep.mubr.f32.mxu0 %v1901
        %2524 = vmatmul.mubr.f32.gmra.mrb[0].mxu0 %v1900
        %v2525 = vpop.f32.mrb[0].mxu0
        %v2526 = vadd.f32 %v2181, %v2525
        %v2527 = vpop.f32.mrb[0].mxu0
        %2528 = vmatprep.mubr.f32.mxu0 %v1903
        %2529 = vmatmul.mubr.f32.gmra.mrb[0].mxu0 %v1902
        %v2530 = vpop.f32.mrb[0].mxu0
        %v2531 = vadd.f32 %v2194, %v2530
        %v2532 = vpop.f32.mrb[0].mxu0
        %2533 = vmatprep.mubr.f32.mxu0 %v1905
        %2534 = vmatmul.mubr.f32.gmra.mrb[0].mxu0 %v1904
        %v2535 = vpop.f32.mrb[0].mxu0
        %v2536 = vadd.f32 %v2207, %v2535
        %v2537 = vpop.f32.mrb[0].mxu0
        %2538 = vmatprep.mubr.f32.mxu0 %v1907
        %2539 = vmatmul.mubr.f32.gmra.mrb[0].mxu0 %v1906
        %v2540 = vpop.f32.mrb[0].mxu0
        %v2541 = vadd.f32 %v2220, %v2540
        %v2542 = vpop.f32.mrb[0].mxu0
        %2543 = vmatprep.mubr.f32.mxu0 %v1909
        %2544 = vmatmul.mubr.f32.gmra.mrb[0].mxu0 %v1908
        %v2545 = vpop.f32.mrb[0].mxu0
        %v2546 = vadd.f32 %v2233, %v2545
        %v2547 = vpop.f32.mrb[0].mxu0
        %2548 = vmatprep.mubr.f32.mxu0 %v1911
        %2549 = vmatmul.mubr.f32.gmra.mrb[0].mxu0 %v1910
        %v2550 = vpop.f32.mrb[0].mxu0
        %v2551 = vadd.f32 %v2246, %v2550
        %v2552 = vpop.f32.mrb[0].mxu0
        %2553 = vdwg.mxu0
        %2554 = vmatprep.subr.mxu0 0.0
        %v2555 = vand.u32 %v1912, 4294901760
        %v2556 = vsub.f32 %v1912, %v2555
        %2557 = vmatpush1.msra.mxu0 %v2556
        %2558 = vmatprep.subr.mxu0 0.0
        %v2559 = vand.u32 %v1913, 4294901760
        %v2560 = vsub.f32 %v1913, %v2559
        %2561 = vmatpush1.msra.mxu0 %v2560
        %2562 = vmatprep.subr.mxu0 0.0
        %v2563 = vand.u32 %v1914, 4294901760
        %v2564 = vsub.f32 %v1914, %v2563
        %2565 = vmatpush1.msra.mxu0 %v2564
        %2566 = vmatprep.subr.mxu0 0.0
        %v2567 = vand.u32 %v1915, 4294901760
        %v2568 = vsub.f32 %v1915, %v2567
        %2569 = vmatpush1.msra.mxu0 %v2568
        %2570 = vmatprep.subr.mxu0 0.0
        %v2571 = vand.u32 %v1916, 4294901760
        %v2572 = vsub.f32 %v1916, %v2571
        %2573 = vmatpush1.msra.mxu0 %v2572
        %2574 = vmatprep.subr.mxu0 0.0
        %v2575 = vand.u32 %v1917, 4294901760
        %v2576 = vsub.f32 %v1917, %v2575
        %2577 = vmatpush1.msra.mxu0 %v2576
        %2578 = vmatprep.subr.mxu0 0.0
        %v2579 = vand.u32 %v1918, 4294901760
        %v2580 = vsub.f32 %v1918, %v2579
        %2581 = vmatpush1.msra.mxu0 %v2580
        %2582 = vmatprep.subr.mxu0 0.0
        %v2583 = vand.u32 %v1919, 4294901760
        %v2584 = vsub.f32 %v1919, %v2583
        %2585 = vmatpush1.msra.mxu0 %v2584
        %2586 = vmatprep.subr.mxu0 0.0
        %v2587 = vand.u32 %v1920, 4294901760
        %v2588 = vsub.f32 %v1920, %v2587
        %2589 = vmatpush1.msra.mxu0 %v2588
        %2590 = vmatprep.subr.mxu0 0.0
        %v2591 = vand.u32 %v1921, 4294901760
        %v2592 = vsub.f32 %v1921, %v2591
        %2593 = vmatpush1.msra.mxu0 %v2592
        %2594 = vmatprep.subr.mxu0 0.0
        %v2595 = vand.u32 %v1922, 4294901760
        %v2596 = vsub.f32 %v1922, %v2595
        %2597 = vmatpush1.msra.mxu0 %v2596
        %2598 = vmatprep.subr.mxu0 0.0
        %v2599 = vand.u32 %v1923, 4294901760
        %v2600 = vsub.f32 %v1923, %v2599
        %2601 = vmatpush1.msra.mxu0 %v2600
        %2602 = vmatprep.subr.mxu0 0.0
        %v2603 = vand.u32 %v1924, 4294901760
        %v2604 = vsub.f32 %v1924, %v2603
        %2605 = vmatpush1.msra.mxu0 %v2604
        %2606 = vmatprep.subr.mxu0 0.0
        %v2607 = vand.u32 %v1925, 4294901760
        %v2608 = vsub.f32 %v1925, %v2607
        %2609 = vmatpush1.msra.mxu0 %v2608
        %2610 = vmatprep.subr.mxu0 0.0
        %v2611 = vand.u32 %v1926, 4294901760
        %v2612 = vsub.f32 %v1926, %v2611
        %2613 = vmatpush1.msra.mxu0 %v2612
        %2614 = vmatprep.subr.mxu0 0.0
        %v2615 = vand.u32 %v1927, 4294901760
        %v2616 = vsub.f32 %v1927, %v2615
        %2617 = vmatpush1.msra.mxu0 %v2616
        %2618 = vmatprep.subr.mxu0 0.0
        %v2619 = vand.u32 %v1928, 4294901760
        %v2620 = vsub.f32 %v1928, %v2619
        %2621 = vmatpush1.msra.mxu0 %v2620
        %2622 = vmatprep.subr.mxu0 0.0
        %v2623 = vand.u32 %v1929, 4294901760
        %v2624 = vsub.f32 %v1929, %v2623
        %2625 = vmatpush1.msra.mxu0 %v2624
        %2626 = vmatprep.subr.mxu0 0.0
        %v2627 = vand.u32 %v1930, 4294901760
        %v2628 = vsub.f32 %v1930, %v2627
        %2629 = vmatpush1.msra.mxu0 %v2628
        %2630 = vmatprep.subr.mxu0 0.0
        %v2631 = vand.u32 %v1931, 4294901760
        %v2632 = vsub.f32 %v1931, %v2631
        %2633 = vmatpush1.msra.mxu0 %v2632
        %2634 = vmatprep.subr.mxu0 0.0
        %v2635 = vand.u32 %v1932, 4294901760
        %v2636 = vsub.f32 %v1932, %v2635
        %2637 = vmatpush1.msra.mxu0 %v2636
        %2638 = vmatprep.subr.mxu0 0.0
        %v2639 = vand.u32 %v1933, 4294901760
        %v2640 = vsub.f32 %v1933, %v2639
        %2641 = vmatpush1.msra.mxu0 %v2640
        %2642 = vmatprep.subr.mxu0 0.0
        %v2643 = vand.u32 %v1934, 4294901760
        %v2644 = vsub.f32 %v1934, %v2643
        %2645 = vmatpush1.msra.mxu0 %v2644
        %2646 = vmatprep.subr.mxu0 0.0
        %v2647 = vand.u32 %v1935, 4294901760
        %v2648 = vsub.f32 %v1935, %v2647
        %2649 = vmatpush1.msra.mxu0 %v2648
        %2650 = vmatprep.subr.mxu0 0.0
        %v2651 = vand.u32 %v1936, 4294901760
        %v2652 = vsub.f32 %v1936, %v2651
        %2653 = vmatpush1.msra.mxu0 %v2652
        %2654 = vmatprep.subr.mxu0 0.0
        %v2655 = vand.u32 %v1937, 4294901760
        %v2656 = vsub.f32 %v1937, %v2655
        %2657 = vmatpush1.msra.mxu0 %v2656
        %2658 = vmatprep.subr.mxu0 0.0
        %v2659 = vand.u32 %v1938, 4294901760
        %v2660 = vsub.f32 %v1938, %v2659
        %2661 = vmatpush1.msra.mxu0 %v2660
        %2662 = vmatprep.subr.mxu0 0.0
        %v2663 = vand.u32 %v1939, 4294901760
        %v2664 = vsub.f32 %v1939, %v2663
        %2665 = vmatpush1.msra.mxu0 %v2664
        %2666 = vmatprep.subr.mxu0 0.0
        %v2667 = vand.u32 %v1940, 4294901760
        %v2668 = vsub.f32 %v1940, %v2667
        %2669 = vmatpush1.msra.mxu0 %v2668
        %2670 = vmatprep.subr.mxu0 0.0
        %v2671 = vand.u32 %v1941, 4294901760
        %v2672 = vsub.f32 %v1941, %v2671
        %2673 = vmatpush1.msra.mxu0 %v2672
        %2674 = vmatprep.subr.mxu0 0.0
        %v2675 = vand.u32 %v1942, 4294901760
        %v2676 = vsub.f32 %v1942, %v2675
        %2677 = vmatpush1.msra.mxu0 %v2676
        %2678 = vmatprep.subr.mxu0 0.0
        %v2679 = vand.u32 %v1943, 4294901760
        %v2680 = vsub.f32 %v1943, %v2679
        %2681 = vmatpush1.msra.mxu0 %v2680
        %v2682 = vsub.f32 %v1881, %v1881
        %2683 = vmatprep.mubr.f32.mxu0 %v2682
        %v2684 = vsub.f32 %v1880, %v1880
        %2685 = vmatmul.mubr.f32.gmra.mrb[0].mxu0 %v2684
        %v2686 = vpop.f32.mrb[0].mxu0
        %v2687 = vadd.f32 %v2476, %v2686
        %v2688 = vpop.f32.mrb[0].mxu0
        %v2689 = vsub.f32 %v1883, %v1883
        %2690 = vmatprep.mubr.f32.mxu0 %v2689
        %v2691 = vsub.f32 %v1882, %v1882
        %2692 = vmatmul.mubr.f32.gmra.mrb[0].mxu0 %v2691
        %v2693 = vpop.f32.mrb[0].mxu0
        %v2694 = vadd.f32 %v2481, %v2693
        %v2695 = vpop.f32.mrb[0].mxu0
        %v2696 = vsub.f32 %v1885, %v1885
        %2697 = vmatprep.mubr.f32.mxu0 %v2696
        %v2698 = vsub.f32 %v1884, %v1884
        %2699 = vmatmul.mubr.f32.gmra.mrb[0].mxu0 %v2698
        %v2700 = vpop.f32.mrb[0].mxu0
        %v2701 = vadd.f32 %v2486, %v2700
        %v2702 = vpop.f32.mrb[0].mxu0
        %v2703 = vsub.f32 %v1887, %v1887
        %2704 = vmatprep.mubr.f32.mxu0 %v2703
        %v2705 = vsub.f32 %v1886, %v1886
        %2706 = vmatmul.mubr.f32.gmra.mrb[0].mxu0 %v2705
        %v2707 = vpop.f32.mrb[0].mxu0
        %v2708 = vadd.f32 %v2491, %v2707
        %v2709 = vpop.f32.mrb[0].mxu0
        %v2710 = vsub.f32 %v1889, %v1889
        %2711 = vmatprep.mubr.f32.mxu0 %v2710
        %v2712 = vsub.f32 %v1888, %v1888
        %2713 = vmatmul.mubr.f32.gmra.mrb[0].mxu0 %v2712
        %v2714 = vpop.f32.mrb[0].mxu0
        %v2715 = vadd.f32 %v2496, %v2714
        %v2716 = vpop.f32.mrb[0].mxu0
        %v2717 = vsub.f32 %v1891, %v1891
        %2718 = vmatprep.mubr.f32.mxu0 %v2717
        %v2719 = vsub.f32 %v1890, %v1890
        %2720 = vmatmul.mubr.f32.gmra.mrb[0].mxu0 %v2719
        %v2721 = vpop.f32.mrb[0].mxu0
        %v2722 = vadd.f32 %v2501, %v2721
        %v2723 = vpop.f32.mrb[0].mxu0
        %v2724 = vsub.f32 %v1893, %v1893
        %2725 = vmatprep.mubr.f32.mxu0 %v2724
        %v2726 = vsub.f32 %v1892, %v1892
        %2727 = vmatmul.mubr.f32.gmra.mrb[0].mxu0 %v2726
        %v2728 = vpop.f32.mrb[0].mxu0
        %v2729 = vadd.f32 %v2506, %v2728
        %v2730 = vpop.f32.mrb[0].mxu0
        %v2731 = vsub.f32 %v1895, %v1895
        %2732 = vmatprep.mubr.f32.mxu0 %v2731
        %v2733 = vsub.f32 %v1894, %v1894
        %2734 = vmatmul.mubr.f32.gmra.mrb[0].mxu0 %v2733
        %v2735 = vpop.f32.mrb[0].mxu0
        %v2736 = vadd.f32 %v2511, %v2735
        %v2737 = vpop.f32.mrb[0].mxu0
        %v2738 = vsub.f32 %v1897, %v1897
        %2739 = vmatprep.mubr.f32.mxu0 %v2738
        %v2740 = vsub.f32 %v1896, %v1896
        %2741 = vmatmul.mubr.f32.gmra.mrb[0].mxu0 %v2740
        %v2742 = vpop.f32.mrb[0].mxu0
        %v2743 = vadd.f32 %v2516, %v2742
        %v2744 = vpop.f32.mrb[0].mxu0
        %v2745 = vsub.f32 %v1899, %v1899
        %2746 = vmatprep.mubr.f32.mxu0 %v2745
        %v2747 = vsub.f32 %v1898, %v1898
        %2748 = vmatmul.mubr.f32.gmra.mrb[0].mxu0 %v2747
        %v2749 = vpop.f32.mrb[0].mxu0
        %v2750 = vadd.f32 %v2521, %v2749
        %v2751 = vpop.f32.mrb[0].mxu0
        %v2752 = vsub.f32 %v1901, %v1901
        %2753 = vmatprep.mubr.f32.mxu0 %v2752
        %v2754 = vsub.f32 %v1900, %v1900
        %2755 = vmatmul.mubr.f32.gmra.mrb[0].mxu0 %v2754
        %v2756 = vpop.f32.mrb[0].mxu0
        %v2757 = vadd.f32 %v2526, %v2756
        %v2758 = vpop.f32.mrb[0].mxu0
        %v2759 = vsub.f32 %v1903, %v1903
        %2760 = vmatprep.mubr.f32.mxu0 %v2759
        %v2761 = vsub.f32 %v1902, %v1902
        %2762 = vmatmul.mubr.f32.gmra.mrb[0].mxu0 %v2761
        %v2763 = vpop.f32.mrb[0].mxu0
        %v2764 = vadd.f32 %v2531, %v2763
        %v2765 = vpop.f32.mrb[0].mxu0
        %v2766 = vsub.f32 %v1905, %v1905
        %2767 = vmatprep.mubr.f32.mxu0 %v2766
        %v2768 = vsub.f32 %v1904, %v1904
        %2769 = vmatmul.mubr.f32.gmra.mrb[0].mxu0 %v2768
        %v2770 = vpop.f32.mrb[0].mxu0
        %v2771 = vadd.f32 %v2536, %v2770
        %v2772 = vpop.f32.mrb[0].mxu0
        %v2773 = vsub.f32 %v1907, %v1907
        %2774 = vmatprep.mubr.f32.mxu0 %v2773
        %v2775 = vsub.f32 %v1906, %v1906
        %2776 = vmatmul.mubr.f32.gmra.mrb[0].mxu0 %v2775
        %v2777 = vpop.f32.mrb[0].mxu0
        %v2778 = vadd.f32 %v2541, %v2777
        %v2779 = vpop.f32.mrb[0].mxu0
        %v2780 = vsub.f32 %v1909, %v1909
        %2781 = vmatprep.mubr.f32.mxu0 %v2780
        %v2782 = vsub.f32 %v1908, %v1908
        %2783 = vmatmul.mubr.f32.gmra.mrb[0].mxu0 %v2782
        %v2784 = vpop.f32.mrb[0].mxu0
        %v2785 = vadd.f32 %v2546, %v2784
        %v2786 = vpop.f32.mrb[0].mxu0
        %v2787 = vsub.f32 %v1911, %v1911
        %2788 = vmatprep.mubr.f32.mxu0 %v2787
        %v2789 = vsub.f32 %v1910, %v1910
        %2790 = vmatmul.mubr.f32.gmra.mrb[0].mxu0 %v2789
        %v2791 = vpop.f32.mrb[0].mxu0
        %v2792 = vadd.f32 %v2551, %v2791
        %v2793 = vpop.f32.mrb[0].mxu0
        %2794 = vdwg.mxu0
        %2795 = vmatprep.subr.mxu0 0.0
        %v2796 = vand.u32 %v1912, 4294901760
        %2797 = vmatpush1.msra.mxu0 %v2796
        %2798 = vmatprep.subr.mxu0 0.0
        %v2799 = vand.u32 %v1913, 4294901760
        %2800 = vmatpush1.msra.mxu0 %v2799
        %2801 = vmatprep.subr.mxu0 0.0
        %v2802 = vand.u32 %v1914, 4294901760
        %2803 = vmatpush1.msra.mxu0 %v2802
        %2804 = vmatprep.subr.mxu0 0.0
        %v2805 = vand.u32 %v1915, 4294901760
        %2806 = vmatpush1.msra.mxu0 %v2805
        %2807 = vmatprep.subr.mxu0 0.0
        %v2808 = vand.u32 %v1916, 4294901760
        %2809 = vmatpush1.msra.mxu0 %v2808
        %2810 = vmatprep.subr.mxu0 0.0
        %v2811 = vand.u32 %v1917, 4294901760
        %2812 = vmatpush1.msra.mxu0 %v2811
        %2813 = vmatprep.subr.mxu0 0.0
        %v2814 = vand.u32 %v1918, 4294901760
        %2815 = vmatpush1.msra.mxu0 %v2814
        %2816 = vmatprep.subr.mxu0 0.0
        %v2817 = vand.u32 %v1919, 4294901760
        %2818 = vmatpush1.msra.mxu0 %v2817
        %2819 = vmatprep.subr.mxu0 0.0
        %v2820 = vand.u32 %v1920, 4294901760
        %2821 = vmatpush1.msra.mxu0 %v2820
        %2822 = vmatprep.subr.mxu0 0.0
        %v2823 = vand.u32 %v1921, 4294901760
        %2824 = vmatpush1.msra.mxu0 %v2823
        %2825 = vmatprep.subr.mxu0 0.0
        %v2826 = vand.u32 %v1922, 4294901760
        %2827 = vmatpush1.msra.mxu0 %v2826
        %2828 = vmatprep.subr.mxu0 0.0
        %v2829 = vand.u32 %v1923, 4294901760
        %2830 = vmatpush1.msra.mxu0 %v2829
        %2831 = vmatprep.subr.mxu0 0.0
        %v2832 = vand.u32 %v1924, 4294901760
        %2833 = vmatpush1.msra.mxu0 %v2832
        %2834 = vmatprep.subr.mxu0 0.0
        %v2835 = vand.u32 %v1925, 4294901760
        %2836 = vmatpush1.msra.mxu0 %v2835
        %2837 = vmatprep.subr.mxu0 0.0
        %v2838 = vand.u32 %v1926, 4294901760
        %2839 = vmatpush1.msra.mxu0 %v2838
        %2840 = vmatprep.subr.mxu0 0.0
        %v2841 = vand.u32 %v1927, 4294901760
        %2842 = vmatpush1.msra.mxu0 %v2841
        %2843 = vmatprep.subr.mxu0 0.0
        %v2844 = vand.u32 %v1928, 4294901760
        %2845 = vmatpush1.msra.mxu0 %v2844
        %2846 = vmatprep.subr.mxu0 0.0
        %v2847 = vand.u32 %v1929, 4294901760
        %2848 = vmatpush1.msra.mxu0 %v2847
        %2849 = vmatprep.subr.mxu0 0.0
        %v2850 = vand.u32 %v1930, 4294901760
        %2851 = vmatpush1.msra.mxu0 %v2850
        %2852 = vmatprep.subr.mxu0 0.0
        %v2853 = vand.u32 %v1931, 4294901760
        %2854 = vmatpush1.msra.mxu0 %v2853
        %2855 = vmatprep.subr.mxu0 0.0
        %v2856 = vand.u32 %v1932, 4294901760
        %2857 = vmatpush1.msra.mxu0 %v2856
        %2858 = vmatprep.subr.mxu0 0.0
        %v2859 = vand.u32 %v1933, 4294901760
        %2860 = vmatpush1.msra.mxu0 %v2859
        %2861 = vmatprep.subr.mxu0 0.0
        %v2862 = vand.u32 %v1934, 4294901760
        %2863 = vmatpush1.msra.mxu0 %v2862
        %2864 = vmatprep.subr.mxu0 0.0
        %v2865 = vand.u32 %v1935, 4294901760
        %2866 = vmatpush1.msra.mxu0 %v2865
        %2867 = vmatprep.subr.mxu0 0.0
        %v2868 = vand.u32 %v1936, 4294901760
        %2869 = vmatpush1.msra.mxu0 %v2868
        %2870 = vmatprep.subr.mxu0 0.0
        %v2871 = vand.u32 %v1937, 4294901760
        %2872 = vmatpush1.msra.mxu0 %v2871
        %2873 = vmatprep.subr.mxu0 0.0
        %v2874 = vand.u32 %v1938, 4294901760
        %2875 = vmatpush1.msra.mxu0 %v2874
        %2876 = vmatprep.subr.mxu0 0.0
        %v2877 = vand.u32 %v1939, 4294901760
        %2878 = vmatpush1.msra.mxu0 %v2877
        %2879 = vmatprep.subr.mxu0 0.0
        %v2880 = vand.u32 %v1940, 4294901760
        %2881 = vmatpush1.msra.mxu0 %v2880
        %2882 = vmatprep.subr.mxu0 0.0
        %v2883 = vand.u32 %v1941, 4294901760
        %2884 = vmatpush1.msra.mxu0 %v2883
        %2885 = vmatprep.subr.mxu0 0.0
        %v2886 = vand.u32 %v1942, 4294901760
        %2887 = vmatpush1.msra.mxu0 %v2886
        %2888 = vmatprep.subr.mxu0 0.0
        %v2889 = vand.u32 %v1943, 4294901760
        %2890 = vmatpush1.msra.mxu0 %v2889
        %v2891 = vsub.f32 %v1881, %v1881
        %v2892 = vand.u32 %v2891, 4294901760
        %2893 = vmatprep.mubr.f32.mxu0 %v2892
        %v2894 = vsub.f32 %v1880, %v1880
        %v2895 = vand.u32 %v2894, 4294901760
        %2896 = vmatmul.mubr.f32.gmra.mrb[0].mxu0 %v2895
        %v2897 = vpop.f32.mrb[0].mxu0
        %v2898 = vadd.f32 %v2687, %v2897
        %v2899 = vpop.f32.mrb[0].mxu0
        %v2900 = vsub.f32 %v1883, %v1883
        %v2901 = vand.u32 %v2900, 4294901760
        %2902 = vmatprep.mubr.f32.mxu0 %v2901
        %v2903 = vsub.f32 %v1882, %v1882
        %v2904 = vand.u32 %v2903, 4294901760
        %2905 = vmatmul.mubr.f32.gmra.mrb[0].mxu0 %v2904
        %v2906 = vpop.f32.mrb[0].mxu0
        %v2907 = vadd.f32 %v2694, %v2906
        %v2908 = vpop.f32.mrb[0].mxu0
        %v2909 = vsub.f32 %v1885, %v1885
        %v2910 = vand.u32 %v2909, 4294901760
        %2911 = vmatprep.mubr.f32.mxu0 %v2910
        %v2912 = vsub.f32 %v1884, %v1884
        %v2913 = vand.u32 %v2912, 4294901760
        %2914 = vmatmul.mubr.f32.gmra.mrb[0].mxu0 %v2913
        %v2915 = vpop.f32.mrb[0].mxu0
        %v2916 = vadd.f32 %v2701, %v2915
        %v2917 = vpop.f32.mrb[0].mxu0
        %v2918 = vsub.f32 %v1887, %v1887
        %v2919 = vand.u32 %v2918, 4294901760
        %2920 = vmatprep.mubr.f32.mxu0 %v2919
        %v2921 = vsub.f32 %v1886, %v1886
        %v2922 = vand.u32 %v2921, 4294901760
        %2923 = vmatmul.mubr.f32.gmra.mrb[0].mxu0 %v2922
        %v2924 = vpop.f32.mrb[0].mxu0
        %v2925 = vadd.f32 %v2708, %v2924
        %v2926 = vpop.f32.mrb[0].mxu0
        %v2927 = vsub.f32 %v1889, %v1889
        %v2928 = vand.u32 %v2927, 4294901760
        %2929 = vmatprep.mubr.f32.mxu0 %v2928
        %v2930 = vsub.f32 %v1888, %v1888
        %v2931 = vand.u32 %v2930, 4294901760
        %2932 = vmatmul.mubr.f32.gmra.mrb[0].mxu0 %v2931
        %v2933 = vpop.f32.mrb[0].mxu0
        %v2934 = vadd.f32 %v2715, %v2933
        %v2935 = vpop.f32.mrb[0].mxu0
        %v2936 = vsub.f32 %v1891, %v1891
        %v2937 = vand.u32 %v2936, 4294901760
        %2938 = vmatprep.mubr.f32.mxu0 %v2937
        %v2939 = vsub.f32 %v1890, %v1890
        %v2940 = vand.u32 %v2939, 4294901760
        %2941 = vmatmul.mubr.f32.gmra.mrb[0].mxu0 %v2940
        %v2942 = vpop.f32.mrb[0].mxu0
        %v2943 = vadd.f32 %v2722, %v2942
        %v2944 = vpop.f32.mrb[0].mxu0
        %v2945 = vsub.f32 %v1893, %v1893
        %v2946 = vand.u32 %v2945, 4294901760
        %2947 = vmatprep.mubr.f32.mxu0 %v2946
        %v2948 = vsub.f32 %v1892, %v1892
        %v2949 = vand.u32 %v2948, 4294901760
        %2950 = vmatmul.mubr.f32.gmra.mrb[0].mxu0 %v2949
        %v2951 = vpop.f32.mrb[0].mxu0
        %v2952 = vadd.f32 %v2729, %v2951
        %v2953 = vpop.f32.mrb[0].mxu0
        %v2954 = vsub.f32 %v1895, %v1895
        %v2955 = vand.u32 %v2954, 4294901760
        %2956 = vmatprep.mubr.f32.mxu0 %v2955
        %v2957 = vsub.f32 %v1894, %v1894
        %v2958 = vand.u32 %v2957, 4294901760
        %2959 = vmatmul.mubr.f32.gmra.mrb[0].mxu0 %v2958
        %v2960 = vpop.f32.mrb[0].mxu0
        %v2961 = vadd.f32 %v2736, %v2960
        %v2962 = vpop.f32.mrb[0].mxu0
        %v2963 = vsub.f32 %v1897, %v1897
        %v2964 = vand.u32 %v2963, 4294901760
        %2965 = vmatprep.mubr.f32.mxu0 %v2964
        %v2966 = vsub.f32 %v1896, %v1896
        %v2967 = vand.u32 %v2966, 4294901760
        %2968 = vmatmul.mubr.f32.gmra.mrb[0].mxu0 %v2967
        %v2969 = vpop.f32.mrb[0].mxu0
        %v2970 = vadd.f32 %v2743, %v2969
        %v2971 = vpop.f32.mrb[0].mxu0
        %v2972 = vsub.f32 %v1899, %v1899
        %v2973 = vand.u32 %v2972, 4294901760
        %2974 = vmatprep.mubr.f32.mxu0 %v2973
        %v2975 = vsub.f32 %v1898, %v1898
        %v2976 = vand.u32 %v2975, 4294901760
        %2977 = vmatmul.mubr.f32.gmra.mrb[0].mxu0 %v2976
        %v2978 = vpop.f32.mrb[0].mxu0
        %v2979 = vadd.f32 %v2750, %v2978
        %v2980 = vpop.f32.mrb[0].mxu0
        %v2981 = vsub.f32 %v1901, %v1901
        %v2982 = vand.u32 %v2981, 4294901760
        %2983 = vmatprep.mubr.f32.mxu0 %v2982
        %v2984 = vsub.f32 %v1900, %v1900
        %v2985 = vand.u32 %v2984, 4294901760
        %2986 = vmatmul.mubr.f32.gmra.mrb[0].mxu0 %v2985
        %v2987 = vpop.f32.mrb[0].mxu0
        %v2988 = vadd.f32 %v2757, %v2987
        %v2989 = vpop.f32.mrb[0].mxu0
        %v2990 = vsub.f32 %v1903, %v1903
        %v2991 = vand.u32 %v2990, 4294901760
        %2992 = vmatprep.mubr.f32.mxu0 %v2991
        %v2993 = vsub.f32 %v1902, %v1902
        %v2994 = vand.u32 %v2993, 4294901760
        %2995 = vmatmul.mubr.f32.gmra.mrb[0].mxu0 %v2994
        %v2996 = vpop.f32.mrb[0].mxu0
        %v2997 = vadd.f32 %v2764, %v2996
        %v2998 = vpop.f32.mrb[0].mxu0
        %v2999 = vsub.f32 %v1905, %v1905
        %v3000 = vand.u32 %v2999, 4294901760
        %3001 = vmatprep.mubr.f32.mxu0 %v3000
        %v3002 = vsub.f32 %v1904, %v1904
        %v3003 = vand.u32 %v3002, 4294901760
        %3004 = vmatmul.mubr.f32.gmra.mrb[0].mxu0 %v3003
        %v3005 = vpop.f32.mrb[0].mxu0
        %v3006 = vadd.f32 %v2771, %v3005
        %v3007 = vpop.f32.mrb[0].mxu0
        %v3008 = vsub.f32 %v1907, %v1907
        %v3009 = vand.u32 %v3008, 4294901760
        %3010 = vmatprep.mubr.f32.mxu0 %v3009
        %v3011 = vsub.f32 %v1906, %v1906
        %v3012 = vand.u32 %v3011, 4294901760
        %3013 = vmatmul.mubr.f32.gmra.mrb[0].mxu0 %v3012
        %v3014 = vpop.f32.mrb[0].mxu0
        %v3015 = vadd.f32 %v2778, %v3014
        %v3016 = vpop.f32.mrb[0].mxu0
        %v3017 = vsub.f32 %v1909, %v1909
        %v3018 = vand.u32 %v3017, 4294901760
        %3019 = vmatprep.mubr.f32.mxu0 %v3018
        %v3020 = vsub.f32 %v1908, %v1908
        %v3021 = vand.u32 %v3020, 4294901760
        %3022 = vmatmul.mubr.f32.gmra.mrb[0].mxu0 %v3021
        %v3023 = vpop.f32.mrb[0].mxu0
        %v3024 = vadd.f32 %v2785, %v3023
        %v3025 = vpop.f32.mrb[0].mxu0
        %v3026 = vsub.f32 %v1911, %v1911
        %v3027 = vand.u32 %v3026, 4294901760
        %3028 = vmatprep.mubr.f32.mxu0 %v3027
        %v3029 = vsub.f32 %v1910, %v1910
        %v3030 = vand.u32 %v3029, 4294901760
        %3031 = vmatmul.mubr.f32.gmra.mrb[0].mxu0 %v3030
        %v3032 = vpop.f32.mrb[0].mxu0
        %v3033 = vadd.f32 %v2792, %v3032
        %v3034 = vpop.f32.mrb[0].mxu0
        %3035 = vdwg.mxu0
        %3036 = vmatprep.subr.mxu0 0.0
        %v3037 = vand.u32 %v1912, 4294901760
        %v3038 = vsub.f32 %v1912, %v3037
        %v3039 = vand.u32 %v3038, 4294901760
        %3040 = vmatpush1.msra.mxu0 %v3039
        %3041 = vmatprep.subr.mxu0 0.0
        %v3042 = vand.u32 %v1913, 4294901760
        %v3043 = vsub.f32 %v1913, %v3042
        %v3044 = vand.u32 %v3043, 4294901760
        %3045 = vmatpush1.msra.mxu0 %v3044
        %3046 = vmatprep.subr.mxu0 0.0
        %v3047 = vand.u32 %v1914, 4294901760
        %v3048 = vsub.f32 %v1914, %v3047
        %v3049 = vand.u32 %v3048, 4294901760
        %3050 = vmatpush1.msra.mxu0 %v3049
        %3051 = vmatprep.subr.mxu0 0.0
        %v3052 = vand.u32 %v1915, 4294901760
        %v3053 = vsub.f32 %v1915, %v3052
        %v3054 = vand.u32 %v3053, 4294901760
        %3055 = vmatpush1.msra.mxu0 %v3054
        %3056 = vmatprep.subr.mxu0 0.0
        %v3057 = vand.u32 %v1916, 4294901760
        %v3058 = vsub.f32 %v1916, %v3057
        %v3059 = vand.u32 %v3058, 4294901760
        %3060 = vmatpush1.msra.mxu0 %v3059
        %3061 = vmatprep.subr.mxu0 0.0
        %v3062 = vand.u32 %v1917, 4294901760
        %v3063 = vsub.f32 %v1917, %v3062
        %v3064 = vand.u32 %v3063, 4294901760
        %3065 = vmatpush1.msra.mxu0 %v3064
        %3066 = vmatprep.subr.mxu0 0.0
        %v3067 = vand.u32 %v1918, 4294901760
        %v3068 = vsub.f32 %v1918, %v3067
        %v3069 = vand.u32 %v3068, 4294901760
        %3070 = vmatpush1.msra.mxu0 %v3069
        %3071 = vmatprep.subr.mxu0 0.0
        %v3072 = vand.u32 %v1919, 4294901760
        %v3073 = vsub.f32 %v1919, %v3072
        %v3074 = vand.u32 %v3073, 4294901760
        %3075 = vmatpush1.msra.mxu0 %v3074
        %3076 = vmatprep.subr.mxu0 0.0
        %v3077 = vand.u32 %v1920, 4294901760
        %v3078 = vsub.f32 %v1920, %v3077
        %v3079 = vand.u32 %v3078, 4294901760
        %3080 = vmatpush1.msra.mxu0 %v3079
        %3081 = vmatprep.subr.mxu0 0.0
        %v3082 = vand.u32 %v1921, 4294901760
        %v3083 = vsub.f32 %v1921, %v3082
        %v3084 = vand.u32 %v3083, 4294901760
        %3085 = vmatpush1.msra.mxu0 %v3084
        %3086 = vmatprep.subr.mxu0 0.0
        %v3087 = vand.u32 %v1922, 4294901760
        %v3088 = vsub.f32 %v1922, %v3087
        %v3089 = vand.u32 %v3088, 4294901760
        %3090 = vmatpush1.msra.mxu0 %v3089
        %3091 = vmatprep.subr.mxu0 0.0
        %v3092 = vand.u32 %v1923, 4294901760
        %v3093 = vsub.f32 %v1923, %v3092
        %v3094 = vand.u32 %v3093, 4294901760
        %3095 = vmatpush1.msra.mxu0 %v3094
        %3096 = vmatprep.subr.mxu0 0.0
        %v3097 = vand.u32 %v1924, 4294901760
        %v3098 = vsub.f32 %v1924, %v3097
        %v3099 = vand.u32 %v3098, 4294901760
        %3100 = vmatpush1.msra.mxu0 %v3099
        %3101 = vmatprep.subr.mxu0 0.0
        %v3102 = vand.u32 %v1925, 4294901760
        %v3103 = vsub.f32 %v1925, %v3102
        %v3104 = vand.u32 %v3103, 4294901760
        %3105 = vmatpush1.msra.mxu0 %v3104
        %3106 = vmatprep.subr.mxu0 0.0
        %v3107 = vand.u32 %v1926, 4294901760
        %v3108 = vsub.f32 %v1926, %v3107
        %v3109 = vand.u32 %v3108, 4294901760
        %3110 = vmatpush1.msra.mxu0 %v3109
        %3111 = vmatprep.subr.mxu0 0.0
        %v3112 = vand.u32 %v1927, 4294901760
        %v3113 = vsub.f32 %v1927, %v3112
        %v3114 = vand.u32 %v3113, 4294901760
        %3115 = vmatpush1.msra.mxu0 %v3114
        %3116 = vmatprep.subr.mxu0 0.0
        %v3117 = vand.u32 %v1928, 4294901760
        %v3118 = vsub.f32 %v1928, %v3117
        %v3119 = vand.u32 %v3118, 4294901760
        %3120 = vmatpush1.msra.mxu0 %v3119
        %3121 = vmatprep.subr.mxu0 0.0
        %v3122 = vand.u32 %v1929, 4294901760
        %v3123 = vsub.f32 %v1929, %v3122
        %v3124 = vand.u32 %v3123, 4294901760
        %3125 = vmatpush1.msra.mxu0 %v3124
        %3126 = vmatprep.subr.mxu0 0.0
        %v3127 = vand.u32 %v1930, 4294901760
        %v3128 = vsub.f32 %v1930, %v3127
        %v3129 = vand.u32 %v3128, 4294901760
        %3130 = vmatpush1.msra.mxu0 %v3129
        %3131 = vmatprep.subr.mxu0 0.0
        %v3132 = vand.u32 %v1931, 4294901760
        %v3133 = vsub.f32 %v1931, %v3132
        %v3134 = vand.u32 %v3133, 4294901760
        %3135 = vmatpush1.msra.mxu0 %v3134
        %3136 = vmatprep.subr.mxu0 0.0
        %v3137 = vand.u32 %v1932, 4294901760
        %v3138 = vsub.f32 %v1932, %v3137
        %v3139 = vand.u32 %v3138, 4294901760
        %3140 = vmatpush1.msra.mxu0 %v3139
        %3141 = vmatprep.subr.mxu0 0.0
        %v3142 = vand.u32 %v1933, 4294901760
        %v3143 = vsub.f32 %v1933, %v3142
        %v3144 = vand.u32 %v3143, 4294901760
        %3145 = vmatpush1.msra.mxu0 %v3144
        %3146 = vmatprep.subr.mxu0 0.0
        %v3147 = vand.u32 %v1934, 4294901760
        %v3148 = vsub.f32 %v1934, %v3147
        %v3149 = vand.u32 %v3148, 4294901760
        %3150 = vmatpush1.msra.mxu0 %v3149
        %3151 = vmatprep.subr.mxu0 0.0
        %v3152 = vand.u32 %v1935, 4294901760
        %v3153 = vsub.f32 %v1935, %v3152
        %v3154 = vand.u32 %v3153, 4294901760
        %3155 = vmatpush1.msra.mxu0 %v3154
        %3156 = vmatprep.subr.mxu0 0.0
        %v3157 = vand.u32 %v1936, 4294901760
        %v3158 = vsub.f32 %v1936, %v3157
        %v3159 = vand.u32 %v3158, 4294901760
        %3160 = vmatpush1.msra.mxu0 %v3159
        %3161 = vmatprep.subr.mxu0 0.0
        %v3162 = vand.u32 %v1937, 4294901760
        %v3163 = vsub.f32 %v1937, %v3162
        %v3164 = vand.u32 %v3163, 4294901760
        %3165 = vmatpush1.msra.mxu0 %v3164
        %3166 = vmatprep.subr.mxu0 0.0
        %v3167 = vand.u32 %v1938, 4294901760
        %v3168 = vsub.f32 %v1938, %v3167
        %v3169 = vand.u32 %v3168, 4294901760
        %3170 = vmatpush1.msra.mxu0 %v3169
        %3171 = vmatprep.subr.mxu0 0.0
        %v3172 = vand.u32 %v1939, 4294901760
        %v3173 = vsub.f32 %v1939, %v3172
        %v3174 = vand.u32 %v3173, 4294901760
        %3175 = vmatpush1.msra.mxu0 %v3174
        %3176 = vmatprep.subr.mxu0 0.0
        %v3177 = vand.u32 %v1940, 4294901760
        %v3178 = vsub.f32 %v1940, %v3177
        %v3179 = vand.u32 %v3178, 4294901760
        %3180 = vmatpush1.msra.mxu0 %v3179
        %3181 = vmatprep.subr.mxu0 0.0
        %v3182 = vand.u32 %v1941, 4294901760
        %v3183 = vsub.f32 %v1941, %v3182
        %v3184 = vand.u32 %v3183, 4294901760
        %3185 = vmatpush1.msra.mxu0 %v3184
        %3186 = vmatprep.subr.mxu0 0.0
        %v3187 = vand.u32 %v1942, 4294901760
        %v3188 = vsub.f32 %v1942, %v3187
        %v3189 = vand.u32 %v3188, 4294901760
        %3190 = vmatpush1.msra.mxu0 %v3189
        %3191 = vmatprep.subr.mxu0 0.0
        %v3192 = vand.u32 %v1943, 4294901760
        %v3193 = vsub.f32 %v1943, %v3192
        %v3194 = vand.u32 %v3193, 4294901760
        %3195 = vmatpush1.msra.mxu0 %v3194
        %3196 = vmatprep.mubr.f32.mxu0 %v1881
        %3197 = vmatmul.mubr.f32.gmra.mrb[0].mxu0 %v1880
        %v3198 = vpop.f32.mrb[0].mxu0
        %v3199 = vadd.f32 %v2898, %v3198
        %v3200 = vpop.f32.mrb[0].mxu0
        %3201 = vmatprep.mubr.f32.mxu0 %v1883
        %3202 = vmatmul.mubr.f32.gmra.mrb[0].mxu0 %v1882
        %v3203 = vpop.f32.mrb[0].mxu0
        %v3204 = vadd.f32 %v2907, %v3203
        %v3205 = vpop.f32.mrb[0].mxu0
        %3206 = vmatprep.mubr.f32.mxu0 %v1885
        %3207 = vmatmul.mubr.f32.gmra.mrb[0].mxu0 %v1884
        %v3208 = vpop.f32.mrb[0].mxu0
        %v3209 = vadd.f32 %v2916, %v3208
        %v3210 = vpop.f32.mrb[0].mxu0
        %3211 = vmatprep.mubr.f32.mxu0 %v1887
        %3212 = vmatmul.mubr.f32.gmra.mrb[0].mxu0 %v1886
        %v3213 = vpop.f32.mrb[0].mxu0
        %v3214 = vadd.f32 %v2925, %v3213
        %v3215 = vpop.f32.mrb[0].mxu0
        %3216 = vmatprep.mubr.f32.mxu0 %v1889
        %3217 = vmatmul.mubr.f32.gmra.mrb[0].mxu0 %v1888
        %v3218 = vpop.f32.mrb[0].mxu0
        %v3219 = vadd.f32 %v2934, %v3218
        %v3220 = vpop.f32.mrb[0].mxu0
        %3221 = vmatprep.mubr.f32.mxu0 %v1891
        %3222 = vmatmul.mubr.f32.gmra.mrb[0].mxu0 %v1890
        %v3223 = vpop.f32.mrb[0].mxu0
        %v3224 = vadd.f32 %v2943, %v3223
        %v3225 = vpop.f32.mrb[0].mxu0
        %3226 = vmatprep.mubr.f32.mxu0 %v1893
        %3227 = vmatmul.mubr.f32.gmra.mrb[0].mxu0 %v1892
        %v3228 = vpop.f32.mrb[0].mxu0
        %v3229 = vadd.f32 %v2952, %v3228
        %v3230 = vpop.f32.mrb[0].mxu0
        %3231 = vmatprep.mubr.f32.mxu0 %v1895
        %3232 = vmatmul.mubr.f32.gmra.mrb[0].mxu0 %v1894
        %v3233 = vpop.f32.mrb[0].mxu0
        %v3234 = vadd.f32 %v2961, %v3233
        %v3235 = vpop.f32.mrb[0].mxu0
        %3236 = vmatprep.mubr.f32.mxu0 %v1897
        %3237 = vmatmul.mubr.f32.gmra.mrb[0].mxu0 %v1896
        %v3238 = vpop.f32.mrb[0].mxu0
        %v3239 = vadd.f32 %v2970, %v3238
        %v3240 = vpop.f32.mrb[0].mxu0
        %3241 = vmatprep.mubr.f32.mxu0 %v1899
        %3242 = vmatmul.mubr.f32.gmra.mrb[0].mxu0 %v1898
        %v3243 = vpop.f32.mrb[0].mxu0
        %v3244 = vadd.f32 %v2979, %v3243
        %v3245 = vpop.f32.mrb[0].mxu0
        %3246 = vmatprep.mubr.f32.mxu0 %v1901
        %3247 = vmatmul.mubr.f32.gmra.mrb[0].mxu0 %v1900
        %v3248 = vpop.f32.mrb[0].mxu0
        %v3249 = vadd.f32 %v2988, %v3248
        %v3250 = vpop.f32.mrb[0].mxu0
        %3251 = vmatprep.mubr.f32.mxu0 %v1903
        %3252 = vmatmul.mubr.f32.gmra.mrb[0].mxu0 %v1902
        %v3253 = vpop.f32.mrb[0].mxu0
        %v3254 = vadd.f32 %v2997, %v3253
        %v3255 = vpop.f32.mrb[0].mxu0
        %3256 = vmatprep.mubr.f32.mxu0 %v1905
        %3257 = vmatmul.mubr.f32.gmra.mrb[0].mxu0 %v1904
        %v3258 = vpop.f32.mrb[0].mxu0
        %v3259 = vadd.f32 %v3006, %v3258
        %v3260 = vpop.f32.mrb[0].mxu0
        %3261 = vmatprep.mubr.f32.mxu0 %v1907
        %3262 = vmatmul.mubr.f32.gmra.mrb[0].mxu0 %v1906
        %v3263 = vpop.f32.mrb[0].mxu0
        %v3264 = vadd.f32 %v3015, %v3263
        %v3265 = vpop.f32.mrb[0].mxu0
        %3266 = vmatprep.mubr.f32.mxu0 %v1909
        %3267 = vmatmul.mubr.f32.gmra.mrb[0].mxu0 %v1908
        %v3268 = vpop.f32.mrb[0].mxu0
        %v3269 = vadd.f32 %v3024, %v3268
        %v3270 = vpop.f32.mrb[0].mxu0
        %3271 = vmatprep.mubr.f32.mxu0 %v1911
        %3272 = vmatmul.mubr.f32.gmra.mrb[0].mxu0 %v1910
        %v3273 = vpop.f32.mrb[0].mxu0
        %v3274 = vadd.f32 %v3033, %v3273
        %v3275 = vpop.f32.mrb[0].mxu0
        %3276 = vdwg.mxu0
        %3277 = vmatprep.subr.mxu0 0.0
        %v3278 = vand.u32 %v1912, 4294901760
        %3279 = vmatpush1.msra.mxu0 %v3278
        %3280 = vmatprep.subr.mxu0 0.0
        %v3281 = vand.u32 %v1913, 4294901760
        %3282 = vmatpush1.msra.mxu0 %v3281
        %3283 = vmatprep.subr.mxu0 0.0
        %v3284 = vand.u32 %v1914, 4294901760
        %3285 = vmatpush1.msra.mxu0 %v3284
        %3286 = vmatprep.subr.mxu0 0.0
        %v3287 = vand.u32 %v1915, 4294901760
        %3288 = vmatpush1.msra.mxu0 %v3287
        %3289 = vmatprep.subr.mxu0 0.0
        %v3290 = vand.u32 %v1916, 4294901760
        %3291 = vmatpush1.msra.mxu0 %v3290
        %3292 = vmatprep.subr.mxu0 0.0
        %v3293 = vand.u32 %v1917, 4294901760
        %3294 = vmatpush1.msra.mxu0 %v3293
        %3295 = vmatprep.subr.mxu0 0.0
        %v3296 = vand.u32 %v1918, 4294901760
        %3297 = vmatpush1.msra.mxu0 %v3296
        %3298 = vmatprep.subr.mxu0 0.0
        %v3299 = vand.u32 %v1919, 4294901760
        %3300 = vmatpush1.msra.mxu0 %v3299
        %3301 = vmatprep.subr.mxu0 0.0
        %v3302 = vand.u32 %v1920, 4294901760
        %3303 = vmatpush1.msra.mxu0 %v3302
        %3304 = vmatprep.subr.mxu0 0.0
        %v3305 = vand.u32 %v1921, 4294901760
        %3306 = vmatpush1.msra.mxu0 %v3305
        %3307 = vmatprep.subr.mxu0 0.0
        %v3308 = vand.u32 %v1922, 4294901760
        %3309 = vmatpush1.msra.mxu0 %v3308
        %3310 = vmatprep.subr.mxu0 0.0
        %v3311 = vand.u32 %v1923, 4294901760
        %3312 = vmatpush1.msra.mxu0 %v3311
        %3313 = vmatprep.subr.mxu0 0.0
        %v3314 = vand.u32 %v1924, 4294901760
        %3315 = vmatpush1.msra.mxu0 %v3314
        %3316 = vmatprep.subr.mxu0 0.0
        %v3317 = vand.u32 %v1925, 4294901760
        %3318 = vmatpush1.msra.mxu0 %v3317
        %3319 = vmatprep.subr.mxu0 0.0
        %v3320 = vand.u32 %v1926, 4294901760
        %3321 = vmatpush1.msra.mxu0 %v3320
        %3322 = vmatprep.subr.mxu0 0.0
        %v3323 = vand.u32 %v1927, 4294901760
        %3324 = vmatpush1.msra.mxu0 %v3323
        %3325 = vmatprep.subr.mxu0 0.0
        %v3326 = vand.u32 %v1928, 4294901760
        %3327 = vmatpush1.msra.mxu0 %v3326
        %3328 = vmatprep.subr.mxu0 0.0
        %v3329 = vand.u32 %v1929, 4294901760
        %3330 = vmatpush1.msra.mxu0 %v3329
        %3331 = vmatprep.subr.mxu0 0.0
        %v3332 = vand.u32 %v1930, 4294901760
        %3333 = vmatpush1.msra.mxu0 %v3332
        %3334 = vmatprep.subr.mxu0 0.0
        %v3335 = vand.u32 %v1931, 4294901760
        %3336 = vmatpush1.msra.mxu0 %v3335
        %3337 = vmatprep.subr.mxu0 0.0
        %v3338 = vand.u32 %v1932, 4294901760
        %3339 = vmatpush1.msra.mxu0 %v3338
        %3340 = vmatprep.subr.mxu0 0.0
        %v3341 = vand.u32 %v1933, 4294901760
        %3342 = vmatpush1.msra.mxu0 %v3341
        %3343 = vmatprep.subr.mxu0 0.0
        %v3344 = vand.u32 %v1934, 4294901760
        %3345 = vmatpush1.msra.mxu0 %v3344
        %3346 = vmatprep.subr.mxu0 0.0
        %v3347 = vand.u32 %v1935, 4294901760
        %3348 = vmatpush1.msra.mxu0 %v3347
        %3349 = vmatprep.subr.mxu0 0.0
        %v3350 = vand.u32 %v1936, 4294901760
        %3351 = vmatpush1.msra.mxu0 %v3350
        %3352 = vmatprep.subr.mxu0 0.0
        %v3353 = vand.u32 %v1937, 4294901760
        %3354 = vmatpush1.msra.mxu0 %v3353
        %3355 = vmatprep.subr.mxu0 0.0
        %v3356 = vand.u32 %v1938, 4294901760
        %3357 = vmatpush1.msra.mxu0 %v3356
        %3358 = vmatprep.subr.mxu0 0.0
        %v3359 = vand.u32 %v1939, 4294901760
        %3360 = vmatpush1.msra.mxu0 %v3359
        %3361 = vmatprep.subr.mxu0 0.0
        %v3362 = vand.u32 %v1940, 4294901760
        %3363 = vmatpush1.msra.mxu0 %v3362
        %3364 = vmatprep.subr.mxu0 0.0
        %v3365 = vand.u32 %v1941, 4294901760
        %3366 = vmatpush1.msra.mxu0 %v3365
        %3367 = vmatprep.subr.mxu0 0.0
        %v3368 = vand.u32 %v1942, 4294901760
        %3369 = vmatpush1.msra.mxu0 %v3368
        %3370 = vmatprep.subr.mxu0 0.0
        %v3371 = vand.u32 %v1943, 4294901760
        %3372 = vmatpush1.msra.mxu0 %v3371
        %3373 = vmatprep.mubr.f32.mxu0 %v1881
        %3374 = vmatmul.mubr.f32.gmra.mrb[0].mxu0 %v1880
        %v3375 = vpop.f32.mrb[0].mxu0
        %v3376 = vadd.f32 %v3199, %v3375
        %v3377 = vpop.f32.mrb[0].mxu0
        %3378 = vmatprep.mubr.f32.mxu0 %v1883
        %3379 = vmatmul.mubr.f32.gmra.mrb[0].mxu0 %v1882
        %v3380 = vpop.f32.mrb[0].mxu0
        %v3381 = vadd.f32 %v3204, %v3380
        %v3382 = vpop.f32.mrb[0].mxu0
        %3383 = vmatprep.mubr.f32.mxu0 %v1885
        %3384 = vmatmul.mubr.f32.gmra.mrb[0].mxu0 %v1884
        %v3385 = vpop.f32.mrb[0].mxu0
        %v3386 = vadd.f32 %v3209, %v3385
        %v3387 = vpop.f32.mrb[0].mxu0
        %3388 = vmatprep.mubr.f32.mxu0 %v1887
        %3389 = vmatmul.mubr.f32.gmra.mrb[0].mxu0 %v1886
        %v3390 = vpop.f32.mrb[0].mxu0
        %v3391 = vadd.f32 %v3214, %v3390
        %v3392 = vpop.f32.mrb[0].mxu0
        %3393 = vmatprep.mubr.f32.mxu0 %v1889
        %3394 = vmatmul.mubr.f32.gmra.mrb[0].mxu0 %v1888
        %v3395 = vpop.f32.mrb[0].mxu0
        %v3396 = vadd.f32 %v3219, %v3395
        %v3397 = vpop.f32.mrb[0].mxu0
        %3398 = vmatprep.mubr.f32.mxu0 %v1891
        %3399 = vmatmul.mubr.f32.gmra.mrb[0].mxu0 %v1890
        %v3400 = vpop.f32.mrb[0].mxu0
        %v3401 = vadd.f32 %v3224, %v3400
        %v3402 = vpop.f32.mrb[0].mxu0
        %3403 = vmatprep.mubr.f32.mxu0 %v1893
        %3404 = vmatmul.mubr.f32.gmra.mrb[0].mxu0 %v1892
        %v3405 = vpop.f32.mrb[0].mxu0
        %v3406 = vadd.f32 %v3229, %v3405
        %v3407 = vpop.f32.mrb[0].mxu0
        %3408 = vmatprep.mubr.f32.mxu0 %v1895
        %3409 = vmatmul.mubr.f32.gmra.mrb[0].mxu0 %v1894
        %v3410 = vpop.f32.mrb[0].mxu0
        %v3411 = vadd.f32 %v3234, %v3410
        %v3412 = vpop.f32.mrb[0].mxu0
        %3413 = vmatprep.mubr.f32.mxu0 %v1897
        %3414 = vmatmul.mubr.f32.gmra.mrb[0].mxu0 %v1896
        %v3415 = vpop.f32.mrb[0].mxu0
        %v3416 = vadd.f32 %v3239, %v3415
        %v3417 = vpop.f32.mrb[0].mxu0
        %3418 = vmatprep.mubr.f32.mxu0 %v1899
        %3419 = vmatmul.mubr.f32.gmra.mrb[0].mxu0 %v1898
        %v3420 = vpop.f32.mrb[0].mxu0
        %v3421 = vadd.f32 %v3244, %v3420
        %v3422 = vpop.f32.mrb[0].mxu0
        %3423 = vmatprep.mubr.f32.mxu0 %v1901
        %3424 = vmatmul.mubr.f32.gmra.mrb[0].mxu0 %v1900
        %v3425 = vpop.f32.mrb[0].mxu0
        %v3426 = vadd.f32 %v3249, %v3425
        %v3427 = vpop.f32.mrb[0].mxu0
        %3428 = vmatprep.mubr.f32.mxu0 %v1903
        %3429 = vmatmul.mubr.f32.gmra.mrb[0].mxu0 %v1902
        %v3430 = vpop.f32.mrb[0].mxu0
        %v3431 = vadd.f32 %v3254, %v3430
        %v3432 = vpop.f32.mrb[0].mxu0
        %3433 = vmatprep.mubr.f32.mxu0 %v1905
        %3434 = vmatmul.mubr.f32.gmra.mrb[0].mxu0 %v1904
        %v3435 = vpop.f32.mrb[0].mxu0
        %v3436 = vadd.f32 %v3259, %v3435
        %v3437 = vpop.f32.mrb[0].mxu0
        %3438 = vmatprep.mubr.f32.mxu0 %v1907
        %3439 = vmatmul.mubr.f32.gmra.mrb[0].mxu0 %v1906
        %v3440 = vpop.f32.mrb[0].mxu0
        %v3441 = vadd.f32 %v3264, %v3440
        %v3442 = vpop.f32.mrb[0].mxu0
        %3443 = vmatprep.mubr.f32.mxu0 %v1909
        %3444 = vmatmul.mubr.f32.gmra.mrb[0].mxu0 %v1908
        %v3445 = vpop.f32.mrb[0].mxu0
        %v3446 = vadd.f32 %v3269, %v3445
        %v3447 = vpop.f32.mrb[0].mxu0
        %3448 = vmatprep.mubr.f32.mxu0 %v1911
        %3449 = vmatmul.mubr.f32.gmra.mrb[0].mxu0 %v1910
        %v3450 = vpop.f32.mrb[0].mxu0
        %v3451 = vadd.f32 %v3274, %v3450
        %v3452 = vpop.f32.mrb[0].mxu0
        %3453 = vdwg.mxu0
        %v3454 = vmul.f32 %v3376, %v1688
        %v3455 = vmul.f32 %v3381, %v1694
        %v3456 = vmul.f32 %v3386, %v1700
        %v3457 = vmul.f32 %v3391, %v1706
        %v3458 = vmul.f32 %v3396, %v1712
        %v3459 = vmul.f32 %v3401, %v1718
        %v3460 = vmul.f32 %v3406, %v1724
        %v3461 = vmul.f32 %v3411, %v1730
        %v3462 = vmul.f32 %v3416, %v1736
        %v3463 = vmul.f32 %v3421, %v1742
        %v3464 = vmul.f32 %v3426, %v1748
        %v3465 = vmul.f32 %v3431, %v1754
        %v3466 = vmul.f32 %v3436, %v1760
        %v3467 = vmul.f32 %v3441, %v1766
        %v3468 = vmul.f32 %v3446, %v1772
        %v3469 = vmul.f32 %v3451, %v1778
        %v3470 = vld [vmem:[%s399] sm:$0x1]
        %v3471 = vlaneseq
        %v3472 = vshrl.u32 %v3471, 7
        %v3473 = vadd.s32 %v3472, 8
        %v3474 = vadd.s32 %v3472, 16
        %v3475 = vadd.s32 %v3472, 24
        %v3476 = vadd.s32 %v3472, 32
        %v3477 = vadd.s32 %v3472, 40
        %v3478 = vadd.s32 %v3472, 48
        %v3479 = vadd.s32 %v3472, 56
        %v3480 = vadd.s32 %v3472, 64
        %v3481 = vadd.s32 %v3472, 72
        %v3482 = vadd.s32 %v3472, 80
        %v3483 = vadd.s32 %v3472, 88
        %v3484 = vadd.s32 %v3472, 96
        %v3485 = vadd.s32 %v3472, 104
        %v3486 = vadd.s32 %v3472, 112
        %v3487 = vadd.s32 %v3472, 120
        %v3488 = vadd.s32 %v3472, 128
        %v3489 = vadd.s32 %v3472, 136
        %v3490 = vadd.s32 %v3472, 144
        %v3491 = vadd.s32 %v3472, 152
        %v3492 = vadd.s32 %v3472, 160
        %v3493 = vadd.s32 %v3472, 168
        %v3494 = vadd.s32 %v3472, 176
        %v3495 = vadd.s32 %v3472, 184
        %v3496 = vadd.s32 %v3472, 192
        %v3497 = vadd.s32 %v3472, 200
        %v3498 = vadd.s32 %v3472, 208
        %v3499 = vadd.s32 %v3472, 216
        %v3500 = vadd.s32 %v3472, 224
        %v3501 = vadd.s32 %v3472, 232
        %v3502 = vadd.s32 %v3472, 240
        %v3503 = vadd.s32 %v3472, 248
        %v3504 = vlaneseq
        %v3505 = vshrl.u32 %v3504, 7
        %v3506 = vsub.s32 0, %v3505
        %v3507 = vrot.slane %v3470, %v3506
        %vm3508 = vcmp.eq.s32.totalorder %v3472, %v3507
        %vm3509 = vcmp.eq.s32.totalorder %v3473, %v3507
        %vm3510 = vcmp.eq.s32.totalorder %v3474, %v3507
        %vm3511 = vcmp.eq.s32.totalorder %v3475, %v3507
        %vm3512 = vcmp.eq.s32.totalorder %v3476, %v3507
        %vm3513 = vcmp.eq.s32.totalorder %v3477, %v3507
        %vm3514 = vcmp.eq.s32.totalorder %v3478, %v3507
        %vm3515 = vcmp.eq.s32.totalorder %v3479, %v3507
        %vm3516 = vcmp.eq.s32.totalorder %v3480, %v3507
        %vm3517 = vcmp.eq.s32.totalorder %v3481, %v3507
        %vm3518 = vcmp.eq.s32.totalorder %v3482, %v3507
        %vm3519 = vcmp.eq.s32.totalorder %v3483, %v3507
        %vm3520 = vcmp.eq.s32.totalorder %v3484, %v3507
        %vm3521 = vcmp.eq.s32.totalorder %v3485, %v3507
        %vm3522 = vcmp.eq.s32.totalorder %v3486, %v3507
        %vm3523 = vcmp.eq.s32.totalorder %v3487, %v3507
        %vm3524 = vcmp.eq.s32.totalorder %v3488, %v3507
        %vm3525 = vcmp.eq.s32.totalorder %v3489, %v3507
        %vm3526 = vcmp.eq.s32.totalorder %v3490, %v3507
        %vm3527 = vcmp.eq.s32.totalorder %v3491, %v3507
        %vm3528 = vcmp.eq.s32.totalorder %v3492, %v3507
        %vm3529 = vcmp.eq.s32.totalorder %v3493, %v3507
        %vm3530 = vcmp.eq.s32.totalorder %v3494, %v3507
        %vm3531 = vcmp.eq.s32.totalorder %v3495, %v3507
        %vm3532 = vcmp.eq.s32.totalorder %v3496, %v3507
        %vm3533 = vcmp.eq.s32.totalorder %v3497, %v3507
        %vm3534 = vcmp.eq.s32.totalorder %v3498, %v3507
        %vm3535 = vcmp.eq.s32.totalorder %v3499, %v3507
        %vm3536 = vcmp.eq.s32.totalorder %v3500, %v3507
        %vm3537 = vcmp.eq.s32.totalorder %v3501, %v3507
        %vm3538 = vcmp.eq.s32.totalorder %v3502, %v3507
        %vm3539 = vcmp.eq.s32.totalorder %v3503, %v3507
        %v3540 = vsel %vm3508, 1.0, 0.0
        %v3541 = vsel %vm3509, 1.0, 0.0
        %v3542 = vsel %vm3510, 1.0, 0.0
        %v3543 = vsel %vm3511, 1.0, 0.0
        %v3544 = vsel %vm3512, 1.0, 0.0
        %v3545 = vsel %vm3513, 1.0, 0.0
        %v3546 = vsel %vm3514, 1.0, 0.0
        %v3547 = vsel %vm3515, 1.0, 0.0
        %v3548 = vsel %vm3516, 1.0, 0.0
        %v3549 = vsel %vm3517, 1.0, 0.0
        %v3550 = vsel %vm3518, 1.0, 0.0
        %v3551 = vsel %vm3519, 1.0, 0.0
        %v3552 = vsel %vm3520, 1.0, 0.0
        %v3553 = vsel %vm3521, 1.0, 0.0
        %v3554 = vsel %vm3522, 1.0, 0.0
        %v3555 = vsel %vm3523, 1.0, 0.0
        %v3556 = vsel %vm3524, 1.0, 0.0
        %v3557 = vsel %vm3525, 1.0, 0.0
        %v3558 = vsel %vm3526, 1.0, 0.0
        %v3559 = vsel %vm3527, 1.0, 0.0
        %v3560 = vsel %vm3528, 1.0, 0.0
        %v3561 = vsel %vm3529, 1.0, 0.0
        %v3562 = vsel %vm3530, 1.0, 0.0
        %v3563 = vsel %vm3531, 1.0, 0.0
        %v3564 = vsel %vm3532, 1.0, 0.0
        %v3565 = vsel %vm3533, 1.0, 0.0
        %v3566 = vsel %vm3534, 1.0, 0.0
        %v3567 = vsel %vm3535, 1.0, 0.0
        %v3568 = vsel %vm3536, 1.0, 0.0
        %v3569 = vsel %vm3537, 1.0, 0.0
        %v3570 = vsel %vm3538, 1.0, 0.0
        %v3571 = vsel %vm3539, 1.0, 0.0
        %v3572 = vld [vmem:[#allocation3] sm:$0xff]
        %v3573 = vld [vmem:[#allocation3 + $0x8] sm:$0xff]
        %v3574 = vld [vmem:[#allocation3 + $0x10] sm:$0xff]
        %v3575 = vld [vmem:[#allocation3 + $0x18] sm:$0xff]
        %v3576 = vld [vmem:[#allocation3 + $0x20] sm:$0xff]
        %v3577 = vld [vmem:[#allocation3 + $0x28] sm:$0xff]
        %v3578 = vld [vmem:[#allocation3 + $0x30] sm:$0xff]
        %v3579 = vld [vmem:[#allocation3 + $0x38] sm:$0xff]
        %v3580 = vld [vmem:[#allocation3 + $0x40] sm:$0xff]
        %v3581 = vld [vmem:[#allocation3 + $0x48] sm:$0xff]
        %v3582 = vld [vmem:[#allocation3 + $0x50] sm:$0xff]
        %v3583 = vld [vmem:[#allocation3 + $0x58] sm:$0xff]
        %v3584 = vld [vmem:[#allocation3 + $0x60] sm:$0xff]
        %v3585 = vld [vmem:[#allocation3 + $0x68] sm:$0xff]
        %v3586 = vld [vmem:[#allocation3 + $0x70] sm:$0xff]
        %v3587 = vld [vmem:[#allocation3 + $0x78] sm:$0xff]
        %v3588 = vld [vmem:[#allocation3 + $0x80] sm:$0xff]
        %v3589 = vld [vmem:[#allocation3 + $0x88] sm:$0xff]
        %v3590 = vld [vmem:[#allocation3 + $0x90] sm:$0xff]
        %v3591 = vld [vmem:[#allocation3 + $0x98] sm:$0xff]
        %v3592 = vld [vmem:[#allocation3 + $0xa0] sm:$0xff]
        %v3593 = vld [vmem:[#allocation3 + $0xa8] sm:$0xff]
        %v3594 = vld [vmem:[#allocation3 + $0xb0] sm:$0xff]
        %v3595 = vld [vmem:[#allocation3 + $0xb8] sm:$0xff]
        %v3596 = vld [vmem:[#allocation3 + $0xc0] sm:$0xff]
        %v3597 = vld [vmem:[#allocation3 + $0xc8] sm:$0xff]
        %v3598 = vld [vmem:[#allocation3 + $0xd0] sm:$0xff]
        %v3599 = vld [vmem:[#allocation3 + $0xd8] sm:$0xff]
        %v3600 = vld [vmem:[#allocation3 + $0xe0] sm:$0xff]
        %v3601 = vld [vmem:[#allocation3 + $0xe8] sm:$0xff]
        %v3602 = vld [vmem:[#allocation3 + $0xf0] sm:$0xff]
        %v3603 = vld [vmem:[#allocation3 + $0xf8] sm:$0xff]
        %3604 = vmatprep.subr.mxu0 0.0
        %v3605 = vand.u32 %v3454, 4294901760
        %3606 = vmatpush1.msra.mxu0 %v3605
        %3607 = vmatprep.subr.mxu0 0.0
        %v3608 = vand.u32 %v3455, 4294901760
        %3609 = vmatpush1.msra.mxu0 %v3608
        %3610 = vmatprep.subr.mxu0 0.0
        %v3611 = vand.u32 %v3456, 4294901760
        %3612 = vmatpush1.msra.mxu0 %v3611
        %3613 = vmatprep.subr.mxu0 0.0
        %v3614 = vand.u32 %v3457, 4294901760
        %3615 = vmatpush1.msra.mxu0 %v3614
        %3616 = vmatprep.subr.mxu0 0.0
        %v3617 = vand.u32 %v3458, 4294901760
        %3618 = vmatpush1.msra.mxu0 %v3617
        %3619 = vmatprep.subr.mxu0 0.0
        %v3620 = vand.u32 %v3459, 4294901760
        %3621 = vmatpush1.msra.mxu0 %v3620
        %3622 = vmatprep.subr.mxu0 0.0
        %v3623 = vand.u32 %v3460, 4294901760
        %3624 = vmatpush1.msra.mxu0 %v3623
        %3625 = vmatprep.subr.mxu0 0.0
        %v3626 = vand.u32 %v3461, 4294901760
        %3627 = vmatpush1.msra.mxu0 %v3626
        %3628 = vmatprep.subr.mxu0 0.0
        %v3629 = vand.u32 %v3462, 4294901760
        %3630 = vmatpush1.msra.mxu0 %v3629
        %3631 = vmatprep.subr.mxu0 0.0
        %v3632 = vand.u32 %v3463, 4294901760
        %3633 = vmatpush1.msra.mxu0 %v3632
        %3634 = vmatprep.subr.mxu0 0.0
        %v3635 = vand.u32 %v3464, 4294901760
        %3636 = vmatpush1.msra.mxu0 %v3635
        %3637 = vmatprep.subr.mxu0 0.0
        %v3638 = vand.u32 %v3465, 4294901760
        %3639 = vmatpush1.msra.mxu0 %v3638
        %3640 = vmatprep.subr.mxu0 0.0
        %v3641 = vand.u32 %v3466, 4294901760
        %3642 = vmatpush1.msra.mxu0 %v3641
        %3643 = vmatprep.subr.mxu0 0.0
        %v3644 = vand.u32 %v3467, 4294901760
        %3645 = vmatpush1.msra.mxu0 %v3644
        %3646 = vmatprep.subr.mxu0 0.0
        %v3647 = vand.u32 %v3468, 4294901760
        %3648 = vmatpush1.msra.mxu0 %v3647
        %3649 = vmatprep.subr.mxu0 0.0
        %v3650 = vand.u32 %v3469, 4294901760
        %3651 = vmatpush1.msra.mxu0 %v3650
        %3652 = vmatprep.subr.mxu0 0.0
        %3653 = vmatpush1.msra.mxu0 0.0
        %3654 = vmatprep.subr.mxu0 0.0
        %3655 = vmatpush1.msra.mxu0 0.0
        %3656 = vmatprep.subr.mxu0 0.0
        %3657 = vmatpush1.msra.mxu0 0.0
        %3658 = vmatprep.subr.mxu0 0.0
        %3659 = vmatpush1.msra.mxu0 0.0
        %3660 = vmatprep.subr.mxu0 0.0
        %3661 = vmatpush1.msra.mxu0 0.0
        %3662 = vmatprep.subr.mxu0 0.0
        %3663 = vmatpush1.msra.mxu0 0.0
        %3664 = vmatprep.subr.mxu0 0.0
        %3665 = vmatpush1.msra.mxu0 0.0
        %3666 = vmatprep.subr.mxu0 0.0
        %3667 = vmatpush1.msra.mxu0 0.0
        %3668 = vmatprep.subr.mxu0 0.0
        %3669 = vmatpush1.msra.mxu0 0.0
        %3670 = vmatprep.subr.mxu0 0.0
        %3671 = vmatpush1.msra.mxu0 0.0
        %3672 = vmatprep.subr.mxu0 0.0
        %3673 = vmatpush1.msra.mxu0 0.0
        %3674 = vmatprep.subr.mxu0 0.0
        %3675 = vmatpush1.msra.mxu0 0.0
        %3676 = vmatprep.subr.mxu0 0.0
        %3677 = vmatpush1.msra.mxu0 0.0
        %3678 = vmatprep.subr.mxu0 0.0
        %3679 = vmatpush1.msra.mxu0 0.0
        %3680 = vmatprep.subr.mxu0 0.0
        %3681 = vmatpush1.msra.mxu0 0.0
        %3682 = vmatprep.subr.mxu0 0.0
        %3683 = vmatpush1.msra.mxu0 0.0
        %3684 = vmatprep.mubr.f32.mxu0 0.0
        %v3685 = vsub.f32 %v3540, %v3540
        %v3686 = vand.u32 %v3685, 4294901760
        %v3687 = vsub.f32 %v3685, %v3686
        %v3688 = vand.u32 %v3687, 4294901760
        %3689 = vmatmul.mubr.f32.gmra.mrb[0].mxu0 %v3688
        %v3690 = vpop.f32.mrb[0].mxu0
        %v3691 = vadd.f32 0.0, %v3690
        %v3692 = vpop.f32.mrb[0].mxu0
        %3693 = vmatprep.mubr.f32.mxu0 0.0
        %v3694 = vsub.f32 %v3541, %v3541
        %v3695 = vand.u32 %v3694, 4294901760
        %v3696 = vsub.f32 %v3694, %v3695
        %v3697 = vand.u32 %v3696, 4294901760
        %3698 = vmatmul.mubr.f32.gmra.mrb[0].mxu0 %v3697
        %v3699 = vpop.f32.mrb[0].mxu0
        %v3700 = vadd.f32 0.0, %v3699
        %v3701 = vpop.f32.mrb[0].mxu0
        %3702 = vmatprep.mubr.f32.mxu0 0.0
        %v3703 = vsub.f32 %v3542, %v3542
        %v3704 = vand.u32 %v3703, 4294901760
        %v3705 = vsub.f32 %v3703, %v3704
        %v3706 = vand.u32 %v3705, 4294901760
        %3707 = vmatmul.mubr.f32.gmra.mrb[0].mxu0 %v3706
        %v3708 = vpop.f32.mrb[0].mxu0
        %v3709 = vadd.f32 0.0, %v3708
        %v3710 = vpop.f32.mrb[0].mxu0
        %3711 = vmatprep.mubr.f32.mxu0 0.0
        %v3712 = vsub.f32 %v3543, %v3543
        %v3713 = vand.u32 %v3712, 4294901760
        %v3714 = vsub.f32 %v3712, %v3713
        %v3715 = vand.u32 %v3714, 4294901760
        %3716 = vmatmul.mubr.f32.gmra.mrb[0].mxu0 %v3715
        %v3717 = vpop.f32.mrb[0].mxu0
        %v3718 = vadd.f32 0.0, %v3717
        %v3719 = vpop.f32.mrb[0].mxu0
        %3720 = vmatprep.mubr.f32.mxu0 0.0
        %v3721 = vsub.f32 %v3544, %v3544
        %v3722 = vand.u32 %v3721, 4294901760
        %v3723 = vsub.f32 %v3721, %v3722
        %v3724 = vand.u32 %v3723, 4294901760
        %3725 = vmatmul.mubr.f32.gmra.mrb[0].mxu0 %v3724
        %v3726 = vpop.f32.mrb[0].mxu0
        %v3727 = vadd.f32 0.0, %v3726
        %v3728 = vpop.f32.mrb[0].mxu0
        %3729 = vmatprep.mubr.f32.mxu0 0.0
        %v3730 = vsub.f32 %v3545, %v3545
        %v3731 = vand.u32 %v3730, 4294901760
        %v3732 = vsub.f32 %v3730, %v3731
        %v3733 = vand.u32 %v3732, 4294901760
        %3734 = vmatmul.mubr.f32.gmra.mrb[0].mxu0 %v3733
        %v3735 = vpop.f32.mrb[0].mxu0
        %v3736 = vadd.f32 0.0, %v3735
        %v3737 = vpop.f32.mrb[0].mxu0
        %3738 = vmatprep.mubr.f32.mxu0 0.0
        %v3739 = vsub.f32 %v3546, %v3546
        %v3740 = vand.u32 %v3739, 4294901760
        %v3741 = vsub.f32 %v3739, %v3740
        %v3742 = vand.u32 %v3741, 4294901760
        %3743 = vmatmul.mubr.f32.gmra.mrb[0].mxu0 %v3742
        %v3744 = vpop.f32.mrb[0].mxu0
        %v3745 = vadd.f32 0.0, %v3744
        %v3746 = vpop.f32.mrb[0].mxu0
        %3747 = vmatprep.mubr.f32.mxu0 0.0
        %v3748 = vsub.f32 %v3547, %v3547
        %v3749 = vand.u32 %v3748, 4294901760
        %v3750 = vsub.f32 %v3748, %v3749
        %v3751 = vand.u32 %v3750, 4294901760
        %3752 = vmatmul.mubr.f32.gmra.mrb[0].mxu0 %v3751
        %v3753 = vpop.f32.mrb[0].mxu0
        %v3754 = vadd.f32 0.0, %v3753
        %v3755 = vpop.f32.mrb[0].mxu0
        %3756 = vmatprep.mubr.f32.mxu0 0.0
        %v3757 = vsub.f32 %v3548, %v3548
        %v3758 = vand.u32 %v3757, 4294901760
        %v3759 = vsub.f32 %v3757, %v3758
        %v3760 = vand.u32 %v3759, 4294901760
        %3761 = vmatmul.mubr.f32.gmra.mrb[0].mxu0 %v3760
        %v3762 = vpop.f32.mrb[0].mxu0
        %v3763 = vadd.f32 0.0, %v3762
        %v3764 = vpop.f32.mrb[0].mxu0
        %3765 = vmatprep.mubr.f32.mxu0 0.0
        %v3766 = vsub.f32 %v3549, %v3549
        %v3767 = vand.u32 %v3766, 4294901760
        %v3768 = vsub.f32 %v3766, %v3767
        %v3769 = vand.u32 %v3768, 4294901760
        %3770 = vmatmul.mubr.f32.gmra.mrb[0].mxu0 %v3769
        %v3771 = vpop.f32.mrb[0].mxu0
        %v3772 = vadd.f32 0.0, %v3771
        %v3773 = vpop.f32.mrb[0].mxu0
        %3774 = vmatprep.mubr.f32.mxu0 0.0
        %v3775 = vsub.f32 %v3550, %v3550
        %v3776 = vand.u32 %v3775, 4294901760
        %v3777 = vsub.f32 %v3775, %v3776
        %v3778 = vand.u32 %v3777, 4294901760
        %3779 = vmatmul.mubr.f32.gmra.mrb[0].mxu0 %v3778
        %v3780 = vpop.f32.mrb[0].mxu0
        %v3781 = vadd.f32 0.0, %v3780
        %v3782 = vpop.f32.mrb[0].mxu0
        %3783 = vmatprep.mubr.f32.mxu0 0.0
        %v3784 = vsub.f32 %v3551, %v3551
        %v3785 = vand.u32 %v3784, 4294901760
        %v3786 = vsub.f32 %v3784, %v3785
        %v3787 = vand.u32 %v3786, 4294901760
        %3788 = vmatmul.mubr.f32.gmra.mrb[0].mxu0 %v3787
        %v3789 = vpop.f32.mrb[0].mxu0
        %v3790 = vadd.f32 0.0, %v3789
        %v3791 = vpop.f32.mrb[0].mxu0
        %3792 = vmatprep.mubr.f32.mxu0 0.0
        %v3793 = vsub.f32 %v3552, %v3552
        %v3794 = vand.u32 %v3793, 4294901760
        %v3795 = vsub.f32 %v3793, %v3794
        %v3796 = vand.u32 %v3795, 4294901760
        %3797 = vmatmul.mubr.f32.gmra.mrb[0].mxu0 %v3796
        %v3798 = vpop.f32.mrb[0].mxu0
        %v3799 = vadd.f32 0.0, %v3798
        %v3800 = vpop.f32.mrb[0].mxu0
        %3801 = vmatprep.mubr.f32.mxu0 0.0
        %v3802 = vsub.f32 %v3553, %v3553
        %v3803 = vand.u32 %v3802, 4294901760
        %v3804 = vsub.f32 %v3802, %v3803
        %v3805 = vand.u32 %v3804, 4294901760
        %3806 = vmatmul.mubr.f32.gmra.mrb[0].mxu0 %v3805
        %v3807 = vpop.f32.mrb[0].mxu0
        %v3808 = vadd.f32 0.0, %v3807
        %v3809 = vpop.f32.mrb[0].mxu0
        %3810 = vmatprep.mubr.f32.mxu0 0.0
        %v3811 = vsub.f32 %v3554, %v3554
        %v3812 = vand.u32 %v3811, 4294901760
        %v3813 = vsub.f32 %v3811, %v3812
        %v3814 = vand.u32 %v3813, 4294901760
        %3815 = vmatmul.mubr.f32.gmra.mrb[0].mxu0 %v3814
        %v3816 = vpop.f32.mrb[0].mxu0
        %v3817 = vadd.f32 0.0, %v3816
        %v3818 = vpop.f32.mrb[0].mxu0
        %3819 = vmatprep.mubr.f32.mxu0 0.0
        %v3820 = vsub.f32 %v3555, %v3555
        %v3821 = vand.u32 %v3820, 4294901760
        %v3822 = vsub.f32 %v3820, %v3821
        %v3823 = vand.u32 %v3822, 4294901760
        %3824 = vmatmul.mubr.f32.gmra.mrb[0].mxu0 %v3823
        %v3825 = vpop.f32.mrb[0].mxu0
        %v3826 = vadd.f32 0.0, %v3825
        %v3827 = vpop.f32.mrb[0].mxu0
        %3828 = vmatprep.mubr.f32.mxu0 0.0
        %v3829 = vsub.f32 %v3556, %v3556
        %v3830 = vand.u32 %v3829, 4294901760
        %v3831 = vsub.f32 %v3829, %v3830
        %v3832 = vand.u32 %v3831, 4294901760
        %3833 = vmatmul.mubr.f32.gmra.mrb[0].mxu0 %v3832
        %v3834 = vpop.f32.mrb[0].mxu0
        %v3835 = vadd.f32 0.0, %v3834
        %v3836 = vpop.f32.mrb[0].mxu0
        %3837 = vmatprep.mubr.f32.mxu0 0.0
        %v3838 = vsub.f32 %v3557, %v3557
        %v3839 = vand.u32 %v3838, 4294901760
        %v3840 = vsub.f32 %v3838, %v3839
        %v3841 = vand.u32 %v3840, 4294901760
        %3842 = vmatmul.mubr.f32.gmra.mrb[0].mxu0 %v3841
        %v3843 = vpop.f32.mrb[0].mxu0
        %v3844 = vadd.f32 0.0, %v3843
        %v3845 = vpop.f32.mrb[0].mxu0
        %3846 = vmatprep.mubr.f32.mxu0 0.0
        %v3847 = vsub.f32 %v3558, %v3558
        %v3848 = vand.u32 %v3847, 4294901760
        %v3849 = vsub.f32 %v3847, %v3848
        %v3850 = vand.u32 %v3849, 4294901760
        %3851 = vmatmul.mubr.f32.gmra.mrb[0].mxu0 %v3850
        %v3852 = vpop.f32.mrb[0].mxu0
        %v3853 = vadd.f32 0.0, %v3852
        %v3854 = vpop.f32.mrb[0].mxu0
        %3855 = vmatprep.mubr.f32.mxu0 0.0
        %v3856 = vsub.f32 %v3559, %v3559
        %v3857 = vand.u32 %v3856, 4294901760
        %v3858 = vsub.f32 %v3856, %v3857
        %v3859 = vand.u32 %v3858, 4294901760
        %3860 = vmatmul.mubr.f32.gmra.mrb[0].mxu0 %v3859
        %v3861 = vpop.f32.mrb[0].mxu0
        %v3862 = vadd.f32 0.0, %v3861
        %v3863 = vpop.f32.mrb[0].mxu0
        %3864 = vmatprep.mubr.f32.mxu0 0.0
        %v3865 = vsub.f32 %v3560, %v3560
        %v3866 = vand.u32 %v3865, 4294901760
        %v3867 = vsub.f32 %v3865, %v3866
        %v3868 = vand.u32 %v3867, 4294901760
        %3869 = vmatmul.mubr.f32.gmra.mrb[0].mxu0 %v3868
        %v3870 = vpop.f32.mrb[0].mxu0
        %v3871 = vadd.f32 0.0, %v3870
        %v3872 = vpop.f32.mrb[0].mxu0
        %3873 = vmatprep.mubr.f32.mxu0 0.0
        %v3874 = vsub.f32 %v3561, %v3561
        %v3875 = vand.u32 %v3874, 4294901760
        %v3876 = vsub.f32 %v3874, %v3875
        %v3877 = vand.u32 %v3876, 4294901760
        %3878 = vmatmul.mubr.f32.gmra.mrb[0].mxu0 %v3877
        %v3879 = vpop.f32.mrb[0].mxu0
        %v3880 = vadd.f32 0.0, %v3879
        %v3881 = vpop.f32.mrb[0].mxu0
        %3882 = vmatprep.mubr.f32.mxu0 0.0
        %v3883 = vsub.f32 %v3562, %v3562
        %v3884 = vand.u32 %v3883, 4294901760
        %v3885 = vsub.f32 %v3883, %v3884
        %v3886 = vand.u32 %v3885, 4294901760
        %3887 = vmatmul.mubr.f32.gmra.mrb[0].mxu0 %v3886
        %v3888 = vpop.f32.mrb[0].mxu0
        %v3889 = vadd.f32 0.0, %v3888
        %v3890 = vpop.f32.mrb[0].mxu0
        %3891 = vmatprep.mubr.f32.mxu0 0.0
        %v3892 = vsub.f32 %v3563, %v3563
        %v3893 = vand.u32 %v3892, 4294901760
        %v3894 = vsub.f32 %v3892, %v3893
        %v3895 = vand.u32 %v3894, 4294901760
        %3896 = vmatmul.mubr.f32.gmra.mrb[0].mxu0 %v3895
        %v3897 = vpop.f32.mrb[0].mxu0
        %v3898 = vadd.f32 0.0, %v3897
        %v3899 = vpop.f32.mrb[0].mxu0
        %3900 = vmatprep.mubr.f32.mxu0 0.0
        %v3901 = vsub.f32 %v3564, %v3564
        %v3902 = vand.u32 %v3901, 4294901760
        %v3903 = vsub.f32 %v3901, %v3902
        %v3904 = vand.u32 %v3903, 4294901760
        %3905 = vmatmul.mubr.f32.gmra.mrb[0].mxu0 %v3904
        %v3906 = vpop.f32.mrb[0].mxu0
        %v3907 = vadd.f32 0.0, %v3906
        %v3908 = vpop.f32.mrb[0].mxu0
        %3909 = vmatprep.mubr.f32.mxu0 0.0
        %v3910 = vsub.f32 %v3565, %v3565
        %v3911 = vand.u32 %v3910, 4294901760
        %v3912 = vsub.f32 %v3910, %v3911
        %v3913 = vand.u32 %v3912, 4294901760
        %3914 = vmatmul.mubr.f32.gmra.mrb[0].mxu0 %v3913
        %v3915 = vpop.f32.mrb[0].mxu0
        %v3916 = vadd.f32 0.0, %v3915
        %v3917 = vpop.f32.mrb[0].mxu0
        %3918 = vmatprep.mubr.f32.mxu0 0.0
        %v3919 = vsub.f32 %v3566, %v3566
        %v3920 = vand.u32 %v3919, 4294901760
        %v3921 = vsub.f32 %v3919, %v3920
        %v3922 = vand.u32 %v3921, 4294901760
        %3923 = vmatmul.mubr.f32.gmra.mrb[0].mxu0 %v3922
        %v3924 = vpop.f32.mrb[0].mxu0
        %v3925 = vadd.f32 0.0, %v3924
        %v3926 = vpop.f32.mrb[0].mxu0
        %3927 = vmatprep.mubr.f32.mxu0 0.0
        %v3928 = vsub.f32 %v3567, %v3567
        %v3929 = vand.u32 %v3928, 4294901760
        %v3930 = vsub.f32 %v3928, %v3929
        %v3931 = vand.u32 %v3930, 4294901760
        %3932 = vmatmul.mubr.f32.gmra.mrb[0].mxu0 %v3931
        %v3933 = vpop.f32.mrb[0].mxu0
        %v3934 = vadd.f32 0.0, %v3933
        %v3935 = vpop.f32.mrb[0].mxu0
        %3936 = vmatprep.mubr.f32.mxu0 0.0
        %v3937 = vsub.f32 %v3568, %v3568
        %v3938 = vand.u32 %v3937, 4294901760
        %v3939 = vsub.f32 %v3937, %v3938
        %v3940 = vand.u32 %v3939, 4294901760
        %3941 = vmatmul.mubr.f32.gmra.mrb[0].mxu0 %v3940
        %v3942 = vpop.f32.mrb[0].mxu0
        %v3943 = vadd.f32 0.0, %v3942
        %v3944 = vpop.f32.mrb[0].mxu0
        %3945 = vmatprep.mubr.f32.mxu0 0.0
        %v3946 = vsub.f32 %v3569, %v3569
        %v3947 = vand.u32 %v3946, 4294901760
        %v3948 = vsub.f32 %v3946, %v3947
        %v3949 = vand.u32 %v3948, 4294901760
        %3950 = vmatmul.mubr.f32.gmra.mrb[0].mxu0 %v3949
        %v3951 = vpop.f32.mrb[0].mxu0
        %v3952 = vadd.f32 0.0, %v3951
        %v3953 = vpop.f32.mrb[0].mxu0
        %3954 = vmatprep.mubr.f32.mxu0 0.0
        %v3955 = vsub.f32 %v3570, %v3570
        %v3956 = vand.u32 %v3955, 4294901760
        %v3957 = vsub.f32 %v3955, %v3956
        %v3958 = vand.u32 %v3957, 4294901760
        %3959 = vmatmul.mubr.f32.gmra.mrb[0].mxu0 %v3958
        %v3960 = vpop.f32.mrb[0].mxu0
        %v3961 = vadd.f32 0.0, %v3960
        %v3962 = vpop.f32.mrb[0].mxu0
        %3963 = vmatprep.mubr.f32.mxu0 0.0
        %v3964 = vsub.f32 %v3571, %v3571
        %v3965 = vand.u32 %v3964, 4294901760
        %v3966 = vsub.f32 %v3964, %v3965
        %v3967 = vand.u32 %v3966, 4294901760
        %3968 = vmatmul.mubr.f32.gmra.mrb[0].mxu0 %v3967
        %v3969 = vpop.f32.mrb[0].mxu0
        %v3970 = vadd.f32 0.0, %v3969
        %v3971 = vpop.f32.mrb[0].mxu0
        %3972 = vdwg.mxu0
        %3973 = vmatprep.subr.mxu0 0.0
        %v3974 = vand.u32 %v3454, 4294901760
        %v3975 = vsub.f32 %v3454, %v3974
        %v3976 = vand.u32 %v3975, 4294901760
        %v3977 = vsub.f32 %v3975, %v3976
        %v3978 = vand.u32 %v3977, 4294901760
        %3979 = vmatpush1.msra.mxu0 %v3978
        %3980 = vmatprep.subr.mxu0 0.0
        %v3981 = vand.u32 %v3455, 4294901760
        %v3982 = vsub.f32 %v3455, %v3981
        %v3983 = vand.u32 %v3982, 4294901760
        %v3984 = vsub.f32 %v3982, %v3983
        %v3985 = vand.u32 %v3984, 4294901760
        %3986 = vmatpush1.msra.mxu0 %v3985
        %3987 = vmatprep.subr.mxu0 0.0
        %v3988 = vand.u32 %v3456, 4294901760
        %v3989 = vsub.f32 %v3456, %v3988
        %v3990 = vand.u32 %v3989, 4294901760
        %v3991 = vsub.f32 %v3989, %v3990
        %v3992 = vand.u32 %v3991, 4294901760
        %3993 = vmatpush1.msra.mxu0 %v3992
        %3994 = vmatprep.subr.mxu0 0.0
        %v3995 = vand.u32 %v3457, 4294901760
        %v3996 = vsub.f32 %v3457, %v3995
        %v3997 = vand.u32 %v3996, 4294901760
        %v3998 = vsub.f32 %v3996, %v3997
        %v3999 = vand.u32 %v3998, 4294901760
        %4000 = vmatpush1.msra.mxu0 %v3999
        %4001 = vmatprep.subr.mxu0 0.0
        %v4002 = vand.u32 %v3458, 4294901760
        %v4003 = vsub.f32 %v3458, %v4002
        %v4004 = vand.u32 %v4003, 4294901760
        %v4005 = vsub.f32 %v4003, %v4004
        %v4006 = vand.u32 %v4005, 4294901760
        %4007 = vmatpush1.msra.mxu0 %v4006
        %4008 = vmatprep.subr.mxu0 0.0
        %v4009 = vand.u32 %v3459, 4294901760
        %v4010 = vsub.f32 %v3459, %v4009
        %v4011 = vand.u32 %v4010, 4294901760
        %v4012 = vsub.f32 %v4010, %v4011
        %v4013 = vand.u32 %v4012, 4294901760
        %4014 = vmatpush1.msra.mxu0 %v4013
        %4015 = vmatprep.subr.mxu0 0.0
        %v4016 = vand.u32 %v3460, 4294901760
        %v4017 = vsub.f32 %v3460, %v4016
        %v4018 = vand.u32 %v4017, 4294901760
        %v4019 = vsub.f32 %v4017, %v4018
        %v4020 = vand.u32 %v4019, 4294901760
        %4021 = vmatpush1.msra.mxu0 %v4020
        %4022 = vmatprep.subr.mxu0 0.0
        %v4023 = vand.u32 %v3461, 4294901760
        %v4024 = vsub.f32 %v3461, %v4023
        %v4025 = vand.u32 %v4024, 4294901760
        %v4026 = vsub.f32 %v4024, %v4025
        %v4027 = vand.u32 %v4026, 4294901760
        %4028 = vmatpush1.msra.mxu0 %v4027
        %4029 = vmatprep.subr.mxu0 0.0
        %v4030 = vand.u32 %v3462, 4294901760
        %v4031 = vsub.f32 %v3462, %v4030
        %v4032 = vand.u32 %v4031, 4294901760
        %v4033 = vsub.f32 %v4031, %v4032
        %v4034 = vand.u32 %v4033, 4294901760
        %4035 = vmatpush1.msra.mxu0 %v4034
        %4036 = vmatprep.subr.mxu0 0.0
        %v4037 = vand.u32 %v3463, 4294901760
        %v4038 = vsub.f32 %v3463, %v4037
        %v4039 = vand.u32 %v4038, 4294901760
        %v4040 = vsub.f32 %v4038, %v4039
        %v4041 = vand.u32 %v4040, 4294901760
        %4042 = vmatpush1.msra.mxu0 %v4041
        %4043 = vmatprep.subr.mxu0 0.0
        %v4044 = vand.u32 %v3464, 4294901760
        %v4045 = vsub.f32 %v3464, %v4044
        %v4046 = vand.u32 %v4045, 4294901760
        %v4047 = vsub.f32 %v4045, %v4046
        %v4048 = vand.u32 %v4047, 4294901760
        %4049 = vmatpush1.msra.mxu0 %v4048
        %4050 = vmatprep.subr.mxu0 0.0
        %v4051 = vand.u32 %v3465, 4294901760
        %v4052 = vsub.f32 %v3465, %v4051
        %v4053 = vand.u32 %v4052, 4294901760
        %v4054 = vsub.f32 %v4052, %v4053
        %v4055 = vand.u32 %v4054, 4294901760
        %4056 = vmatpush1.msra.mxu0 %v4055
        %4057 = vmatprep.subr.mxu0 0.0
        %v4058 = vand.u32 %v3466, 4294901760
        %v4059 = vsub.f32 %v3466, %v4058
        %v4060 = vand.u32 %v4059, 4294901760
        %v4061 = vsub.f32 %v4059, %v4060
        %v4062 = vand.u32 %v4061, 4294901760
        %4063 = vmatpush1.msra.mxu0 %v4062
        %4064 = vmatprep.subr.mxu0 0.0
        %v4065 = vand.u32 %v3467, 4294901760
        %v4066 = vsub.f32 %v3467, %v4065
        %v4067 = vand.u32 %v4066, 4294901760
        %v4068 = vsub.f32 %v4066, %v4067
        %v4069 = vand.u32 %v4068, 4294901760
        %4070 = vmatpush1.msra.mxu0 %v4069
        %4071 = vmatprep.subr.mxu0 0.0
        %v4072 = vand.u32 %v3468, 4294901760
        %v4073 = vsub.f32 %v3468, %v4072
        %v4074 = vand.u32 %v4073, 4294901760
        %v4075 = vsub.f32 %v4073, %v4074
        %v4076 = vand.u32 %v4075, 4294901760
        %4077 = vmatpush1.msra.mxu0 %v4076
        %4078 = vmatprep.subr.mxu0 0.0
        %v4079 = vand.u32 %v3469, 4294901760
        %v4080 = vsub.f32 %v3469, %v4079
        %v4081 = vand.u32 %v4080, 4294901760
        %v4082 = vsub.f32 %v4080, %v4081
        %v4083 = vand.u32 %v4082, 4294901760
        %4084 = vmatpush1.msra.mxu0 %v4083
        %4085 = vmatprep.subr.mxu0 0.0
        %4086 = vmatpush1.msra.mxu0 0.0
        %4087 = vmatprep.subr.mxu0 0.0
        %4088 = vmatpush1.msra.mxu0 0.0
        %4089 = vmatprep.subr.mxu0 0.0
        %4090 = vmatpush1.msra.mxu0 0.0
        %4091 = vmatprep.subr.mxu0 0.0
        %4092 = vmatpush1.msra.mxu0 0.0
        %4093 = vmatprep.subr.mxu0 0.0
        %4094 = vmatpush1.msra.mxu0 0.0
        %4095 = vmatprep.subr.mxu0 0.0
        %4096 = vmatpush1.msra.mxu0 0.0
        %4097 = vmatprep.subr.mxu0 0.0
        %4098 = vmatpush1.msra.mxu0 0.0
        %4099 = vmatprep.subr.mxu0 0.0
        %4100 = vmatpush1.msra.mxu0 0.0
        %4101 = vmatprep.subr.mxu0 0.0
        %4102 = vmatpush1.msra.mxu0 0.0
        %4103 = vmatprep.subr.mxu0 0.0
        %4104 = vmatpush1.msra.mxu0 0.0
        %4105 = vmatprep.subr.mxu0 0.0
        %4106 = vmatpush1.msra.mxu0 0.0
        %4107 = vmatprep.subr.mxu0 0.0
        %4108 = vmatpush1.msra.mxu0 0.0
        %4109 = vmatprep.subr.mxu0 0.0
        %4110 = vmatpush1.msra.mxu0 0.0
        %4111 = vmatprep.subr.mxu0 0.0
        %4112 = vmatpush1.msra.mxu0 0.0
        %4113 = vmatprep.subr.mxu0 0.0
        %4114 = vmatpush1.msra.mxu0 0.0
        %4115 = vmatprep.subr.mxu0 0.0
        %4116 = vmatpush1.msra.mxu0 0.0
        %4117 = vmatprep.mubr.f32.mxu0 0.0
        %4118 = vmatmul.mubr.f32.gmra.mrb[0].mxu0 %v3540
        %v4119 = vpop.f32.mrb[0].mxu0
        %v4120 = vadd.f32 %v3691, %v4119
        %v4121 = vpop.f32.mrb[0].mxu0
        %4122 = vmatprep.mubr.f32.mxu0 0.0
        %4123 = vmatmul.mubr.f32.gmra.mrb[0].mxu0 %v3541
        %v4124 = vpop.f32.mrb[0].mxu0
        %v4125 = vadd.f32 %v3700, %v4124
        %v4126 = vpop.f32.mrb[0].mxu0
        %4127 = vmatprep.mubr.f32.mxu0 0.0
        %4128 = vmatmul.mubr.f32.gmra.mrb[0].mxu0 %v3542
        %v4129 = vpop.f32.mrb[0].mxu0
        %v4130 = vadd.f32 %v3709, %v4129
        %v4131 = vpop.f32.mrb[0].mxu0
        %4132 = vmatprep.mubr.f32.mxu0 0.0
        %4133 = vmatmul.mubr.f32.gmra.mrb[0].mxu0 %v3543
        %v4134 = vpop.f32.mrb[0].mxu0
        %v4135 = vadd.f32 %v3718, %v4134
        %v4136 = vpop.f32.mrb[0].mxu0
        %4137 = vmatprep.mubr.f32.mxu0 0.0
        %4138 = vmatmul.mubr.f32.gmra.mrb[0].mxu0 %v3544
        %v4139 = vpop.f32.mrb[0].mxu0
        %v4140 = vadd.f32 %v3727, %v4139
        %v4141 = vpop.f32.mrb[0].mxu0
        %4142 = vmatprep.mubr.f32.mxu0 0.0
        %4143 = vmatmul.mubr.f32.gmra.mrb[0].mxu0 %v3545
        %v4144 = vpop.f32.mrb[0].mxu0
        %v4145 = vadd.f32 %v3736, %v4144
        %v4146 = vpop.f32.mrb[0].mxu0
        %4147 = vmatprep.mubr.f32.mxu0 0.0
        %4148 = vmatmul.mubr.f32.gmra.mrb[0].mxu0 %v3546
        %v4149 = vpop.f32.mrb[0].mxu0
        %v4150 = vadd.f32 %v3745, %v4149
        %v4151 = vpop.f32.mrb[0].mxu0
        %4152 = vmatprep.mubr.f32.mxu0 0.0
        %4153 = vmatmul.mubr.f32.gmra.mrb[0].mxu0 %v3547
        %v4154 = vpop.f32.mrb[0].mxu0
        %v4155 = vadd.f32 %v3754, %v4154
        %v4156 = vpop.f32.mrb[0].mxu0
        %4157 = vmatprep.mubr.f32.mxu0 0.0
        %4158 = vmatmul.mubr.f32.gmra.mrb[0].mxu0 %v3548
        %v4159 = vpop.f32.mrb[0].mxu0
        %v4160 = vadd.f32 %v3763, %v4159
        %v4161 = vpop.f32.mrb[0].mxu0
        %4162 = vmatprep.mubr.f32.mxu0 0.0
        %4163 = vmatmul.mubr.f32.gmra.mrb[0].mxu0 %v3549
        %v4164 = vpop.f32.mrb[0].mxu0
        %v4165 = vadd.f32 %v3772, %v4164
        %v4166 = vpop.f32.mrb[0].mxu0
        %4167 = vmatprep.mubr.f32.mxu0 0.0
        %4168 = vmatmul.mubr.f32.gmra.mrb[0].mxu0 %v3550
        %v4169 = vpop.f32.mrb[0].mxu0
        %v4170 = vadd.f32 %v3781, %v4169
        %v4171 = vpop.f32.mrb[0].mxu0
        %4172 = vmatprep.mubr.f32.mxu0 0.0
        %4173 = vmatmul.mubr.f32.gmra.mrb[0].mxu0 %v3551
        %v4174 = vpop.f32.mrb[0].mxu0
        %v4175 = vadd.f32 %v3790, %v4174
        %v4176 = vpop.f32.mrb[0].mxu0
        %4177 = vmatprep.mubr.f32.mxu0 0.0
        %4178 = vmatmul.mubr.f32.gmra.mrb[0].mxu0 %v3552
        %v4179 = vpop.f32.mrb[0].mxu0
        %v4180 = vadd.f32 %v3799, %v4179
        %v4181 = vpop.f32.mrb[0].mxu0
        %4182 = vmatprep.mubr.f32.mxu0 0.0
        %4183 = vmatmul.mubr.f32.gmra.mrb[0].mxu0 %v3553
        %v4184 = vpop.f32.mrb[0].mxu0
        %v4185 = vadd.f32 %v3808, %v4184
        %v4186 = vpop.f32.mrb[0].mxu0
        %4187 = vmatprep.mubr.f32.mxu0 0.0
        %4188 = vmatmul.mubr.f32.gmra.mrb[0].mxu0 %v3554
        %v4189 = vpop.f32.mrb[0].mxu0
        %v4190 = vadd.f32 %v3817, %v4189
        %v4191 = vpop.f32.mrb[0].mxu0
        %4192 = vmatprep.mubr.f32.mxu0 0.0
        %4193 = vmatmul.mubr.f32.gmra.mrb[0].mxu0 %v3555
        %v4194 = vpop.f32.mrb[0].mxu0
        %v4195 = vadd.f32 %v3826, %v4194
        %v4196 = vpop.f32.mrb[0].mxu0
        %4197 = vmatprep.mubr.f32.mxu0 0.0
        %4198 = vmatmul.mubr.f32.gmra.mrb[0].mxu0 %v3556
        %v4199 = vpop.f32.mrb[0].mxu0
        %v4200 = vadd.f32 %v3835, %v4199
        %v4201 = vpop.f32.mrb[0].mxu0
        %4202 = vmatprep.mubr.f32.mxu0 0.0
        %4203 = vmatmul.mubr.f32.gmra.mrb[0].mxu0 %v3557
        %v4204 = vpop.f32.mrb[0].mxu0
        %v4205 = vadd.f32 %v3844, %v4204
        %v4206 = vpop.f32.mrb[0].mxu0
        %4207 = vmatprep.mubr.f32.mxu0 0.0
        %4208 = vmatmul.mubr.f32.gmra.mrb[0].mxu0 %v3558
        %v4209 = vpop.f32.mrb[0].mxu0
        %v4210 = vadd.f32 %v3853, %v4209
        %v4211 = vpop.f32.mrb[0].mxu0
        %4212 = vmatprep.mubr.f32.mxu0 0.0
        %4213 = vmatmul.mubr.f32.gmra.mrb[0].mxu0 %v3559
        %v4214 = vpop.f32.mrb[0].mxu0
        %v4215 = vadd.f32 %v3862, %v4214
        %v4216 = vpop.f32.mrb[0].mxu0
        %4217 = vmatprep.mubr.f32.mxu0 0.0
        %4218 = vmatmul.mubr.f32.gmra.mrb[0].mxu0 %v3560
        %v4219 = vpop.f32.mrb[0].mxu0
        %v4220 = vadd.f32 %v3871, %v4219
        %v4221 = vpop.f32.mrb[0].mxu0
        %4222 = vmatprep.mubr.f32.mxu0 0.0
        %4223 = vmatmul.mubr.f32.gmra.mrb[0].mxu0 %v3561
        %v4224 = vpop.f32.mrb[0].mxu0
        %v4225 = vadd.f32 %v3880, %v4224
        %v4226 = vpop.f32.mrb[0].mxu0
        %4227 = vmatprep.mubr.f32.mxu0 0.0
        %4228 = vmatmul.mubr.f32.gmra.mrb[0].mxu0 %v3562
        %v4229 = vpop.f32.mrb[0].mxu0
        %v4230 = vadd.f32 %v3889, %v4229
        %v4231 = vpop.f32.mrb[0].mxu0
        %4232 = vmatprep.mubr.f32.mxu0 0.0
        %4233 = vmatmul.mubr.f32.gmra.mrb[0].mxu0 %v3563
        %v4234 = vpop.f32.mrb[0].mxu0
        %v4235 = vadd.f32 %v3898, %v4234
        %v4236 = vpop.f32.mrb[0].mxu0
        %4237 = vmatprep.mubr.f32.mxu0 0.0
        %4238 = vmatmul.mubr.f32.gmra.mrb[0].mxu0 %v3564
        %v4239 = vpop.f32.mrb[0].mxu0
        %v4240 = vadd.f32 %v3907, %v4239
        %v4241 = vpop.f32.mrb[0].mxu0
        %4242 = vmatprep.mubr.f32.mxu0 0.0
        %4243 = vmatmul.mubr.f32.gmra.mrb[0].mxu0 %v3565
        %v4244 = vpop.f32.mrb[0].mxu0
        %v4245 = vadd.f32 %v3916, %v4244
        %v4246 = vpop.f32.mrb[0].mxu0
        %4247 = vmatprep.mubr.f32.mxu0 0.0
        %4248 = vmatmul.mubr.f32.gmra.mrb[0].mxu0 %v3566
        %v4249 = vpop.f32.mrb[0].mxu0
        %v4250 = vadd.f32 %v3925, %v4249
        %v4251 = vpop.f32.mrb[0].mxu0
        %4252 = vmatprep.mubr.f32.mxu0 0.0
        %4253 = vmatmul.mubr.f32.gmra.mrb[0].mxu0 %v3567
        %v4254 = vpop.f32.mrb[0].mxu0
        %v4255 = vadd.f32 %v3934, %v4254
        %v4256 = vpop.f32.mrb[0].mxu0
        %4257 = vmatprep.mubr.f32.mxu0 0.0
        %4258 = vmatmul.mubr.f32.gmra.mrb[0].mxu0 %v3568
        %v4259 = vpop.f32.mrb[0].mxu0
        %v4260 = vadd.f32 %v3943, %v4259
        %v4261 = vpop.f32.mrb[0].mxu0
        %4262 = vmatprep.mubr.f32.mxu0 0.0
        %4263 = vmatmul.mubr.f32.gmra.mrb[0].mxu0 %v3569
        %v4264 = vpop.f32.mrb[0].mxu0
        %v4265 = vadd.f32 %v3952, %v4264
        %v4266 = vpop.f32.mrb[0].mxu0
        %4267 = vmatprep.mubr.f32.mxu0 0.0
        %4268 = vmatmul.mubr.f32.gmra.mrb[0].mxu0 %v3570
        %v4269 = vpop.f32.mrb[0].mxu0
        %v4270 = vadd.f32 %v3961, %v4269
        %v4271 = vpop.f32.mrb[0].mxu0
        %4272 = vmatprep.mubr.f32.mxu0 0.0
        %4273 = vmatmul.mubr.f32.gmra.mrb[0].mxu0 %v3571
        %v4274 = vpop.f32.mrb[0].mxu0
        %v4275 = vadd.f32 %v3970, %v4274
        %v4276 = vpop.f32.mrb[0].mxu0
        %4277 = vdwg.mxu0
        %4278 = vmatprep.subr.mxu0 0.0
        %v4279 = vand.u32 %v3454, 4294901760
        %v4280 = vsub.f32 %v3454, %v4279
        %4281 = vmatpush1.msra.mxu0 %v4280
        %4282 = vmatprep.subr.mxu0 0.0
        %v4283 = vand.u32 %v3455, 4294901760
        %v4284 = vsub.f32 %v3455, %v4283
        %4285 = vmatpush1.msra.mxu0 %v4284
        %4286 = vmatprep.subr.mxu0 0.0
        %v4287 = vand.u32 %v3456, 4294901760
        %v4288 = vsub.f32 %v3456, %v4287
        %4289 = vmatpush1.msra.mxu0 %v4288
        %4290 = vmatprep.subr.mxu0 0.0
        %v4291 = vand.u32 %v3457, 4294901760
        %v4292 = vsub.f32 %v3457, %v4291
        %4293 = vmatpush1.msra.mxu0 %v4292
        %4294 = vmatprep.subr.mxu0 0.0
        %v4295 = vand.u32 %v3458, 4294901760
        %v4296 = vsub.f32 %v3458, %v4295
        %4297 = vmatpush1.msra.mxu0 %v4296
        %4298 = vmatprep.subr.mxu0 0.0
        %v4299 = vand.u32 %v3459, 4294901760
        %v4300 = vsub.f32 %v3459, %v4299
        %4301 = vmatpush1.msra.mxu0 %v4300
        %4302 = vmatprep.subr.mxu0 0.0
        %v4303 = vand.u32 %v3460, 4294901760
        %v4304 = vsub.f32 %v3460, %v4303
        %4305 = vmatpush1.msra.mxu0 %v4304
        %4306 = vmatprep.subr.mxu0 0.0
        %v4307 = vand.u32 %v3461, 4294901760
        %v4308 = vsub.f32 %v3461, %v4307
        %4309 = vmatpush1.msra.mxu0 %v4308
        %4310 = vmatprep.subr.mxu0 0.0
        %v4311 = vand.u32 %v3462, 4294901760
        %v4312 = vsub.f32 %v3462, %v4311
        %4313 = vmatpush1.msra.mxu0 %v4312
        %4314 = vmatprep.subr.mxu0 0.0
        %v4315 = vand.u32 %v3463, 4294901760
        %v4316 = vsub.f32 %v3463, %v4315
        %4317 = vmatpush1.msra.mxu0 %v4316
        %4318 = vmatprep.subr.mxu0 0.0
        %v4319 = vand.u32 %v3464, 4294901760
        %v4320 = vsub.f32 %v3464, %v4319
        %4321 = vmatpush1.msra.mxu0 %v4320
        %4322 = vmatprep.subr.mxu0 0.0
        %v4323 = vand.u32 %v3465, 4294901760
        %v4324 = vsub.f32 %v3465, %v4323
        %4325 = vmatpush1.msra.mxu0 %v4324
        %4326 = vmatprep.subr.mxu0 0.0
        %v4327 = vand.u32 %v3466, 4294901760
        %v4328 = vsub.f32 %v3466, %v4327
        %4329 = vmatpush1.msra.mxu0 %v4328
        %4330 = vmatprep.subr.mxu0 0.0
        %v4331 = vand.u32 %v3467, 4294901760
        %v4332 = vsub.f32 %v3467, %v4331
        %4333 = vmatpush1.msra.mxu0 %v4332
        %4334 = vmatprep.subr.mxu0 0.0
        %v4335 = vand.u32 %v3468, 4294901760
        %v4336 = vsub.f32 %v3468, %v4335
        %4337 = vmatpush1.msra.mxu0 %v4336
        %4338 = vmatprep.subr.mxu0 0.0
        %v4339 = vand.u32 %v3469, 4294901760
        %v4340 = vsub.f32 %v3469, %v4339
        %4341 = vmatpush1.msra.mxu0 %v4340
        %4342 = vmatprep.subr.mxu0 0.0
        %4343 = vmatpush1.msra.mxu0 0.0
        %4344 = vmatprep.subr.mxu0 0.0
        %4345 = vmatpush1.msra.mxu0 0.0
        %4346 = vmatprep.subr.mxu0 0.0
        %4347 = vmatpush1.msra.mxu0 0.0
        %4348 = vmatprep.subr.mxu0 0.0
        %4349 = vmatpush1.msra.mxu0 0.0
        %4350 = vmatprep.subr.mxu0 0.0
        %4351 = vmatpush1.msra.mxu0 0.0
        %4352 = vmatprep.subr.mxu0 0.0
        %4353 = vmatpush1.msra.mxu0 0.0
        %4354 = vmatprep.subr.mxu0 0.0
        %4355 = vmatpush1.msra.mxu0 0.0
        %4356 = vmatprep.subr.mxu0 0.0
        %4357 = vmatpush1.msra.mxu0 0.0
        %4358 = vmatprep.subr.mxu0 0.0
        %4359 = vmatpush1.msra.mxu0 0.0
        %4360 = vmatprep.subr.mxu0 0.0
        %4361 = vmatpush1.msra.mxu0 0.0
        %4362 = vmatprep.subr.mxu0 0.0
        %4363 = vmatpush1.msra.mxu0 0.0
        %4364 = vmatprep.subr.mxu0 0.0
        %4365 = vmatpush1.msra.mxu0 0.0
        %4366 = vmatprep.subr.mxu0 0.0
        %4367 = vmatpush1.msra.mxu0 0.0
        %4368 = vmatprep.subr.mxu0 0.0
        %4369 = vmatpush1.msra.mxu0 0.0
        %4370 = vmatprep.subr.mxu0 0.0
        %4371 = vmatpush1.msra.mxu0 0.0
        %4372 = vmatprep.subr.mxu0 0.0
        %4373 = vmatpush1.msra.mxu0 0.0
        %4374 = vmatprep.mubr.f32.mxu0 0.0
        %v4375 = vsub.f32 %v3540, %v3540
        %4376 = vmatmul.mubr.f32.gmra.mrb[0].mxu0 %v4375
        %v4377 = vpop.f32.mrb[0].mxu0
        %v4378 = vadd.f32 %v4120, %v4377
        %v4379 = vpop.f32.mrb[0].mxu0
        %4380 = vmatprep.mubr.f32.mxu0 0.0
        %v4381 = vsub.f32 %v3541, %v3541
        %4382 = vmatmul.mubr.f32.gmra.mrb[0].mxu0 %v4381
        %v4383 = vpop.f32.mrb[0].mxu0
        %v4384 = vadd.f32 %v4125, %v4383
        %v4385 = vpop.f32.mrb[0].mxu0
        %4386 = vmatprep.mubr.f32.mxu0 0.0
        %v4387 = vsub.f32 %v3542, %v3542
        %4388 = vmatmul.mubr.f32.gmra.mrb[0].mxu0 %v4387
        %v4389 = vpop.f32.mrb[0].mxu0
        %v4390 = vadd.f32 %v4130, %v4389
        %v4391 = vpop.f32.mrb[0].mxu0
        %4392 = vmatprep.mubr.f32.mxu0 0.0
        %v4393 = vsub.f32 %v3543, %v3543
        %4394 = vmatmul.mubr.f32.gmra.mrb[0].mxu0 %v4393
        %v4395 = vpop.f32.mrb[0].mxu0
        %v4396 = vadd.f32 %v4135, %v4395
        %v4397 = vpop.f32.mrb[0].mxu0
        %4398 = vmatprep.mubr.f32.mxu0 0.0
        %v4399 = vsub.f32 %v3544, %v3544
        %4400 = vmatmul.mubr.f32.gmra.mrb[0].mxu0 %v4399
        %v4401 = vpop.f32.mrb[0].mxu0
        %v4402 = vadd.f32 %v4140, %v4401
        %v4403 = vpop.f32.mrb[0].mxu0
        %4404 = vmatprep.mubr.f32.mxu0 0.0
        %v4405 = vsub.f32 %v3545, %v3545
        %4406 = vmatmul.mubr.f32.gmra.mrb[0].mxu0 %v4405
        %v4407 = vpop.f32.mrb[0].mxu0
        %v4408 = vadd.f32 %v4145, %v4407
        %v4409 = vpop.f32.mrb[0].mxu0
        %4410 = vmatprep.mubr.f32.mxu0 0.0
        %v4411 = vsub.f32 %v3546, %v3546
        %4412 = vmatmul.mubr.f32.gmra.mrb[0].mxu0 %v4411
        %v4413 = vpop.f32.mrb[0].mxu0
        %v4414 = vadd.f32 %v4150, %v4413
        %v4415 = vpop.f32.mrb[0].mxu0
        %4416 = vmatprep.mubr.f32.mxu0 0.0
        %v4417 = vsub.f32 %v3547, %v3547
        %4418 = vmatmul.mubr.f32.gmra.mrb[0].mxu0 %v4417
        %v4419 = vpop.f32.mrb[0].mxu0
        %v4420 = vadd.f32 %v4155, %v4419
        %v4421 = vpop.f32.mrb[0].mxu0
        %4422 = vmatprep.mubr.f32.mxu0 0.0
        %v4423 = vsub.f32 %v3548, %v3548
        %4424 = vmatmul.mubr.f32.gmra.mrb[0].mxu0 %v4423
        %v4425 = vpop.f32.mrb[0].mxu0
        %v4426 = vadd.f32 %v4160, %v4425
        %v4427 = vpop.f32.mrb[0].mxu0
        %4428 = vmatprep.mubr.f32.mxu0 0.0
        %v4429 = vsub.f32 %v3549, %v3549
        %4430 = vmatmul.mubr.f32.gmra.mrb[0].mxu0 %v4429
        %v4431 = vpop.f32.mrb[0].mxu0
        %v4432 = vadd.f32 %v4165, %v4431
        %v4433 = vpop.f32.mrb[0].mxu0
        %4434 = vmatprep.mubr.f32.mxu0 0.0
        %v4435 = vsub.f32 %v3550, %v3550
        %4436 = vmatmul.mubr.f32.gmra.mrb[0].mxu0 %v4435
        %v4437 = vpop.f32.mrb[0].mxu0
        %v4438 = vadd.f32 %v4170, %v4437
        %v4439 = vpop.f32.mrb[0].mxu0
        %4440 = vmatprep.mubr.f32.mxu0 0.0
        %v4441 = vsub.f32 %v3551, %v3551
        %4442 = vmatmul.mubr.f32.gmra.mrb[0].mxu0 %v4441
        %v4443 = vpop.f32.mrb[0].mxu0
        %v4444 = vadd.f32 %v4175, %v4443
        %v4445 = vpop.f32.mrb[0].mxu0
        %4446 = vmatprep.mubr.f32.mxu0 0.0
        %v4447 = vsub.f32 %v3552, %v3552
        %4448 = vmatmul.mubr.f32.gmra.mrb[0].mxu0 %v4447
        %v4449 = vpop.f32.mrb[0].mxu0
        %v4450 = vadd.f32 %v4180, %v4449
        %v4451 = vpop.f32.mrb[0].mxu0
        %4452 = vmatprep.mubr.f32.mxu0 0.0
        %v4453 = vsub.f32 %v3553, %v3553
        %4454 = vmatmul.mubr.f32.gmra.mrb[0].mxu0 %v4453
        %v4455 = vpop.f32.mrb[0].mxu0
        %v4456 = vadd.f32 %v4185, %v4455
        %v4457 = vpop.f32.mrb[0].mxu0
        %4458 = vmatprep.mubr.f32.mxu0 0.0
        %v4459 = vsub.f32 %v3554, %v3554
        %4460 = vmatmul.mubr.f32.gmra.mrb[0].mxu0 %v4459
        %v4461 = vpop.f32.mrb[0].mxu0
        %v4462 = vadd.f32 %v4190, %v4461
        %v4463 = vpop.f32.mrb[0].mxu0
        %4464 = vmatprep.mubr.f32.mxu0 0.0
        %v4465 = vsub.f32 %v3555, %v3555
        %4466 = vmatmul.mubr.f32.gmra.mrb[0].mxu0 %v4465
        %v4467 = vpop.f32.mrb[0].mxu0
        %v4468 = vadd.f32 %v4195, %v4467
        %v4469 = vpop.f32.mrb[0].mxu0
        %4470 = vmatprep.mubr.f32.mxu0 0.0
        %v4471 = vsub.f32 %v3556, %v3556
        %4472 = vmatmul.mubr.f32.gmra.mrb[0].mxu0 %v4471
        %v4473 = vpop.f32.mrb[0].mxu0
        %v4474 = vadd.f32 %v4200, %v4473
        %v4475 = vpop.f32.mrb[0].mxu0
        %4476 = vmatprep.mubr.f32.mxu0 0.0
        %v4477 = vsub.f32 %v3557, %v3557
        %4478 = vmatmul.mubr.f32.gmra.mrb[0].mxu0 %v4477
        %v4479 = vpop.f32.mrb[0].mxu0
        %v4480 = vadd.f32 %v4205, %v4479
        %v4481 = vpop.f32.mrb[0].mxu0
        %4482 = vmatprep.mubr.f32.mxu0 0.0
        %v4483 = vsub.f32 %v3558, %v3558
        %4484 = vmatmul.mubr.f32.gmra.mrb[0].mxu0 %v4483
        %v4485 = vpop.f32.mrb[0].mxu0
        %v4486 = vadd.f32 %v4210, %v4485
        %v4487 = vpop.f32.mrb[0].mxu0
        %4488 = vmatprep.mubr.f32.mxu0 0.0
        %v4489 = vsub.f32 %v3559, %v3559
        %4490 = vmatmul.mubr.f32.gmra.mrb[0].mxu0 %v4489
        %v4491 = vpop.f32.mrb[0].mxu0
        %v4492 = vadd.f32 %v4215, %v4491
        %v4493 = vpop.f32.mrb[0].mxu0
        %4494 = vmatprep.mubr.f32.mxu0 0.0
        %v4495 = vsub.f32 %v3560, %v3560
        %4496 = vmatmul.mubr.f32.gmra.mrb[0].mxu0 %v4495
        %v4497 = vpop.f32.mrb[0].mxu0
        %v4498 = vadd.f32 %v4220, %v4497
        %v4499 = vpop.f32.mrb[0].mxu0
        %4500 = vmatprep.mubr.f32.mxu0 0.0
        %v4501 = vsub.f32 %v3561, %v3561
        %4502 = vmatmul.mubr.f32.gmra.mrb[0].mxu0 %v4501
        %v4503 = vpop.f32.mrb[0].mxu0
        %v4504 = vadd.f32 %v4225, %v4503
        %v4505 = vpop.f32.mrb[0].mxu0
        %4506 = vmatprep.mubr.f32.mxu0 0.0
        %v4507 = vsub.f32 %v3562, %v3562
        %4508 = vmatmul.mubr.f32.gmra.mrb[0].mxu0 %v4507
        %v4509 = vpop.f32.mrb[0].mxu0
        %v4510 = vadd.f32 %v4230, %v4509
        %v4511 = vpop.f32.mrb[0].mxu0
        %4512 = vmatprep.mubr.f32.mxu0 0.0
        %v4513 = vsub.f32 %v3563, %v3563
        %4514 = vmatmul.mubr.f32.gmra.mrb[0].mxu0 %v4513
        %v4515 = vpop.f32.mrb[0].mxu0
        %v4516 = vadd.f32 %v4235, %v4515
        %v4517 = vpop.f32.mrb[0].mxu0
        %4518 = vmatprep.mubr.f32.mxu0 0.0
        %v4519 = vsub.f32 %v3564, %v3564
        %4520 = vmatmul.mubr.f32.gmra.mrb[0].mxu0 %v4519
        %v4521 = vpop.f32.mrb[0].mxu0
        %v4522 = vadd.f32 %v4240, %v4521
        %v4523 = vpop.f32.mrb[0].mxu0
        %4524 = vmatprep.mubr.f32.mxu0 0.0
        %v4525 = vsub.f32 %v3565, %v3565
        %4526 = vmatmul.mubr.f32.gmra.mrb[0].mxu0 %v4525
        %v4527 = vpop.f32.mrb[0].mxu0
        %v4528 = vadd.f32 %v4245, %v4527
        %v4529 = vpop.f32.mrb[0].mxu0
        %4530 = vmatprep.mubr.f32.mxu0 0.0
        %v4531 = vsub.f32 %v3566, %v3566
        %4532 = vmatmul.mubr.f32.gmra.mrb[0].mxu0 %v4531
        %v4533 = vpop.f32.mrb[0].mxu0
        %v4534 = vadd.f32 %v4250, %v4533
        %v4535 = vpop.f32.mrb[0].mxu0
        %4536 = vmatprep.mubr.f32.mxu0 0.0
        %v4537 = vsub.f32 %v3567, %v3567
        %4538 = vmatmul.mubr.f32.gmra.mrb[0].mxu0 %v4537
        %v4539 = vpop.f32.mrb[0].mxu0
        %v4540 = vadd.f32 %v4255, %v4539
        %v4541 = vpop.f32.mrb[0].mxu0
        %4542 = vmatprep.mubr.f32.mxu0 0.0
        %v4543 = vsub.f32 %v3568, %v3568
        %4544 = vmatmul.mubr.f32.gmra.mrb[0].mxu0 %v4543
        %v4545 = vpop.f32.mrb[0].mxu0
        %v4546 = vadd.f32 %v4260, %v4545
        %v4547 = vpop.f32.mrb[0].mxu0
        %4548 = vmatprep.mubr.f32.mxu0 0.0
        %v4549 = vsub.f32 %v3569, %v3569
        %4550 = vmatmul.mubr.f32.gmra.mrb[0].mxu0 %v4549
        %v4551 = vpop.f32.mrb[0].mxu0
        %v4552 = vadd.f32 %v4265, %v4551
        %v4553 = vpop.f32.mrb[0].mxu0
        %4554 = vmatprep.mubr.f32.mxu0 0.0
        %v4555 = vsub.f32 %v3570, %v3570
        %4556 = vmatmul.mubr.f32.gmra.mrb[0].mxu0 %v4555
        %v4557 = vpop.f32.mrb[0].mxu0
        %v4558 = vadd.f32 %v4270, %v4557
        %v4559 = vpop.f32.mrb[0].mxu0
        %4560 = vmatprep.mubr.f32.mxu0 0.0
        %v4561 = vsub.f32 %v3571, %v3571
        %4562 = vmatmul.mubr.f32.gmra.mrb[0].mxu0 %v4561
        %v4563 = vpop.f32.mrb[0].mxu0
        %v4564 = vadd.f32 %v4275, %v4563
        %v4565 = vpop.f32.mrb[0].mxu0
        %4566 = vdwg.mxu0
        %4567 = vmatprep.subr.mxu0 0.0
        %v4568 = vand.u32 %v3454, 4294901760
        %4569 = vmatpush1.msra.mxu0 %v4568
        %4570 = vmatprep.subr.mxu0 0.0
        %v4571 = vand.u32 %v3455, 4294901760
        %4572 = vmatpush1.msra.mxu0 %v4571
        %4573 = vmatprep.subr.mxu0 0.0
        %v4574 = vand.u32 %v3456, 4294901760
        %4575 = vmatpush1.msra.mxu0 %v4574
        %4576 = vmatprep.subr.mxu0 0.0
        %v4577 = vand.u32 %v3457, 4294901760
        %4578 = vmatpush1.msra.mxu0 %v4577
        %4579 = vmatprep.subr.mxu0 0.0
        %v4580 = vand.u32 %v3458, 4294901760
        %4581 = vmatpush1.msra.mxu0 %v4580
        %4582 = vmatprep.subr.mxu0 0.0
        %v4583 = vand.u32 %v3459, 4294901760
        %4584 = vmatpush1.msra.mxu0 %v4583
        %4585 = vmatprep.subr.mxu0 0.0
        %v4586 = vand.u32 %v3460, 4294901760
        %4587 = vmatpush1.msra.mxu0 %v4586
        %4588 = vmatprep.subr.mxu0 0.0
        %v4589 = vand.u32 %v3461, 4294901760
        %4590 = vmatpush1.msra.mxu0 %v4589
        %4591 = vmatprep.subr.mxu0 0.0
        %v4592 = vand.u32 %v3462, 4294901760
        %4593 = vmatpush1.msra.mxu0 %v4592
        %4594 = vmatprep.subr.mxu0 0.0
        %v4595 = vand.u32 %v3463, 4294901760
        %4596 = vmatpush1.msra.mxu0 %v4595
        %4597 = vmatprep.subr.mxu0 0.0
        %v4598 = vand.u32 %v3464, 4294901760
        %4599 = vmatpush1.msra.mxu0 %v4598
        %4600 = vmatprep.subr.mxu0 0.0
        %v4601 = vand.u32 %v3465, 4294901760
        %4602 = vmatpush1.msra.mxu0 %v4601
        %4603 = vmatprep.subr.mxu0 0.0
        %v4604 = vand.u32 %v3466, 4294901760
        %4605 = vmatpush1.msra.mxu0 %v4604
        %4606 = vmatprep.subr.mxu0 0.0
        %v4607 = vand.u32 %v3467, 4294901760
        %4608 = vmatpush1.msra.mxu0 %v4607
        %4609 = vmatprep.subr.mxu0 0.0
        %v4610 = vand.u32 %v3468, 4294901760
        %4611 = vmatpush1.msra.mxu0 %v4610
        %4612 = vmatprep.subr.mxu0 0.0
        %v4613 = vand.u32 %v3469, 4294901760
        %4614 = vmatpush1.msra.mxu0 %v4613
        %4615 = vmatprep.subr.mxu0 0.0
        %4616 = vmatpush1.msra.mxu0 0.0
        %4617 = vmatprep.subr.mxu0 0.0
        %4618 = vmatpush1.msra.mxu0 0.0
        %4619 = vmatprep.subr.mxu0 0.0
        %4620 = vmatpush1.msra.mxu0 0.0
        %4621 = vmatprep.subr.mxu0 0.0
        %4622 = vmatpush1.msra.mxu0 0.0
        %4623 = vmatprep.subr.mxu0 0.0
        %4624 = vmatpush1.msra.mxu0 0.0
        %4625 = vmatprep.subr.mxu0 0.0
        %4626 = vmatpush1.msra.mxu0 0.0
        %4627 = vmatprep.subr.mxu0 0.0
        %4628 = vmatpush1.msra.mxu0 0.0
        %4629 = vmatprep.subr.mxu0 0.0
        %4630 = vmatpush1.msra.mxu0 0.0
        %4631 = vmatprep.subr.mxu0 0.0
        %4632 = vmatpush1.msra.mxu0 0.0
        %4633 = vmatprep.subr.mxu0 0.0
        %4634 = vmatpush1.msra.mxu0 0.0
        %4635 = vmatprep.subr.mxu0 0.0
        %4636 = vmatpush1.msra.mxu0 0.0
        %4637 = vmatprep.subr.mxu0 0.0
        %4638 = vmatpush1.msra.mxu0 0.0
        %4639 = vmatprep.subr.mxu0 0.0
        %4640 = vmatpush1.msra.mxu0 0.0
        %4641 = vmatprep.subr.mxu0 0.0
        %4642 = vmatpush1.msra.mxu0 0.0
        %4643 = vmatprep.subr.mxu0 0.0
        %4644 = vmatpush1.msra.mxu0 0.0
        %4645 = vmatprep.subr.mxu0 0.0
        %4646 = vmatpush1.msra.mxu0 0.0
        %4647 = vmatprep.mubr.f32.mxu0 0.0
        %v4648 = vsub.f32 %v3540, %v3540
        %v4649 = vand.u32 %v4648, 4294901760
        %4650 = vmatmul.mubr.f32.gmra.mrb[0].mxu0 %v4649
        %v4651 = vpop.f32.mrb[0].mxu0
        %v4652 = vadd.f32 %v4378, %v4651
        %v4653 = vpop.f32.mrb[0].mxu0
        %4654 = vmatprep.mubr.f32.mxu0 0.0
        %v4655 = vsub.f32 %v3541, %v3541
        %v4656 = vand.u32 %v4655, 4294901760
        %4657 = vmatmul.mubr.f32.gmra.mrb[0].mxu0 %v4656
        %v4658 = vpop.f32.mrb[0].mxu0
        %v4659 = vadd.f32 %v4384, %v4658
        %v4660 = vpop.f32.mrb[0].mxu0
        %4661 = vmatprep.mubr.f32.mxu0 0.0
        %v4662 = vsub.f32 %v3542, %v3542
        %v4663 = vand.u32 %v4662, 4294901760
        %4664 = vmatmul.mubr.f32.gmra.mrb[0].mxu0 %v4663
        %v4665 = vpop.f32.mrb[0].mxu0
        %v4666 = vadd.f32 %v4390, %v4665
        %v4667 = vpop.f32.mrb[0].mxu0
        %4668 = vmatprep.mubr.f32.mxu0 0.0
        %v4669 = vsub.f32 %v3543, %v3543
        %v4670 = vand.u32 %v4669, 4294901760
        %4671 = vmatmul.mubr.f32.gmra.mrb[0].mxu0 %v4670
        %v4672 = vpop.f32.mrb[0].mxu0
        %v4673 = vadd.f32 %v4396, %v4672
        %v4674 = vpop.f32.mrb[0].mxu0
        %4675 = vmatprep.mubr.f32.mxu0 0.0
        %v4676 = vsub.f32 %v3544, %v3544
        %v4677 = vand.u32 %v4676, 4294901760
        %4678 = vmatmul.mubr.f32.gmra.mrb[0].mxu0 %v4677
        %v4679 = vpop.f32.mrb[0].mxu0
        %v4680 = vadd.f32 %v4402, %v4679
        %v4681 = vpop.f32.mrb[0].mxu0
        %4682 = vmatprep.mubr.f32.mxu0 0.0
        %v4683 = vsub.f32 %v3545, %v3545
        %v4684 = vand.u32 %v4683, 4294901760
        %4685 = vmatmul.mubr.f32.gmra.mrb[0].mxu0 %v4684
        %v4686 = vpop.f32.mrb[0].mxu0
        %v4687 = vadd.f32 %v4408, %v4686
        %v4688 = vpop.f32.mrb[0].mxu0
        %4689 = vmatprep.mubr.f32.mxu0 0.0
        %v4690 = vsub.f32 %v3546, %v3546
        %v4691 = vand.u32 %v4690, 4294901760
        %4692 = vmatmul.mubr.f32.gmra.mrb[0].mxu0 %v4691
        %v4693 = vpop.f32.mrb[0].mxu0
        %v4694 = vadd.f32 %v4414, %v4693
        %v4695 = vpop.f32.mrb[0].mxu0
        %4696 = vmatprep.mubr.f32.mxu0 0.0
        %v4697 = vsub.f32 %v3547, %v3547
        %v4698 = vand.u32 %v4697, 4294901760
        %4699 = vmatmul.mubr.f32.gmra.mrb[0].mxu0 %v4698
        %v4700 = vpop.f32.mrb[0].mxu0
        %v4701 = vadd.f32 %v4420, %v4700
        %v4702 = vpop.f32.mrb[0].mxu0
        %4703 = vmatprep.mubr.f32.mxu0 0.0
        %v4704 = vsub.f32 %v3548, %v3548
        %v4705 = vand.u32 %v4704, 4294901760
        %4706 = vmatmul.mubr.f32.gmra.mrb[0].mxu0 %v4705
        %v4707 = vpop.f32.mrb[0].mxu0
        %v4708 = vadd.f32 %v4426, %v4707
        %v4709 = vpop.f32.mrb[0].mxu0
        %4710 = vmatprep.mubr.f32.mxu0 0.0
        %v4711 = vsub.f32 %v3549, %v3549
        %v4712 = vand.u32 %v4711, 4294901760
        %4713 = vmatmul.mubr.f32.gmra.mrb[0].mxu0 %v4712
        %v4714 = vpop.f32.mrb[0].mxu0
        %v4715 = vadd.f32 %v4432, %v4714
        %v4716 = vpop.f32.mrb[0].mxu0
        %4717 = vmatprep.mubr.f32.mxu0 0.0
        %v4718 = vsub.f32 %v3550, %v3550
        %v4719 = vand.u32 %v4718, 4294901760
        %4720 = vmatmul.mubr.f32.gmra.mrb[0].mxu0 %v4719
        %v4721 = vpop.f32.mrb[0].mxu0
        %v4722 = vadd.f32 %v4438, %v4721
        %v4723 = vpop.f32.mrb[0].mxu0
        %4724 = vmatprep.mubr.f32.mxu0 0.0
        %v4725 = vsub.f32 %v3551, %v3551
        %v4726 = vand.u32 %v4725, 4294901760
        %4727 = vmatmul.mubr.f32.gmra.mrb[0].mxu0 %v4726
        %v4728 = vpop.f32.mrb[0].mxu0
        %v4729 = vadd.f32 %v4444, %v4728
        %v4730 = vpop.f32.mrb[0].mxu0
        %4731 = vmatprep.mubr.f32.mxu0 0.0
        %v4732 = vsub.f32 %v3552, %v3552
        %v4733 = vand.u32 %v4732, 4294901760
        %4734 = vmatmul.mubr.f32.gmra.mrb[0].mxu0 %v4733
        %v4735 = vpop.f32.mrb[0].mxu0
        %v4736 = vadd.f32 %v4450, %v4735
        %v4737 = vpop.f32.mrb[0].mxu0
        %4738 = vmatprep.mubr.f32.mxu0 0.0
        %v4739 = vsub.f32 %v3553, %v3553
        %v4740 = vand.u32 %v4739, 4294901760
        %4741 = vmatmul.mubr.f32.gmra.mrb[0].mxu0 %v4740
        %v4742 = vpop.f32.mrb[0].mxu0
        %v4743 = vadd.f32 %v4456, %v4742
        %v4744 = vpop.f32.mrb[0].mxu0
        %4745 = vmatprep.mubr.f32.mxu0 0.0
        %v4746 = vsub.f32 %v3554, %v3554
        %v4747 = vand.u32 %v4746, 4294901760
        %4748 = vmatmul.mubr.f32.gmra.mrb[0].mxu0 %v4747
        %v4749 = vpop.f32.mrb[0].mxu0
        %v4750 = vadd.f32 %v4462, %v4749
        %v4751 = vpop.f32.mrb[0].mxu0
        %4752 = vmatprep.mubr.f32.mxu0 0.0
        %v4753 = vsub.f32 %v3555, %v3555
        %v4754 = vand.u32 %v4753, 4294901760
        %4755 = vmatmul.mubr.f32.gmra.mrb[0].mxu0 %v4754
        %v4756 = vpop.f32.mrb[0].mxu0
        %v4757 = vadd.f32 %v4468, %v4756
        %v4758 = vpop.f32.mrb[0].mxu0
        %4759 = vmatprep.mubr.f32.mxu0 0.0
        %v4760 = vsub.f32 %v3556, %v3556
        %v4761 = vand.u32 %v4760, 4294901760
        %4762 = vmatmul.mubr.f32.gmra.mrb[0].mxu0 %v4761
        %v4763 = vpop.f32.mrb[0].mxu0
        %v4764 = vadd.f32 %v4474, %v4763
        %v4765 = vpop.f32.mrb[0].mxu0
        %4766 = vmatprep.mubr.f32.mxu0 0.0
        %v4767 = vsub.f32 %v3557, %v3557
        %v4768 = vand.u32 %v4767, 4294901760
        %4769 = vmatmul.mubr.f32.gmra.mrb[0].mxu0 %v4768
        %v4770 = vpop.f32.mrb[0].mxu0
        %v4771 = vadd.f32 %v4480, %v4770
        %v4772 = vpop.f32.mrb[0].mxu0
        %4773 = vmatprep.mubr.f32.mxu0 0.0
        %v4774 = vsub.f32 %v3558, %v3558
        %v4775 = vand.u32 %v4774, 4294901760
        %4776 = vmatmul.mubr.f32.gmra.mrb[0].mxu0 %v4775
        %v4777 = vpop.f32.mrb[0].mxu0
        %v4778 = vadd.f32 %v4486, %v4777
        %v4779 = vpop.f32.mrb[0].mxu0
        %4780 = vmatprep.mubr.f32.mxu0 0.0
        %v4781 = vsub.f32 %v3559, %v3559
        %v4782 = vand.u32 %v4781, 4294901760
        %4783 = vmatmul.mubr.f32.gmra.mrb[0].mxu0 %v4782
        %v4784 = vpop.f32.mrb[0].mxu0
        %v4785 = vadd.f32 %v4492, %v4784
        %v4786 = vpop.f32.mrb[0].mxu0
        %4787 = vmatprep.mubr.f32.mxu0 0.0
        %v4788 = vsub.f32 %v3560, %v3560
        %v4789 = vand.u32 %v4788, 4294901760
        %4790 = vmatmul.mubr.f32.gmra.mrb[0].mxu0 %v4789
        %v4791 = vpop.f32.mrb[0].mxu0
        %v4792 = vadd.f32 %v4498, %v4791
        %v4793 = vpop.f32.mrb[0].mxu0
        %4794 = vmatprep.mubr.f32.mxu0 0.0
        %v4795 = vsub.f32 %v3561, %v3561
        %v4796 = vand.u32 %v4795, 4294901760
        %4797 = vmatmul.mubr.f32.gmra.mrb[0].mxu0 %v4796
        %v4798 = vpop.f32.mrb[0].mxu0
        %v4799 = vadd.f32 %v4504, %v4798
        %v4800 = vpop.f32.mrb[0].mxu0
        %4801 = vmatprep.mubr.f32.mxu0 0.0
        %v4802 = vsub.f32 %v3562, %v3562
        %v4803 = vand.u32 %v4802, 4294901760
        %4804 = vmatmul.mubr.f32.gmra.mrb[0].mxu0 %v4803
        %v4805 = vpop.f32.mrb[0].mxu0
        %v4806 = vadd.f32 %v4510, %v4805
        %v4807 = vpop.f32.mrb[0].mxu0
        %4808 = vmatprep.mubr.f32.mxu0 0.0
        %v4809 = vsub.f32 %v3563, %v3563
        %v4810 = vand.u32 %v4809, 4294901760
        %4811 = vmatmul.mubr.f32.gmra.mrb[0].mxu0 %v4810
        %v4812 = vpop.f32.mrb[0].mxu0
        %v4813 = vadd.f32 %v4516, %v4812
        %v4814 = vpop.f32.mrb[0].mxu0
        %4815 = vmatprep.mubr.f32.mxu0 0.0
        %v4816 = vsub.f32 %v3564, %v3564
        %v4817 = vand.u32 %v4816, 4294901760
        %4818 = vmatmul.mubr.f32.gmra.mrb[0].mxu0 %v4817
        %v4819 = vpop.f32.mrb[0].mxu0
        %v4820 = vadd.f32 %v4522, %v4819
        %v4821 = vpop.f32.mrb[0].mxu0
        %4822 = vmatprep.mubr.f32.mxu0 0.0
        %v4823 = vsub.f32 %v3565, %v3565
        %v4824 = vand.u32 %v4823, 4294901760
        %4825 = vmatmul.mubr.f32.gmra.mrb[0].mxu0 %v4824
        %v4826 = vpop.f32.mrb[0].mxu0
        %v4827 = vadd.f32 %v4528, %v4826
        %v4828 = vpop.f32.mrb[0].mxu0
        %4829 = vmatprep.mubr.f32.mxu0 0.0
        %v4830 = vsub.f32 %v3566, %v3566
        %v4831 = vand.u32 %v4830, 4294901760
        %4832 = vmatmul.mubr.f32.gmra.mrb[0].mxu0 %v4831
        %v4833 = vpop.f32.mrb[0].mxu0
        %v4834 = vadd.f32 %v4534, %v4833
        %v4835 = vpop.f32.mrb[0].mxu0
        %4836 = vmatprep.mubr.f32.mxu0 0.0
        %v4837 = vsub.f32 %v3567, %v3567
        %v4838 = vand.u32 %v4837, 4294901760
        %4839 = vmatmul.mubr.f32.gmra.mrb[0].mxu0 %v4838
        %v4840 = vpop.f32.mrb[0].mxu0
        %v4841 = vadd.f32 %v4540, %v4840
        %v4842 = vpop.f32.mrb[0].mxu0
        %4843 = vmatprep.mubr.f32.mxu0 0.0
        %v4844 = vsub.f32 %v3568, %v3568
        %v4845 = vand.u32 %v4844, 4294901760
        %4846 = vmatmul.mubr.f32.gmra.mrb[0].mxu0 %v4845
        %v4847 = vpop.f32.mrb[0].mxu0
        %v4848 = vadd.f32 %v4546, %v4847
        %v4849 = vpop.f32.mrb[0].mxu0
        %4850 = vmatprep.mubr.f32.mxu0 0.0
        %v4851 = vsub.f32 %v3569, %v3569
        %v4852 = vand.u32 %v4851, 4294901760
        %4853 = vmatmul.mubr.f32.gmra.mrb[0].mxu0 %v4852
        %v4854 = vpop.f32.mrb[0].mxu0
        %v4855 = vadd.f32 %v4552, %v4854
        %v4856 = vpop.f32.mrb[0].mxu0
        %4857 = vmatprep.mubr.f32.mxu0 0.0
        %v4858 = vsub.f32 %v3570, %v3570
        %v4859 = vand.u32 %v4858, 4294901760
        %4860 = vmatmul.mubr.f32.gmra.mrb[0].mxu0 %v4859
        %v4861 = vpop.f32.mrb[0].mxu0
        %v4862 = vadd.f32 %v4558, %v4861
        %v4863 = vpop.f32.mrb[0].mxu0
        %4864 = vmatprep.mubr.f32.mxu0 0.0
        %v4865 = vsub.f32 %v3571, %v3571
        %v4866 = vand.u32 %v4865, 4294901760
        %4867 = vmatmul.mubr.f32.gmra.mrb[0].mxu0 %v4866
        %v4868 = vpop.f32.mrb[0].mxu0
        %v4869 = vadd.f32 %v4564, %v4868
        %v4870 = vpop.f32.mrb[0].mxu0
        %4871 = vdwg.mxu0
        %4872 = vmatprep.subr.mxu0 0.0
        %v4873 = vand.u32 %v3454, 4294901760
        %v4874 = vsub.f32 %v3454, %v4873
        %v4875 = vand.u32 %v4874, 4294901760
        %4876 = vmatpush1.msra.mxu0 %v4875
        %4877 = vmatprep.subr.mxu0 0.0
        %v4878 = vand.u32 %v3455, 4294901760
        %v4879 = vsub.f32 %v3455, %v4878
        %v4880 = vand.u32 %v4879, 4294901760
        %4881 = vmatpush1.msra.mxu0 %v4880
        %4882 = vmatprep.subr.mxu0 0.0
        %v4883 = vand.u32 %v3456, 4294901760
        %v4884 = vsub.f32 %v3456, %v4883
        %v4885 = vand.u32 %v4884, 4294901760
        %4886 = vmatpush1.msra.mxu0 %v4885
        %4887 = vmatprep.subr.mxu0 0.0
        %v4888 = vand.u32 %v3457, 4294901760
        %v4889 = vsub.f32 %v3457, %v4888
        %v4890 = vand.u32 %v4889, 4294901760
        %4891 = vmatpush1.msra.mxu0 %v4890
        %4892 = vmatprep.subr.mxu0 0.0
        %v4893 = vand.u32 %v3458, 4294901760
        %v4894 = vsub.f32 %v3458, %v4893
        %v4895 = vand.u32 %v4894, 4294901760
        %4896 = vmatpush1.msra.mxu0 %v4895
        %4897 = vmatprep.subr.mxu0 0.0
        %v4898 = vand.u32 %v3459, 4294901760
        %v4899 = vsub.f32 %v3459, %v4898
        %v4900 = vand.u32 %v4899, 4294901760
        %4901 = vmatpush1.msra.mxu0 %v4900
        %4902 = vmatprep.subr.mxu0 0.0
        %v4903 = vand.u32 %v3460, 4294901760
        %v4904 = vsub.f32 %v3460, %v4903
        %v4905 = vand.u32 %v4904, 4294901760
        %4906 = vmatpush1.msra.mxu0 %v4905
        %4907 = vmatprep.subr.mxu0 0.0
        %v4908 = vand.u32 %v3461, 4294901760
        %v4909 = vsub.f32 %v3461, %v4908
        %v4910 = vand.u32 %v4909, 4294901760
        %4911 = vmatpush1.msra.mxu0 %v4910
        %4912 = vmatprep.subr.mxu0 0.0
        %v4913 = vand.u32 %v3462, 4294901760
        %v4914 = vsub.f32 %v3462, %v4913
        %v4915 = vand.u32 %v4914, 4294901760
        %4916 = vmatpush1.msra.mxu0 %v4915
        %4917 = vmatprep.subr.mxu0 0.0
        %v4918 = vand.u32 %v3463, 4294901760
        %v4919 = vsub.f32 %v3463, %v4918
        %v4920 = vand.u32 %v4919, 4294901760
        %4921 = vmatpush1.msra.mxu0 %v4920
        %4922 = vmatprep.subr.mxu0 0.0
        %v4923 = vand.u32 %v3464, 4294901760
        %v4924 = vsub.f32 %v3464, %v4923
        %v4925 = vand.u32 %v4924, 4294901760
        %4926 = vmatpush1.msra.mxu0 %v4925
        %4927 = vmatprep.subr.mxu0 0.0
        %v4928 = vand.u32 %v3465, 4294901760
        %v4929 = vsub.f32 %v3465, %v4928
        %v4930 = vand.u32 %v4929, 4294901760
        %4931 = vmatpush1.msra.mxu0 %v4930
        %4932 = vmatprep.subr.mxu0 0.0
        %v4933 = vand.u32 %v3466, 4294901760
        %v4934 = vsub.f32 %v3466, %v4933
        %v4935 = vand.u32 %v4934, 4294901760
        %4936 = vmatpush1.msra.mxu0 %v4935
        %4937 = vmatprep.subr.mxu0 0.0
        %v4938 = vand.u32 %v3467, 4294901760
        %v4939 = vsub.f32 %v3467, %v4938
        %v4940 = vand.u32 %v4939, 4294901760
        %4941 = vmatpush1.msra.mxu0 %v4940
        %4942 = vmatprep.subr.mxu0 0.0
        %v4943 = vand.u32 %v3468, 4294901760
        %v4944 = vsub.f32 %v3468, %v4943
        %v4945 = vand.u32 %v4944, 4294901760
        %4946 = vmatpush1.msra.mxu0 %v4945
        %4947 = vmatprep.subr.mxu0 0.0
        %v4948 = vand.u32 %v3469, 4294901760
        %v4949 = vsub.f32 %v3469, %v4948
        %v4950 = vand.u32 %v4949, 4294901760
        %4951 = vmatpush1.msra.mxu0 %v4950
        %4952 = vmatprep.subr.mxu0 0.0
        %4953 = vmatpush1.msra.mxu0 0.0
        %4954 = vmatprep.subr.mxu0 0.0
        %4955 = vmatpush1.msra.mxu0 0.0
        %4956 = vmatprep.subr.mxu0 0.0
        %4957 = vmatpush1.msra.mxu0 0.0
        %4958 = vmatprep.subr.mxu0 0.0
        %4959 = vmatpush1.msra.mxu0 0.0
        %4960 = vmatprep.subr.mxu0 0.0
        %4961 = vmatpush1.msra.mxu0 0.0
        %4962 = vmatprep.subr.mxu0 0.0
        %4963 = vmatpush1.msra.mxu0 0.0
        %4964 = vmatprep.subr.mxu0 0.0
        %4965 = vmatpush1.msra.mxu0 0.0
        %4966 = vmatprep.subr.mxu0 0.0
        %4967 = vmatpush1.msra.mxu0 0.0
        %4968 = vmatprep.subr.mxu0 0.0
        %4969 = vmatpush1.msra.mxu0 0.0
        %4970 = vmatprep.subr.mxu0 0.0
        %4971 = vmatpush1.msra.mxu0 0.0
        %4972 = vmatprep.subr.mxu0 0.0
        %4973 = vmatpush1.msra.mxu0 0.0
        %4974 = vmatprep.subr.mxu0 0.0
        %4975 = vmatpush1.msra.mxu0 0.0
        %4976 = vmatprep.subr.mxu0 0.0
        %4977 = vmatpush1.msra.mxu0 0.0
        %4978 = vmatprep.subr.mxu0 0.0
        %4979 = vmatpush1.msra.mxu0 0.0
        %4980 = vmatprep.subr.mxu0 0.0
        %4981 = vmatpush1.msra.mxu0 0.0
        %4982 = vmatprep.subr.mxu0 0.0
        %4983 = vmatpush1.msra.mxu0 0.0
        %4984 = vmatprep.mubr.f32.mxu0 0.0
        %4985 = vmatmul.mubr.f32.gmra.mrb[0].mxu0 %v3540
        %v4986 = vpop.f32.mrb[0].mxu0
        %v4987 = vadd.f32 %v4652, %v4986
        %v4988 = vpop.f32.mrb[0].mxu0
        %4989 = vmatprep.mubr.f32.mxu0 0.0
        %4990 = vmatmul.mubr.f32.gmra.mrb[0].mxu0 %v3541
        %v4991 = vpop.f32.mrb[0].mxu0
        %v4992 = vadd.f32 %v4659, %v4991
        %v4993 = vpop.f32.mrb[0].mxu0
        %4994 = vmatprep.mubr.f32.mxu0 0.0
        %4995 = vmatmul.mubr.f32.gmra.mrb[0].mxu0 %v3542
        %v4996 = vpop.f32.mrb[0].mxu0
        %v4997 = vadd.f32 %v4666, %v4996
        %v4998 = vpop.f32.mrb[0].mxu0
        %4999 = vmatprep.mubr.f32.mxu0 0.0
        %5000 = vmatmul.mubr.f32.gmra.mrb[0].mxu0 %v3543
        %v5001 = vpop.f32.mrb[0].mxu0
        %v5002 = vadd.f32 %v4673, %v5001
        %v5003 = vpop.f32.mrb[0].mxu0
        %5004 = vmatprep.mubr.f32.mxu0 0.0
        %5005 = vmatmul.mubr.f32.gmra.mrb[0].mxu0 %v3544
        %v5006 = vpop.f32.mrb[0].mxu0
        %v5007 = vadd.f32 %v4680, %v5006
        %v5008 = vpop.f32.mrb[0].mxu0
        %5009 = vmatprep.mubr.f32.mxu0 0.0
        %5010 = vmatmul.mubr.f32.gmra.mrb[0].mxu0 %v3545
        %v5011 = vpop.f32.mrb[0].mxu0
        %v5012 = vadd.f32 %v4687, %v5011
        %v5013 = vpop.f32.mrb[0].mxu0
        %5014 = vmatprep.mubr.f32.mxu0 0.0
        %5015 = vmatmul.mubr.f32.gmra.mrb[0].mxu0 %v3546
        %v5016 = vpop.f32.mrb[0].mxu0
        %v5017 = vadd.f32 %v4694, %v5016
        %v5018 = vpop.f32.mrb[0].mxu0
        %5019 = vmatprep.mubr.f32.mxu0 0.0
        %5020 = vmatmul.mubr.f32.gmra.mrb[0].mxu0 %v3547
        %v5021 = vpop.f32.mrb[0].mxu0
        %v5022 = vadd.f32 %v4701, %v5021
        %v5023 = vpop.f32.mrb[0].mxu0
        %5024 = vmatprep.mubr.f32.mxu0 0.0
        %5025 = vmatmul.mubr.f32.gmra.mrb[0].mxu0 %v3548
        %v5026 = vpop.f32.mrb[0].mxu0
        %v5027 = vadd.f32 %v4708, %v5026
        %v5028 = vpop.f32.mrb[0].mxu0
        %5029 = vmatprep.mubr.f32.mxu0 0.0
        %5030 = vmatmul.mubr.f32.gmra.mrb[0].mxu0 %v3549
        %v5031 = vpop.f32.mrb[0].mxu0
        %v5032 = vadd.f32 %v4715, %v5031
        %v5033 = vpop.f32.mrb[0].mxu0
        %5034 = vmatprep.mubr.f32.mxu0 0.0
        %5035 = vmatmul.mubr.f32.gmra.mrb[0].mxu0 %v3550
        %v5036 = vpop.f32.mrb[0].mxu0
        %v5037 = vadd.f32 %v4722, %v5036
        %v5038 = vpop.f32.mrb[0].mxu0
        %5039 = vmatprep.mubr.f32.mxu0 0.0
        %5040 = vmatmul.mubr.f32.gmra.mrb[0].mxu0 %v3551
        %v5041 = vpop.f32.mrb[0].mxu0
        %v5042 = vadd.f32 %v4729, %v5041
        %v5043 = vpop.f32.mrb[0].mxu0
        %5044 = vmatprep.mubr.f32.mxu0 0.0
        %5045 = vmatmul.mubr.f32.gmra.mrb[0].mxu0 %v3552
        %v5046 = vpop.f32.mrb[0].mxu0
        %v5047 = vadd.f32 %v4736, %v5046
        %v5048 = vpop.f32.mrb[0].mxu0
        %5049 = vmatprep.mubr.f32.mxu0 0.0
        %5050 = vmatmul.mubr.f32.gmra.mrb[0].mxu0 %v3553
        %v5051 = vpop.f32.mrb[0].mxu0
        %v5052 = vadd.f32 %v4743, %v5051
        %v5053 = vpop.f32.mrb[0].mxu0
        %5054 = vmatprep.mubr.f32.mxu0 0.0
        %5055 = vmatmul.mubr.f32.gmra.mrb[0].mxu0 %v3554
        %v5056 = vpop.f32.mrb[0].mxu0
        %v5057 = vadd.f32 %v4750, %v5056
        %v5058 = vpop.f32.mrb[0].mxu0
        %5059 = vmatprep.mubr.f32.mxu0 0.0
        %5060 = vmatmul.mubr.f32.gmra.mrb[0].mxu0 %v3555
        %v5061 = vpop.f32.mrb[0].mxu0
        %v5062 = vadd.f32 %v4757, %v5061
        %v5063 = vpop.f32.mrb[0].mxu0
        %5064 = vmatprep.mubr.f32.mxu0 0.0
        %5065 = vmatmul.mubr.f32.gmra.mrb[0].mxu0 %v3556
        %v5066 = vpop.f32.mrb[0].mxu0
        %v5067 = vadd.f32 %v4764, %v5066
        %v5068 = vpop.f32.mrb[0].mxu0
        %5069 = vmatprep.mubr.f32.mxu0 0.0
        %5070 = vmatmul.mubr.f32.gmra.mrb[0].mxu0 %v3557
        %v5071 = vpop.f32.mrb[0].mxu0
        %v5072 = vadd.f32 %v4771, %v5071
        %v5073 = vpop.f32.mrb[0].mxu0
        %5074 = vmatprep.mubr.f32.mxu0 0.0
        %5075 = vmatmul.mubr.f32.gmra.mrb[0].mxu0 %v3558
        %v5076 = vpop.f32.mrb[0].mxu0
        %v5077 = vadd.f32 %v4778, %v5076
        %v5078 = vpop.f32.mrb[0].mxu0
        %5079 = vmatprep.mubr.f32.mxu0 0.0
        %5080 = vmatmul.mubr.f32.gmra.mrb[0].mxu0 %v3559
        %v5081 = vpop.f32.mrb[0].mxu0
        %v5082 = vadd.f32 %v4785, %v5081
        %v5083 = vpop.f32.mrb[0].mxu0
        %5084 = vmatprep.mubr.f32.mxu0 0.0
        %5085 = vmatmul.mubr.f32.gmra.mrb[0].mxu0 %v3560
        %v5086 = vpop.f32.mrb[0].mxu0
        %v5087 = vadd.f32 %v4792, %v5086
        %v5088 = vpop.f32.mrb[0].mxu0
        %5089 = vmatprep.mubr.f32.mxu0 0.0
        %5090 = vmatmul.mubr.f32.gmra.mrb[0].mxu0 %v3561
        %v5091 = vpop.f32.mrb[0].mxu0
        %v5092 = vadd.f32 %v4799, %v5091
        %v5093 = vpop.f32.mrb[0].mxu0
        %5094 = vmatprep.mubr.f32.mxu0 0.0
        %5095 = vmatmul.mubr.f32.gmra.mrb[0].mxu0 %v3562
        %v5096 = vpop.f32.mrb[0].mxu0
        %v5097 = vadd.f32 %v4806, %v5096
        %v5098 = vpop.f32.mrb[0].mxu0
        %5099 = vmatprep.mubr.f32.mxu0 0.0
        %5100 = vmatmul.mubr.f32.gmra.mrb[0].mxu0 %v3563
        %v5101 = vpop.f32.mrb[0].mxu0
        %v5102 = vadd.f32 %v4813, %v5101
        %v5103 = vpop.f32.mrb[0].mxu0
        %5104 = vmatprep.mubr.f32.mxu0 0.0
        %5105 = vmatmul.mubr.f32.gmra.mrb[0].mxu0 %v3564
        %v5106 = vpop.f32.mrb[0].mxu0
        %v5107 = vadd.f32 %v4820, %v5106
        %v5108 = vpop.f32.mrb[0].mxu0
        %5109 = vmatprep.mubr.f32.mxu0 0.0
        %5110 = vmatmul.mubr.f32.gmra.mrb[0].mxu0 %v3565
        %v5111 = vpop.f32.mrb[0].mxu0
        %v5112 = vadd.f32 %v4827, %v5111
        %v5113 = vpop.f32.mrb[0].mxu0
        %5114 = vmatprep.mubr.f32.mxu0 0.0
        %5115 = vmatmul.mubr.f32.gmra.mrb[0].mxu0 %v3566
        %v5116 = vpop.f32.mrb[0].mxu0
        %v5117 = vadd.f32 %v4834, %v5116
        %v5118 = vpop.f32.mrb[0].mxu0
        %5119 = vmatprep.mubr.f32.mxu0 0.0
        %5120 = vmatmul.mubr.f32.gmra.mrb[0].mxu0 %v3567
        %v5121 = vpop.f32.mrb[0].mxu0
        %v5122 = vadd.f32 %v4841, %v5121
        %v5123 = vpop.f32.mrb[0].mxu0
        %5124 = vmatprep.mubr.f32.mxu0 0.0
        %5125 = vmatmul.mubr.f32.gmra.mrb[0].mxu0 %v3568
        %v5126 = vpop.f32.mrb[0].mxu0
        %v5127 = vadd.f32 %v4848, %v5126
        %v5128 = vpop.f32.mrb[0].mxu0
        %5129 = vmatprep.mubr.f32.mxu0 0.0
        %5130 = vmatmul.mubr.f32.gmra.mrb[0].mxu0 %v3569
        %v5131 = vpop.f32.mrb[0].mxu0
        %v5132 = vadd.f32 %v4855, %v5131
        %v5133 = vpop.f32.mrb[0].mxu0
        %5134 = vmatprep.mubr.f32.mxu0 0.0
        %5135 = vmatmul.mubr.f32.gmra.mrb[0].mxu0 %v3570
        %v5136 = vpop.f32.mrb[0].mxu0
        %v5137 = vadd.f32 %v4862, %v5136
        %v5138 = vpop.f32.mrb[0].mxu0
        %5139 = vmatprep.mubr.f32.mxu0 0.0
        %5140 = vmatmul.mubr.f32.gmra.mrb[0].mxu0 %v3571
        %v5141 = vpop.f32.mrb[0].mxu0
        %v5142 = vadd.f32 %v4869, %v5141
        %v5143 = vpop.f32.mrb[0].mxu0
        %5144 = vdwg.mxu0
        %5145 = vmatprep.subr.mxu0 0.0
        %v5146 = vand.u32 %v3454, 4294901760
        %5147 = vmatpush1.msra.mxu0 %v5146
        %5148 = vmatprep.subr.mxu0 0.0
        %v5149 = vand.u32 %v3455, 4294901760
        %5150 = vmatpush1.msra.mxu0 %v5149
        %5151 = vmatprep.subr.mxu0 0.0
        %v5152 = vand.u32 %v3456, 4294901760
        %5153 = vmatpush1.msra.mxu0 %v5152
        %5154 = vmatprep.subr.mxu0 0.0
        %v5155 = vand.u32 %v3457, 4294901760
        %5156 = vmatpush1.msra.mxu0 %v5155
        %5157 = vmatprep.subr.mxu0 0.0
        %v5158 = vand.u32 %v3458, 4294901760
        %5159 = vmatpush1.msra.mxu0 %v5158
        %5160 = vmatprep.subr.mxu0 0.0
        %v5161 = vand.u32 %v3459, 4294901760
        %5162 = vmatpush1.msra.mxu0 %v5161
        %5163 = vmatprep.subr.mxu0 0.0
        %v5164 = vand.u32 %v3460, 4294901760
        %5165 = vmatpush1.msra.mxu0 %v5164
        %5166 = vmatprep.subr.mxu0 0.0
        %v5167 = vand.u32 %v3461, 4294901760
        %5168 = vmatpush1.msra.mxu0 %v5167
        %5169 = vmatprep.subr.mxu0 0.0
        %v5170 = vand.u32 %v3462, 4294901760
        %5171 = vmatpush1.msra.mxu0 %v5170
        %5172 = vmatprep.subr.mxu0 0.0
        %v5173 = vand.u32 %v3463, 4294901760
        %5174 = vmatpush1.msra.mxu0 %v5173
        %5175 = vmatprep.subr.mxu0 0.0
        %v5176 = vand.u32 %v3464, 4294901760
        %5177 = vmatpush1.msra.mxu0 %v5176
        %5178 = vmatprep.subr.mxu0 0.0
        %v5179 = vand.u32 %v3465, 4294901760
        %5180 = vmatpush1.msra.mxu0 %v5179
        %5181 = vmatprep.subr.mxu0 0.0
        %v5182 = vand.u32 %v3466, 4294901760
        %5183 = vmatpush1.msra.mxu0 %v5182
        %5184 = vmatprep.subr.mxu0 0.0
        %v5185 = vand.u32 %v3467, 4294901760
        %5186 = vmatpush1.msra.mxu0 %v5185
        %5187 = vmatprep.subr.mxu0 0.0
        %v5188 = vand.u32 %v3468, 4294901760
        %5189 = vmatpush1.msra.mxu0 %v5188
        %5190 = vmatprep.subr.mxu0 0.0
        %v5191 = vand.u32 %v3469, 4294901760
        %5192 = vmatpush1.msra.mxu0 %v5191
        %5193 = vmatprep.subr.mxu0 0.0
        %5194 = vmatpush1.msra.mxu0 0.0
        %5195 = vmatprep.subr.mxu0 0.0
        %5196 = vmatpush1.msra.mxu0 0.0
        %5197 = vmatprep.subr.mxu0 0.0
        %5198 = vmatpush1.msra.mxu0 0.0
        %5199 = vmatprep.subr.mxu0 0.0
        %5200 = vmatpush1.msra.mxu0 0.0
        %5201 = vmatprep.subr.mxu0 0.0
        %5202 = vmatpush1.msra.mxu0 0.0
        %5203 = vmatprep.subr.mxu0 0.0
        %5204 = vmatpush1.msra.mxu0 0.0
        %5205 = vmatprep.subr.mxu0 0.0
        %5206 = vmatpush1.msra.mxu0 0.0
        %5207 = vmatprep.subr.mxu0 0.0
        %5208 = vmatpush1.msra.mxu0 0.0
        %5209 = vmatprep.subr.mxu0 0.0
        %5210 = vmatpush1.msra.mxu0 0.0
        %5211 = vmatprep.subr.mxu0 0.0
        %5212 = vmatpush1.msra.mxu0 0.0
        %5213 = vmatprep.subr.mxu0 0.0
        %5214 = vmatpush1.msra.mxu0 0.0
        %5215 = vmatprep.subr.mxu0 0.0
        %5216 = vmatpush1.msra.mxu0 0.0
        %5217 = vmatprep.subr.mxu0 0.0
        %5218 = vmatpush1.msra.mxu0 0.0
        %5219 = vmatprep.subr.mxu0 0.0
        %5220 = vmatpush1.msra.mxu0 0.0
        %5221 = vmatprep.subr.mxu0 0.0
        %5222 = vmatpush1.msra.mxu0 0.0
        %5223 = vmatprep.subr.mxu0 0.0
        %5224 = vmatpush1.msra.mxu0 0.0
        %5225 = vmatprep.mubr.f32.mxu0 0.0
        %5226 = vmatmul.mubr.f32.gmra.mrb[0].mxu0 %v3540
        %v5227 = vpop.f32.mrb[0].mxu0
        %v5228 = vadd.f32 %v4987, %v5227
        %v5229 = vpop.f32.mrb[0].mxu0
        %5230 = vmatprep.mubr.f32.mxu0 0.0
        %5231 = vmatmul.mubr.f32.gmra.mrb[0].mxu0 %v3541
        %v5232 = vpop.f32.mrb[0].mxu0
        %v5233 = vadd.f32 %v4992, %v5232
        %v5234 = vpop.f32.mrb[0].mxu0
        %5235 = vmatprep.mubr.f32.mxu0 0.0
        %5236 = vmatmul.mubr.f32.gmra.mrb[0].mxu0 %v3542
        %v5237 = vpop.f32.mrb[0].mxu0
        %v5238 = vadd.f32 %v4997, %v5237
        %v5239 = vpop.f32.mrb[0].mxu0
        %5240 = vmatprep.mubr.f32.mxu0 0.0
        %5241 = vmatmul.mubr.f32.gmra.mrb[0].mxu0 %v3543
        %v5242 = vpop.f32.mrb[0].mxu0
        %v5243 = vadd.f32 %v5002, %v5242
        %v5244 = vpop.f32.mrb[0].mxu0
        %5245 = vmatprep.mubr.f32.mxu0 0.0
        %5246 = vmatmul.mubr.f32.gmra.mrb[0].mxu0 %v3544
        %v5247 = vpop.f32.mrb[0].mxu0
        %v5248 = vadd.f32 %v5007, %v5247
        %v5249 = vpop.f32.mrb[0].mxu0
        %5250 = vmatprep.mubr.f32.mxu0 0.0
        %5251 = vmatmul.mubr.f32.gmra.mrb[0].mxu0 %v3545
        %v5252 = vpop.f32.mrb[0].mxu0
        %v5253 = vadd.f32 %v5012, %v5252
        %v5254 = vpop.f32.mrb[0].mxu0
        %5255 = vmatprep.mubr.f32.mxu0 0.0
        %5256 = vmatmul.mubr.f32.gmra.mrb[0].mxu0 %v3546
        %v5257 = vpop.f32.mrb[0].mxu0
        %v5258 = vadd.f32 %v5017, %v5257
        %v5259 = vpop.f32.mrb[0].mxu0
        %5260 = vmatprep.mubr.f32.mxu0 0.0
        %5261 = vmatmul.mubr.f32.gmra.mrb[0].mxu0 %v3547
        %v5262 = vpop.f32.mrb[0].mxu0
        %v5263 = vadd.f32 %v5022, %v5262
        %v5264 = vpop.f32.mrb[0].mxu0
        %5265 = vmatprep.mubr.f32.mxu0 0.0
        %5266 = vmatmul.mubr.f32.gmra.mrb[0].mxu0 %v3548
        %v5267 = vpop.f32.mrb[0].mxu0
        %v5268 = vadd.f32 %v5027, %v5267
        %v5269 = vpop.f32.mrb[0].mxu0
        %5270 = vmatprep.mubr.f32.mxu0 0.0
        %5271 = vmatmul.mubr.f32.gmra.mrb[0].mxu0 %v3549
        %v5272 = vpop.f32.mrb[0].mxu0
        %v5273 = vadd.f32 %v5032, %v5272
        %v5274 = vpop.f32.mrb[0].mxu0
        %5275 = vmatprep.mubr.f32.mxu0 0.0
        %5276 = vmatmul.mubr.f32.gmra.mrb[0].mxu0 %v3550
        %v5277 = vpop.f32.mrb[0].mxu0
        %v5278 = vadd.f32 %v5037, %v5277
        %v5279 = vpop.f32.mrb[0].mxu0
        %5280 = vmatprep.mubr.f32.mxu0 0.0
        %5281 = vmatmul.mubr.f32.gmra.mrb[0].mxu0 %v3551
        %v5282 = vpop.f32.mrb[0].mxu0
        %v5283 = vadd.f32 %v5042, %v5282
        %v5284 = vpop.f32.mrb[0].mxu0
        %5285 = vmatprep.mubr.f32.mxu0 0.0
        %5286 = vmatmul.mubr.f32.gmra.mrb[0].mxu0 %v3552
        %v5287 = vpop.f32.mrb[0].mxu0
        %v5288 = vadd.f32 %v5047, %v5287
        %v5289 = vpop.f32.mrb[0].mxu0
        %5290 = vmatprep.mubr.f32.mxu0 0.0
        %5291 = vmatmul.mubr.f32.gmra.mrb[0].mxu0 %v3553
        %v5292 = vpop.f32.mrb[0].mxu0
        %v5293 = vadd.f32 %v5052, %v5292
        %v5294 = vpop.f32.mrb[0].mxu0
        %5295 = vmatprep.mubr.f32.mxu0 0.0
        %5296 = vmatmul.mubr.f32.gmra.mrb[0].mxu0 %v3554
        %v5297 = vpop.f32.mrb[0].mxu0
        %v5298 = vadd.f32 %v5057, %v5297
        %v5299 = vpop.f32.mrb[0].mxu0
        %5300 = vmatprep.mubr.f32.mxu0 0.0
        %5301 = vmatmul.mubr.f32.gmra.mrb[0].mxu0 %v3555
        %v5302 = vpop.f32.mrb[0].mxu0
        %v5303 = vadd.f32 %v5062, %v5302
        %v5304 = vpop.f32.mrb[0].mxu0
        %5305 = vmatprep.mubr.f32.mxu0 0.0
        %5306 = vmatmul.mubr.f32.gmra.mrb[0].mxu0 %v3556
        %v5307 = vpop.f32.mrb[0].mxu0
        %v5308 = vadd.f32 %v5067, %v5307
        %v5309 = vpop.f32.mrb[0].mxu0
        %5310 = vmatprep.mubr.f32.mxu0 0.0
        %5311 = vmatmul.mubr.f32.gmra.mrb[0].mxu0 %v3557
        %v5312 = vpop.f32.mrb[0].mxu0
        %v5313 = vadd.f32 %v5072, %v5312
        %v5314 = vpop.f32.mrb[0].mxu0
        %5315 = vmatprep.mubr.f32.mxu0 0.0
        %5316 = vmatmul.mubr.f32.gmra.mrb[0].mxu0 %v3558
        %v5317 = vpop.f32.mrb[0].mxu0
        %v5318 = vadd.f32 %v5077, %v5317
        %v5319 = vpop.f32.mrb[0].mxu0
        %5320 = vmatprep.mubr.f32.mxu0 0.0
        %5321 = vmatmul.mubr.f32.gmra.mrb[0].mxu0 %v3559
        %v5322 = vpop.f32.mrb[0].mxu0
        %v5323 = vadd.f32 %v5082, %v5322
        %v5324 = vpop.f32.mrb[0].mxu0
        %5325 = vmatprep.mubr.f32.mxu0 0.0
        %5326 = vmatmul.mubr.f32.gmra.mrb[0].mxu0 %v3560
        %v5327 = vpop.f32.mrb[0].mxu0
        %v5328 = vadd.f32 %v5087, %v5327
        %v5329 = vpop.f32.mrb[0].mxu0
        %5330 = vmatprep.mubr.f32.mxu0 0.0
        %5331 = vmatmul.mubr.f32.gmra.mrb[0].mxu0 %v3561
        %v5332 = vpop.f32.mrb[0].mxu0
        %v5333 = vadd.f32 %v5092, %v5332
        %v5334 = vpop.f32.mrb[0].mxu0
        %5335 = vmatprep.mubr.f32.mxu0 0.0
        %5336 = vmatmul.mubr.f32.gmra.mrb[0].mxu0 %v3562
        %v5337 = vpop.f32.mrb[0].mxu0
        %v5338 = vadd.f32 %v5097, %v5337
        %v5339 = vpop.f32.mrb[0].mxu0
        %5340 = vmatprep.mubr.f32.mxu0 0.0
        %5341 = vmatmul.mubr.f32.gmra.mrb[0].mxu0 %v3563
        %v5342 = vpop.f32.mrb[0].mxu0
        %v5343 = vadd.f32 %v5102, %v5342
        %v5344 = vpop.f32.mrb[0].mxu0
        %5345 = vmatprep.mubr.f32.mxu0 0.0
        %5346 = vmatmul.mubr.f32.gmra.mrb[0].mxu0 %v3564
        %v5347 = vpop.f32.mrb[0].mxu0
        %v5348 = vadd.f32 %v5107, %v5347
        %v5349 = vpop.f32.mrb[0].mxu0
        %5350 = vmatprep.mubr.f32.mxu0 0.0
        %5351 = vmatmul.mubr.f32.gmra.mrb[0].mxu0 %v3565
        %v5352 = vpop.f32.mrb[0].mxu0
        %v5353 = vadd.f32 %v5112, %v5352
        %v5354 = vpop.f32.mrb[0].mxu0
        %5355 = vmatprep.mubr.f32.mxu0 0.0
        %5356 = vmatmul.mubr.f32.gmra.mrb[0].mxu0 %v3566
        %v5357 = vpop.f32.mrb[0].mxu0
        %v5358 = vadd.f32 %v5117, %v5357
        %v5359 = vpop.f32.mrb[0].mxu0
        %5360 = vmatprep.mubr.f32.mxu0 0.0
        %5361 = vmatmul.mubr.f32.gmra.mrb[0].mxu0 %v3567
        %v5362 = vpop.f32.mrb[0].mxu0
        %v5363 = vadd.f32 %v5122, %v5362
        %v5364 = vpop.f32.mrb[0].mxu0
        %5365 = vmatprep.mubr.f32.mxu0 0.0
        %5366 = vmatmul.mubr.f32.gmra.mrb[0].mxu0 %v3568
        %v5367 = vpop.f32.mrb[0].mxu0
        %v5368 = vadd.f32 %v5127, %v5367
        %v5369 = vpop.f32.mrb[0].mxu0
        %5370 = vmatprep.mubr.f32.mxu0 0.0
        %5371 = vmatmul.mubr.f32.gmra.mrb[0].mxu0 %v3569
        %v5372 = vpop.f32.mrb[0].mxu0
        %v5373 = vadd.f32 %v5132, %v5372
        %v5374 = vpop.f32.mrb[0].mxu0
        %5375 = vmatprep.mubr.f32.mxu0 0.0
        %5376 = vmatmul.mubr.f32.gmra.mrb[0].mxu0 %v3570
        %v5377 = vpop.f32.mrb[0].mxu0
        %v5378 = vadd.f32 %v5137, %v5377
        %v5379 = vpop.f32.mrb[0].mxu0
        %5380 = vmatprep.mubr.f32.mxu0 0.0
        %5381 = vmatmul.mubr.f32.gmra.mrb[0].mxu0 %v3571
        %v5382 = vpop.f32.mrb[0].mxu0
        %v5383 = vadd.f32 %v5142, %v5382
        %v5384 = vpop.f32.mrb[0].mxu0
        %5385 = vdwg.mxu0
        %v5386 = vadd.f32 %v3572, %v5228
        %v5387 = vadd.f32 %v3573, %v5233
        %v5388 = vadd.f32 %v3574, %v5238
        %v5389 = vadd.f32 %v3575, %v5243
        %v5390 = vadd.f32 %v3576, %v5248
        %v5391 = vadd.f32 %v3577, %v5253
        %v5392 = vadd.f32 %v3578, %v5258
        %v5393 = vadd.f32 %v3579, %v5263
        %v5394 = vadd.f32 %v3580, %v5268
        %v5395 = vadd.f32 %v3581, %v5273
        %v5396 = vadd.f32 %v3582, %v5278
        %v5397 = vadd.f32 %v3583, %v5283
        %v5398 = vadd.f32 %v3584, %v5288
        %v5399 = vadd.f32 %v3585, %v5293
        %v5400 = vadd.f32 %v3586, %v5298
        %v5401 = vadd.f32 %v3587, %v5303
        %v5402 = vadd.f32 %v3588, %v5308
        %v5403 = vadd.f32 %v3589, %v5313
        %v5404 = vadd.f32 %v3590, %v5318
        %v5405 = vadd.f32 %v3591, %v5323
        %v5406 = vadd.f32 %v3592, %v5328
        %v5407 = vadd.f32 %v3593, %v5333
        %v5408 = vadd.f32 %v3594, %v5338
        %v5409 = vadd.f32 %v3595, %v5343
        %v5410 = vadd.f32 %v3596, %v5348
        %v5411 = vadd.f32 %v3597, %v5353
        %v5412 = vadd.f32 %v3598, %v5358
        %v5413 = vadd.f32 %v3599, %v5363
        %v5414 = vadd.f32 %v3600, %v5368
        %v5415 = vadd.f32 %v3601, %v5373
        %v5416 = vadd.f32 %v3602, %v5378
        %v5417 = vadd.f32 %v3603, %v5383
        %5418 = vst [vmem:[#allocation3] sm:$0xff] %v5386
        %5419 = vst [vmem:[#allocation3 + $0x8] sm:$0xff] %v5387
        %5420 = vst [vmem:[#allocation3 + $0x10] sm:$0xff] %v5388
        %5421 = vst [vmem:[#allocation3 + $0x18] sm:$0xff] %v5389
        %5422 = vst [vmem:[#allocation3 + $0x20] sm:$0xff] %v5390
        %5423 = vst [vmem:[#allocation3 + $0x28] sm:$0xff] %v5391
        %5424 = vst [vmem:[#allocation3 + $0x30] sm:$0xff] %v5392
        %5425 = vst [vmem:[#allocation3 + $0x38] sm:$0xff] %v5393
        %5426 = vst [vmem:[#allocation3 + $0x40] sm:$0xff] %v5394
        %5427 = vst [vmem:[#allocation3 + $0x48] sm:$0xff] %v5395
        %5428 = vst [vmem:[#allocation3 + $0x50] sm:$0xff] %v5396
        %5429 = vst [vmem:[#allocation3 + $0x58] sm:$0xff] %v5397
        %5430 = vst [vmem:[#allocation3 + $0x60] sm:$0xff] %v5398
        %5431 = vst [vmem:[#allocation3 + $0x68] sm:$0xff] %v5399
        %5432 = vst [vmem:[#allocation3 + $0x70] sm:$0xff] %v5400
        %5433 = vst [vmem:[#allocation3 + $0x78] sm:$0xff] %v5401
        %5434 = vst [vmem:[#allocation3 + $0x80] sm:$0xff] %v5402
        %5435 = vst [vmem:[#allocation3 + $0x88] sm:$0xff] %v5403
        %5436 = vst [vmem:[#allocation3 + $0x90] sm:$0xff] %v5404
        %5437 = vst [vmem:[#allocation3 + $0x98] sm:$0xff] %v5405
        %5438 = vst [vmem:[#allocation3 + $0xa0] sm:$0xff] %v5406
        %5439 = vst [vmem:[#allocation3 + $0xa8] sm:$0xff] %v5407
        %5440 = vst [vmem:[#allocation3 + $0xb0] sm:$0xff] %v5408
        %5441 = vst [vmem:[#allocation3 + $0xb8] sm:$0xff] %v5409
        %5442 = vst [vmem:[#allocation3 + $0xc0] sm:$0xff] %v5410
        %5443 = vst [vmem:[#allocation3 + $0xc8] sm:$0xff] %v5411
        %5444 = vst [vmem:[#allocation3 + $0xd0] sm:$0xff] %v5412
        %5445 = vst [vmem:[#allocation3 + $0xd8] sm:$0xff] %v5413
        %5446 = vst [vmem:[#allocation3 + $0xe0] sm:$0xff] %v5414
        %5447 = vst [vmem:[#allocation3 + $0xe8] sm:$0xff] %v5415
        %5448 = vst [vmem:[#allocation3 + $0xf0] sm:$0xff] %v5416
        %5449 = vst [vmem:[#allocation3 + $0xf8] sm:$0xff] %v5417
        %s5450 = sld [smem:[#allocation8 + %s42]]
        %p5451 = scmp.eq.s32.totalorder %s5450, 1
        // Predicated region
        $region77: #{tpu_custom_call.1} parent=51 // pred_check
          %p5452 = pneg %p5451
        $region78: #{tpu_custom_call.1} parent=51 // pred_check_branch
          %5454 = sbr.rel (%p5452) target = $region80
        $region79: #{tpu_custom_call.1} parent=51 // pred_region
          %v5455 = vld [vmem:[#allocation3] sm:$0xff]
          %v5456 = vld [vmem:[#allocation3 + $0x8] sm:$0xff]
          %v5457 = vld [vmem:[#allocation3 + $0x10] sm:$0xff]
          %v5458 = vld [vmem:[#allocation3 + $0x18] sm:$0xff]
          %v5459 = vld [vmem:[#allocation3 + $0x20] sm:$0xff]
          %v5460 = vld [vmem:[#allocation3 + $0x28] sm:$0xff]
          %v5461 = vld [vmem:[#allocation3 + $0x30] sm:$0xff]
          %v5462 = vld [vmem:[#allocation3 + $0x38] sm:$0xff]
          %v5463 = vld [vmem:[#allocation3 + $0x40] sm:$0xff]
          %v5464 = vld [vmem:[#allocation3 + $0x48] sm:$0xff]
          %v5465 = vld [vmem:[#allocation3 + $0x50] sm:$0xff]
          %v5466 = vld [vmem:[#allocation3 + $0x58] sm:$0xff]
          %v5467 = vld [vmem:[#allocation3 + $0x60] sm:$0xff]
          %v5468 = vld [vmem:[#allocation3 + $0x68] sm:$0xff]
          %v5469 = vld [vmem:[#allocation3 + $0x70] sm:$0xff]
          %v5470 = vld [vmem:[#allocation3 + $0x78] sm:$0xff]
          %v5471 = vld [vmem:[#allocation3 + $0x80] sm:$0xff]
          %v5472 = vld [vmem:[#allocation3 + $0x88] sm:$0xff]
          %v5473 = vld [vmem:[#allocation3 + $0x90] sm:$0xff]
          %v5474 = vld [vmem:[#allocation3 + $0x98] sm:$0xff]
          %v5475 = vld [vmem:[#allocation3 + $0xa0] sm:$0xff]
          %v5476 = vld [vmem:[#allocation3 + $0xa8] sm:$0xff]
          %v5477 = vld [vmem:[#allocation3 + $0xb0] sm:$0xff]
          %v5478 = vld [vmem:[#allocation3 + $0xb8] sm:$0xff]
          %v5479 = vld [vmem:[#allocation3 + $0xc0] sm:$0xff]
          %v5480 = vld [vmem:[#allocation3 + $0xc8] sm:$0xff]
          %v5481 = vld [vmem:[#allocation3 + $0xd0] sm:$0xff]
          %v5482 = vld [vmem:[#allocation3 + $0xd8] sm:$0xff]
          %v5483 = vld [vmem:[#allocation3 + $0xe0] sm:$0xff]
          %v5484 = vld [vmem:[#allocation3 + $0xe8] sm:$0xff]
          %v5485 = vld [vmem:[#allocation3 + $0xf0] sm:$0xff]
          %v5486 = vld [vmem:[#allocation3 + $0xf8] sm:$0xff]
          %v5487 = vld [vmem:[#allocation12] sm:$0xff]
          %v5488 = vld [vmem:[#allocation12 + $0x8] sm:$0xff]
          %v5489 = vld [vmem:[#allocation12 + $0x10] sm:$0xff]
          %v5490 = vld [vmem:[#allocation12 + $0x18] sm:$0xff]
          %v5491 = vld [vmem:[#allocation12 + $0x20] sm:$0xff]
          %v5492 = vld [vmem:[#allocation12 + $0x28] sm:$0xff]
          %v5493 = vld [vmem:[#allocation12 + $0x30] sm:$0xff]
          %v5494 = vld [vmem:[#allocation12 + $0x38] sm:$0xff]
          %v5495 = vld [vmem:[#allocation12 + $0x40] sm:$0xff]
          %v5496 = vld [vmem:[#allocation12 + $0x48] sm:$0xff]
          %v5497 = vld [vmem:[#allocation12 + $0x50] sm:$0xff]
          %v5498 = vld [vmem:[#allocation12 + $0x58] sm:$0xff]
          %v5499 = vld [vmem:[#allocation12 + $0x60] sm:$0xff]
          %v5500 = vld [vmem:[#allocation12 + $0x68] sm:$0xff]
          %v5501 = vld [vmem:[#allocation12 + $0x70] sm:$0xff]
          %v5502 = vld [vmem:[#allocation12 + $0x78] sm:$0xff]
          %v5503 = vld [vmem:[%s9] sm:$0x1]
          %v5505 = vlaneseq
          %v5506 = vshrl.u32 %v5505, 7
          %v5507 = vsub.s32 0, %v5506
          %v5508 = vrot.slane %v5503, %v5507
          %5510 = vmatprep.subr.mxu0 0.0
          %v5511 = vand.u32 %v5487, 4294901760
          %5512 = vmatpush1.msra.mxu0 %v5511
          %5513 = vmatprep.subr.mxu0 0.0
          %v5514 = vand.u32 %v5488, 4294901760
          %5515 = vmatpush1.msra.mxu0 %v5514
          %5516 = vmatprep.subr.mxu0 0.0
          %v5517 = vand.u32 %v5489, 4294901760
          %5518 = vmatpush1.msra.mxu0 %v5517
          %5519 = vmatprep.subr.mxu0 0.0
          %v5520 = vand.u32 %v5490, 4294901760
          %5521 = vmatpush1.msra.mxu0 %v5520
          %5522 = vmatprep.subr.mxu0 0.0
          %v5523 = vand.u32 %v5491, 4294901760
          %5524 = vmatpush1.msra.mxu0 %v5523
          %5525 = vmatprep.subr.mxu0 0.0
          %v5526 = vand.u32 %v5492, 4294901760
          %5527 = vmatpush1.msra.mxu0 %v5526
          %5528 = vmatprep.subr.mxu0 0.0
          %v5529 = vand.u32 %v5493, 4294901760
          %5530 = vmatpush1.msra.mxu0 %v5529
          %5531 = vmatprep.subr.mxu0 0.0
          %v5532 = vand.u32 %v5494, 4294901760
          %5533 = vmatpush1.msra.mxu0 %v5532
          %5534 = vmatprep.subr.mxu0 0.0
          %v5535 = vand.u32 %v5495, 4294901760
          %5536 = vmatpush1.msra.mxu0 %v5535
          %5537 = vmatprep.subr.mxu0 0.0
          %v5538 = vand.u32 %v5496, 4294901760
          %5539 = vmatpush1.msra.mxu0 %v5538
          %5540 = vmatprep.subr.mxu0 0.0
          %v5541 = vand.u32 %v5497, 4294901760
          %5542 = vmatpush1.msra.mxu0 %v5541
          %5543 = vmatprep.subr.mxu0 0.0
          %v5544 = vand.u32 %v5498, 4294901760
          %5545 = vmatpush1.msra.mxu0 %v5544
          %5546 = vmatprep.subr.mxu0 0.0
          %v5547 = vand.u32 %v5499, 4294901760
          %5548 = vmatpush1.msra.mxu0 %v5547
          %5549 = vmatprep.subr.mxu0 0.0
          %v5550 = vand.u32 %v5500, 4294901760
          %5551 = vmatpush1.msra.mxu0 %v5550
          %5552 = vmatprep.subr.mxu0 0.0
          %v5553 = vand.u32 %v5501, 4294901760
          %5554 = vmatpush1.msra.mxu0 %v5553
          %5555 = vmatprep.subr.mxu0 0.0
          %v5556 = vand.u32 %v5502, 4294901760
          %5557 = vmatpush1.msra.mxu0 %v5556
          %5558 = vmatprep.subr.mxu0 0.0
          %5559 = vmatpush1.msra.mxu0 0.0
          %5560 = vmatprep.subr.mxu0 0.0
          %5561 = vmatpush1.msra.mxu0 0.0
          %5562 = vmatprep.subr.mxu0 0.0
          %5563 = vmatpush1.msra.mxu0 0.0
          %5564 = vmatprep.subr.mxu0 0.0
          %5565 = vmatpush1.msra.mxu0 0.0
          %5566 = vmatprep.subr.mxu0 0.0
          %5567 = vmatpush1.msra.mxu0 0.0
          %5568 = vmatprep.subr.mxu0 0.0
          %5569 = vmatpush1.msra.mxu0 0.0
          %5570 = vmatprep.subr.mxu0 0.0
          %5571 = vmatpush1.msra.mxu0 0.0
          %5572 = vmatprep.subr.mxu0 0.0
          %5573 = vmatpush1.msra.mxu0 0.0
          %5574 = vmatprep.subr.mxu0 0.0
          %5575 = vmatpush1.msra.mxu0 0.0
          %5576 = vmatprep.subr.mxu0 0.0
          %5577 = vmatpush1.msra.mxu0 0.0
          %5578 = vmatprep.subr.mxu0 0.0
          %5579 = vmatpush1.msra.mxu0 0.0
          %5580 = vmatprep.subr.mxu0 0.0
          %5581 = vmatpush1.msra.mxu0 0.0
          %5582 = vmatprep.subr.mxu0 0.0
          %5583 = vmatpush1.msra.mxu0 0.0
          %5584 = vmatprep.subr.mxu0 0.0
          %5585 = vmatpush1.msra.mxu0 0.0
          %5586 = vmatprep.subr.mxu0 0.0
          %5587 = vmatpush1.msra.mxu0 0.0
          %5588 = vmatprep.subr.mxu0 0.0
          %5589 = vmatpush1.msra.mxu0 0.0
          %5590 = vmatprep.mubr.f32.mxu0 0.0
          %v5591 = vand.u32 %v5455, 4294901760
          %v5592 = vsub.f32 %v5455, %v5591
          %v5593 = vand.u32 %v5592, 4294901760
          %v5594 = vsub.f32 %v5592, %v5593
          %v5595 = vand.u32 %v5594, 4294901760
          %5596 = vmatmul.mubr.f32.gmra.mrb[0].mxu0 %v5595
          %v5597 = vpop.f32.mrb[0].mxu0
          %v5598 = vadd.f32 %v5508, %v5597
          %v5599 = vpop.f32.mrb[0].mxu0
          %5600 = vmatprep.mubr.f32.mxu0 0.0
          %v5601 = vand.u32 %v5456, 4294901760
          %v5602 = vsub.f32 %v5456, %v5601
          %v5603 = vand.u32 %v5602, 4294901760
          %v5604 = vsub.f32 %v5602, %v5603
          %v5605 = vand.u32 %v5604, 4294901760
          %5606 = vmatmul.mubr.f32.gmra.mrb[0].mxu0 %v5605
          %v5607 = vpop.f32.mrb[0].mxu0
          %v5608 = vadd.f32 %v5508, %v5607
          %v5609 = vpop.f32.mrb[0].mxu0
          %5610 = vmatprep.mubr.f32.mxu0 0.0
          %v5611 = vand.u32 %v5457, 4294901760
          %v5612 = vsub.f32 %v5457, %v5611
          %v5613 = vand.u32 %v5612, 4294901760
          %v5614 = vsub.f32 %v5612, %v5613
          %v5615 = vand.u32 %v5614, 4294901760
          %5616 = vmatmul.mubr.f32.gmra.mrb[0].mxu0 %v5615
          %v5617 = vpop.f32.mrb[0].mxu0
          %v5618 = vadd.f32 %v5508, %v5617
          %v5619 = vpop.f32.mrb[0].mxu0
          %5620 = vmatprep.mubr.f32.mxu0 0.0
          %v5621 = vand.u32 %v5458, 4294901760
          %v5622 = vsub.f32 %v5458, %v5621
          %v5623 = vand.u32 %v5622, 4294901760
          %v5624 = vsub.f32 %v5622, %v5623
          %v5625 = vand.u32 %v5624, 4294901760
          %5626 = vmatmul.mubr.f32.gmra.mrb[0].mxu0 %v5625
          %v5627 = vpop.f32.mrb[0].mxu0
          %v5628 = vadd.f32 %v5508, %v5627
          %v5629 = vpop.f32.mrb[0].mxu0
          %5630 = vmatprep.mubr.f32.mxu0 0.0
          %v5631 = vand.u32 %v5459, 4294901760
          %v5632 = vsub.f32 %v5459, %v5631
          %v5633 = vand.u32 %v5632, 4294901760
          %v5634 = vsub.f32 %v5632, %v5633
          %v5635 = vand.u32 %v5634, 4294901760
          %5636 = vmatmul.mubr.f32.gmra.mrb[0].mxu0 %v5635
          %v5637 = vpop.f32.mrb[0].mxu0
          %v5638 = vadd.f32 %v5508, %v5637
          %v5639 = vpop.f32.mrb[0].mxu0
          %5640 = vmatprep.mubr.f32.mxu0 0.0
          %v5641 = vand.u32 %v5460, 4294901760
          %v5642 = vsub.f32 %v5460, %v5641
          %v5643 = vand.u32 %v5642, 4294901760
          %v5644 = vsub.f32 %v5642, %v5643
          %v5645 = vand.u32 %v5644, 4294901760
          %5646 = vmatmul.mubr.f32.gmra.mrb[0].mxu0 %v5645
          %v5647 = vpop.f32.mrb[0].mxu0
          %v5648 = vadd.f32 %v5508, %v5647
          %v5649 = vpop.f32.mrb[0].mxu0
          %5650 = vmatprep.mubr.f32.mxu0 0.0
          %v5651 = vand.u32 %v5461, 4294901760
          %v5652 = vsub.f32 %v5461, %v5651
          %v5653 = vand.u32 %v5652, 4294901760
          %v5654 = vsub.f32 %v5652, %v5653
          %v5655 = vand.u32 %v5654, 4294901760
          %5656 = vmatmul.mubr.f32.gmra.mrb[0].mxu0 %v5655
          %v5657 = vpop.f32.mrb[0].mxu0
          %v5658 = vadd.f32 %v5508, %v5657
          %v5659 = vpop.f32.mrb[0].mxu0
          %5660 = vmatprep.mubr.f32.mxu0 0.0
          %v5661 = vand.u32 %v5462, 4294901760
          %v5662 = vsub.f32 %v5462, %v5661
          %v5663 = vand.u32 %v5662, 4294901760
          %v5664 = vsub.f32 %v5662, %v5663
          %v5665 = vand.u32 %v5664, 4294901760
          %5666 = vmatmul.mubr.f32.gmra.mrb[0].mxu0 %v5665
          %v5667 = vpop.f32.mrb[0].mxu0
          %v5668 = vadd.f32 %v5508, %v5667
          %v5669 = vpop.f32.mrb[0].mxu0
          %5670 = vmatprep.mubr.f32.mxu0 0.0
          %v5671 = vand.u32 %v5463, 4294901760
          %v5672 = vsub.f32 %v5463, %v5671
          %v5673 = vand.u32 %v5672, 4294901760
          %v5674 = vsub.f32 %v5672, %v5673
          %v5675 = vand.u32 %v5674, 4294901760
          %5676 = vmatmul.mubr.f32.gmra.mrb[0].mxu0 %v5675
          %v5677 = vpop.f32.mrb[0].mxu0
          %v5678 = vadd.f32 %v5508, %v5677
          %v5679 = vpop.f32.mrb[0].mxu0
          %5680 = vmatprep.mubr.f32.mxu0 0.0
          %v5681 = vand.u32 %v5464, 4294901760
          %v5682 = vsub.f32 %v5464, %v5681
          %v5683 = vand.u32 %v5682, 4294901760
          %v5684 = vsub.f32 %v5682, %v5683
          %v5685 = vand.u32 %v5684, 4294901760
          %5686 = vmatmul.mubr.f32.gmra.mrb[0].mxu0 %v5685
          %v5687 = vpop.f32.mrb[0].mxu0
          %v5688 = vadd.f32 %v5508, %v5687
          %v5689 = vpop.f32.mrb[0].mxu0
          %5690 = vmatprep.mubr.f32.mxu0 0.0
          %v5691 = vand.u32 %v5465, 4294901760
          %v5692 = vsub.f32 %v5465, %v5691
          %v5693 = vand.u32 %v5692, 4294901760
          %v5694 = vsub.f32 %v5692, %v5693
          %v5695 = vand.u32 %v5694, 4294901760
          %5696 = vmatmul.mubr.f32.gmra.mrb[0].mxu0 %v5695
          %v5697 = vpop.f32.mrb[0].mxu0
          %v5698 = vadd.f32 %v5508, %v5697
          %v5699 = vpop.f32.mrb[0].mxu0
          %5700 = vmatprep.mubr.f32.mxu0 0.0
          %v5701 = vand.u32 %v5466, 4294901760
          %v5702 = vsub.f32 %v5466, %v5701
          %v5703 = vand.u32 %v5702, 4294901760
          %v5704 = vsub.f32 %v5702, %v5703
          %v5705 = vand.u32 %v5704, 4294901760
          %5706 = vmatmul.mubr.f32.gmra.mrb[0].mxu0 %v5705
          %v5707 = vpop.f32.mrb[0].mxu0
          %v5708 = vadd.f32 %v5508, %v5707
          %v5709 = vpop.f32.mrb[0].mxu0
          %5710 = vmatprep.mubr.f32.mxu0 0.0
          %v5711 = vand.u32 %v5467, 4294901760
          %v5712 = vsub.f32 %v5467, %v5711
          %v5713 = vand.u32 %v5712, 4294901760
          %v5714 = vsub.f32 %v5712, %v5713
          %v5715 = vand.u32 %v5714, 4294901760
          %5716 = vmatmul.mubr.f32.gmra.mrb[0].mxu0 %v5715
          %v5717 = vpop.f32.mrb[0].mxu0
          %v5718 = vadd.f32 %v5508, %v5717
          %v5719 = vpop.f32.mrb[0].mxu0
          %5720 = vmatprep.mubr.f32.mxu0 0.0
          %v5721 = vand.u32 %v5468, 4294901760
          %v5722 = vsub.f32 %v5468, %v5721
          %v5723 = vand.u32 %v5722, 4294901760
          %v5724 = vsub.f32 %v5722, %v5723
          %v5725 = vand.u32 %v5724, 4294901760
          %5726 = vmatmul.mubr.f32.gmra.mrb[0].mxu0 %v5725
          %v5727 = vpop.f32.mrb[0].mxu0
          %v5728 = vadd.f32 %v5508, %v5727
          %v5729 = vpop.f32.mrb[0].mxu0
          %5730 = vmatprep.mubr.f32.mxu0 0.0
          %v5731 = vand.u32 %v5469, 4294901760
          %v5732 = vsub.f32 %v5469, %v5731
          %v5733 = vand.u32 %v5732, 4294901760
          %v5734 = vsub.f32 %v5732, %v5733
          %v5735 = vand.u32 %v5734, 4294901760
          %5736 = vmatmul.mubr.f32.gmra.mrb[0].mxu0 %v5735
          %v5737 = vpop.f32.mrb[0].mxu0
          %v5738 = vadd.f32 %v5508, %v5737
          %v5739 = vpop.f32.mrb[0].mxu0
          %5740 = vmatprep.mubr.f32.mxu0 0.0
          %v5741 = vand.u32 %v5470, 4294901760
          %v5742 = vsub.f32 %v5470, %v5741
          %v5743 = vand.u32 %v5742, 4294901760
          %v5744 = vsub.f32 %v5742, %v5743
          %v5745 = vand.u32 %v5744, 4294901760
          %5746 = vmatmul.mubr.f32.gmra.mrb[0].mxu0 %v5745
          %v5747 = vpop.f32.mrb[0].mxu0
          %v5748 = vadd.f32 %v5508, %v5747
          %v5749 = vpop.f32.mrb[0].mxu0
          %5750 = vmatprep.mubr.f32.mxu0 0.0
          %v5751 = vand.u32 %v5471, 4294901760
          %v5752 = vsub.f32 %v5471, %v5751
          %v5753 = vand.u32 %v5752, 4294901760
          %v5754 = vsub.f32 %v5752, %v5753
          %v5755 = vand.u32 %v5754, 4294901760
          %5756 = vmatmul.mubr.f32.gmra.mrb[0].mxu0 %v5755
          %v5757 = vpop.f32.mrb[0].mxu0
          %v5758 = vadd.f32 %v5508, %v5757
          %v5759 = vpop.f32.mrb[0].mxu0
          %5760 = vmatprep.mubr.f32.mxu0 0.0
          %v5761 = vand.u32 %v5472, 4294901760
          %v5762 = vsub.f32 %v5472, %v5761
          %v5763 = vand.u32 %v5762, 4294901760
          %v5764 = vsub.f32 %v5762, %v5763
          %v5765 = vand.u32 %v5764, 4294901760
          %5766 = vmatmul.mubr.f32.gmra.mrb[0].mxu0 %v5765
          %v5767 = vpop.f32.mrb[0].mxu0
          %v5768 = vadd.f32 %v5508, %v5767
          %v5769 = vpop.f32.mrb[0].mxu0
          %5770 = vmatprep.mubr.f32.mxu0 0.0
          %v5771 = vand.u32 %v5473, 4294901760
          %v5772 = vsub.f32 %v5473, %v5771
          %v5773 = vand.u32 %v5772, 4294901760
          %v5774 = vsub.f32 %v5772, %v5773
          %v5775 = vand.u32 %v5774, 4294901760
          %5776 = vmatmul.mubr.f32.gmra.mrb[0].mxu0 %v5775
          %v5777 = vpop.f32.mrb[0].mxu0
          %v5778 = vadd.f32 %v5508, %v5777
          %v5779 = vpop.f32.mrb[0].mxu0
          %5780 = vmatprep.mubr.f32.mxu0 0.0
          %v5781 = vand.u32 %v5474, 4294901760
          %v5782 = vsub.f32 %v5474, %v5781
          %v5783 = vand.u32 %v5782, 4294901760
          %v5784 = vsub.f32 %v5782, %v5783
          %v5785 = vand.u32 %v5784, 4294901760
          %5786 = vmatmul.mubr.f32.gmra.mrb[0].mxu0 %v5785
          %v5787 = vpop.f32.mrb[0].mxu0
          %v5788 = vadd.f32 %v5508, %v5787
          %v5789 = vpop.f32.mrb[0].mxu0
          %5790 = vmatprep.mubr.f32.mxu0 0.0
          %v5791 = vand.u32 %v5475, 4294901760
          %v5792 = vsub.f32 %v5475, %v5791
          %v5793 = vand.u32 %v5792, 4294901760
          %v5794 = vsub.f32 %v5792, %v5793
          %v5795 = vand.u32 %v5794, 4294901760
          %5796 = vmatmul.mubr.f32.gmra.mrb[0].mxu0 %v5795
          %v5797 = vpop.f32.mrb[0].mxu0
          %v5798 = vadd.f32 %v5508, %v5797
          %v5799 = vpop.f32.mrb[0].mxu0
          %5800 = vmatprep.mubr.f32.mxu0 0.0
          %v5801 = vand.u32 %v5476, 4294901760
          %v5802 = vsub.f32 %v5476, %v5801
          %v5803 = vand.u32 %v5802, 4294901760
          %v5804 = vsub.f32 %v5802, %v5803
          %v5805 = vand.u32 %v5804, 4294901760
          %5806 = vmatmul.mubr.f32.gmra.mrb[0].mxu0 %v5805
          %v5807 = vpop.f32.mrb[0].mxu0
          %v5808 = vadd.f32 %v5508, %v5807
          %v5809 = vpop.f32.mrb[0].mxu0
          %5810 = vmatprep.mubr.f32.mxu0 0.0
          %v5811 = vand.u32 %v5477, 4294901760
          %v5812 = vsub.f32 %v5477, %v5811
          %v5813 = vand.u32 %v5812, 4294901760
          %v5814 = vsub.f32 %v5812, %v5813
          %v5815 = vand.u32 %v5814, 4294901760
          %5816 = vmatmul.mubr.f32.gmra.mrb[0].mxu0 %v5815
          %v5817 = vpop.f32.mrb[0].mxu0
          %v5818 = vadd.f32 %v5508, %v5817
          %v5819 = vpop.f32.mrb[0].mxu0
          %5820 = vmatprep.mubr.f32.mxu0 0.0
          %v5821 = vand.u32 %v5478, 4294901760
          %v5822 = vsub.f32 %v5478, %v5821
          %v5823 = vand.u32 %v5822, 4294901760
          %v5824 = vsub.f32 %v5822, %v5823
          %v5825 = vand.u32 %v5824, 4294901760
          %5826 = vmatmul.mubr.f32.gmra.mrb[0].mxu0 %v5825
          %v5827 = vpop.f32.mrb[0].mxu0
          %v5828 = vadd.f32 %v5508, %v5827
          %v5829 = vpop.f32.mrb[0].mxu0
          %5830 = vmatprep.mubr.f32.mxu0 0.0
          %v5831 = vand.u32 %v5479, 4294901760
          %v5832 = vsub.f32 %v5479, %v5831
          %v5833 = vand.u32 %v5832, 4294901760
          %v5834 = vsub.f32 %v5832, %v5833
          %v5835 = vand.u32 %v5834, 4294901760
          %5836 = vmatmul.mubr.f32.gmra.mrb[0].mxu0 %v5835
          %v5837 = vpop.f32.mrb[0].mxu0
          %v5838 = vadd.f32 %v5508, %v5837
          %v5839 = vpop.f32.mrb[0].mxu0
          %5840 = vmatprep.mubr.f32.mxu0 0.0
          %v5841 = vand.u32 %v5480, 4294901760
          %v5842 = vsub.f32 %v5480, %v5841
          %v5843 = vand.u32 %v5842, 4294901760
          %v5844 = vsub.f32 %v5842, %v5843
          %v5845 = vand.u32 %v5844, 4294901760
          %5846 = vmatmul.mubr.f32.gmra.mrb[0].mxu0 %v5845
          %v5847 = vpop.f32.mrb[0].mxu0
          %v5848 = vadd.f32 %v5508, %v5847
          %v5849 = vpop.f32.mrb[0].mxu0
          %5850 = vmatprep.mubr.f32.mxu0 0.0
          %v5851 = vand.u32 %v5481, 4294901760
          %v5852 = vsub.f32 %v5481, %v5851
          %v5853 = vand.u32 %v5852, 4294901760
          %v5854 = vsub.f32 %v5852, %v5853
          %v5855 = vand.u32 %v5854, 4294901760
          %5856 = vmatmul.mubr.f32.gmra.mrb[0].mxu0 %v5855
          %v5857 = vpop.f32.mrb[0].mxu0
          %v5858 = vadd.f32 %v5508, %v5857
          %v5859 = vpop.f32.mrb[0].mxu0
          %5860 = vmatprep.mubr.f32.mxu0 0.0
          %v5861 = vand.u32 %v5482, 4294901760
          %v5862 = vsub.f32 %v5482, %v5861
          %v5863 = vand.u32 %v5862, 4294901760
          %v5864 = vsub.f32 %v5862, %v5863
          %v5865 = vand.u32 %v5864, 4294901760
          %5866 = vmatmul.mubr.f32.gmra.mrb[0].mxu0 %v5865
          %v5867 = vpop.f32.mrb[0].mxu0
          %v5868 = vadd.f32 %v5508, %v5867
          %v5869 = vpop.f32.mrb[0].mxu0
          %5870 = vmatprep.mubr.f32.mxu0 0.0
          %v5871 = vand.u32 %v5483, 4294901760
          %v5872 = vsub.f32 %v5483, %v5871
          %v5873 = vand.u32 %v5872, 4294901760
          %v5874 = vsub.f32 %v5872, %v5873
          %v5875 = vand.u32 %v5874, 4294901760
          %5876 = vmatmul.mubr.f32.gmra.mrb[0].mxu0 %v5875
          %v5877 = vpop.f32.mrb[0].mxu0
          %v5878 = vadd.f32 %v5508, %v5877
          %v5879 = vpop.f32.mrb[0].mxu0
          %5880 = vmatprep.mubr.f32.mxu0 0.0
          %v5881 = vand.u32 %v5484, 4294901760
          %v5882 = vsub.f32 %v5484, %v5881
          %v5883 = vand.u32 %v5882, 4294901760
          %v5884 = vsub.f32 %v5882, %v5883
          %v5885 = vand.u32 %v5884, 4294901760
          %5886 = vmatmul.mubr.f32.gmra.mrb[0].mxu0 %v5885
          %v5887 = vpop.f32.mrb[0].mxu0
          %v5888 = vadd.f32 %v5508, %v5887
          %v5889 = vpop.f32.mrb[0].mxu0
          %5890 = vmatprep.mubr.f32.mxu0 0.0
          %v5891 = vand.u32 %v5485, 4294901760
          %v5892 = vsub.f32 %v5485, %v5891
          %v5893 = vand.u32 %v5892, 4294901760
          %v5894 = vsub.f32 %v5892, %v5893
          %v5895 = vand.u32 %v5894, 4294901760
          %5896 = vmatmul.mubr.f32.gmra.mrb[0].mxu0 %v5895
          %v5897 = vpop.f32.mrb[0].mxu0
          %v5898 = vadd.f32 %v5508, %v5897
          %v5899 = vpop.f32.mrb[0].mxu0
          %5900 = vmatprep.mubr.f32.mxu0 0.0
          %v5901 = vand.u32 %v5486, 4294901760
          %v5902 = vsub.f32 %v5486, %v5901
          %v5903 = vand.u32 %v5902, 4294901760
          %v5904 = vsub.f32 %v5902, %v5903
          %v5905 = vand.u32 %v5904, 4294901760
          %5906 = vmatmul.mubr.f32.gmra.mrb[0].mxu0 %v5905
          %v5907 = vpop.f32.mrb[0].mxu0
          %v5908 = vadd.f32 %v5508, %v5907
          %v5909 = vpop.f32.mrb[0].mxu0
          %5910 = vdwg.mxu0
          %5911 = vmatprep.subr.mxu0 0.0
          %v5912 = vand.u32 %v5487, 4294901760
          %v5913 = vsub.f32 %v5487, %v5912
          %v5914 = vand.u32 %v5913, 4294901760
          %v5915 = vsub.f32 %v5913, %v5914
          %v5916 = vand.u32 %v5915, 4294901760
          %5917 = vmatpush1.msra.mxu0 %v5916
          %5918 = vmatprep.subr.mxu0 0.0
          %v5919 = vand.u32 %v5488, 4294901760
          %v5920 = vsub.f32 %v5488, %v5919
          %v5921 = vand.u32 %v5920, 4294901760
          %v5922 = vsub.f32 %v5920, %v5921
          %v5923 = vand.u32 %v5922, 4294901760
          %5924 = vmatpush1.msra.mxu0 %v5923
          %5925 = vmatprep.subr.mxu0 0.0
          %v5926 = vand.u32 %v5489, 4294901760
          %v5927 = vsub.f32 %v5489, %v5926
          %v5928 = vand.u32 %v5927, 4294901760
          %v5929 = vsub.f32 %v5927, %v5928
          %v5930 = vand.u32 %v5929, 4294901760
          %5931 = vmatpush1.msra.mxu0 %v5930
          %5932 = vmatprep.subr.mxu0 0.0
          %v5933 = vand.u32 %v5490, 4294901760
          %v5934 = vsub.f32 %v5490, %v5933
          %v5935 = vand.u32 %v5934, 4294901760
          %v5936 = vsub.f32 %v5934, %v5935
          %v5937 = vand.u32 %v5936, 4294901760
          %5938 = vmatpush1.msra.mxu0 %v5937
          %5939 = vmatprep.subr.mxu0 0.0
          %v5940 = vand.u32 %v5491, 4294901760
          %v5941 = vsub.f32 %v5491, %v5940
          %v5942 = vand.u32 %v5941, 4294901760
          %v5943 = vsub.f32 %v5941, %v5942
          %v5944 = vand.u32 %v5943, 4294901760
          %5945 = vmatpush1.msra.mxu0 %v5944
          %5946 = vmatprep.subr.mxu0 0.0
          %v5947 = vand.u32 %v5492, 4294901760
          %v5948 = vsub.f32 %v5492, %v5947
          %v5949 = vand.u32 %v5948, 4294901760
          %v5950 = vsub.f32 %v5948, %v5949
          %v5951 = vand.u32 %v5950, 4294901760
          %5952 = vmatpush1.msra.mxu0 %v5951
          %5953 = vmatprep.subr.mxu0 0.0
          %v5954 = vand.u32 %v5493, 4294901760
          %v5955 = vsub.f32 %v5493, %v5954
          %v5956 = vand.u32 %v5955, 4294901760
          %v5957 = vsub.f32 %v5955, %v5956
          %v5958 = vand.u32 %v5957, 4294901760
          %5959 = vmatpush1.msra.mxu0 %v5958
          %5960 = vmatprep.subr.mxu0 0.0
          %v5961 = vand.u32 %v5494, 4294901760
          %v5962 = vsub.f32 %v5494, %v5961
          %v5963 = vand.u32 %v5962, 4294901760
          %v5964 = vsub.f32 %v5962, %v5963
          %v5965 = vand.u32 %v5964, 4294901760
          %5966 = vmatpush1.msra.mxu0 %v5965
          %5967 = vmatprep.subr.mxu0 0.0
          %v5968 = vand.u32 %v5495, 4294901760
          %v5969 = vsub.f32 %v5495, %v5968
          %v5970 = vand.u32 %v5969, 4294901760
          %v5971 = vsub.f32 %v5969, %v5970
          %v5972 = vand.u32 %v5971, 4294901760
          %5973 = vmatpush1.msra.mxu0 %v5972
          %5974 = vmatprep.subr.mxu0 0.0
          %v5975 = vand.u32 %v5496, 4294901760
          %v5976 = vsub.f32 %v5496, %v5975
          %v5977 = vand.u32 %v5976, 4294901760
          %v5978 = vsub.f32 %v5976, %v5977
          %v5979 = vand.u32 %v5978, 4294901760
          %5980 = vmatpush1.msra.mxu0 %v5979
          %5981 = vmatprep.subr.mxu0 0.0
          %v5982 = vand.u32 %v5497, 4294901760
          %v5983 = vsub.f32 %v5497, %v5982
          %v5984 = vand.u32 %v5983, 4294901760
          %v5985 = vsub.f32 %v5983, %v5984
          %v5986 = vand.u32 %v5985, 4294901760
          %5987 = vmatpush1.msra.mxu0 %v5986
          %5988 = vmatprep.subr.mxu0 0.0
          %v5989 = vand.u32 %v5498, 4294901760
          %v5990 = vsub.f32 %v5498, %v5989
          %v5991 = vand.u32 %v5990, 4294901760
          %v5992 = vsub.f32 %v5990, %v5991
          %v5993 = vand.u32 %v5992, 4294901760
          %5994 = vmatpush1.msra.mxu0 %v5993
          %5995 = vmatprep.subr.mxu0 0.0
          %v5996 = vand.u32 %v5499, 4294901760
          %v5997 = vsub.f32 %v5499, %v5996
          %v5998 = vand.u32 %v5997, 4294901760
          %v5999 = vsub.f32 %v5997, %v5998
          %v6000 = vand.u32 %v5999, 4294901760
          %6001 = vmatpush1.msra.mxu0 %v6000
          %6002 = vmatprep.subr.mxu0 0.0
          %v6003 = vand.u32 %v5500, 4294901760
          %v6004 = vsub.f32 %v5500, %v6003
          %v6005 = vand.u32 %v6004, 4294901760
          %v6006 = vsub.f32 %v6004, %v6005
          %v6007 = vand.u32 %v6006, 4294901760
          %6008 = vmatpush1.msra.mxu0 %v6007
          %6009 = vmatprep.subr.mxu0 0.0
          %v6010 = vand.u32 %v5501, 4294901760
          %v6011 = vsub.f32 %v5501, %v6010
          %v6012 = vand.u32 %v6011, 4294901760
          %v6013 = vsub.f32 %v6011, %v6012
          %v6014 = vand.u32 %v6013, 4294901760
          %6015 = vmatpush1.msra.mxu0 %v6014
          %6016 = vmatprep.subr.mxu0 0.0
          %v6017 = vand.u32 %v5502, 4294901760
          %v6018 = vsub.f32 %v5502, %v6017
          %v6019 = vand.u32 %v6018, 4294901760
          %v6020 = vsub.f32 %v6018, %v6019
          %v6021 = vand.u32 %v6020, 4294901760
          %6022 = vmatpush1.msra.mxu0 %v6021
          %6023 = vmatprep.subr.mxu0 0.0
          %6024 = vmatpush1.msra.mxu0 0.0
          %6025 = vmatprep.subr.mxu0 0.0
          %6026 = vmatpush1.msra.mxu0 0.0
          %6027 = vmatprep.subr.mxu0 0.0
          %6028 = vmatpush1.msra.mxu0 0.0
          %6029 = vmatprep.subr.mxu0 0.0
          %6030 = vmatpush1.msra.mxu0 0.0
          %6031 = vmatprep.subr.mxu0 0.0
          %6032 = vmatpush1.msra.mxu0 0.0
          %6033 = vmatprep.subr.mxu0 0.0
          %6034 = vmatpush1.msra.mxu0 0.0
          %6035 = vmatprep.subr.mxu0 0.0
          %6036 = vmatpush1.msra.mxu0 0.0
          %6037 = vmatprep.subr.mxu0 0.0
          %6038 = vmatpush1.msra.mxu0 0.0
          %6039 = vmatprep.subr.mxu0 0.0
          %6040 = vmatpush1.msra.mxu0 0.0
          %6041 = vmatprep.subr.mxu0 0.0
          %6042 = vmatpush1.msra.mxu0 0.0
          %6043 = vmatprep.subr.mxu0 0.0
          %6044 = vmatpush1.msra.mxu0 0.0
          %6045 = vmatprep.subr.mxu0 0.0
          %6046 = vmatpush1.msra.mxu0 0.0
          %6047 = vmatprep.subr.mxu0 0.0
          %6048 = vmatpush1.msra.mxu0 0.0
          %6049 = vmatprep.subr.mxu0 0.0
          %6050 = vmatpush1.msra.mxu0 0.0
          %6051 = vmatprep.subr.mxu0 0.0
          %6052 = vmatpush1.msra.mxu0 0.0
          %6053 = vmatprep.subr.mxu0 0.0
          %6054 = vmatpush1.msra.mxu0 0.0
          %6055 = vmatprep.mubr.f32.mxu0 0.0
          %v6056 = vand.u32 %v5455, 4294901760
          %6057 = vmatmul.mubr.f32.gmra.mrb[0].mxu0 %v6056
          %v6058 = vpop.f32.mrb[0].mxu0
          %v6059 = vadd.f32 %v5598, %v6058
          %v6060 = vpop.f32.mrb[0].mxu0
          %6061 = vmatprep.mubr.f32.mxu0 0.0
          %v6062 = vand.u32 %v5456, 4294901760
          %6063 = vmatmul.mubr.f32.gmra.mrb[0].mxu0 %v6062
          %v6064 = vpop.f32.mrb[0].mxu0
          %v6065 = vadd.f32 %v5608, %v6064
          %v6066 = vpop.f32.mrb[0].mxu0
          %6067 = vmatprep.mubr.f32.mxu0 0.0
          %v6068 = vand.u32 %v5457, 4294901760
          %6069 = vmatmul.mubr.f32.gmra.mrb[0].mxu0 %v6068
          %v6070 = vpop.f32.mrb[0].mxu0
          %v6071 = vadd.f32 %v5618, %v6070
          %v6072 = vpop.f32.mrb[0].mxu0
          %6073 = vmatprep.mubr.f32.mxu0 0.0
          %v6074 = vand.u32 %v5458, 4294901760
          %6075 = vmatmul.mubr.f32.gmra.mrb[0].mxu0 %v6074
          %v6076 = vpop.f32.mrb[0].mxu0
          %v6077 = vadd.f32 %v5628, %v6076
          %v6078 = vpop.f32.mrb[0].mxu0
          %6079 = vmatprep.mubr.f32.mxu0 0.0
          %v6080 = vand.u32 %v5459, 4294901760
          %6081 = vmatmul.mubr.f32.gmra.mrb[0].mxu0 %v6080
          %v6082 = vpop.f32.mrb[0].mxu0
          %v6083 = vadd.f32 %v5638, %v6082
          %v6084 = vpop.f32.mrb[0].mxu0
          %6085 = vmatprep.mubr.f32.mxu0 0.0
          %v6086 = vand.u32 %v5460, 4294901760
          %6087 = vmatmul.mubr.f32.gmra.mrb[0].mxu0 %v6086
          %v6088 = vpop.f32.mrb[0].mxu0
          %v6089 = vadd.f32 %v5648, %v6088
          %v6090 = vpop.f32.mrb[0].mxu0
          %6091 = vmatprep.mubr.f32.mxu0 0.0
          %v6092 = vand.u32 %v5461, 4294901760
          %6093 = vmatmul.mubr.f32.gmra.mrb[0].mxu0 %v6092
          %v6094 = vpop.f32.mrb[0].mxu0
          %v6095 = vadd.f32 %v5658, %v6094
          %v6096 = vpop.f32.mrb[0].mxu0
          %6097 = vmatprep.mubr.f32.mxu0 0.0
          %v6098 = vand.u32 %v5462, 4294901760
          %6099 = vmatmul.mubr.f32.gmra.mrb[0].mxu0 %v6098
          %v6100 = vpop.f32.mrb[0].mxu0
          %v6101 = vadd.f32 %v5668, %v6100
          %v6102 = vpop.f32.mrb[0].mxu0
          %6103 = vmatprep.mubr.f32.mxu0 0.0
          %v6104 = vand.u32 %v5463, 4294901760
          %6105 = vmatmul.mubr.f32.gmra.mrb[0].mxu0 %v6104
          %v6106 = vpop.f32.mrb[0].mxu0
          %v6107 = vadd.f32 %v5678, %v6106
          %v6108 = vpop.f32.mrb[0].mxu0
          %6109 = vmatprep.mubr.f32.mxu0 0.0
          %v6110 = vand.u32 %v5464, 4294901760
          %6111 = vmatmul.mubr.f32.gmra.mrb[0].mxu0 %v6110
          %v6112 = vpop.f32.mrb[0].mxu0
          %v6113 = vadd.f32 %v5688, %v6112
          %v6114 = vpop.f32.mrb[0].mxu0
          %6115 = vmatprep.mubr.f32.mxu0 0.0
          %v6116 = vand.u32 %v5465, 4294901760
          %6117 = vmatmul.mubr.f32.gmra.mrb[0].mxu0 %v6116
          %v6118 = vpop.f32.mrb[0].mxu0
          %v6119 = vadd.f32 %v5698, %v6118
          %v6120 = vpop.f32.mrb[0].mxu0
          %6121 = vmatprep.mubr.f32.mxu0 0.0
          %v6122 = vand.u32 %v5466, 4294901760
          %6123 = vmatmul.mubr.f32.gmra.mrb[0].mxu0 %v6122
          %v6124 = vpop.f32.mrb[0].mxu0
          %v6125 = vadd.f32 %v5708, %v6124
          %v6126 = vpop.f32.mrb[0].mxu0
          %6127 = vmatprep.mubr.f32.mxu0 0.0
          %v6128 = vand.u32 %v5467, 4294901760
          %6129 = vmatmul.mubr.f32.gmra.mrb[0].mxu0 %v6128
          %v6130 = vpop.f32.mrb[0].mxu0
          %v6131 = vadd.f32 %v5718, %v6130
          %v6132 = vpop.f32.mrb[0].mxu0
          %6133 = vmatprep.mubr.f32.mxu0 0.0
          %v6134 = vand.u32 %v5468, 4294901760
          %6135 = vmatmul.mubr.f32.gmra.mrb[0].mxu0 %v6134
          %v6136 = vpop.f32.mrb[0].mxu0
          %v6137 = vadd.f32 %v5728, %v6136
          %v6138 = vpop.f32.mrb[0].mxu0
          %6139 = vmatprep.mubr.f32.mxu0 0.0
          %v6140 = vand.u32 %v5469, 4294901760
          %6141 = vmatmul.mubr.f32.gmra.mrb[0].mxu0 %v6140
          %v6142 = vpop.f32.mrb[0].mxu0
          %v6143 = vadd.f32 %v5738, %v6142
          %v6144 = vpop.f32.mrb[0].mxu0
          %6145 = vmatprep.mubr.f32.mxu0 0.0
          %v6146 = vand.u32 %v5470, 4294901760
          %6147 = vmatmul.mubr.f32.gmra.mrb[0].mxu0 %v6146
          %v6148 = vpop.f32.mrb[0].mxu0
          %v6149 = vadd.f32 %v5748, %v6148
          %v6150 = vpop.f32.mrb[0].mxu0
          %6151 = vmatprep.mubr.f32.mxu0 0.0
          %v6152 = vand.u32 %v5471, 4294901760
          %6153 = vmatmul.mubr.f32.gmra.mrb[0].mxu0 %v6152
          %v6154 = vpop.f32.mrb[0].mxu0
          %v6155 = vadd.f32 %v5758, %v6154
          %v6156 = vpop.f32.mrb[0].mxu0
          %6157 = vmatprep.mubr.f32.mxu0 0.0
          %v6158 = vand.u32 %v5472, 4294901760
          %6159 = vmatmul.mubr.f32.gmra.mrb[0].mxu0 %v6158
          %v6160 = vpop.f32.mrb[0].mxu0
          %v6161 = vadd.f32 %v5768, %v6160
          %v6162 = vpop.f32.mrb[0].mxu0
          %6163 = vmatprep.mubr.f32.mxu0 0.0
          %v6164 = vand.u32 %v5473, 4294901760
          %6165 = vmatmul.mubr.f32.gmra.mrb[0].mxu0 %v6164
          %v6166 = vpop.f32.mrb[0].mxu0
          %v6167 = vadd.f32 %v5778, %v6166
          %v6168 = vpop.f32.mrb[0].mxu0
          %6169 = vmatprep.mubr.f32.mxu0 0.0
          %v6170 = vand.u32 %v5474, 4294901760
          %6171 = vmatmul.mubr.f32.gmra.mrb[0].mxu0 %v6170
          %v6172 = vpop.f32.mrb[0].mxu0
          %v6173 = vadd.f32 %v5788, %v6172
          %v6174 = vpop.f32.mrb[0].mxu0
          %6175 = vmatprep.mubr.f32.mxu0 0.0
          %v6176 = vand.u32 %v5475, 4294901760
          %6177 = vmatmul.mubr.f32.gmra.mrb[0].mxu0 %v6176
          %v6178 = vpop.f32.mrb[0].mxu0
          %v6179 = vadd.f32 %v5798, %v6178
          %v6180 = vpop.f32.mrb[0].mxu0
          %6181 = vmatprep.mubr.f32.mxu0 0.0
          %v6182 = vand.u32 %v5476, 4294901760
          %6183 = vmatmul.mubr.f32.gmra.mrb[0].mxu0 %v6182
          %v6184 = vpop.f32.mrb[0].mxu0
          %v6185 = vadd.f32 %v5808, %v6184
          %v6186 = vpop.f32.mrb[0].mxu0
          %6187 = vmatprep.mubr.f32.mxu0 0.0
          %v6188 = vand.u32 %v5477, 4294901760
          %6189 = vmatmul.mubr.f32.gmra.mrb[0].mxu0 %v6188
          %v6190 = vpop.f32.mrb[0].mxu0
          %v6191 = vadd.f32 %v5818, %v6190
          %v6192 = vpop.f32.mrb[0].mxu0
          %6193 = vmatprep.mubr.f32.mxu0 0.0
          %v6194 = vand.u32 %v5478, 4294901760
          %6195 = vmatmul.mubr.f32.gmra.mrb[0].mxu0 %v6194
          %v6196 = vpop.f32.mrb[0].mxu0
          %v6197 = vadd.f32 %v5828, %v6196
          %v6198 = vpop.f32.mrb[0].mxu0
          %6199 = vmatprep.mubr.f32.mxu0 0.0
          %v6200 = vand.u32 %v5479, 4294901760
          %6201 = vmatmul.mubr.f32.gmra.mrb[0].mxu0 %v6200
          %v6202 = vpop.f32.mrb[0].mxu0
          %v6203 = vadd.f32 %v5838, %v6202
          %v6204 = vpop.f32.mrb[0].mxu0
          %6205 = vmatprep.mubr.f32.mxu0 0.0
          %v6206 = vand.u32 %v5480, 4294901760
          %6207 = vmatmul.mubr.f32.gmra.mrb[0].mxu0 %v6206
          %v6208 = vpop.f32.mrb[0].mxu0
          %v6209 = vadd.f32 %v5848, %v6208
          %v6210 = vpop.f32.mrb[0].mxu0
          %6211 = vmatprep.mubr.f32.mxu0 0.0
          %v6212 = vand.u32 %v5481, 4294901760
          %6213 = vmatmul.mubr.f32.gmra.mrb[0].mxu0 %v6212
          %v6214 = vpop.f32.mrb[0].mxu0
          %v6215 = vadd.f32 %v5858, %v6214
          %v6216 = vpop.f32.mrb[0].mxu0
          %6217 = vmatprep.mubr.f32.mxu0 0.0
          %v6218 = vand.u32 %v5482, 4294901760
          %6219 = vmatmul.mubr.f32.gmra.mrb[0].mxu0 %v6218
          %v6220 = vpop.f32.mrb[0].mxu0
          %v6221 = vadd.f32 %v5868, %v6220
          %v6222 = vpop.f32.mrb[0].mxu0
          %6223 = vmatprep.mubr.f32.mxu0 0.0
          %v6224 = vand.u32 %v5483, 4294901760
          %6225 = vmatmul.mubr.f32.gmra.mrb[0].mxu0 %v6224
          %v6226 = vpop.f32.mrb[0].mxu0
          %v6227 = vadd.f32 %v5878, %v6226
          %v6228 = vpop.f32.mrb[0].mxu0
          %6229 = vmatprep.mubr.f32.mxu0 0.0
          %v6230 = vand.u32 %v5484, 4294901760
          %6231 = vmatmul.mubr.f32.gmra.mrb[0].mxu0 %v6230
          %v6232 = vpop.f32.mrb[0].mxu0
          %v6233 = vadd.f32 %v5888, %v6232
          %v6234 = vpop.f32.mrb[0].mxu0
          %6235 = vmatprep.mubr.f32.mxu0 0.0
          %v6236 = vand.u32 %v5485, 4294901760
          %6237 = vmatmul.mubr.f32.gmra.mrb[0].mxu0 %v6236
          %v6238 = vpop.f32.mrb[0].mxu0
          %v6239 = vadd.f32 %v5898, %v6238
          %v6240 = vpop.f32.mrb[0].mxu0
          %6241 = vmatprep.mubr.f32.mxu0 0.0
          %v6242 = vand.u32 %v5486, 4294901760
          %6243 = vmatmul.mubr.f32.gmra.mrb[0].mxu0 %v6242
          %v6244 = vpop.f32.mrb[0].mxu0
          %v6245 = vadd.f32 %v5908, %v6244
          %v6246 = vpop.f32.mrb[0].mxu0
          %6247 = vdwg.mxu0
          %6248 = vmatprep.subr.mxu0 0.0
          %v6249 = vand.u32 %v5487, 4294901760
          %v6250 = vsub.f32 %v5487, %v6249
          %6251 = vmatpush1.msra.mxu0 %v6250
          %6252 = vmatprep.subr.mxu0 0.0
          %v6253 = vand.u32 %v5488, 4294901760
          %v6254 = vsub.f32 %v5488, %v6253
          %6255 = vmatpush1.msra.mxu0 %v6254
          %6256 = vmatprep.subr.mxu0 0.0
          %v6257 = vand.u32 %v5489, 4294901760
          %v6258 = vsub.f32 %v5489, %v6257
          %6259 = vmatpush1.msra.mxu0 %v6258
          %6260 = vmatprep.subr.mxu0 0.0
          %v6261 = vand.u32 %v5490, 4294901760
          %v6262 = vsub.f32 %v5490, %v6261
          %6263 = vmatpush1.msra.mxu0 %v6262
          %6264 = vmatprep.subr.mxu0 0.0
          %v6265 = vand.u32 %v5491, 4294901760
          %v6266 = vsub.f32 %v5491, %v6265
          %6267 = vmatpush1.msra.mxu0 %v6266
          %6268 = vmatprep.subr.mxu0 0.0
          %v6269 = vand.u32 %v5492, 4294901760
          %v6270 = vsub.f32 %v5492, %v6269
          %6271 = vmatpush1.msra.mxu0 %v6270
          %6272 = vmatprep.subr.mxu0 0.0
          %v6273 = vand.u32 %v5493, 4294901760
          %v6274 = vsub.f32 %v5493, %v6273
          %6275 = vmatpush1.msra.mxu0 %v6274
          %6276 = vmatprep.subr.mxu0 0.0
          %v6277 = vand.u32 %v5494, 4294901760
          %v6278 = vsub.f32 %v5494, %v6277
          %6279 = vmatpush1.msra.mxu0 %v6278
          %6280 = vmatprep.subr.mxu0 0.0
          %v6281 = vand.u32 %v5495, 4294901760
          %v6282 = vsub.f32 %v5495, %v6281
          %6283 = vmatpush1.msra.mxu0 %v6282
          %6284 = vmatprep.subr.mxu0 0.0
          %v6285 = vand.u32 %v5496, 4294901760
          %v6286 = vsub.f32 %v5496, %v6285
          %6287 = vmatpush1.msra.mxu0 %v6286
          %6288 = vmatprep.subr.mxu0 0.0
          %v6289 = vand.u32 %v5497, 4294901760
          %v6290 = vsub.f32 %v5497, %v6289
          %6291 = vmatpush1.msra.mxu0 %v6290
          %6292 = vmatprep.subr.mxu0 0.0
          %v6293 = vand.u32 %v5498, 4294901760
          %v6294 = vsub.f32 %v5498, %v6293
          %6295 = vmatpush1.msra.mxu0 %v6294
          %6296 = vmatprep.subr.mxu0 0.0
          %v6297 = vand.u32 %v5499, 4294901760
          %v6298 = vsub.f32 %v5499, %v6297
          %6299 = vmatpush1.msra.mxu0 %v6298
          %6300 = vmatprep.subr.mxu0 0.0
          %v6301 = vand.u32 %v5500, 4294901760
          %v6302 = vsub.f32 %v5500, %v6301
          %6303 = vmatpush1.msra.mxu0 %v6302
          %6304 = vmatprep.subr.mxu0 0.0
          %v6305 = vand.u32 %v5501, 4294901760
          %v6306 = vsub.f32 %v5501, %v6305
          %6307 = vmatpush1.msra.mxu0 %v6306
          %6308 = vmatprep.subr.mxu0 0.0
          %v6309 = vand.u32 %v5502, 4294901760
          %v6310 = vsub.f32 %v5502, %v6309
          %6311 = vmatpush1.msra.mxu0 %v6310
          %6312 = vmatprep.subr.mxu0 0.0
          %6313 = vmatpush1.msra.mxu0 0.0
          %6314 = vmatprep.subr.mxu0 0.0
          %6315 = vmatpush1.msra.mxu0 0.0
          %6316 = vmatprep.subr.mxu0 0.0
          %6317 = vmatpush1.msra.mxu0 0.0
          %6318 = vmatprep.subr.mxu0 0.0
          %6319 = vmatpush1.msra.mxu0 0.0
          %6320 = vmatprep.subr.mxu0 0.0
          %6321 = vmatpush1.msra.mxu0 0.0
          %6322 = vmatprep.subr.mxu0 0.0
          %6323 = vmatpush1.msra.mxu0 0.0
          %6324 = vmatprep.subr.mxu0 0.0
          %6325 = vmatpush1.msra.mxu0 0.0
          %6326 = vmatprep.subr.mxu0 0.0
          %6327 = vmatpush1.msra.mxu0 0.0
          %6328 = vmatprep.subr.mxu0 0.0
          %6329 = vmatpush1.msra.mxu0 0.0
          %6330 = vmatprep.subr.mxu0 0.0
          %6331 = vmatpush1.msra.mxu0 0.0
          %6332 = vmatprep.subr.mxu0 0.0
          %6333 = vmatpush1.msra.mxu0 0.0
          %6334 = vmatprep.subr.mxu0 0.0
          %6335 = vmatpush1.msra.mxu0 0.0
          %6336 = vmatprep.subr.mxu0 0.0
          %6337 = vmatpush1.msra.mxu0 0.0
          %6338 = vmatprep.subr.mxu0 0.0
          %6339 = vmatpush1.msra.mxu0 0.0
          %6340 = vmatprep.subr.mxu0 0.0
          %6341 = vmatpush1.msra.mxu0 0.0
          %6342 = vmatprep.subr.mxu0 0.0
          %6343 = vmatpush1.msra.mxu0 0.0
          %6344 = vmatprep.mubr.f32.mxu0 0.0
          %v6345 = vand.u32 %v5455, 4294901760
          %v6346 = vsub.f32 %v5455, %v6345
          %6347 = vmatmul.mubr.f32.gmra.mrb[0].mxu0 %v6346
          %v6348 = vpop.f32.mrb[0].mxu0
          %v6349 = vadd.f32 %v6059, %v6348
          %v6350 = vpop.f32.mrb[0].mxu0
          %6351 = vmatprep.mubr.f32.mxu0 0.0
          %v6352 = vand.u32 %v5456, 4294901760
          %v6353 = vsub.f32 %v5456, %v6352
          %6354 = vmatmul.mubr.f32.gmra.mrb[0].mxu0 %v6353
          %v6355 = vpop.f32.mrb[0].mxu0
          %v6356 = vadd.f32 %v6065, %v6355
          %v6357 = vpop.f32.mrb[0].mxu0
          %6358 = vmatprep.mubr.f32.mxu0 0.0
          %v6359 = vand.u32 %v5457, 4294901760
          %v6360 = vsub.f32 %v5457, %v6359
          %6361 = vmatmul.mubr.f32.gmra.mrb[0].mxu0 %v6360
          %v6362 = vpop.f32.mrb[0].mxu0
          %v6363 = vadd.f32 %v6071, %v6362
          %v6364 = vpop.f32.mrb[0].mxu0
          %6365 = vmatprep.mubr.f32.mxu0 0.0
          %v6366 = vand.u32 %v5458, 4294901760
          %v6367 = vsub.f32 %v5458, %v6366
          %6368 = vmatmul.mubr.f32.gmra.mrb[0].mxu0 %v6367
          %v6369 = vpop.f32.mrb[0].mxu0
          %v6370 = vadd.f32 %v6077, %v6369
          %v6371 = vpop.f32.mrb[0].mxu0
          %6372 = vmatprep.mubr.f32.mxu0 0.0
          %v6373 = vand.u32 %v5459, 4294901760
          %v6374 = vsub.f32 %v5459, %v6373
          %6375 = vmatmul.mubr.f32.gmra.mrb[0].mxu0 %v6374
          %v6376 = vpop.f32.mrb[0].mxu0
          %v6377 = vadd.f32 %v6083, %v6376
          %v6378 = vpop.f32.mrb[0].mxu0
          %6379 = vmatprep.mubr.f32.mxu0 0.0
          %v6380 = vand.u32 %v5460, 4294901760
          %v6381 = vsub.f32 %v5460, %v6380
          %6382 = vmatmul.mubr.f32.gmra.mrb[0].mxu0 %v6381
          %v6383 = vpop.f32.mrb[0].mxu0
          %v6384 = vadd.f32 %v6089, %v6383
          %v6385 = vpop.f32.mrb[0].mxu0
          %6386 = vmatprep.mubr.f32.mxu0 0.0
          %v6387 = vand.u32 %v5461, 4294901760
          %v6388 = vsub.f32 %v5461, %v6387
          %6389 = vmatmul.mubr.f32.gmra.mrb[0].mxu0 %v6388
          %v6390 = vpop.f32.mrb[0].mxu0
          %v6391 = vadd.f32 %v6095, %v6390
          %v6392 = vpop.f32.mrb[0].mxu0
          %6393 = vmatprep.mubr.f32.mxu0 0.0
          %v6394 = vand.u32 %v5462, 4294901760
          %v6395 = vsub.f32 %v5462, %v6394
          %6396 = vmatmul.mubr.f32.gmra.mrb[0].mxu0 %v6395
          %v6397 = vpop.f32.mrb[0].mxu0
          %v6398 = vadd.f32 %v6101, %v6397
          %v6399 = vpop.f32.mrb[0].mxu0
          %6400 = vmatprep.mubr.f32.mxu0 0.0
          %v6401 = vand.u32 %v5463, 4294901760
          %v6402 = vsub.f32 %v5463, %v6401
          %6403 = vmatmul.mubr.f32.gmra.mrb[0].mxu0 %v6402
          %v6404 = vpop.f32.mrb[0].mxu0
          %v6405 = vadd.f32 %v6107, %v6404
          %v6406 = vpop.f32.mrb[0].mxu0
          %6407 = vmatprep.mubr.f32.mxu0 0.0
          %v6408 = vand.u32 %v5464, 4294901760
          %v6409 = vsub.f32 %v5464, %v6408
          %6410 = vmatmul.mubr.f32.gmra.mrb[0].mxu0 %v6409
          %v6411 = vpop.f32.mrb[0].mxu0
          %v6412 = vadd.f32 %v6113, %v6411
          %v6413 = vpop.f32.mrb[0].mxu0
          %6414 = vmatprep.mubr.f32.mxu0 0.0
          %v6415 = vand.u32 %v5465, 4294901760
          %v6416 = vsub.f32 %v5465, %v6415
          %6417 = vmatmul.mubr.f32.gmra.mrb[0].mxu0 %v6416
          %v6418 = vpop.f32.mrb[0].mxu0
          %v6419 = vadd.f32 %v6119, %v6418
          %v6420 = vpop.f32.mrb[0].mxu0
          %6421 = vmatprep.mubr.f32.mxu0 0.0
          %v6422 = vand.u32 %v5466, 4294901760
          %v6423 = vsub.f32 %v5466, %v6422
          %6424 = vmatmul.mubr.f32.gmra.mrb[0].mxu0 %v6423
          %v6425 = vpop.f32.mrb[0].mxu0
          %v6426 = vadd.f32 %v6125, %v6425
          %v6427 = vpop.f32.mrb[0].mxu0
          %6428 = vmatprep.mubr.f32.mxu0 0.0
          %v6429 = vand.u32 %v5467, 4294901760
          %v6430 = vsub.f32 %v5467, %v6429
          %6431 = vmatmul.mubr.f32.gmra.mrb[0].mxu0 %v6430
          %v6432 = vpop.f32.mrb[0].mxu0
          %v6433 = vadd.f32 %v6131, %v6432
          %v6434 = vpop.f32.mrb[0].mxu0
          %6435 = vmatprep.mubr.f32.mxu0 0.0
          %v6436 = vand.u32 %v5468, 4294901760
          %v6437 = vsub.f32 %v5468, %v6436
          %6438 = vmatmul.mubr.f32.gmra.mrb[0].mxu0 %v6437
          %v6439 = vpop.f32.mrb[0].mxu0
          %v6440 = vadd.f32 %v6137, %v6439
          %v6441 = vpop.f32.mrb[0].mxu0
          %6442 = vmatprep.mubr.f32.mxu0 0.0
          %v6443 = vand.u32 %v5469, 4294901760
          %v6444 = vsub.f32 %v5469, %v6443
          %6445 = vmatmul.mubr.f32.gmra.mrb[0].mxu0 %v6444
          %v6446 = vpop.f32.mrb[0].mxu0
          %v6447 = vadd.f32 %v6143, %v6446
          %v6448 = vpop.f32.mrb[0].mxu0
          %6449 = vmatprep.mubr.f32.mxu0 0.0
          %v6450 = vand.u32 %v5470, 4294901760
          %v6451 = vsub.f32 %v5470, %v6450
          %6452 = vmatmul.mubr.f32.gmra.mrb[0].mxu0 %v6451
          %v6453 = vpop.f32.mrb[0].mxu0
          %v6454 = vadd.f32 %v6149, %v6453
          %v6455 = vpop.f32.mrb[0].mxu0
          %6456 = vmatprep.mubr.f32.mxu0 0.0
          %v6457 = vand.u32 %v5471, 4294901760
          %v6458 = vsub.f32 %v5471, %v6457
          %6459 = vmatmul.mubr.f32.gmra.mrb[0].mxu0 %v6458
          %v6460 = vpop.f32.mrb[0].mxu0
          %v6461 = vadd.f32 %v6155, %v6460
          %v6462 = vpop.f32.mrb[0].mxu0
          %6463 = vmatprep.mubr.f32.mxu0 0.0
          %v6464 = vand.u32 %v5472, 4294901760
          %v6465 = vsub.f32 %v5472, %v6464
          %6466 = vmatmul.mubr.f32.gmra.mrb[0].mxu0 %v6465
          %v6467 = vpop.f32.mrb[0].mxu0
          %v6468 = vadd.f32 %v6161, %v6467
          %v6469 = vpop.f32.mrb[0].mxu0
          %6470 = vmatprep.mubr.f32.mxu0 0.0
          %v6471 = vand.u32 %v5473, 4294901760
          %v6472 = vsub.f32 %v5473, %v6471
          %6473 = vmatmul.mubr.f32.gmra.mrb[0].mxu0 %v6472
          %v6474 = vpop.f32.mrb[0].mxu0
          %v6475 = vadd.f32 %v6167, %v6474
          %v6476 = vpop.f32.mrb[0].mxu0
          %6477 = vmatprep.mubr.f32.mxu0 0.0
          %v6478 = vand.u32 %v5474, 4294901760
          %v6479 = vsub.f32 %v5474, %v6478
          %6480 = vmatmul.mubr.f32.gmra.mrb[0].mxu0 %v6479
          %v6481 = vpop.f32.mrb[0].mxu0
          %v6482 = vadd.f32 %v6173, %v6481
          %v6483 = vpop.f32.mrb[0].mxu0
          %6484 = vmatprep.mubr.f32.mxu0 0.0
          %v6485 = vand.u32 %v5475, 4294901760
          %v6486 = vsub.f32 %v5475, %v6485
          %6487 = vmatmul.mubr.f32.gmra.mrb[0].mxu0 %v6486
          %v6488 = vpop.f32.mrb[0].mxu0
          %v6489 = vadd.f32 %v6179, %v6488
          %v6490 = vpop.f32.mrb[0].mxu0
          %6491 = vmatprep.mubr.f32.mxu0 0.0
          %v6492 = vand.u32 %v5476, 4294901760
          %v6493 = vsub.f32 %v5476, %v6492
          %6494 = vmatmul.mubr.f32.gmra.mrb[0].mxu0 %v6493
          %v6495 = vpop.f32.mrb[0].mxu0
          %v6496 = vadd.f32 %v6185, %v6495
          %v6497 = vpop.f32.mrb[0].mxu0
          %6498 = vmatprep.mubr.f32.mxu0 0.0
          %v6499 = vand.u32 %v5477, 4294901760
          %v6500 = vsub.f32 %v5477, %v6499
          %6501 = vmatmul.mubr.f32.gmra.mrb[0].mxu0 %v6500
          %v6502 = vpop.f32.mrb[0].mxu0
          %v6503 = vadd.f32 %v6191, %v6502
          %v6504 = vpop.f32.mrb[0].mxu0
          %6505 = vmatprep.mubr.f32.mxu0 0.0
          %v6506 = vand.u32 %v5478, 4294901760
          %v6507 = vsub.f32 %v5478, %v6506
          %6508 = vmatmul.mubr.f32.gmra.mrb[0].mxu0 %v6507
          %v6509 = vpop.f32.mrb[0].mxu0
          %v6510 = vadd.f32 %v6197, %v6509
          %v6511 = vpop.f32.mrb[0].mxu0
          %6512 = vmatprep.mubr.f32.mxu0 0.0
          %v6513 = vand.u32 %v5479, 4294901760
          %v6514 = vsub.f32 %v5479, %v6513
          %6515 = vmatmul.mubr.f32.gmra.mrb[0].mxu0 %v6514
          %v6516 = vpop.f32.mrb[0].mxu0
          %v6517 = vadd.f32 %v6203, %v6516
          %v6518 = vpop.f32.mrb[0].mxu0
          %6519 = vmatprep.mubr.f32.mxu0 0.0
          %v6520 = vand.u32 %v5480, 4294901760
          %v6521 = vsub.f32 %v5480, %v6520
          %6522 = vmatmul.mubr.f32.gmra.mrb[0].mxu0 %v6521
          %v6523 = vpop.f32.mrb[0].mxu0
          %v6524 = vadd.f32 %v6209, %v6523
          %v6525 = vpop.f32.mrb[0].mxu0
          %6526 = vmatprep.mubr.f32.mxu0 0.0
          %v6527 = vand.u32 %v5481, 4294901760
          %v6528 = vsub.f32 %v5481, %v6527
          %6529 = vmatmul.mubr.f32.gmra.mrb[0].mxu0 %v6528
          %v6530 = vpop.f32.mrb[0].mxu0
          %v6531 = vadd.f32 %v6215, %v6530
          %v6532 = vpop.f32.mrb[0].mxu0
          %6533 = vmatprep.mubr.f32.mxu0 0.0
          %v6534 = vand.u32 %v5482, 4294901760
          %v6535 = vsub.f32 %v5482, %v6534
          %6536 = vmatmul.mubr.f32.gmra.mrb[0].mxu0 %v6535
          %v6537 = vpop.f32.mrb[0].mxu0
          %v6538 = vadd.f32 %v6221, %v6537
          %v6539 = vpop.f32.mrb[0].mxu0
          %6540 = vmatprep.mubr.f32.mxu0 0.0
          %v6541 = vand.u32 %v5483, 4294901760
          %v6542 = vsub.f32 %v5483, %v6541
          %6543 = vmatmul.mubr.f32.gmra.mrb[0].mxu0 %v6542
          %v6544 = vpop.f32.mrb[0].mxu0
          %v6545 = vadd.f32 %v6227, %v6544
          %v6546 = vpop.f32.mrb[0].mxu0
          %6547 = vmatprep.mubr.f32.mxu0 0.0
          %v6548 = vand.u32 %v5484, 4294901760
          %v6549 = vsub.f32 %v5484, %v6548
          %6550 = vmatmul.mubr.f32.gmra.mrb[0].mxu0 %v6549
          %v6551 = vpop.f32.mrb[0].mxu0
          %v6552 = vadd.f32 %v6233, %v6551
          %v6553 = vpop.f32.mrb[0].mxu0
          %6554 = vmatprep.mubr.f32.mxu0 0.0
          %v6555 = vand.u32 %v5485, 4294901760
          %v6556 = vsub.f32 %v5485, %v6555
          %6557 = vmatmul.mubr.f32.gmra.mrb[0].mxu0 %v6556
          %v6558 = vpop.f32.mrb[0].mxu0
          %v6559 = vadd.f32 %v6239, %v6558
          %v6560 = vpop.f32.mrb[0].mxu0
          %6561 = vmatprep.mubr.f32.mxu0 0.0
          %v6562 = vand.u32 %v5486, 4294901760
          %v6563 = vsub.f32 %v5486, %v6562
          %6564 = vmatmul.mubr.f32.gmra.mrb[0].mxu0 %v6563
          %v6565 = vpop.f32.mrb[0].mxu0
          %v6566 = vadd.f32 %v6245, %v6565
          %v6567 = vpop.f32.mrb[0].mxu0
          %6568 = vdwg.mxu0
          %6569 = vmatprep.subr.mxu0 0.0
          %v6570 = vand.u32 %v5487, 4294901760
          %6571 = vmatpush1.msra.mxu0 %v6570
          %6572 = vmatprep.subr.mxu0 0.0
          %v6573 = vand.u32 %v5488, 4294901760
          %6574 = vmatpush1.msra.mxu0 %v6573
          %6575 = vmatprep.subr.mxu0 0.0
          %v6576 = vand.u32 %v5489, 4294901760
          %6577 = vmatpush1.msra.mxu0 %v6576
          %6578 = vmatprep.subr.mxu0 0.0
          %v6579 = vand.u32 %v5490, 4294901760
          %6580 = vmatpush1.msra.mxu0 %v6579
          %6581 = vmatprep.subr.mxu0 0.0
          %v6582 = vand.u32 %v5491, 4294901760
          %6583 = vmatpush1.msra.mxu0 %v6582
          %6584 = vmatprep.subr.mxu0 0.0
          %v6585 = vand.u32 %v5492, 4294901760
          %6586 = vmatpush1.msra.mxu0 %v6585
          %6587 = vmatprep.subr.mxu0 0.0
          %v6588 = vand.u32 %v5493, 4294901760
          %6589 = vmatpush1.msra.mxu0 %v6588
          %6590 = vmatprep.subr.mxu0 0.0
          %v6591 = vand.u32 %v5494, 4294901760
          %6592 = vmatpush1.msra.mxu0 %v6591
          %6593 = vmatprep.subr.mxu0 0.0
          %v6594 = vand.u32 %v5495, 4294901760
          %6595 = vmatpush1.msra.mxu0 %v6594
          %6596 = vmatprep.subr.mxu0 0.0
          %v6597 = vand.u32 %v5496, 4294901760
          %6598 = vmatpush1.msra.mxu0 %v6597
          %6599 = vmatprep.subr.mxu0 0.0
          %v6600 = vand.u32 %v5497, 4294901760
          %6601 = vmatpush1.msra.mxu0 %v6600
          %6602 = vmatprep.subr.mxu0 0.0
          %v6603 = vand.u32 %v5498, 4294901760
          %6604 = vmatpush1.msra.mxu0 %v6603
          %6605 = vmatprep.subr.mxu0 0.0
          %v6606 = vand.u32 %v5499, 4294901760
          %6607 = vmatpush1.msra.mxu0 %v6606
          %6608 = vmatprep.subr.mxu0 0.0
          %v6609 = vand.u32 %v5500, 4294901760
          %6610 = vmatpush1.msra.mxu0 %v6609
          %6611 = vmatprep.subr.mxu0 0.0
          %v6612 = vand.u32 %v5501, 4294901760
          %6613 = vmatpush1.msra.mxu0 %v6612
          %6614 = vmatprep.subr.mxu0 0.0
          %v6615 = vand.u32 %v5502, 4294901760
          %6616 = vmatpush1.msra.mxu0 %v6615
          %6617 = vmatprep.subr.mxu0 0.0
          %6618 = vmatpush1.msra.mxu0 0.0
          %6619 = vmatprep.subr.mxu0 0.0
          %6620 = vmatpush1.msra.mxu0 0.0
          %6621 = vmatprep.subr.mxu0 0.0
          %6622 = vmatpush1.msra.mxu0 0.0
          %6623 = vmatprep.subr.mxu0 0.0
          %6624 = vmatpush1.msra.mxu0 0.0
          %6625 = vmatprep.subr.mxu0 0.0
          %6626 = vmatpush1.msra.mxu0 0.0
          %6627 = vmatprep.subr.mxu0 0.0
          %6628 = vmatpush1.msra.mxu0 0.0
          %6629 = vmatprep.subr.mxu0 0.0
          %6630 = vmatpush1.msra.mxu0 0.0
          %6631 = vmatprep.subr.mxu0 0.0
          %6632 = vmatpush1.msra.mxu0 0.0
          %6633 = vmatprep.subr.mxu0 0.0
          %6634 = vmatpush1.msra.mxu0 0.0
          %6635 = vmatprep.subr.mxu0 0.0
          %6636 = vmatpush1.msra.mxu0 0.0
          %6637 = vmatprep.subr.mxu0 0.0
          %6638 = vmatpush1.msra.mxu0 0.0
          %6639 = vmatprep.subr.mxu0 0.0
          %6640 = vmatpush1.msra.mxu0 0.0
          %6641 = vmatprep.subr.mxu0 0.0
          %6642 = vmatpush1.msra.mxu0 0.0
          %6643 = vmatprep.subr.mxu0 0.0
          %6644 = vmatpush1.msra.mxu0 0.0
          %6645 = vmatprep.subr.mxu0 0.0
          %6646 = vmatpush1.msra.mxu0 0.0
          %6647 = vmatprep.subr.mxu0 0.0
          %6648 = vmatpush1.msra.mxu0 0.0
          %6649 = vmatprep.mubr.f32.mxu0 0.0
          %v6650 = vand.u32 %v5455, 4294901760
          %v6651 = vsub.f32 %v5455, %v6650
          %v6652 = vand.u32 %v6651, 4294901760
          %6653 = vmatmul.mubr.f32.gmra.mrb[0].mxu0 %v6652
          %v6654 = vpop.f32.mrb[0].mxu0
          %v6655 = vadd.f32 %v6349, %v6654
          %v6656 = vpop.f32.mrb[0].mxu0
          %6657 = vmatprep.mubr.f32.mxu0 0.0
          %v6658 = vand.u32 %v5456, 4294901760
          %v6659 = vsub.f32 %v5456, %v6658
          %v6660 = vand.u32 %v6659, 4294901760
          %6661 = vmatmul.mubr.f32.gmra.mrb[0].mxu0 %v6660
          %v6662 = vpop.f32.mrb[0].mxu0
          %v6663 = vadd.f32 %v6356, %v6662
          %v6664 = vpop.f32.mrb[0].mxu0
          %6665 = vmatprep.mubr.f32.mxu0 0.0
          %v6666 = vand.u32 %v5457, 4294901760
          %v6667 = vsub.f32 %v5457, %v6666
          %v6668 = vand.u32 %v6667, 4294901760
          %6669 = vmatmul.mubr.f32.gmra.mrb[0].mxu0 %v6668
          %v6670 = vpop.f32.mrb[0].mxu0
          %v6671 = vadd.f32 %v6363, %v6670
          %v6672 = vpop.f32.mrb[0].mxu0
          %6673 = vmatprep.mubr.f32.mxu0 0.0
          %v6674 = vand.u32 %v5458, 4294901760
          %v6675 = vsub.f32 %v5458, %v6674
          %v6676 = vand.u32 %v6675, 4294901760
          %6677 = vmatmul.mubr.f32.gmra.mrb[0].mxu0 %v6676
          %v6678 = vpop.f32.mrb[0].mxu0
          %v6679 = vadd.f32 %v6370, %v6678
          %v6680 = vpop.f32.mrb[0].mxu0
          %6681 = vmatprep.mubr.f32.mxu0 0.0
          %v6682 = vand.u32 %v5459, 4294901760
          %v6683 = vsub.f32 %v5459, %v6682
          %v6684 = vand.u32 %v6683, 4294901760
          %6685 = vmatmul.mubr.f32.gmra.mrb[0].mxu0 %v6684
          %v6686 = vpop.f32.mrb[0].mxu0
          %v6687 = vadd.f32 %v6377, %v6686
          %v6688 = vpop.f32.mrb[0].mxu0
          %6689 = vmatprep.mubr.f32.mxu0 0.0
          %v6690 = vand.u32 %v5460, 4294901760
          %v6691 = vsub.f32 %v5460, %v6690
          %v6692 = vand.u32 %v6691, 4294901760
          %6693 = vmatmul.mubr.f32.gmra.mrb[0].mxu0 %v6692
          %v6694 = vpop.f32.mrb[0].mxu0
          %v6695 = vadd.f32 %v6384, %v6694
          %v6696 = vpop.f32.mrb[0].mxu0
          %6697 = vmatprep.mubr.f32.mxu0 0.0
          %v6698 = vand.u32 %v5461, 4294901760
          %v6699 = vsub.f32 %v5461, %v6698
          %v6700 = vand.u32 %v6699, 4294901760
          %6701 = vmatmul.mubr.f32.gmra.mrb[0].mxu0 %v6700
          %v6702 = vpop.f32.mrb[0].mxu0
          %v6703 = vadd.f32 %v6391, %v6702
          %v6704 = vpop.f32.mrb[0].mxu0
          %6705 = vmatprep.mubr.f32.mxu0 0.0
          %v6706 = vand.u32 %v5462, 4294901760
          %v6707 = vsub.f32 %v5462, %v6706
          %v6708 = vand.u32 %v6707, 4294901760
          %6709 = vmatmul.mubr.f32.gmra.mrb[0].mxu0 %v6708
          %v6710 = vpop.f32.mrb[0].mxu0
          %v6711 = vadd.f32 %v6398, %v6710
          %v6712 = vpop.f32.mrb[0].mxu0
          %6713 = vmatprep.mubr.f32.mxu0 0.0
          %v6714 = vand.u32 %v5463, 4294901760
          %v6715 = vsub.f32 %v5463, %v6714
          %v6716 = vand.u32 %v6715, 4294901760
          %6717 = vmatmul.mubr.f32.gmra.mrb[0].mxu0 %v6716
          %v6718 = vpop.f32.mrb[0].mxu0
          %v6719 = vadd.f32 %v6405, %v6718
          %v6720 = vpop.f32.mrb[0].mxu0
          %6721 = vmatprep.mubr.f32.mxu0 0.0
          %v6722 = vand.u32 %v5464, 4294901760
          %v6723 = vsub.f32 %v5464, %v6722
          %v6724 = vand.u32 %v6723, 4294901760
          %6725 = vmatmul.mubr.f32.gmra.mrb[0].mxu0 %v6724
          %v6726 = vpop.f32.mrb[0].mxu0
          %v6727 = vadd.f32 %v6412, %v6726
          %v6728 = vpop.f32.mrb[0].mxu0
          %6729 = vmatprep.mubr.f32.mxu0 0.0
          %v6730 = vand.u32 %v5465, 4294901760
          %v6731 = vsub.f32 %v5465, %v6730
          %v6732 = vand.u32 %v6731, 4294901760
          %6733 = vmatmul.mubr.f32.gmra.mrb[0].mxu0 %v6732
          %v6734 = vpop.f32.mrb[0].mxu0
          %v6735 = vadd.f32 %v6419, %v6734
          %v6736 = vpop.f32.mrb[0].mxu0
          %6737 = vmatprep.mubr.f32.mxu0 0.0
          %v6738 = vand.u32 %v5466, 4294901760
          %v6739 = vsub.f32 %v5466, %v6738
          %v6740 = vand.u32 %v6739, 4294901760
          %6741 = vmatmul.mubr.f32.gmra.mrb[0].mxu0 %v6740
          %v6742 = vpop.f32.mrb[0].mxu0
          %v6743 = vadd.f32 %v6426, %v6742
          %v6744 = vpop.f32.mrb[0].mxu0
          %6745 = vmatprep.mubr.f32.mxu0 0.0
          %v6746 = vand.u32 %v5467, 4294901760
          %v6747 = vsub.f32 %v5467, %v6746
          %v6748 = vand.u32 %v6747, 4294901760
          %6749 = vmatmul.mubr.f32.gmra.mrb[0].mxu0 %v6748
          %v6750 = vpop.f32.mrb[0].mxu0
          %v6751 = vadd.f32 %v6433, %v6750
          %v6752 = vpop.f32.mrb[0].mxu0
          %6753 = vmatprep.mubr.f32.mxu0 0.0
          %v6754 = vand.u32 %v5468, 4294901760
          %v6755 = vsub.f32 %v5468, %v6754
          %v6756 = vand.u32 %v6755, 4294901760
          %6757 = vmatmul.mubr.f32.gmra.mrb[0].mxu0 %v6756
          %v6758 = vpop.f32.mrb[0].mxu0
          %v6759 = vadd.f32 %v6440, %v6758
          %v6760 = vpop.f32.mrb[0].mxu0
          %6761 = vmatprep.mubr.f32.mxu0 0.0
          %v6762 = vand.u32 %v5469, 4294901760
          %v6763 = vsub.f32 %v5469, %v6762
          %v6764 = vand.u32 %v6763, 4294901760
          %6765 = vmatmul.mubr.f32.gmra.mrb[0].mxu0 %v6764
          %v6766 = vpop.f32.mrb[0].mxu0
          %v6767 = vadd.f32 %v6447, %v6766
          %v6768 = vpop.f32.mrb[0].mxu0
          %6769 = vmatprep.mubr.f32.mxu0 0.0
          %v6770 = vand.u32 %v5470, 4294901760
          %v6771 = vsub.f32 %v5470, %v6770
          %v6772 = vand.u32 %v6771, 4294901760
          %6773 = vmatmul.mubr.f32.gmra.mrb[0].mxu0 %v6772
          %v6774 = vpop.f32.mrb[0].mxu0
          %v6775 = vadd.f32 %v6454, %v6774
          %v6776 = vpop.f32.mrb[0].mxu0
          %6777 = vmatprep.mubr.f32.mxu0 0.0
          %v6778 = vand.u32 %v5471, 4294901760
          %v6779 = vsub.f32 %v5471, %v6778
          %v6780 = vand.u32 %v6779, 4294901760
          %6781 = vmatmul.mubr.f32.gmra.mrb[0].mxu0 %v6780
          %v6782 = vpop.f32.mrb[0].mxu0
          %v6783 = vadd.f32 %v6461, %v6782
          %v6784 = vpop.f32.mrb[0].mxu0
          %6785 = vmatprep.mubr.f32.mxu0 0.0
          %v6786 = vand.u32 %v5472, 4294901760
          %v6787 = vsub.f32 %v5472, %v6786
          %v6788 = vand.u32 %v6787, 4294901760
          %6789 = vmatmul.mubr.f32.gmra.mrb[0].mxu0 %v6788
          %v6790 = vpop.f32.mrb[0].mxu0
          %v6791 = vadd.f32 %v6468, %v6790
          %v6792 = vpop.f32.mrb[0].mxu0
          %6793 = vmatprep.mubr.f32.mxu0 0.0
          %v6794 = vand.u32 %v5473, 4294901760
          %v6795 = vsub.f32 %v5473, %v6794
          %v6796 = vand.u32 %v6795, 4294901760
          %6797 = vmatmul.mubr.f32.gmra.mrb[0].mxu0 %v6796
          %v6798 = vpop.f32.mrb[0].mxu0
          %v6799 = vadd.f32 %v6475, %v6798
          %v6800 = vpop.f32.mrb[0].mxu0
          %6801 = vmatprep.mubr.f32.mxu0 0.0
          %v6802 = vand.u32 %v5474, 4294901760
          %v6803 = vsub.f32 %v5474, %v6802
          %v6804 = vand.u32 %v6803, 4294901760
          %6805 = vmatmul.mubr.f32.gmra.mrb[0].mxu0 %v6804
          %v6806 = vpop.f32.mrb[0].mxu0
          %v6807 = vadd.f32 %v6482, %v6806
          %v6808 = vpop.f32.mrb[0].mxu0
          %6809 = vmatprep.mubr.f32.mxu0 0.0
          %v6810 = vand.u32 %v5475, 4294901760
          %v6811 = vsub.f32 %v5475, %v6810
          %v6812 = vand.u32 %v6811, 4294901760
          %6813 = vmatmul.mubr.f32.gmra.mrb[0].mxu0 %v6812
          %v6814 = vpop.f32.mrb[0].mxu0
          %v6815 = vadd.f32 %v6489, %v6814
          %v6816 = vpop.f32.mrb[0].mxu0
          %6817 = vmatprep.mubr.f32.mxu0 0.0
          %v6818 = vand.u32 %v5476, 4294901760
          %v6819 = vsub.f32 %v5476, %v6818
          %v6820 = vand.u32 %v6819, 4294901760
          %6821 = vmatmul.mubr.f32.gmra.mrb[0].mxu0 %v6820
          %v6822 = vpop.f32.mrb[0].mxu0
          %v6823 = vadd.f32 %v6496, %v6822
          %v6824 = vpop.f32.mrb[0].mxu0
          %6825 = vmatprep.mubr.f32.mxu0 0.0
          %v6826 = vand.u32 %v5477, 4294901760
          %v6827 = vsub.f32 %v5477, %v6826
          %v6828 = vand.u32 %v6827, 4294901760
          %6829 = vmatmul.mubr.f32.gmra.mrb[0].mxu0 %v6828
          %v6830 = vpop.f32.mrb[0].mxu0
          %v6831 = vadd.f32 %v6503, %v6830
          %v6832 = vpop.f32.mrb[0].mxu0
          %6833 = vmatprep.mubr.f32.mxu0 0.0
          %v6834 = vand.u32 %v5478, 4294901760
          %v6835 = vsub.f32 %v5478, %v6834
          %v6836 = vand.u32 %v6835, 4294901760
          %6837 = vmatmul.mubr.f32.gmra.mrb[0].mxu0 %v6836
          %v6838 = vpop.f32.mrb[0].mxu0
          %v6839 = vadd.f32 %v6510, %v6838
          %v6840 = vpop.f32.mrb[0].mxu0
          %6841 = vmatprep.mubr.f32.mxu0 0.0
          %v6842 = vand.u32 %v5479, 4294901760
          %v6843 = vsub.f32 %v5479, %v6842
          %v6844 = vand.u32 %v6843, 4294901760
          %6845 = vmatmul.mubr.f32.gmra.mrb[0].mxu0 %v6844
          %v6846 = vpop.f32.mrb[0].mxu0
          %v6847 = vadd.f32 %v6517, %v6846
          %v6848 = vpop.f32.mrb[0].mxu0
          %6849 = vmatprep.mubr.f32.mxu0 0.0
          %v6850 = vand.u32 %v5480, 4294901760
          %v6851 = vsub.f32 %v5480, %v6850
          %v6852 = vand.u32 %v6851, 4294901760
          %6853 = vmatmul.mubr.f32.gmra.mrb[0].mxu0 %v6852
          %v6854 = vpop.f32.mrb[0].mxu0
          %v6855 = vadd.f32 %v6524, %v6854
          %v6856 = vpop.f32.mrb[0].mxu0
          %6857 = vmatprep.mubr.f32.mxu0 0.0
          %v6858 = vand.u32 %v5481, 4294901760
          %v6859 = vsub.f32 %v5481, %v6858
          %v6860 = vand.u32 %v6859, 4294901760
          %6861 = vmatmul.mubr.f32.gmra.mrb[0].mxu0 %v6860
          %v6862 = vpop.f32.mrb[0].mxu0
          %v6863 = vadd.f32 %v6531, %v6862
          %v6864 = vpop.f32.mrb[0].mxu0
          %6865 = vmatprep.mubr.f32.mxu0 0.0
          %v6866 = vand.u32 %v5482, 4294901760
          %v6867 = vsub.f32 %v5482, %v6866
          %v6868 = vand.u32 %v6867, 4294901760
          %6869 = vmatmul.mubr.f32.gmra.mrb[0].mxu0 %v6868
          %v6870 = vpop.f32.mrb[0].mxu0
          %v6871 = vadd.f32 %v6538, %v6870
          %v6872 = vpop.f32.mrb[0].mxu0
          %6873 = vmatprep.mubr.f32.mxu0 0.0
          %v6874 = vand.u32 %v5483, 4294901760
          %v6875 = vsub.f32 %v5483, %v6874
          %v6876 = vand.u32 %v6875, 4294901760
          %6877 = vmatmul.mubr.f32.gmra.mrb[0].mxu0 %v6876
          %v6878 = vpop.f32.mrb[0].mxu0
          %v6879 = vadd.f32 %v6545, %v6878
          %v6880 = vpop.f32.mrb[0].mxu0
          %6881 = vmatprep.mubr.f32.mxu0 0.0
          %v6882 = vand.u32 %v5484, 4294901760
          %v6883 = vsub.f32 %v5484, %v6882
          %v6884 = vand.u32 %v6883, 4294901760
          %6885 = vmatmul.mubr.f32.gmra.mrb[0].mxu0 %v6884
          %v6886 = vpop.f32.mrb[0].mxu0
          %v6887 = vadd.f32 %v6552, %v6886
          %v6888 = vpop.f32.mrb[0].mxu0
          %6889 = vmatprep.mubr.f32.mxu0 0.0
          %v6890 = vand.u32 %v5485, 4294901760
          %v6891 = vsub.f32 %v5485, %v6890
          %v6892 = vand.u32 %v6891, 4294901760
          %6893 = vmatmul.mubr.f32.gmra.mrb[0].mxu0 %v6892
          %v6894 = vpop.f32.mrb[0].mxu0
          %v6895 = vadd.f32 %v6559, %v6894
          %v6896 = vpop.f32.mrb[0].mxu0
          %6897 = vmatprep.mubr.f32.mxu0 0.0
          %v6898 = vand.u32 %v5486, 4294901760
          %v6899 = vsub.f32 %v5486, %v6898
          %v6900 = vand.u32 %v6899, 4294901760
          %6901 = vmatmul.mubr.f32.gmra.mrb[0].mxu0 %v6900
          %v6902 = vpop.f32.mrb[0].mxu0
          %v6903 = vadd.f32 %v6566, %v6902
          %v6904 = vpop.f32.mrb[0].mxu0
          %6905 = vdwg.mxu0
          %6906 = vmatprep.subr.mxu0 0.0
          %v6907 = vand.u32 %v5487, 4294901760
          %v6908 = vsub.f32 %v5487, %v6907
          %v6909 = vand.u32 %v6908, 4294901760
          %6910 = vmatpush1.msra.mxu0 %v6909
          %6911 = vmatprep.subr.mxu0 0.0
          %v6912 = vand.u32 %v5488, 4294901760
          %v6913 = vsub.f32 %v5488, %v6912
          %v6914 = vand.u32 %v6913, 4294901760
          %6915 = vmatpush1.msra.mxu0 %v6914
          %6916 = vmatprep.subr.mxu0 0.0
          %v6917 = vand.u32 %v5489, 4294901760
          %v6918 = vsub.f32 %v5489, %v6917
          %v6919 = vand.u32 %v6918, 4294901760
          %6920 = vmatpush1.msra.mxu0 %v6919
          %6921 = vmatprep.subr.mxu0 0.0
          %v6922 = vand.u32 %v5490, 4294901760
          %v6923 = vsub.f32 %v5490, %v6922
          %v6924 = vand.u32 %v6923, 4294901760
          %6925 = vmatpush1.msra.mxu0 %v6924
          %6926 = vmatprep.subr.mxu0 0.0
          %v6927 = vand.u32 %v5491, 4294901760
          %v6928 = vsub.f32 %v5491, %v6927
          %v6929 = vand.u32 %v6928, 4294901760
          %6930 = vmatpush1.msra.mxu0 %v6929
          %6931 = vmatprep.subr.mxu0 0.0
          %v6932 = vand.u32 %v5492, 4294901760
          %v6933 = vsub.f32 %v5492, %v6932
          %v6934 = vand.u32 %v6933, 4294901760
          %6935 = vmatpush1.msra.mxu0 %v6934
          %6936 = vmatprep.subr.mxu0 0.0
          %v6937 = vand.u32 %v5493, 4294901760
          %v6938 = vsub.f32 %v5493, %v6937
          %v6939 = vand.u32 %v6938, 4294901760
          %6940 = vmatpush1.msra.mxu0 %v6939
          %6941 = vmatprep.subr.mxu0 0.0
          %v6942 = vand.u32 %v5494, 4294901760
          %v6943 = vsub.f32 %v5494, %v6942
          %v6944 = vand.u32 %v6943, 4294901760
          %6945 = vmatpush1.msra.mxu0 %v6944
          %6946 = vmatprep.subr.mxu0 0.0
          %v6947 = vand.u32 %v5495, 4294901760
          %v6948 = vsub.f32 %v5495, %v6947
          %v6949 = vand.u32 %v6948, 4294901760
          %6950 = vmatpush1.msra.mxu0 %v6949
          %6951 = vmatprep.subr.mxu0 0.0
          %v6952 = vand.u32 %v5496, 4294901760
          %v6953 = vsub.f32 %v5496, %v6952
          %v6954 = vand.u32 %v6953, 4294901760
          %6955 = vmatpush1.msra.mxu0 %v6954
          %6956 = vmatprep.subr.mxu0 0.0
          %v6957 = vand.u32 %v5497, 4294901760
          %v6958 = vsub.f32 %v5497, %v6957
          %v6959 = vand.u32 %v6958, 4294901760
          %6960 = vmatpush1.msra.mxu0 %v6959
          %6961 = vmatprep.subr.mxu0 0.0
          %v6962 = vand.u32 %v5498, 4294901760
          %v6963 = vsub.f32 %v5498, %v6962
          %v6964 = vand.u32 %v6963, 4294901760
          %6965 = vmatpush1.msra.mxu0 %v6964
          %6966 = vmatprep.subr.mxu0 0.0
          %v6967 = vand.u32 %v5499, 4294901760
          %v6968 = vsub.f32 %v5499, %v6967
          %v6969 = vand.u32 %v6968, 4294901760
          %6970 = vmatpush1.msra.mxu0 %v6969
          %6971 = vmatprep.subr.mxu0 0.0
          %v6972 = vand.u32 %v5500, 4294901760
          %v6973 = vsub.f32 %v5500, %v6972
          %v6974 = vand.u32 %v6973, 4294901760
          %6975 = vmatpush1.msra.mxu0 %v6974
          %6976 = vmatprep.subr.mxu0 0.0
          %v6977 = vand.u32 %v5501, 4294901760
          %v6978 = vsub.f32 %v5501, %v6977
          %v6979 = vand.u32 %v6978, 4294901760
          %6980 = vmatpush1.msra.mxu0 %v6979
          %6981 = vmatprep.subr.mxu0 0.0
          %v6982 = vand.u32 %v5502, 4294901760
          %v6983 = vsub.f32 %v5502, %v6982
          %v6984 = vand.u32 %v6983, 4294901760
          %6985 = vmatpush1.msra.mxu0 %v6984
          %6986 = vmatprep.subr.mxu0 0.0
          %6987 = vmatpush1.msra.mxu0 0.0
          %6988 = vmatprep.subr.mxu0 0.0
          %6989 = vmatpush1.msra.mxu0 0.0
          %6990 = vmatprep.subr.mxu0 0.0
          %6991 = vmatpush1.msra.mxu0 0.0
          %6992 = vmatprep.subr.mxu0 0.0
          %6993 = vmatpush1.msra.mxu0 0.0
          %6994 = vmatprep.subr.mxu0 0.0
          %6995 = vmatpush1.msra.mxu0 0.0
          %6996 = vmatprep.subr.mxu0 0.0
          %6997 = vmatpush1.msra.mxu0 0.0
          %6998 = vmatprep.subr.mxu0 0.0
          %6999 = vmatpush1.msra.mxu0 0.0
          %7000 = vmatprep.subr.mxu0 0.0
          %7001 = vmatpush1.msra.mxu0 0.0
          %7002 = vmatprep.subr.mxu0 0.0
          %7003 = vmatpush1.msra.mxu0 0.0
          %7004 = vmatprep.subr.mxu0 0.0
          %7005 = vmatpush1.msra.mxu0 0.0
          %7006 = vmatprep.subr.mxu0 0.0
          %7007 = vmatpush1.msra.mxu0 0.0
          %7008 = vmatprep.subr.mxu0 0.0
          %7009 = vmatpush1.msra.mxu0 0.0
          %7010 = vmatprep.subr.mxu0 0.0
          %7011 = vmatpush1.msra.mxu0 0.0
          %7012 = vmatprep.subr.mxu0 0.0
          %7013 = vmatpush1.msra.mxu0 0.0
          %7014 = vmatprep.subr.mxu0 0.0
          %7015 = vmatpush1.msra.mxu0 0.0
          %7016 = vmatprep.subr.mxu0 0.0
          %7017 = vmatpush1.msra.mxu0 0.0
          %7018 = vmatprep.mubr.f32.mxu0 0.0
          %v7019 = vand.u32 %v5455, 4294901760
          %7020 = vmatmul.mubr.f32.gmra.mrb[0].mxu0 %v7019
          %v7021 = vpop.f32.mrb[0].mxu0
          %v7022 = vadd.f32 %v6655, %v7021
          %v7023 = vpop.f32.mrb[0].mxu0
          %7024 = vmatprep.mubr.f32.mxu0 0.0
          %v7025 = vand.u32 %v5456, 4294901760
          %7026 = vmatmul.mubr.f32.gmra.mrb[0].mxu0 %v7025
          %v7027 = vpop.f32.mrb[0].mxu0
          %v7028 = vadd.f32 %v6663, %v7027
          %v7029 = vpop.f32.mrb[0].mxu0
          %7030 = vmatprep.mubr.f32.mxu0 0.0
          %v7031 = vand.u32 %v5457, 4294901760
          %7032 = vmatmul.mubr.f32.gmra.mrb[0].mxu0 %v7031
          %v7033 = vpop.f32.mrb[0].mxu0
          %v7034 = vadd.f32 %v6671, %v7033
          %v7035 = vpop.f32.mrb[0].mxu0
          %7036 = vmatprep.mubr.f32.mxu0 0.0
          %v7037 = vand.u32 %v5458, 4294901760
          %7038 = vmatmul.mubr.f32.gmra.mrb[0].mxu0 %v7037
          %v7039 = vpop.f32.mrb[0].mxu0
          %v7040 = vadd.f32 %v6679, %v7039
          %v7041 = vpop.f32.mrb[0].mxu0
          %7042 = vmatprep.mubr.f32.mxu0 0.0
          %v7043 = vand.u32 %v5459, 4294901760
          %7044 = vmatmul.mubr.f32.gmra.mrb[0].mxu0 %v7043
          %v7045 = vpop.f32.mrb[0].mxu0
          %v7046 = vadd.f32 %v6687, %v7045
          %v7047 = vpop.f32.mrb[0].mxu0
          %7048 = vmatprep.mubr.f32.mxu0 0.0
          %v7049 = vand.u32 %v5460, 4294901760
          %7050 = vmatmul.mubr.f32.gmra.mrb[0].mxu0 %v7049
          %v7051 = vpop.f32.mrb[0].mxu0
          %v7052 = vadd.f32 %v6695, %v7051
          %v7053 = vpop.f32.mrb[0].mxu0
          %7054 = vmatprep.mubr.f32.mxu0 0.0
          %v7055 = vand.u32 %v5461, 4294901760
          %7056 = vmatmul.mubr.f32.gmra.mrb[0].mxu0 %v7055
          %v7057 = vpop.f32.mrb[0].mxu0
          %v7058 = vadd.f32 %v6703, %v7057
          %v7059 = vpop.f32.mrb[0].mxu0
          %7060 = vmatprep.mubr.f32.mxu0 0.0
          %v7061 = vand.u32 %v5462, 4294901760
          %7062 = vmatmul.mubr.f32.gmra.mrb[0].mxu0 %v7061
          %v7063 = vpop.f32.mrb[0].mxu0
          %v7064 = vadd.f32 %v6711, %v7063
          %v7065 = vpop.f32.mrb[0].mxu0
          %7066 = vmatprep.mubr.f32.mxu0 0.0
          %v7067 = vand.u32 %v5463, 4294901760
          %7068 = vmatmul.mubr.f32.gmra.mrb[0].mxu0 %v7067
          %v7069 = vpop.f32.mrb[0].mxu0
          %v7070 = vadd.f32 %v6719, %v7069
          %v7071 = vpop.f32.mrb[0].mxu0
          %7072 = vmatprep.mubr.f32.mxu0 0.0
          %v7073 = vand.u32 %v5464, 4294901760
          %7074 = vmatmul.mubr.f32.gmra.mrb[0].mxu0 %v7073
          %v7075 = vpop.f32.mrb[0].mxu0
          %v7076 = vadd.f32 %v6727, %v7075
          %v7077 = vpop.f32.mrb[0].mxu0
          %7078 = vmatprep.mubr.f32.mxu0 0.0
          %v7079 = vand.u32 %v5465, 4294901760
          %7080 = vmatmul.mubr.f32.gmra.mrb[0].mxu0 %v7079
          %v7081 = vpop.f32.mrb[0].mxu0
          %v7082 = vadd.f32 %v6735, %v7081
          %v7083 = vpop.f32.mrb[0].mxu0
          %7084 = vmatprep.mubr.f32.mxu0 0.0
          %v7085 = vand.u32 %v5466, 4294901760
          %7086 = vmatmul.mubr.f32.gmra.mrb[0].mxu0 %v7085
          %v7087 = vpop.f32.mrb[0].mxu0
          %v7088 = vadd.f32 %v6743, %v7087
          %v7089 = vpop.f32.mrb[0].mxu0
          %7090 = vmatprep.mubr.f32.mxu0 0.0
          %v7091 = vand.u32 %v5467, 4294901760
          %7092 = vmatmul.mubr.f32.gmra.mrb[0].mxu0 %v7091
          %v7093 = vpop.f32.mrb[0].mxu0
          %v7094 = vadd.f32 %v6751, %v7093
          %v7095 = vpop.f32.mrb[0].mxu0
          %7096 = vmatprep.mubr.f32.mxu0 0.0
          %v7097 = vand.u32 %v5468, 4294901760
          %7098 = vmatmul.mubr.f32.gmra.mrb[0].mxu0 %v7097
          %v7099 = vpop.f32.mrb[0].mxu0
          %v7100 = vadd.f32 %v6759, %v7099
          %v7101 = vpop.f32.mrb[0].mxu0
          %7102 = vmatprep.mubr.f32.mxu0 0.0
          %v7103 = vand.u32 %v5469, 4294901760
          %7104 = vmatmul.mubr.f32.gmra.mrb[0].mxu0 %v7103
          %v7105 = vpop.f32.mrb[0].mxu0
          %v7106 = vadd.f32 %v6767, %v7105
          %v7107 = vpop.f32.mrb[0].mxu0
          %7108 = vmatprep.mubr.f32.mxu0 0.0
          %v7109 = vand.u32 %v5470, 4294901760
          %7110 = vmatmul.mubr.f32.gmra.mrb[0].mxu0 %v7109
          %v7111 = vpop.f32.mrb[0].mxu0
          %v7112 = vadd.f32 %v6775, %v7111
          %v7113 = vpop.f32.mrb[0].mxu0
          %7114 = vmatprep.mubr.f32.mxu0 0.0
          %v7115 = vand.u32 %v5471, 4294901760
          %7116 = vmatmul.mubr.f32.gmra.mrb[0].mxu0 %v7115
          %v7117 = vpop.f32.mrb[0].mxu0
          %v7118 = vadd.f32 %v6783, %v7117
          %v7119 = vpop.f32.mrb[0].mxu0
          %7120 = vmatprep.mubr.f32.mxu0 0.0
          %v7121 = vand.u32 %v5472, 4294901760
          %7122 = vmatmul.mubr.f32.gmra.mrb[0].mxu0 %v7121
          %v7123 = vpop.f32.mrb[0].mxu0
          %v7124 = vadd.f32 %v6791, %v7123
          %v7125 = vpop.f32.mrb[0].mxu0
          %7126 = vmatprep.mubr.f32.mxu0 0.0
          %v7127 = vand.u32 %v5473, 4294901760
          %7128 = vmatmul.mubr.f32.gmra.mrb[0].mxu0 %v7127
          %v7129 = vpop.f32.mrb[0].mxu0
          %v7130 = vadd.f32 %v6799, %v7129
          %v7131 = vpop.f32.mrb[0].mxu0
          %7132 = vmatprep.mubr.f32.mxu0 0.0
          %v7133 = vand.u32 %v5474, 4294901760
          %7134 = vmatmul.mubr.f32.gmra.mrb[0].mxu0 %v7133
          %v7135 = vpop.f32.mrb[0].mxu0
          %v7136 = vadd.f32 %v6807, %v7135
          %v7137 = vpop.f32.mrb[0].mxu0
          %7138 = vmatprep.mubr.f32.mxu0 0.0
          %v7139 = vand.u32 %v5475, 4294901760
          %7140 = vmatmul.mubr.f32.gmra.mrb[0].mxu0 %v7139
          %v7141 = vpop.f32.mrb[0].mxu0
          %v7142 = vadd.f32 %v6815, %v7141
          %v7143 = vpop.f32.mrb[0].mxu0
          %7144 = vmatprep.mubr.f32.mxu0 0.0
          %v7145 = vand.u32 %v5476, 4294901760
          %7146 = vmatmul.mubr.f32.gmra.mrb[0].mxu0 %v7145
          %v7147 = vpop.f32.mrb[0].mxu0
          %v7148 = vadd.f32 %v6823, %v7147
          %v7149 = vpop.f32.mrb[0].mxu0
          %7150 = vmatprep.mubr.f32.mxu0 0.0
          %v7151 = vand.u32 %v5477, 4294901760
          %7152 = vmatmul.mubr.f32.gmra.mrb[0].mxu0 %v7151
          %v7153 = vpop.f32.mrb[0].mxu0
          %v7154 = vadd.f32 %v6831, %v7153
          %v7155 = vpop.f32.mrb[0].mxu0
          %7156 = vmatprep.mubr.f32.mxu0 0.0
          %v7157 = vand.u32 %v5478, 4294901760
          %7158 = vmatmul.mubr.f32.gmra.mrb[0].mxu0 %v7157
          %v7159 = vpop.f32.mrb[0].mxu0
          %v7160 = vadd.f32 %v6839, %v7159
          %v7161 = vpop.f32.mrb[0].mxu0
          %7162 = vmatprep.mubr.f32.mxu0 0.0
          %v7163 = vand.u32 %v5479, 4294901760
          %7164 = vmatmul.mubr.f32.gmra.mrb[0].mxu0 %v7163
          %v7165 = vpop.f32.mrb[0].mxu0
          %v7166 = vadd.f32 %v6847, %v7165
          %v7167 = vpop.f32.mrb[0].mxu0
          %7168 = vmatprep.mubr.f32.mxu0 0.0
          %v7169 = vand.u32 %v5480, 4294901760
          %7170 = vmatmul.mubr.f32.gmra.mrb[0].mxu0 %v7169
          %v7171 = vpop.f32.mrb[0].mxu0
          %v7172 = vadd.f32 %v6855, %v7171
          %v7173 = vpop.f32.mrb[0].mxu0
          %7174 = vmatprep.mubr.f32.mxu0 0.0
          %v7175 = vand.u32 %v5481, 4294901760
          %7176 = vmatmul.mubr.f32.gmra.mrb[0].mxu0 %v7175
          %v7177 = vpop.f32.mrb[0].mxu0
          %v7178 = vadd.f32 %v6863, %v7177
          %v7179 = vpop.f32.mrb[0].mxu0
          %7180 = vmatprep.mubr.f32.mxu0 0.0
          %v7181 = vand.u32 %v5482, 4294901760
          %7182 = vmatmul.mubr.f32.gmra.mrb[0].mxu0 %v7181
          %v7183 = vpop.f32.mrb[0].mxu0
          %v7184 = vadd.f32 %v6871, %v7183
          %v7185 = vpop.f32.mrb[0].mxu0
          %7186 = vmatprep.mubr.f32.mxu0 0.0
          %v7187 = vand.u32 %v5483, 4294901760
          %7188 = vmatmul.mubr.f32.gmra.mrb[0].mxu0 %v7187
          %v7189 = vpop.f32.mrb[0].mxu0
          %v7190 = vadd.f32 %v6879, %v7189
          %v7191 = vpop.f32.mrb[0].mxu0
          %7192 = vmatprep.mubr.f32.mxu0 0.0
          %v7193 = vand.u32 %v5484, 4294901760
          %7194 = vmatmul.mubr.f32.gmra.mrb[0].mxu0 %v7193
          %v7195 = vpop.f32.mrb[0].mxu0
          %v7196 = vadd.f32 %v6887, %v7195
          %v7197 = vpop.f32.mrb[0].mxu0
          %7198 = vmatprep.mubr.f32.mxu0 0.0
          %v7199 = vand.u32 %v5485, 4294901760
          %7200 = vmatmul.mubr.f32.gmra.mrb[0].mxu0 %v7199
          %v7201 = vpop.f32.mrb[0].mxu0
          %v7202 = vadd.f32 %v6895, %v7201
          %v7203 = vpop.f32.mrb[0].mxu0
          %7204 = vmatprep.mubr.f32.mxu0 0.0
          %v7205 = vand.u32 %v5486, 4294901760
          %7206 = vmatmul.mubr.f32.gmra.mrb[0].mxu0 %v7205
          %v7207 = vpop.f32.mrb[0].mxu0
          %v7208 = vadd.f32 %v6903, %v7207
          %v7209 = vpop.f32.mrb[0].mxu0
          %7210 = vdwg.mxu0
          %7211 = vmatprep.subr.mxu0 0.0
          %v7212 = vand.u32 %v5487, 4294901760
          %7213 = vmatpush1.msra.mxu0 %v7212
          %7214 = vmatprep.subr.mxu0 0.0
          %v7215 = vand.u32 %v5488, 4294901760
          %7216 = vmatpush1.msra.mxu0 %v7215
          %7217 = vmatprep.subr.mxu0 0.0
          %v7218 = vand.u32 %v5489, 4294901760
          %7219 = vmatpush1.msra.mxu0 %v7218
          %7220 = vmatprep.subr.mxu0 0.0
          %v7221 = vand.u32 %v5490, 4294901760
          %7222 = vmatpush1.msra.mxu0 %v7221
          %7223 = vmatprep.subr.mxu0 0.0
          %v7224 = vand.u32 %v5491, 4294901760
          %7225 = vmatpush1.msra.mxu0 %v7224
          %7226 = vmatprep.subr.mxu0 0.0
          %v7227 = vand.u32 %v5492, 4294901760
          %7228 = vmatpush1.msra.mxu0 %v7227
          %7229 = vmatprep.subr.mxu0 0.0
          %v7230 = vand.u32 %v5493, 4294901760
          %7231 = vmatpush1.msra.mxu0 %v7230
          %7232 = vmatprep.subr.mxu0 0.0
          %v7233 = vand.u32 %v5494, 4294901760
          %7234 = vmatpush1.msra.mxu0 %v7233
          %7235 = vmatprep.subr.mxu0 0.0
          %v7236 = vand.u32 %v5495, 4294901760
          %7237 = vmatpush1.msra.mxu0 %v7236
          %7238 = vmatprep.subr.mxu0 0.0
          %v7239 = vand.u32 %v5496, 4294901760
          %7240 = vmatpush1.msra.mxu0 %v7239
          %7241 = vmatprep.subr.mxu0 0.0
          %v7242 = vand.u32 %v5497, 4294901760
          %7243 = vmatpush1.msra.mxu0 %v7242
          %7244 = vmatprep.subr.mxu0 0.0
          %v7245 = vand.u32 %v5498, 4294901760
          %7246 = vmatpush1.msra.mxu0 %v7245
          %7247 = vmatprep.subr.mxu0 0.0
          %v7248 = vand.u32 %v5499, 4294901760
          %7249 = vmatpush1.msra.mxu0 %v7248
          %7250 = vmatprep.subr.mxu0 0.0
          %v7251 = vand.u32 %v5500, 4294901760
          %7252 = vmatpush1.msra.mxu0 %v7251
          %7253 = vmatprep.subr.mxu0 0.0
          %v7254 = vand.u32 %v5501, 4294901760
          %7255 = vmatpush1.msra.mxu0 %v7254
          %7256 = vmatprep.subr.mxu0 0.0
          %v7257 = vand.u32 %v5502, 4294901760
          %7258 = vmatpush1.msra.mxu0 %v7257
          %7259 = vmatprep.subr.mxu0 0.0
          %7260 = vmatpush1.msra.mxu0 0.0
          %7261 = vmatprep.subr.mxu0 0.0
          %7262 = vmatpush1.msra.mxu0 0.0
          %7263 = vmatprep.subr.mxu0 0.0
          %7264 = vmatpush1.msra.mxu0 0.0
          %7265 = vmatprep.subr.mxu0 0.0
          %7266 = vmatpush1.msra.mxu0 0.0
          %7267 = vmatprep.subr.mxu0 0.0
          %7268 = vmatpush1.msra.mxu0 0.0
          %7269 = vmatprep.subr.mxu0 0.0
          %7270 = vmatpush1.msra.mxu0 0.0
          %7271 = vmatprep.subr.mxu0 0.0
          %7272 = vmatpush1.msra.mxu0 0.0
          %7273 = vmatprep.subr.mxu0 0.0
          %7274 = vmatpush1.msra.mxu0 0.0
          %7275 = vmatprep.subr.mxu0 0.0
          %7276 = vmatpush1.msra.mxu0 0.0
          %7277 = vmatprep.subr.mxu0 0.0
          %7278 = vmatpush1.msra.mxu0 0.0
          %7279 = vmatprep.subr.mxu0 0.0
          %7280 = vmatpush1.msra.mxu0 0.0
          %7281 = vmatprep.subr.mxu0 0.0
          %7282 = vmatpush1.msra.mxu0 0.0
          %7283 = vmatprep.subr.mxu0 0.0
          %7284 = vmatpush1.msra.mxu0 0.0
          %7285 = vmatprep.subr.mxu0 0.0
          %7286 = vmatpush1.msra.mxu0 0.0
          %7287 = vmatprep.subr.mxu0 0.0
          %7288 = vmatpush1.msra.mxu0 0.0
          %7289 = vmatprep.subr.mxu0 0.0
          %7290 = vmatpush1.msra.mxu0 0.0
          %7291 = vmatprep.mubr.f32.mxu0 0.0
          %v7292 = vand.u32 %v5455, 4294901760
          %7293 = vmatmul.mubr.f32.gmra.mrb[0].mxu0 %v7292
          %v7294 = vpop.f32.mrb[0].mxu0
          %v7295 = vadd.f32 %v7022, %v7294
          %v7296 = vpop.f32.mrb[0].mxu0
          %7297 = vmatprep.mubr.f32.mxu0 0.0
          %v7298 = vand.u32 %v5456, 4294901760
          %7299 = vmatmul.mubr.f32.gmra.mrb[0].mxu0 %v7298
          %v7300 = vpop.f32.mrb[0].mxu0
          %v7301 = vadd.f32 %v7028, %v7300
          %v7302 = vpop.f32.mrb[0].mxu0
          %7303 = vmatprep.mubr.f32.mxu0 0.0
          %v7304 = vand.u32 %v5457, 4294901760
          %7305 = vmatmul.mubr.f32.gmra.mrb[0].mxu0 %v7304
          %v7306 = vpop.f32.mrb[0].mxu0
          %v7307 = vadd.f32 %v7034, %v7306
          %v7308 = vpop.f32.mrb[0].mxu0
          %7309 = vmatprep.mubr.f32.mxu0 0.0
          %v7310 = vand.u32 %v5458, 4294901760
          %7311 = vmatmul.mubr.f32.gmra.mrb[0].mxu0 %v7310
          %v7312 = vpop.f32.mrb[0].mxu0
          %v7313 = vadd.f32 %v7040, %v7312
          %v7314 = vpop.f32.mrb[0].mxu0
          %7315 = vmatprep.mubr.f32.mxu0 0.0
          %v7316 = vand.u32 %v5459, 4294901760
          %7317 = vmatmul.mubr.f32.gmra.mrb[0].mxu0 %v7316
          %v7318 = vpop.f32.mrb[0].mxu0
          %v7319 = vadd.f32 %v7046, %v7318
          %v7320 = vpop.f32.mrb[0].mxu0
          %7321 = vmatprep.mubr.f32.mxu0 0.0
          %v7322 = vand.u32 %v5460, 4294901760
          %7323 = vmatmul.mubr.f32.gmra.mrb[0].mxu0 %v7322
          %v7324 = vpop.f32.mrb[0].mxu0
          %v7325 = vadd.f32 %v7052, %v7324
          %v7326 = vpop.f32.mrb[0].mxu0
          %7327 = vmatprep.mubr.f32.mxu0 0.0
          %v7328 = vand.u32 %v5461, 4294901760
          %7329 = vmatmul.mubr.f32.gmra.mrb[0].mxu0 %v7328
          %v7330 = vpop.f32.mrb[0].mxu0
          %v7331 = vadd.f32 %v7058, %v7330
          %v7332 = vpop.f32.mrb[0].mxu0
          %7333 = vmatprep.mubr.f32.mxu0 0.0
          %v7334 = vand.u32 %v5462, 4294901760
          %7335 = vmatmul.mubr.f32.gmra.mrb[0].mxu0 %v7334
          %v7336 = vpop.f32.mrb[0].mxu0
          %v7337 = vadd.f32 %v7064, %v7336
          %v7338 = vpop.f32.mrb[0].mxu0
          %7339 = vmatprep.mubr.f32.mxu0 0.0
          %v7340 = vand.u32 %v5463, 4294901760
          %7341 = vmatmul.mubr.f32.gmra.mrb[0].mxu0 %v7340
          %v7342 = vpop.f32.mrb[0].mxu0
          %v7343 = vadd.f32 %v7070, %v7342
          %v7344 = vpop.f32.mrb[0].mxu0
          %7345 = vmatprep.mubr.f32.mxu0 0.0
          %v7346 = vand.u32 %v5464, 4294901760
          %7347 = vmatmul.mubr.f32.gmra.mrb[0].mxu0 %v7346
          %v7348 = vpop.f32.mrb[0].mxu0
          %v7349 = vadd.f32 %v7076, %v7348
          %v7350 = vpop.f32.mrb[0].mxu0
          %7351 = vmatprep.mubr.f32.mxu0 0.0
          %v7352 = vand.u32 %v5465, 4294901760
          %7353 = vmatmul.mubr.f32.gmra.mrb[0].mxu0 %v7352
          %v7354 = vpop.f32.mrb[0].mxu0
          %v7355 = vadd.f32 %v7082, %v7354
          %v7356 = vpop.f32.mrb[0].mxu0
          %7357 = vmatprep.mubr.f32.mxu0 0.0
          %v7358 = vand.u32 %v5466, 4294901760
          %7359 = vmatmul.mubr.f32.gmra.mrb[0].mxu0 %v7358
          %v7360 = vpop.f32.mrb[0].mxu0
          %v7361 = vadd.f32 %v7088, %v7360
          %v7362 = vpop.f32.mrb[0].mxu0
          %7363 = vmatprep.mubr.f32.mxu0 0.0
          %v7364 = vand.u32 %v5467, 4294901760
          %7365 = vmatmul.mubr.f32.gmra.mrb[0].mxu0 %v7364
          %v7366 = vpop.f32.mrb[0].mxu0
          %v7367 = vadd.f32 %v7094, %v7366
          %v7368 = vpop.f32.mrb[0].mxu0
          %7369 = vmatprep.mubr.f32.mxu0 0.0
          %v7370 = vand.u32 %v5468, 4294901760
          %7371 = vmatmul.mubr.f32.gmra.mrb[0].mxu0 %v7370
          %v7372 = vpop.f32.mrb[0].mxu0
          %v7373 = vadd.f32 %v7100, %v7372
          %v7374 = vpop.f32.mrb[0].mxu0
          %7375 = vmatprep.mubr.f32.mxu0 0.0
          %v7376 = vand.u32 %v5469, 4294901760
          %7377 = vmatmul.mubr.f32.gmra.mrb[0].mxu0 %v7376
          %v7378 = vpop.f32.mrb[0].mxu0
          %v7379 = vadd.f32 %v7106, %v7378
          %v7380 = vpop.f32.mrb[0].mxu0
          %7381 = vmatprep.mubr.f32.mxu0 0.0
          %v7382 = vand.u32 %v5470, 4294901760
          %7383 = vmatmul.mubr.f32.gmra.mrb[0].mxu0 %v7382
          %v7384 = vpop.f32.mrb[0].mxu0
          %v7385 = vadd.f32 %v7112, %v7384
          %v7386 = vpop.f32.mrb[0].mxu0
          %7387 = vmatprep.mubr.f32.mxu0 0.0
          %v7388 = vand.u32 %v5471, 4294901760
          %7389 = vmatmul.mubr.f32.gmra.mrb[0].mxu0 %v7388
          %v7390 = vpop.f32.mrb[0].mxu0
          %v7391 = vadd.f32 %v7118, %v7390
          %v7392 = vpop.f32.mrb[0].mxu0
          %7393 = vmatprep.mubr.f32.mxu0 0.0
          %v7394 = vand.u32 %v5472, 4294901760
          %7395 = vmatmul.mubr.f32.gmra.mrb[0].mxu0 %v7394
          %v7396 = vpop.f32.mrb[0].mxu0
          %v7397 = vadd.f32 %v7124, %v7396
          %v7398 = vpop.f32.mrb[0].mxu0
          %7399 = vmatprep.mubr.f32.mxu0 0.0
          %v7400 = vand.u32 %v5473, 4294901760
          %7401 = vmatmul.mubr.f32.gmra.mrb[0].mxu0 %v7400
          %v7402 = vpop.f32.mrb[0].mxu0
          %v7403 = vadd.f32 %v7130, %v7402
          %v7404 = vpop.f32.mrb[0].mxu0
          %7405 = vmatprep.mubr.f32.mxu0 0.0
          %v7406 = vand.u32 %v5474, 4294901760
          %7407 = vmatmul.mubr.f32.gmra.mrb[0].mxu0 %v7406
          %v7408 = vpop.f32.mrb[0].mxu0
          %v7409 = vadd.f32 %v7136, %v7408
          %v7410 = vpop.f32.mrb[0].mxu0
          %7411 = vmatprep.mubr.f32.mxu0 0.0
          %v7412 = vand.u32 %v5475, 4294901760
          %7413 = vmatmul.mubr.f32.gmra.mrb[0].mxu0 %v7412
          %v7414 = vpop.f32.mrb[0].mxu0
          %v7415 = vadd.f32 %v7142, %v7414
          %v7416 = vpop.f32.mrb[0].mxu0
          %7417 = vmatprep.mubr.f32.mxu0 0.0
          %v7418 = vand.u32 %v5476, 4294901760
          %7419 = vmatmul.mubr.f32.gmra.mrb[0].mxu0 %v7418
          %v7420 = vpop.f32.mrb[0].mxu0
          %v7421 = vadd.f32 %v7148, %v7420
          %v7422 = vpop.f32.mrb[0].mxu0
          %7423 = vmatprep.mubr.f32.mxu0 0.0
          %v7424 = vand.u32 %v5477, 4294901760
          %7425 = vmatmul.mubr.f32.gmra.mrb[0].mxu0 %v7424
          %v7426 = vpop.f32.mrb[0].mxu0
          %v7427 = vadd.f32 %v7154, %v7426
          %v7428 = vpop.f32.mrb[0].mxu0
          %7429 = vmatprep.mubr.f32.mxu0 0.0
          %v7430 = vand.u32 %v5478, 4294901760
          %7431 = vmatmul.mubr.f32.gmra.mrb[0].mxu0 %v7430
          %v7432 = vpop.f32.mrb[0].mxu0
          %v7433 = vadd.f32 %v7160, %v7432
          %v7434 = vpop.f32.mrb[0].mxu0
          %7435 = vmatprep.mubr.f32.mxu0 0.0
          %v7436 = vand.u32 %v5479, 4294901760
          %7437 = vmatmul.mubr.f32.gmra.mrb[0].mxu0 %v7436
          %v7438 = vpop.f32.mrb[0].mxu0
          %v7439 = vadd.f32 %v7166, %v7438
          %v7440 = vpop.f32.mrb[0].mxu0
          %7441 = vmatprep.mubr.f32.mxu0 0.0
          %v7442 = vand.u32 %v5480, 4294901760
          %7443 = vmatmul.mubr.f32.gmra.mrb[0].mxu0 %v7442
          %v7444 = vpop.f32.mrb[0].mxu0
          %v7445 = vadd.f32 %v7172, %v7444
          %v7446 = vpop.f32.mrb[0].mxu0
          %7447 = vmatprep.mubr.f32.mxu0 0.0
          %v7448 = vand.u32 %v5481, 4294901760
          %7449 = vmatmul.mubr.f32.gmra.mrb[0].mxu0 %v7448
          %v7450 = vpop.f32.mrb[0].mxu0
          %v7451 = vadd.f32 %v7178, %v7450
          %v7452 = vpop.f32.mrb[0].mxu0
          %7453 = vmatprep.mubr.f32.mxu0 0.0
          %v7454 = vand.u32 %v5482, 4294901760
          %7455 = vmatmul.mubr.f32.gmra.mrb[0].mxu0 %v7454
          %v7456 = vpop.f32.mrb[0].mxu0
          %v7457 = vadd.f32 %v7184, %v7456
          %v7458 = vpop.f32.mrb[0].mxu0
          %7459 = vmatprep.mubr.f32.mxu0 0.0
          %v7460 = vand.u32 %v5483, 4294901760
          %7461 = vmatmul.mubr.f32.gmra.mrb[0].mxu0 %v7460
          %v7462 = vpop.f32.mrb[0].mxu0
          %v7463 = vadd.f32 %v7190, %v7462
          %v7464 = vpop.f32.mrb[0].mxu0
          %7465 = vmatprep.mubr.f32.mxu0 0.0
          %v7466 = vand.u32 %v5484, 4294901760
          %7467 = vmatmul.mubr.f32.gmra.mrb[0].mxu0 %v7466
          %v7468 = vpop.f32.mrb[0].mxu0
          %v7469 = vadd.f32 %v7196, %v7468
          %v7470 = vpop.f32.mrb[0].mxu0
          %7471 = vmatprep.mubr.f32.mxu0 0.0
          %v7472 = vand.u32 %v5485, 4294901760
          %7473 = vmatmul.mubr.f32.gmra.mrb[0].mxu0 %v7472
          %v7474 = vpop.f32.mrb[0].mxu0
          %v7475 = vadd.f32 %v7202, %v7474
          %v7476 = vpop.f32.mrb[0].mxu0
          %7477 = vmatprep.mubr.f32.mxu0 0.0
          %v7478 = vand.u32 %v5486, 4294901760
          %7479 = vmatmul.mubr.f32.gmra.mrb[0].mxu0 %v7478
          %v7480 = vpop.f32.mrb[0].mxu0
          %v7481 = vadd.f32 %v7208, %v7480
          %v7482 = vpop.f32.mrb[0].mxu0
          %7483 = vdwg.mxu0
          %v7484 = vmax.f32 %v7295, 0.0
          %v7485 = vmax.f32 %v7301, 0.0
          %v7486 = vmax.f32 %v7307, 0.0
          %v7487 = vmax.f32 %v7313, 0.0
          %v7488 = vmax.f32 %v7319, 0.0
          %v7489 = vmax.f32 %v7325, 0.0
          %v7490 = vmax.f32 %v7331, 0.0
          %v7491 = vmax.f32 %v7337, 0.0
          %v7492 = vmax.f32 %v7343, 0.0
          %v7493 = vmax.f32 %v7349, 0.0
          %v7494 = vmax.f32 %v7355, 0.0
          %v7495 = vmax.f32 %v7361, 0.0
          %v7496 = vmax.f32 %v7367, 0.0
          %v7497 = vmax.f32 %v7373, 0.0
          %v7498 = vmax.f32 %v7379, 0.0
          %v7499 = vmax.f32 %v7385, 0.0
          %v7500 = vmax.f32 %v7391, 0.0
          %v7501 = vmax.f32 %v7397, 0.0
          %v7502 = vmax.f32 %v7403, 0.0
          %v7503 = vmax.f32 %v7409, 0.0
          %v7504 = vmax.f32 %v7415, 0.0
          %v7505 = vmax.f32 %v7421, 0.0
          %v7506 = vmax.f32 %v7427, 0.0
          %v7507 = vmax.f32 %v7433, 0.0
          %v7508 = vmax.f32 %v7439, 0.0
          %v7509 = vmax.f32 %v7445, 0.0
          %v7510 = vmax.f32 %v7451, 0.0
          %v7511 = vmax.f32 %v7457, 0.0
          %v7512 = vmax.f32 %v7463, 0.0
          %v7513 = vmax.f32 %v7469, 0.0
          %v7514 = vmax.f32 %v7475, 0.0
          %v7515 = vmax.f32 %v7481, 0.0
          %v7516 = vand.u32 2147483647, %v7295
          %v7517 = vand.u32 2147483647, %v7301
          %v7518 = vand.u32 2147483647, %v7307
          %v7519 = vand.u32 2147483647, %v7313
          %v7520 = vand.u32 2147483647, %v7319
          %v7521 = vand.u32 2147483647, %v7325
          %v7522 = vand.u32 2147483647, %v7331
          %v7523 = vand.u32 2147483647, %v7337
          %v7524 = vand.u32 2147483647, %v7343
          %v7525 = vand.u32 2147483647, %v7349
          %v7526 = vand.u32 2147483647, %v7355
          %v7527 = vand.u32 2147483647, %v7361
          %v7528 = vand.u32 2147483647, %v7367
          %v7529 = vand.u32 2147483647, %v7373
          %v7530 = vand.u32 2147483647, %v7379
          %v7531 = vand.u32 2147483647, %v7385
          %v7532 = vand.u32 2147483647, %v7391
          %v7533 = vand.u32 2147483647, %v7397
          %v7534 = vand.u32 2147483647, %v7403
          %v7535 = vand.u32 2147483647, %v7409
          %v7536 = vand.u32 2147483647, %v7415
          %v7537 = vand.u32 2147483647, %v7421
          %v7538 = vand.u32 2147483647, %v7427
          %v7539 = vand.u32 2147483647, %v7433
          %v7540 = vand.u32 2147483647, %v7439
          %v7541 = vand.u32 2147483647, %v7445
          %v7542 = vand.u32 2147483647, %v7451
          %v7543 = vand.u32 2147483647, %v7457
          %v7544 = vand.u32 2147483647, %v7463
          %v7545 = vand.u32 2147483647, %v7469
          %v7546 = vand.u32 2147483647, %v7475
          %v7547 = vand.u32 2147483647, %v7481
          %v7548 = vsub.f32 0.0, %v7516
          %v7549 = vsub.f32 0.0, %v7517
          %v7550 = vsub.f32 0.0, %v7518
          %v7551 = vsub.f32 0.0, %v7519
          %v7552 = vsub.f32 0.0, %v7520
          %v7553 = vsub.f32 0.0, %v7521
          %v7554 = vsub.f32 0.0, %v7522
          %v7555 = vsub.f32 0.0, %v7523
          %v7556 = vsub.f32 0.0, %v7524
          %v7557 = vsub.f32 0.0, %v7525
          %v7558 = vsub.f32 0.0, %v7526
          %v7559 = vsub.f32 0.0, %v7527
          %v7560 = vsub.f32 0.0, %v7528
          %v7561 = vsub.f32 0.0, %v7529
          %v7562 = vsub.f32 0.0, %v7530
          %v7563 = vsub.f32 0.0, %v7531
          %v7564 = vsub.f32 0.0, %v7532
          %v7565 = vsub.f32 0.0, %v7533
          %v7566 = vsub.f32 0.0, %v7534
          %v7567 = vsub.f32 0.0, %v7535
          %v7568 = vsub.f32 0.0, %v7536
          %v7569 = vsub.f32 0.0, %v7537
          %v7570 = vsub.f32 0.0, %v7538
          %v7571 = vsub.f32 0.0, %v7539
          %v7572 = vsub.f32 0.0, %v7540
          %v7573 = vsub.f32 0.0, %v7541
          %v7574 = vsub.f32 0.0, %v7542
          %v7575 = vsub.f32 0.0, %v7543
          %v7576 = vsub.f32 0.0, %v7544
          %v7577 = vsub.f32 0.0, %v7545
          %v7578 = vsub.f32 0.0, %v7546
          %v7579 = vsub.f32 0.0, %v7547
          %v7580 = vmul.f32 %v7548, 1.442695
          %v7581 = vpow.pop %v7580
          %v7582 = vmul.f32 %v7549, 1.442695
          %v7583 = vpow.pop %v7582
          %v7584 = vmul.f32 %v7550, 1.442695
          %v7585 = vpow.pop %v7584
          %v7586 = vmul.f32 %v7551, 1.442695
          %v7587 = vpow.pop %v7586
          %v7588 = vmul.f32 %v7552, 1.442695
          %v7589 = vpow.pop %v7588
          %v7590 = vmul.f32 %v7553, 1.442695
          %v7591 = vpow.pop %v7590
          %v7592 = vmul.f32 %v7554, 1.442695
          %v7593 = vpow.pop %v7592
          %v7594 = vmul.f32 %v7555, 1.442695
          %v7595 = vpow.pop %v7594
          %v7596 = vmul.f32 %v7556, 1.442695
          %v7597 = vpow.pop %v7596
          %v7598 = vmul.f32 %v7557, 1.442695
          %v7599 = vpow.pop %v7598
          %v7600 = vmul.f32 %v7558, 1.442695
          %v7601 = vpow.pop %v7600
          %v7602 = vmul.f32 %v7559, 1.442695
          %v7603 = vpow.pop %v7602
          %v7604 = vmul.f32 %v7560, 1.442695
          %v7605 = vpow.pop %v7604
          %v7606 = vmul.f32 %v7561, 1.442695
          %v7607 = vpow.pop %v7606
          %v7608 = vmul.f32 %v7562, 1.442695
          %v7609 = vpow.pop %v7608
          %v7610 = vmul.f32 %v7563, 1.442695
          %v7611 = vpow.pop %v7610
          %v7612 = vmul.f32 %v7564, 1.442695
          %v7613 = vpow.pop %v7612
          %v7614 = vmul.f32 %v7565, 1.442695
          %v7615 = vpow.pop %v7614
          %v7616 = vmul.f32 %v7566, 1.442695
          %v7617 = vpow.pop %v7616
          %v7618 = vmul.f32 %v7567, 1.442695
          %v7619 = vpow.pop %v7618
          %v7620 = vmul.f32 %v7568, 1.442695
          %v7621 = vpow.pop %v7620
          %v7622 = vmul.f32 %v7569, 1.442695
          %v7623 = vpow.pop %v7622
          %v7624 = vmul.f32 %v7570, 1.442695
          %v7625 = vpow.pop %v7624
          %v7626 = vmul.f32 %v7571, 1.442695
          %v7627 = vpow.pop %v7626
          %v7628 = vmul.f32 %v7572, 1.442695
          %v7629 = vpow.pop %v7628
          %v7630 = vmul.f32 %v7573, 1.442695
          %v7631 = vpow.pop %v7630
          %v7632 = vmul.f32 %v7574, 1.442695
          %v7633 = vpow.pop %v7632
          %v7634 = vmul.f32 %v7575, 1.442695
          %v7635 = vpow.pop %v7634
          %v7636 = vmul.f32 %v7576, 1.442695
          %v7637 = vpow.pop %v7636
          %v7638 = vmul.f32 %v7577, 1.442695
          %v7639 = vpow.pop %v7638
          %v7640 = vmul.f32 %v7578, 1.442695
          %v7641 = vpow.pop %v7640
          %v7642 = vmul.f32 %v7579, 1.442695
          %v7643 = vpow.pop %v7642
          %v7644 = vadd.f32 %v7581, 1.0
          %v7645 = vlog2.pop %v7644
          %v7646 = vmul.f32 %v7645, 0.6931472
          %v7647 = vmul.f32 -0.5, %v7581
          %v7648 = vadd.f32 %v7647, 1.0
          %v7649 = vmul.f32 %v7648, %v7581
          %v7650 = vand.u32 2147483647, %v7581
          %vm7651 = vcmp.lt.f32.partialorder %v7650, 0.0004427343
          %v7652 = vsel %vm7651, %v7649, %v7646
          %v7653 = vadd.f32 %v7583, 1.0
          %v7654 = vlog2.pop %v7653
          %v7655 = vmul.f32 %v7654, 0.6931472
          %v7656 = vmul.f32 -0.5, %v7583
          %v7657 = vadd.f32 %v7656, 1.0
          %v7658 = vmul.f32 %v7657, %v7583
          %v7659 = vand.u32 2147483647, %v7583
          %vm7660 = vcmp.lt.f32.partialorder %v7659, 0.0004427343
          %v7661 = vsel %vm7660, %v7658, %v7655
          %v7662 = vadd.f32 %v7585, 1.0
          %v7663 = vlog2.pop %v7662
          %v7664 = vmul.f32 %v7663, 0.6931472
          %v7665 = vmul.f32 -0.5, %v7585
          %v7666 = vadd.f32 %v7665, 1.0
          %v7667 = vmul.f32 %v7666, %v7585
          %v7668 = vand.u32 2147483647, %v7585
          %vm7669 = vcmp.lt.f32.partialorder %v7668, 0.0004427343
          %v7670 = vsel %vm7669, %v7667, %v7664
          %v7671 = vadd.f32 %v7587, 1.0
          %v7672 = vlog2.pop %v7671
          %v7673 = vmul.f32 %v7672, 0.6931472
          %v7674 = vmul.f32 -0.5, %v7587
          %v7675 = vadd.f32 %v7674, 1.0
          %v7676 = vmul.f32 %v7675, %v7587
          %v7677 = vand.u32 2147483647, %v7587
          %vm7678 = vcmp.lt.f32.partialorder %v7677, 0.0004427343
          %v7679 = vsel %vm7678, %v7676, %v7673
          %v7680 = vadd.f32 %v7589, 1.0
          %v7681 = vlog2.pop %v7680
          %v7682 = vmul.f32 %v7681, 0.6931472
          %v7683 = vmul.f32 -0.5, %v7589
          %v7684 = vadd.f32 %v7683, 1.0
          %v7685 = vmul.f32 %v7684, %v7589
          %v7686 = vand.u32 2147483647, %v7589
          %vm7687 = vcmp.lt.f32.partialorder %v7686, 0.0004427343
          %v7688 = vsel %vm7687, %v7685, %v7682
          %v7689 = vadd.f32 %v7591, 1.0
          %v7690 = vlog2.pop %v7689
          %v7691 = vmul.f32 %v7690, 0.6931472
          %v7692 = vmul.f32 -0.5, %v7591
          %v7693 = vadd.f32 %v7692, 1.0
          %v7694 = vmul.f32 %v7693, %v7591
          %v7695 = vand.u32 2147483647, %v7591
          %vm7696 = vcmp.lt.f32.partialorder %v7695, 0.0004427343
          %v7697 = vsel %vm7696, %v7694, %v7691
          %v7698 = vadd.f32 %v7593, 1.0
          %v7699 = vlog2.pop %v7698
          %v7700 = vmul.f32 %v7699, 0.6931472
          %v7701 = vmul.f32 -0.5, %v7593
          %v7702 = vadd.f32 %v7701, 1.0
          %v7703 = vmul.f32 %v7702, %v7593
          %v7704 = vand.u32 2147483647, %v7593
          %vm7705 = vcmp.lt.f32.partialorder %v7704, 0.0004427343
          %v7706 = vsel %vm7705, %v7703, %v7700
          %v7707 = vadd.f32 %v7595, 1.0
          %v7708 = vlog2.pop %v7707
          %v7709 = vmul.f32 %v7708, 0.6931472
          %v7710 = vmul.f32 -0.5, %v7595
          %v7711 = vadd.f32 %v7710, 1.0
          %v7712 = vmul.f32 %v7711, %v7595
          %v7713 = vand.u32 2147483647, %v7595
          %vm7714 = vcmp.lt.f32.partialorder %v7713, 0.0004427343
          %v7715 = vsel %vm7714, %v7712, %v7709
          %v7716 = vadd.f32 %v7597, 1.0
          %v7717 = vlog2.pop %v7716
          %v7718 = vmul.f32 %v7717, 0.6931472
          %v7719 = vmul.f32 -0.5, %v7597
          %v7720 = vadd.f32 %v7719, 1.0
          %v7721 = vmul.f32 %v7720, %v7597
          %v7722 = vand.u32 2147483647, %v7597
          %vm7723 = vcmp.lt.f32.partialorder %v7722, 0.0004427343
          %v7724 = vsel %vm7723, %v7721, %v7718
          %v7725 = vadd.f32 %v7599, 1.0
          %v7726 = vlog2.pop %v7725
          %v7727 = vmul.f32 %v7726, 0.6931472
          %v7728 = vmul.f32 -0.5, %v7599
          %v7729 = vadd.f32 %v7728, 1.0
          %v7730 = vmul.f32 %v7729, %v7599
          %v7731 = vand.u32 2147483647, %v7599
          %vm7732 = vcmp.lt.f32.partialorder %v7731, 0.0004427343
          %v7733 = vsel %vm7732, %v7730, %v7727
          %v7734 = vadd.f32 %v7601, 1.0
          %v7735 = vlog2.pop %v7734
          %v7736 = vmul.f32 %v7735, 0.6931472
          %v7737 = vmul.f32 -0.5, %v7601
          %v7738 = vadd.f32 %v7737, 1.0
          %v7739 = vmul.f32 %v7738, %v7601
          %v7740 = vand.u32 2147483647, %v7601
          %vm7741 = vcmp.lt.f32.partialorder %v7740, 0.0004427343
          %v7742 = vsel %vm7741, %v7739, %v7736
          %v7743 = vadd.f32 %v7603, 1.0
          %v7744 = vlog2.pop %v7743
          %v7745 = vmul.f32 %v7744, 0.6931472
          %v7746 = vmul.f32 -0.5, %v7603
          %v7747 = vadd.f32 %v7746, 1.0
          %v7748 = vmul.f32 %v7747, %v7603
          %v7749 = vand.u32 2147483647, %v7603
          %vm7750 = vcmp.lt.f32.partialorder %v7749, 0.0004427343
          %v7751 = vsel %vm7750, %v7748, %v7745
          %v7752 = vadd.f32 %v7605, 1.0
          %v7753 = vlog2.pop %v7752
          %v7754 = vmul.f32 %v7753, 0.6931472
          %v7755 = vmul.f32 -0.5, %v7605
          %v7756 = vadd.f32 %v7755, 1.0
          %v7757 = vmul.f32 %v7756, %v7605
          %v7758 = vand.u32 2147483647, %v7605
          %vm7759 = vcmp.lt.f32.partialorder %v7758, 0.0004427343
          %v7760 = vsel %vm7759, %v7757, %v7754
          %v7761 = vadd.f32 %v7607, 1.0
          %v7762 = vlog2.pop %v7761
          %v7763 = vmul.f32 %v7762, 0.6931472
          %v7764 = vmul.f32 -0.5, %v7607
          %v7765 = vadd.f32 %v7764, 1.0
          %v7766 = vmul.f32 %v7765, %v7607
          %v7767 = vand.u32 2147483647, %v7607
          %vm7768 = vcmp.lt.f32.partialorder %v7767, 0.0004427343
          %v7769 = vsel %vm7768, %v7766, %v7763
          %v7770 = vadd.f32 %v7609, 1.0
          %v7771 = vlog2.pop %v7770
          %v7772 = vmul.f32 %v7771, 0.6931472
          %v7773 = vmul.f32 -0.5, %v7609
          %v7774 = vadd.f32 %v7773, 1.0
          %v7775 = vmul.f32 %v7774, %v7609
          %v7776 = vand.u32 2147483647, %v7609
          %vm7777 = vcmp.lt.f32.partialorder %v7776, 0.0004427343
          %v7778 = vsel %vm7777, %v7775, %v7772
          %v7779 = vadd.f32 %v7611, 1.0
          %v7780 = vlog2.pop %v7779
          %v7781 = vmul.f32 %v7780, 0.6931472
          %v7782 = vmul.f32 -0.5, %v7611
          %v7783 = vadd.f32 %v7782, 1.0
          %v7784 = vmul.f32 %v7783, %v7611
          %v7785 = vand.u32 2147483647, %v7611
          %vm7786 = vcmp.lt.f32.partialorder %v7785, 0.0004427343
          %v7787 = vsel %vm7786, %v7784, %v7781
          %v7788 = vadd.f32 %v7613, 1.0
          %v7789 = vlog2.pop %v7788
          %v7790 = vmul.f32 %v7789, 0.6931472
          %v7791 = vmul.f32 -0.5, %v7613
          %v7792 = vadd.f32 %v7791, 1.0
          %v7793 = vmul.f32 %v7792, %v7613
          %v7794 = vand.u32 2147483647, %v7613
          %vm7795 = vcmp.lt.f32.partialorder %v7794, 0.0004427343
          %v7796 = vsel %vm7795, %v7793, %v7790
          %v7797 = vadd.f32 %v7615, 1.0
          %v7798 = vlog2.pop %v7797
          %v7799 = vmul.f32 %v7798, 0.6931472
          %v7800 = vmul.f32 -0.5, %v7615
          %v7801 = vadd.f32 %v7800, 1.0
          %v7802 = vmul.f32 %v7801, %v7615
          %v7803 = vand.u32 2147483647, %v7615
          %vm7804 = vcmp.lt.f32.partialorder %v7803, 0.0004427343
          %v7805 = vsel %vm7804, %v7802, %v7799
          %v7806 = vadd.f32 %v7617, 1.0
          %v7807 = vlog2.pop %v7806
          %v7808 = vmul.f32 %v7807, 0.6931472
          %v7809 = vmul.f32 -0.5, %v7617
          %v7810 = vadd.f32 %v7809, 1.0
          %v7811 = vmul.f32 %v7810, %v7617
          %v7812 = vand.u32 2147483647, %v7617
          %vm7813 = vcmp.lt.f32.partialorder %v7812, 0.0004427343
          %v7814 = vsel %vm7813, %v7811, %v7808
          %v7815 = vadd.f32 %v7619, 1.0
          %v7816 = vlog2.pop %v7815
          %v7817 = vmul.f32 %v7816, 0.6931472
          %v7818 = vmul.f32 -0.5, %v7619
          %v7819 = vadd.f32 %v7818, 1.0
          %v7820 = vmul.f32 %v7819, %v7619
          %v7821 = vand.u32 2147483647, %v7619
          %vm7822 = vcmp.lt.f32.partialorder %v7821, 0.0004427343
          %v7823 = vsel %vm7822, %v7820, %v7817
          %v7824 = vadd.f32 %v7621, 1.0
          %v7825 = vlog2.pop %v7824
          %v7826 = vmul.f32 %v7825, 0.6931472
          %v7827 = vmul.f32 -0.5, %v7621
          %v7828 = vadd.f32 %v7827, 1.0
          %v7829 = vmul.f32 %v7828, %v7621
          %v7830 = vand.u32 2147483647, %v7621
          %vm7831 = vcmp.lt.f32.partialorder %v7830, 0.0004427343
          %v7832 = vsel %vm7831, %v7829, %v7826
          %v7833 = vadd.f32 %v7623, 1.0
          %v7834 = vlog2.pop %v7833
          %v7835 = vmul.f32 %v7834, 0.6931472
          %v7836 = vmul.f32 -0.5, %v7623
          %v7837 = vadd.f32 %v7836, 1.0
          %v7838 = vmul.f32 %v7837, %v7623
          %v7839 = vand.u32 2147483647, %v7623
          %vm7840 = vcmp.lt.f32.partialorder %v7839, 0.0004427343
          %v7841 = vsel %vm7840, %v7838, %v7835
          %v7842 = vadd.f32 %v7625, 1.0
          %v7843 = vlog2.pop %v7842
          %v7844 = vmul.f32 %v7843, 0.6931472
          %v7845 = vmul.f32 -0.5, %v7625
          %v7846 = vadd.f32 %v7845, 1.0
          %v7847 = vmul.f32 %v7846, %v7625
          %v7848 = vand.u32 2147483647, %v7625
          %vm7849 = vcmp.lt.f32.partialorder %v7848, 0.0004427343
          %v7850 = vsel %vm7849, %v7847, %v7844
          %v7851 = vadd.f32 %v7627, 1.0
          %v7852 = vlog2.pop %v7851
          %v7853 = vmul.f32 %v7852, 0.6931472
          %v7854 = vmul.f32 -0.5, %v7627
          %v7855 = vadd.f32 %v7854, 1.0
          %v7856 = vmul.f32 %v7855, %v7627
          %v7857 = vand.u32 2147483647, %v7627
          %vm7858 = vcmp.lt.f32.partialorder %v7857, 0.0004427343
          %v7859 = vsel %vm7858, %v7856, %v7853
          %v7860 = vadd.f32 %v7629, 1.0
          %v7861 = vlog2.pop %v7860
          %v7862 = vmul.f32 %v7861, 0.6931472
          %v7863 = vmul.f32 -0.5, %v7629
          %v7864 = vadd.f32 %v7863, 1.0
          %v7865 = vmul.f32 %v7864, %v7629
          %v7866 = vand.u32 2147483647, %v7629
          %vm7867 = vcmp.lt.f32.partialorder %v7866, 0.0004427343
          %v7868 = vsel %vm7867, %v7865, %v7862
          %v7869 = vadd.f32 %v7631, 1.0
          %v7870 = vlog2.pop %v7869
          %v7871 = vmul.f32 %v7870, 0.6931472
          %v7872 = vmul.f32 -0.5, %v7631
          %v7873 = vadd.f32 %v7872, 1.0
          %v7874 = vmul.f32 %v7873, %v7631
          %v7875 = vand.u32 2147483647, %v7631
          %vm7876 = vcmp.lt.f32.partialorder %v7875, 0.0004427343
          %v7877 = vsel %vm7876, %v7874, %v7871
          %v7878 = vadd.f32 %v7633, 1.0
          %v7879 = vlog2.pop %v7878
          %v7880 = vmul.f32 %v7879, 0.6931472
          %v7881 = vmul.f32 -0.5, %v7633
          %v7882 = vadd.f32 %v7881, 1.0
          %v7883 = vmul.f32 %v7882, %v7633
          %v7884 = vand.u32 2147483647, %v7633
          %vm7885 = vcmp.lt.f32.partialorder %v7884, 0.0004427343
          %v7886 = vsel %vm7885, %v7883, %v7880
          %v7887 = vadd.f32 %v7635, 1.0
          %v7888 = vlog2.pop %v7887
          %v7889 = vmul.f32 %v7888, 0.6931472
          %v7890 = vmul.f32 -0.5, %v7635
          %v7891 = vadd.f32 %v7890, 1.0
          %v7892 = vmul.f32 %v7891, %v7635
          %v7893 = vand.u32 2147483647, %v7635
          %vm7894 = vcmp.lt.f32.partialorder %v7893, 0.0004427343
          %v7895 = vsel %vm7894, %v7892, %v7889
          %v7896 = vadd.f32 %v7637, 1.0
          %v7897 = vlog2.pop %v7896
          %v7898 = vmul.f32 %v7897, 0.6931472
          %v7899 = vmul.f32 -0.5, %v7637
          %v7900 = vadd.f32 %v7899, 1.0
          %v7901 = vmul.f32 %v7900, %v7637
          %v7902 = vand.u32 2147483647, %v7637
          %vm7903 = vcmp.lt.f32.partialorder %v7902, 0.0004427343
          %v7904 = vsel %vm7903, %v7901, %v7898
          %v7905 = vadd.f32 %v7639, 1.0
          %v7906 = vlog2.pop %v7905
          %v7907 = vmul.f32 %v7906, 0.6931472
          %v7908 = vmul.f32 -0.5, %v7639
          %v7909 = vadd.f32 %v7908, 1.0
          %v7910 = vmul.f32 %v7909, %v7639
          %v7911 = vand.u32 2147483647, %v7639
          %vm7912 = vcmp.lt.f32.partialorder %v7911, 0.0004427343
          %v7913 = vsel %vm7912, %v7910, %v7907
          %v7914 = vadd.f32 %v7641, 1.0
          %v7915 = vlog2.pop %v7914
          %v7916 = vmul.f32 %v7915, 0.6931472
          %v7917 = vmul.f32 -0.5, %v7641
          %v7918 = vadd.f32 %v7917, 1.0
          %v7919 = vmul.f32 %v7918, %v7641
          %v7920 = vand.u32 2147483647, %v7641
          %vm7921 = vcmp.lt.f32.partialorder %v7920, 0.0004427343
          %v7922 = vsel %vm7921, %v7919, %v7916
          %v7923 = vadd.f32 %v7643, 1.0
          %v7924 = vlog2.pop %v7923
          %v7925 = vmul.f32 %v7924, 0.6931472
          %v7926 = vmul.f32 -0.5, %v7643
          %v7927 = vadd.f32 %v7926, 1.0
          %v7928 = vmul.f32 %v7927, %v7643
          %v7929 = vand.u32 2147483647, %v7643
          %vm7930 = vcmp.lt.f32.partialorder %v7929, 0.0004427343
          %v7931 = vsel %vm7930, %v7928, %v7925
          %v7932 = vadd.f32 %v7484, %v7652
          %v7933 = vadd.f32 %v7485, %v7661
          %v7934 = vadd.f32 %v7486, %v7670
          %v7935 = vadd.f32 %v7487, %v7679
          %v7936 = vadd.f32 %v7488, %v7688
          %v7937 = vadd.f32 %v7489, %v7697
          %v7938 = vadd.f32 %v7490, %v7706
          %v7939 = vadd.f32 %v7491, %v7715
          %v7940 = vadd.f32 %v7492, %v7724
          %v7941 = vadd.f32 %v7493, %v7733
          %v7942 = vadd.f32 %v7494, %v7742
          %v7943 = vadd.f32 %v7495, %v7751
          %v7944 = vadd.f32 %v7496, %v7760
          %v7945 = vadd.f32 %v7497, %v7769
          %v7946 = vadd.f32 %v7498, %v7778
          %v7947 = vadd.f32 %v7499, %v7787
          %v7948 = vadd.f32 %v7500, %v7796
          %v7949 = vadd.f32 %v7501, %v7805
          %v7950 = vadd.f32 %v7502, %v7814
          %v7951 = vadd.f32 %v7503, %v7823
          %v7952 = vadd.f32 %v7504, %v7832
          %v7953 = vadd.f32 %v7505, %v7841
          %v7954 = vadd.f32 %v7506, %v7850
          %v7955 = vadd.f32 %v7507, %v7859
          %v7956 = vadd.f32 %v7508, %v7868
          %v7957 = vadd.f32 %v7509, %v7877
          %v7958 = vadd.f32 %v7510, %v7886
          %v7959 = vadd.f32 %v7511, %v7895
          %v7960 = vadd.f32 %v7512, %v7904
          %v7961 = vadd.f32 %v7513, %v7913
          %v7962 = vadd.f32 %v7514, %v7922
          %v7963 = vadd.f32 %v7515, %v7931
          %v7964 = vsub.f32 %v7932, 0.6931472
          %v7965 = vsub.f32 %v7933, 0.6931472
          %v7966 = vsub.f32 %v7934, 0.6931472
          %v7967 = vsub.f32 %v7935, 0.6931472
          %v7968 = vsub.f32 %v7936, 0.6931472
          %v7969 = vsub.f32 %v7937, 0.6931472
          %v7970 = vsub.f32 %v7938, 0.6931472
          %v7971 = vsub.f32 %v7939, 0.6931472
          %v7972 = vsub.f32 %v7940, 0.6931472
          %v7973 = vsub.f32 %v7941, 0.6931472
          %v7974 = vsub.f32 %v7942, 0.6931472
          %v7975 = vsub.f32 %v7943, 0.6931472
          %v7976 = vsub.f32 %v7944, 0.6931472
          %v7977 = vsub.f32 %v7945, 0.6931472
          %v7978 = vsub.f32 %v7946, 0.6931472
          %v7979 = vsub.f32 %v7947, 0.6931472
          %v7980 = vsub.f32 %v7948, 0.6931472
          %v7981 = vsub.f32 %v7949, 0.6931472
          %v7982 = vsub.f32 %v7950, 0.6931472
          %v7983 = vsub.f32 %v7951, 0.6931472
          %v7984 = vsub.f32 %v7952, 0.6931472
          %v7985 = vsub.f32 %v7953, 0.6931472
          %v7986 = vsub.f32 %v7954, 0.6931472
          %v7987 = vsub.f32 %v7955, 0.6931472
          %v7988 = vsub.f32 %v7956, 0.6931472
          %v7989 = vsub.f32 %v7957, 0.6931472
          %v7990 = vsub.f32 %v7958, 0.6931472
          %v7991 = vsub.f32 %v7959, 0.6931472
          %v7992 = vsub.f32 %v7960, 0.6931472
          %v7993 = vsub.f32 %v7961, 0.6931472
          %v7994 = vsub.f32 %v7962, 0.6931472
          %v7995 = vsub.f32 %v7963, 0.6931472
          %v7996 = vld [vmem:[#allocation14] sm:$0xff]
          %v7997 = vld [vmem:[#allocation14 + $0x8] sm:$0xff]
          %v7998 = vld [vmem:[#allocation14 + $0x10] sm:$0xff]
          %v7999 = vld [vmem:[#allocation14 + $0x18] sm:$0xff]
          %v8000 = vld [vmem:[#allocation14 + $0x20] sm:$0xff]
          %v8001 = vld [vmem:[#allocation14 + $0x28] sm:$0xff]
          %v8002 = vld [vmem:[#allocation14 + $0x30] sm:$0xff]
          %v8003 = vld [vmem:[#allocation14 + $0x38] sm:$0xff]
          %v8004 = vld [vmem:[#allocation14 + $0x40] sm:$0xff]
          %v8005 = vld [vmem:[#allocation14 + $0x48] sm:$0xff]
          %v8006 = vld [vmem:[#allocation14 + $0x50] sm:$0xff]
          %v8007 = vld [vmem:[#allocation14 + $0x58] sm:$0xff]
          %v8008 = vld [vmem:[#allocation14 + $0x60] sm:$0xff]
          %v8009 = vld [vmem:[#allocation14 + $0x68] sm:$0xff]
          %v8010 = vld [vmem:[#allocation14 + $0x70] sm:$0xff]
          %v8011 = vld [vmem:[#allocation14 + $0x78] sm:$0xff]
          %v8012 = vld [vmem:[%s11] sm:$0x1]
          %v8014 = vlaneseq
          %v8015 = vshrl.u32 %v8014, 7
          %v8016 = vsub.s32 0, %v8015
          %v8017 = vrot.slane %v8012, %v8016
          %8019 = vmatprep.subr.mxu0 0.0
          %v8020 = vand.u32 %v7996, 4294901760
          %8021 = vmatpush1.msra.mxu0 %v8020
          %8022 = vmatprep.subr.mxu0 0.0
          %v8023 = vand.u32 %v7997, 4294901760
          %8024 = vmatpush1.msra.mxu0 %v8023
          %8025 = vmatprep.subr.mxu0 0.0
          %v8026 = vand.u32 %v7998, 4294901760
          %8027 = vmatpush1.msra.mxu0 %v8026
          %8028 = vmatprep.subr.mxu0 0.0
          %v8029 = vand.u32 %v7999, 4294901760
          %8030 = vmatpush1.msra.mxu0 %v8029
          %8031 = vmatprep.subr.mxu0 0.0
          %v8032 = vand.u32 %v8000, 4294901760
          %8033 = vmatpush1.msra.mxu0 %v8032
          %8034 = vmatprep.subr.mxu0 0.0
          %v8035 = vand.u32 %v8001, 4294901760
          %8036 = vmatpush1.msra.mxu0 %v8035
          %8037 = vmatprep.subr.mxu0 0.0
          %v8038 = vand.u32 %v8002, 4294901760
          %8039 = vmatpush1.msra.mxu0 %v8038
          %8040 = vmatprep.subr.mxu0 0.0
          %v8041 = vand.u32 %v8003, 4294901760
          %8042 = vmatpush1.msra.mxu0 %v8041
          %8043 = vmatprep.subr.mxu0 0.0
          %v8044 = vand.u32 %v8004, 4294901760
          %8045 = vmatpush1.msra.mxu0 %v8044
          %8046 = vmatprep.subr.mxu0 0.0
          %v8047 = vand.u32 %v8005, 4294901760
          %8048 = vmatpush1.msra.mxu0 %v8047
          %8049 = vmatprep.subr.mxu0 0.0
          %v8050 = vand.u32 %v8006, 4294901760
          %8051 = vmatpush1.msra.mxu0 %v8050
          %8052 = vmatprep.subr.mxu0 0.0
          %v8053 = vand.u32 %v8007, 4294901760
          %8054 = vmatpush1.msra.mxu0 %v8053
          %8055 = vmatprep.subr.mxu0 0.0
          %v8056 = vand.u32 %v8008, 4294901760
          %8057 = vmatpush1.msra.mxu0 %v8056
          %8058 = vmatprep.subr.mxu0 0.0
          %v8059 = vand.u32 %v8009, 4294901760
          %8060 = vmatpush1.msra.mxu0 %v8059
          %8061 = vmatprep.subr.mxu0 0.0
          %v8062 = vand.u32 %v8010, 4294901760
          %8063 = vmatpush1.msra.mxu0 %v8062
          %8064 = vmatprep.subr.mxu0 0.0
          %v8065 = vand.u32 %v8011, 4294901760
          %8066 = vmatpush1.msra.mxu0 %v8065
          %8067 = vmatprep.subr.mxu0 0.0
          %8068 = vmatpush1.msra.mxu0 0.0
          %8069 = vmatprep.subr.mxu0 0.0
          %8070 = vmatpush1.msra.mxu0 0.0
          %8071 = vmatprep.subr.mxu0 0.0
          %8072 = vmatpush1.msra.mxu0 0.0
          %8073 = vmatprep.subr.mxu0 0.0
          %8074 = vmatpush1.msra.mxu0 0.0
          %8075 = vmatprep.subr.mxu0 0.0
          %8076 = vmatpush1.msra.mxu0 0.0
          %8077 = vmatprep.subr.mxu0 0.0
          %8078 = vmatpush1.msra.mxu0 0.0
          %8079 = vmatprep.subr.mxu0 0.0
          %8080 = vmatpush1.msra.mxu0 0.0
          %8081 = vmatprep.subr.mxu0 0.0
          %8082 = vmatpush1.msra.mxu0 0.0
          %8083 = vmatprep.subr.mxu0 0.0
          %8084 = vmatpush1.msra.mxu0 0.0
          %8085 = vmatprep.subr.mxu0 0.0
          %8086 = vmatpush1.msra.mxu0 0.0
          %8087 = vmatprep.subr.mxu0 0.0
          %8088 = vmatpush1.msra.mxu0 0.0
          %8089 = vmatprep.subr.mxu0 0.0
          %8090 = vmatpush1.msra.mxu0 0.0
          %8091 = vmatprep.subr.mxu0 0.0
          %8092 = vmatpush1.msra.mxu0 0.0
          %8093 = vmatprep.subr.mxu0 0.0
          %8094 = vmatpush1.msra.mxu0 0.0
          %8095 = vmatprep.subr.mxu0 0.0
          %8096 = vmatpush1.msra.mxu0 0.0
          %8097 = vmatprep.subr.mxu0 0.0
          %8098 = vmatpush1.msra.mxu0 0.0
          %8099 = vmatprep.mubr.f32.mxu0 0.0
          %v8100 = vand.u32 %v7964, 4294901760
          %v8101 = vsub.f32 %v7964, %v8100
          %v8102 = vand.u32 %v8101, 4294901760
          %v8103 = vsub.f32 %v8101, %v8102
          %v8104 = vand.u32 %v8103, 4294901760
          %8105 = vmatmul.mubr.f32.gmra.mrb[0].mxu0 %v8104
          %v8106 = vpop.f32.mrb[0].mxu0
          %v8107 = vadd.f32 %v8017, %v8106
          %v8108 = vpop.f32.mrb[0].mxu0
          %8109 = vmatprep.mubr.f32.mxu0 0.0
          %v8110 = vand.u32 %v7965, 4294901760
          %v8111 = vsub.f32 %v7965, %v8110
          %v8112 = vand.u32 %v8111, 4294901760
          %v8113 = vsub.f32 %v8111, %v8112
          %v8114 = vand.u32 %v8113, 4294901760
          %8115 = vmatmul.mubr.f32.gmra.mrb[0].mxu0 %v8114
          %v8116 = vpop.f32.mrb[0].mxu0
          %v8117 = vadd.f32 %v8017, %v8116
          %v8118 = vpop.f32.mrb[0].mxu0
          %8119 = vmatprep.mubr.f32.mxu0 0.0
          %v8120 = vand.u32 %v7966, 4294901760
          %v8121 = vsub.f32 %v7966, %v8120
          %v8122 = vand.u32 %v8121, 4294901760
          %v8123 = vsub.f32 %v8121, %v8122
          %v8124 = vand.u32 %v8123, 4294901760
          %8125 = vmatmul.mubr.f32.gmra.mrb[0].mxu0 %v8124
          %v8126 = vpop.f32.mrb[0].mxu0
          %v8127 = vadd.f32 %v8017, %v8126
          %v8128 = vpop.f32.mrb[0].mxu0
          %8129 = vmatprep.mubr.f32.mxu0 0.0
          %v8130 = vand.u32 %v7967, 4294901760
          %v8131 = vsub.f32 %v7967, %v8130
          %v8132 = vand.u32 %v8131, 4294901760
          %v8133 = vsub.f32 %v8131, %v8132
          %v8134 = vand.u32 %v8133, 4294901760
          %8135 = vmatmul.mubr.f32.gmra.mrb[0].mxu0 %v8134
          %v8136 = vpop.f32.mrb[0].mxu0
          %v8137 = vadd.f32 %v8017, %v8136
          %v8138 = vpop.f32.mrb[0].mxu0
          %8139 = vmatprep.mubr.f32.mxu0 0.0
          %v8140 = vand.u32 %v7968, 4294901760
          %v8141 = vsub.f32 %v7968, %v8140
          %v8142 = vand.u32 %v8141, 4294901760
          %v8143 = vsub.f32 %v8141, %v8142
          %v8144 = vand.u32 %v8143, 4294901760
          %8145 = vmatmul.mubr.f32.gmra.mrb[0].mxu0 %v8144
          %v8146 = vpop.f32.mrb[0].mxu0
          %v8147 = vadd.f32 %v8017, %v8146
          %v8148 = vpop.f32.mrb[0].mxu0
          %8149 = vmatprep.mubr.f32.mxu0 0.0
          %v8150 = vand.u32 %v7969, 4294901760
          %v8151 = vsub.f32 %v7969, %v8150
          %v8152 = vand.u32 %v8151, 4294901760
          %v8153 = vsub.f32 %v8151, %v8152
          %v8154 = vand.u32 %v8153, 4294901760
          %8155 = vmatmul.mubr.f32.gmra.mrb[0].mxu0 %v8154
          %v8156 = vpop.f32.mrb[0].mxu0
          %v8157 = vadd.f32 %v8017, %v8156
          %v8158 = vpop.f32.mrb[0].mxu0
          %8159 = vmatprep.mubr.f32.mxu0 0.0
          %v8160 = vand.u32 %v7970, 4294901760
          %v8161 = vsub.f32 %v7970, %v8160
          %v8162 = vand.u32 %v8161, 4294901760
          %v8163 = vsub.f32 %v8161, %v8162
          %v8164 = vand.u32 %v8163, 4294901760
          %8165 = vmatmul.mubr.f32.gmra.mrb[0].mxu0 %v8164
          %v8166 = vpop.f32.mrb[0].mxu0
          %v8167 = vadd.f32 %v8017, %v8166
          %v8168 = vpop.f32.mrb[0].mxu0
          %8169 = vmatprep.mubr.f32.mxu0 0.0
          %v8170 = vand.u32 %v7971, 4294901760
          %v8171 = vsub.f32 %v7971, %v8170
          %v8172 = vand.u32 %v8171, 4294901760
          %v8173 = vsub.f32 %v8171, %v8172
          %v8174 = vand.u32 %v8173, 4294901760
          %8175 = vmatmul.mubr.f32.gmra.mrb[0].mxu0 %v8174
          %v8176 = vpop.f32.mrb[0].mxu0
          %v8177 = vadd.f32 %v8017, %v8176
          %v8178 = vpop.f32.mrb[0].mxu0
          %8179 = vmatprep.mubr.f32.mxu0 0.0
          %v8180 = vand.u32 %v7972, 4294901760
          %v8181 = vsub.f32 %v7972, %v8180
          %v8182 = vand.u32 %v8181, 4294901760
          %v8183 = vsub.f32 %v8181, %v8182
          %v8184 = vand.u32 %v8183, 4294901760
          %8185 = vmatmul.mubr.f32.gmra.mrb[0].mxu0 %v8184
          %v8186 = vpop.f32.mrb[0].mxu0
          %v8187 = vadd.f32 %v8017, %v8186
          %v8188 = vpop.f32.mrb[0].mxu0
          %8189 = vmatprep.mubr.f32.mxu0 0.0
          %v8190 = vand.u32 %v7973, 4294901760
          %v8191 = vsub.f32 %v7973, %v8190
          %v8192 = vand.u32 %v8191, 4294901760
          %v8193 = vsub.f32 %v8191, %v8192
          %v8194 = vand.u32 %v8193, 4294901760
          %8195 = vmatmul.mubr.f32.gmra.mrb[0].mxu0 %v8194
          %v8196 = vpop.f32.mrb[0].mxu0
          %v8197 = vadd.f32 %v8017, %v8196
          %v8198 = vpop.f32.mrb[0].mxu0
          %8199 = vmatprep.mubr.f32.mxu0 0.0
          %v8200 = vand.u32 %v7974, 4294901760
          %v8201 = vsub.f32 %v7974, %v8200
          %v8202 = vand.u32 %v8201, 4294901760
          %v8203 = vsub.f32 %v8201, %v8202
          %v8204 = vand.u32 %v8203, 4294901760
          %8205 = vmatmul.mubr.f32.gmra.mrb[0].mxu0 %v8204
          %v8206 = vpop.f32.mrb[0].mxu0
          %v8207 = vadd.f32 %v8017, %v8206
          %v8208 = vpop.f32.mrb[0].mxu0
          %8209 = vmatprep.mubr.f32.mxu0 0.0
          %v8210 = vand.u32 %v7975, 4294901760
          %v8211 = vsub.f32 %v7975, %v8210
          %v8212 = vand.u32 %v8211, 4294901760
          %v8213 = vsub.f32 %v8211, %v8212
          %v8214 = vand.u32 %v8213, 4294901760
          %8215 = vmatmul.mubr.f32.gmra.mrb[0].mxu0 %v8214
          %v8216 = vpop.f32.mrb[0].mxu0
          %v8217 = vadd.f32 %v8017, %v8216
          %v8218 = vpop.f32.mrb[0].mxu0
          %8219 = vmatprep.mubr.f32.mxu0 0.0
          %v8220 = vand.u32 %v7976, 4294901760
          %v8221 = vsub.f32 %v7976, %v8220
          %v8222 = vand.u32 %v8221, 4294901760
          %v8223 = vsub.f32 %v8221, %v8222
          %v8224 = vand.u32 %v8223, 4294901760
          %8225 = vmatmul.mubr.f32.gmra.mrb[0].mxu0 %v8224
          %v8226 = vpop.f32.mrb[0].mxu0
          %v8227 = vadd.f32 %v8017, %v8226
          %v8228 = vpop.f32.mrb[0].mxu0
          %8229 = vmatprep.mubr.f32.mxu0 0.0
          %v8230 = vand.u32 %v7977, 4294901760
          %v8231 = vsub.f32 %v7977, %v8230
          %v8232 = vand.u32 %v8231, 4294901760
          %v8233 = vsub.f32 %v8231, %v8232
          %v8234 = vand.u32 %v8233, 4294901760
          %8235 = vmatmul.mubr.f32.gmra.mrb[0].mxu0 %v8234
          %v8236 = vpop.f32.mrb[0].mxu0
          %v8237 = vadd.f32 %v8017, %v8236
          %v8238 = vpop.f32.mrb[0].mxu0
          %8239 = vmatprep.mubr.f32.mxu0 0.0
          %v8240 = vand.u32 %v7978, 4294901760
          %v8241 = vsub.f32 %v7978, %v8240
          %v8242 = vand.u32 %v8241, 4294901760
          %v8243 = vsub.f32 %v8241, %v8242
          %v8244 = vand.u32 %v8243, 4294901760
          %8245 = vmatmul.mubr.f32.gmra.mrb[0].mxu0 %v8244
          %v8246 = vpop.f32.mrb[0].mxu0
          %v8247 = vadd.f32 %v8017, %v8246
          %v8248 = vpop.f32.mrb[0].mxu0
          %8249 = vmatprep.mubr.f32.mxu0 0.0
          %v8250 = vand.u32 %v7979, 4294901760
          %v8251 = vsub.f32 %v7979, %v8250
          %v8252 = vand.u32 %v8251, 4294901760
          %v8253 = vsub.f32 %v8251, %v8252
          %v8254 = vand.u32 %v8253, 4294901760
          %8255 = vmatmul.mubr.f32.gmra.mrb[0].mxu0 %v8254
          %v8256 = vpop.f32.mrb[0].mxu0
          %v8257 = vadd.f32 %v8017, %v8256
          %v8258 = vpop.f32.mrb[0].mxu0
          %8259 = vmatprep.mubr.f32.mxu0 0.0
          %v8260 = vand.u32 %v7980, 4294901760
          %v8261 = vsub.f32 %v7980, %v8260
          %v8262 = vand.u32 %v8261, 4294901760
          %v8263 = vsub.f32 %v8261, %v8262
          %v8264 = vand.u32 %v8263, 4294901760
          %8265 = vmatmul.mubr.f32.gmra.mrb[0].mxu0 %v8264
          %v8266 = vpop.f32.mrb[0].mxu0
          %v8267 = vadd.f32 %v8017, %v8266
          %v8268 = vpop.f32.mrb[0].mxu0
          %8269 = vmatprep.mubr.f32.mxu0 0.0
          %v8270 = vand.u32 %v7981, 4294901760
          %v8271 = vsub.f32 %v7981, %v8270
          %v8272 = vand.u32 %v8271, 4294901760
          %v8273 = vsub.f32 %v8271, %v8272
          %v8274 = vand.u32 %v8273, 4294901760
          %8275 = vmatmul.mubr.f32.gmra.mrb[0].mxu0 %v8274
          %v8276 = vpop.f32.mrb[0].mxu0
          %v8277 = vadd.f32 %v8017, %v8276
          %v8278 = vpop.f32.mrb[0].mxu0
          %8279 = vmatprep.mubr.f32.mxu0 0.0
          %v8280 = vand.u32 %v7982, 4294901760
          %v8281 = vsub.f32 %v7982, %v8280
          %v8282 = vand.u32 %v8281, 4294901760
          %v8283 = vsub.f32 %v8281, %v8282
          %v8284 = vand.u32 %v8283, 4294901760
          %8285 = vmatmul.mubr.f32.gmra.mrb[0].mxu0 %v8284
          %v8286 = vpop.f32.mrb[0].mxu0
          %v8287 = vadd.f32 %v8017, %v8286
          %v8288 = vpop.f32.mrb[0].mxu0
          %8289 = vmatprep.mubr.f32.mxu0 0.0
          %v8290 = vand.u32 %v7983, 4294901760
          %v8291 = vsub.f32 %v7983, %v8290
          %v8292 = vand.u32 %v8291, 4294901760
          %v8293 = vsub.f32 %v8291, %v8292
          %v8294 = vand.u32 %v8293, 4294901760
          %8295 = vmatmul.mubr.f32.gmra.mrb[0].mxu0 %v8294
          %v8296 = vpop.f32.mrb[0].mxu0
          %v8297 = vadd.f32 %v8017, %v8296
          %v8298 = vpop.f32.mrb[0].mxu0
          %8299 = vmatprep.mubr.f32.mxu0 0.0
          %v8300 = vand.u32 %v7984, 4294901760
          %v8301 = vsub.f32 %v7984, %v8300
          %v8302 = vand.u32 %v8301, 4294901760
          %v8303 = vsub.f32 %v8301, %v8302
          %v8304 = vand.u32 %v8303, 4294901760
          %8305 = vmatmul.mubr.f32.gmra.mrb[0].mxu0 %v8304
          %v8306 = vpop.f32.mrb[0].mxu0
          %v8307 = vadd.f32 %v8017, %v8306
          %v8308 = vpop.f32.mrb[0].mxu0
          %8309 = vmatprep.mubr.f32.mxu0 0.0
          %v8310 = vand.u32 %v7985, 4294901760
          %v8311 = vsub.f32 %v7985, %v8310
          %v8312 = vand.u32 %v8311, 4294901760
          %v8313 = vsub.f32 %v8311, %v8312
          %v8314 = vand.u32 %v8313, 4294901760
          %8315 = vmatmul.mubr.f32.gmra.mrb[0].mxu0 %v8314
          %v8316 = vpop.f32.mrb[0].mxu0
          %v8317 = vadd.f32 %v8017, %v8316
          %v8318 = vpop.f32.mrb[0].mxu0
          %8319 = vmatprep.mubr.f32.mxu0 0.0
          %v8320 = vand.u32 %v7986, 4294901760
          %v8321 = vsub.f32 %v7986, %v8320
          %v8322 = vand.u32 %v8321, 4294901760
          %v8323 = vsub.f32 %v8321, %v8322
          %v8324 = vand.u32 %v8323, 4294901760
          %8325 = vmatmul.mubr.f32.gmra.mrb[0].mxu0 %v8324
          %v8326 = vpop.f32.mrb[0].mxu0
          %v8327 = vadd.f32 %v8017, %v8326
          %v8328 = vpop.f32.mrb[0].mxu0
          %8329 = vmatprep.mubr.f32.mxu0 0.0
          %v8330 = vand.u32 %v7987, 4294901760
          %v8331 = vsub.f32 %v7987, %v8330
          %v8332 = vand.u32 %v8331, 4294901760
          %v8333 = vsub.f32 %v8331, %v8332
          %v8334 = vand.u32 %v8333, 4294901760
          %8335 = vmatmul.mubr.f32.gmra.mrb[0].mxu0 %v8334
          %v8336 = vpop.f32.mrb[0].mxu0
          %v8337 = vadd.f32 %v8017, %v8336
          %v8338 = vpop.f32.mrb[0].mxu0
          %8339 = vmatprep.mubr.f32.mxu0 0.0
          %v8340 = vand.u32 %v7988, 4294901760
          %v8341 = vsub.f32 %v7988, %v8340
          %v8342 = vand.u32 %v8341, 4294901760
          %v8343 = vsub.f32 %v8341, %v8342
          %v8344 = vand.u32 %v8343, 4294901760
          %8345 = vmatmul.mubr.f32.gmra.mrb[0].mxu0 %v8344
          %v8346 = vpop.f32.mrb[0].mxu0
          %v8347 = vadd.f32 %v8017, %v8346
          %v8348 = vpop.f32.mrb[0].mxu0
          %8349 = vmatprep.mubr.f32.mxu0 0.0
          %v8350 = vand.u32 %v7989, 4294901760
          %v8351 = vsub.f32 %v7989, %v8350
          %v8352 = vand.u32 %v8351, 4294901760
          %v8353 = vsub.f32 %v8351, %v8352
          %v8354 = vand.u32 %v8353, 4294901760
          %8355 = vmatmul.mubr.f32.gmra.mrb[0].mxu0 %v8354
          %v8356 = vpop.f32.mrb[0].mxu0
          %v8357 = vadd.f32 %v8017, %v8356
          %v8358 = vpop.f32.mrb[0].mxu0
          %8359 = vmatprep.mubr.f32.mxu0 0.0
          %v8360 = vand.u32 %v7990, 4294901760
          %v8361 = vsub.f32 %v7990, %v8360
          %v8362 = vand.u32 %v8361, 4294901760
          %v8363 = vsub.f32 %v8361, %v8362
          %v8364 = vand.u32 %v8363, 4294901760
          %8365 = vmatmul.mubr.f32.gmra.mrb[0].mxu0 %v8364
          %v8366 = vpop.f32.mrb[0].mxu0
          %v8367 = vadd.f32 %v8017, %v8366
          %v8368 = vpop.f32.mrb[0].mxu0
          %8369 = vmatprep.mubr.f32.mxu0 0.0
          %v8370 = vand.u32 %v7991, 4294901760
          %v8371 = vsub.f32 %v7991, %v8370
          %v8372 = vand.u32 %v8371, 4294901760
          %v8373 = vsub.f32 %v8371, %v8372
          %v8374 = vand.u32 %v8373, 4294901760
          %8375 = vmatmul.mubr.f32.gmra.mrb[0].mxu0 %v8374
          %v8376 = vpop.f32.mrb[0].mxu0
          %v8377 = vadd.f32 %v8017, %v8376
          %v8378 = vpop.f32.mrb[0].mxu0
          %8379 = vmatprep.mubr.f32.mxu0 0.0
          %v8380 = vand.u32 %v7992, 4294901760
          %v8381 = vsub.f32 %v7992, %v8380
          %v8382 = vand.u32 %v8381, 4294901760
          %v8383 = vsub.f32 %v8381, %v8382
          %v8384 = vand.u32 %v8383, 4294901760
          %8385 = vmatmul.mubr.f32.gmra.mrb[0].mxu0 %v8384
          %v8386 = vpop.f32.mrb[0].mxu0
          %v8387 = vadd.f32 %v8017, %v8386
          %v8388 = vpop.f32.mrb[0].mxu0
          %8389 = vmatprep.mubr.f32.mxu0 0.0
          %v8390 = vand.u32 %v7993, 4294901760
          %v8391 = vsub.f32 %v7993, %v8390
          %v8392 = vand.u32 %v8391, 4294901760
          %v8393 = vsub.f32 %v8391, %v8392
          %v8394 = vand.u32 %v8393, 4294901760
          %8395 = vmatmul.mubr.f32.gmra.mrb[0].mxu0 %v8394
          %v8396 = vpop.f32.mrb[0].mxu0
          %v8397 = vadd.f32 %v8017, %v8396
          %v8398 = vpop.f32.mrb[0].mxu0
          %8399 = vmatprep.mubr.f32.mxu0 0.0
          %v8400 = vand.u32 %v7994, 4294901760
          %v8401 = vsub.f32 %v7994, %v8400
          %v8402 = vand.u32 %v8401, 4294901760
          %v8403 = vsub.f32 %v8401, %v8402
          %v8404 = vand.u32 %v8403, 4294901760
          %8405 = vmatmul.mubr.f32.gmra.mrb[0].mxu0 %v8404
          %v8406 = vpop.f32.mrb[0].mxu0
          %v8407 = vadd.f32 %v8017, %v8406
          %v8408 = vpop.f32.mrb[0].mxu0
          %8409 = vmatprep.mubr.f32.mxu0 0.0
          %v8410 = vand.u32 %v7995, 4294901760
          %v8411 = vsub.f32 %v7995, %v8410
          %v8412 = vand.u32 %v8411, 4294901760
          %v8413 = vsub.f32 %v8411, %v8412
          %v8414 = vand.u32 %v8413, 4294901760
          %8415 = vmatmul.mubr.f32.gmra.mrb[0].mxu0 %v8414
          %v8416 = vpop.f32.mrb[0].mxu0
          %v8417 = vadd.f32 %v8017, %v8416
          %v8418 = vpop.f32.mrb[0].mxu0
          %8419 = vdwg.mxu0
          %8420 = vmatprep.subr.mxu0 0.0
          %v8421 = vand.u32 %v7996, 4294901760
          %v8422 = vsub.f32 %v7996, %v8421
          %v8423 = vand.u32 %v8422, 4294901760
          %v8424 = vsub.f32 %v8422, %v8423
          %v8425 = vand.u32 %v8424, 4294901760
          %8426 = vmatpush1.msra.mxu0 %v8425
          %8427 = vmatprep.subr.mxu0 0.0
          %v8428 = vand.u32 %v7997, 4294901760
          %v8429 = vsub.f32 %v7997, %v8428
          %v8430 = vand.u32 %v8429, 4294901760
          %v8431 = vsub.f32 %v8429, %v8430
          %v8432 = vand.u32 %v8431, 4294901760
          %8433 = vmatpush1.msra.mxu0 %v8432
          %8434 = vmatprep.subr.mxu0 0.0
          %v8435 = vand.u32 %v7998, 4294901760
          %v8436 = vsub.f32 %v7998, %v8435
          %v8437 = vand.u32 %v8436, 4294901760
          %v8438 = vsub.f32 %v8436, %v8437
          %v8439 = vand.u32 %v8438, 4294901760
          %8440 = vmatpush1.msra.mxu0 %v8439
          %8441 = vmatprep.subr.mxu0 0.0
          %v8442 = vand.u32 %v7999, 4294901760
          %v8443 = vsub.f32 %v7999, %v8442
          %v8444 = vand.u32 %v8443, 4294901760
          %v8445 = vsub.f32 %v8443, %v8444
          %v8446 = vand.u32 %v8445, 4294901760
          %8447 = vmatpush1.msra.mxu0 %v8446
          %8448 = vmatprep.subr.mxu0 0.0
          %v8449 = vand.u32 %v8000, 4294901760
          %v8450 = vsub.f32 %v8000, %v8449
          %v8451 = vand.u32 %v8450, 4294901760
          %v8452 = vsub.f32 %v8450, %v8451
          %v8453 = vand.u32 %v8452, 4294901760
          %8454 = vmatpush1.msra.mxu0 %v8453
          %8455 = vmatprep.subr.mxu0 0.0
          %v8456 = vand.u32 %v8001, 4294901760
          %v8457 = vsub.f32 %v8001, %v8456
          %v8458 = vand.u32 %v8457, 4294901760
          %v8459 = vsub.f32 %v8457, %v8458
          %v8460 = vand.u32 %v8459, 4294901760
          %8461 = vmatpush1.msra.mxu0 %v8460
          %8462 = vmatprep.subr.mxu0 0.0
          %v8463 = vand.u32 %v8002, 4294901760
          %v8464 = vsub.f32 %v8002, %v8463
          %v8465 = vand.u32 %v8464, 4294901760
          %v8466 = vsub.f32 %v8464, %v8465
          %v8467 = vand.u32 %v8466, 4294901760
          %8468 = vmatpush1.msra.mxu0 %v8467
          %8469 = vmatprep.subr.mxu0 0.0
          %v8470 = vand.u32 %v8003, 4294901760
          %v8471 = vsub.f32 %v8003, %v8470
          %v8472 = vand.u32 %v8471, 4294901760
          %v8473 = vsub.f32 %v8471, %v8472
          %v8474 = vand.u32 %v8473, 4294901760
          %8475 = vmatpush1.msra.mxu0 %v8474
          %8476 = vmatprep.subr.mxu0 0.0
          %v8477 = vand.u32 %v8004, 4294901760
          %v8478 = vsub.f32 %v8004, %v8477
          %v8479 = vand.u32 %v8478, 4294901760
          %v8480 = vsub.f32 %v8478, %v8479
          %v8481 = vand.u32 %v8480, 4294901760
          %8482 = vmatpush1.msra.mxu0 %v8481
          %8483 = vmatprep.subr.mxu0 0.0
          %v8484 = vand.u32 %v8005, 4294901760
          %v8485 = vsub.f32 %v8005, %v8484
          %v8486 = vand.u32 %v8485, 4294901760
          %v8487 = vsub.f32 %v8485, %v8486
          %v8488 = vand.u32 %v8487, 4294901760
          %8489 = vmatpush1.msra.mxu0 %v8488
          %8490 = vmatprep.subr.mxu0 0.0
          %v8491 = vand.u32 %v8006, 4294901760
          %v8492 = vsub.f32 %v8006, %v8491
          %v8493 = vand.u32 %v8492, 4294901760
          %v8494 = vsub.f32 %v8492, %v8493
          %v8495 = vand.u32 %v8494, 4294901760
          %8496 = vmatpush1.msra.mxu0 %v8495
          %8497 = vmatprep.subr.mxu0 0.0
          %v8498 = vand.u32 %v8007, 4294901760
          %v8499 = vsub.f32 %v8007, %v8498
          %v8500 = vand.u32 %v8499, 4294901760
          %v8501 = vsub.f32 %v8499, %v8500
          %v8502 = vand.u32 %v8501, 4294901760
          %8503 = vmatpush1.msra.mxu0 %v8502
          %8504 = vmatprep.subr.mxu0 0.0
          %v8505 = vand.u32 %v8008, 4294901760
          %v8506 = vsub.f32 %v8008, %v8505
          %v8507 = vand.u32 %v8506, 4294901760
          %v8508 = vsub.f32 %v8506, %v8507
          %v8509 = vand.u32 %v8508, 4294901760
          %8510 = vmatpush1.msra.mxu0 %v8509
          %8511 = vmatprep.subr.mxu0 0.0
          %v8512 = vand.u32 %v8009, 4294901760
          %v8513 = vsub.f32 %v8009, %v8512
          %v8514 = vand.u32 %v8513, 4294901760
          %v8515 = vsub.f32 %v8513, %v8514
          %v8516 = vand.u32 %v8515, 4294901760
          %8517 = vmatpush1.msra.mxu0 %v8516
          %8518 = vmatprep.subr.mxu0 0.0
          %v8519 = vand.u32 %v8010, 4294901760
          %v8520 = vsub.f32 %v8010, %v8519
          %v8521 = vand.u32 %v8520, 4294901760
          %v8522 = vsub.f32 %v8520, %v8521
          %v8523 = vand.u32 %v8522, 4294901760
          %8524 = vmatpush1.msra.mxu0 %v8523
          %8525 = vmatprep.subr.mxu0 0.0
          %v8526 = vand.u32 %v8011, 4294901760
          %v8527 = vsub.f32 %v8011, %v8526
          %v8528 = vand.u32 %v8527, 4294901760
          %v8529 = vsub.f32 %v8527, %v8528
          %v8530 = vand.u32 %v8529, 4294901760
          %8531 = vmatpush1.msra.mxu0 %v8530
          %8532 = vmatprep.subr.mxu0 0.0
          %8533 = vmatpush1.msra.mxu0 0.0
          %8534 = vmatprep.subr.mxu0 0.0
          %8535 = vmatpush1.msra.mxu0 0.0
          %8536 = vmatprep.subr.mxu0 0.0
          %8537 = vmatpush1.msra.mxu0 0.0
          %8538 = vmatprep.subr.mxu0 0.0
          %8539 = vmatpush1.msra.mxu0 0.0
          %8540 = vmatprep.subr.mxu0 0.0
          %8541 = vmatpush1.msra.mxu0 0.0
          %8542 = vmatprep.subr.mxu0 0.0
          %8543 = vmatpush1.msra.mxu0 0.0
          %8544 = vmatprep.subr.mxu0 0.0
          %8545 = vmatpush1.msra.mxu0 0.0
          %8546 = vmatprep.subr.mxu0 0.0
          %8547 = vmatpush1.msra.mxu0 0.0
          %8548 = vmatprep.subr.mxu0 0.0
          %8549 = vmatpush1.msra.mxu0 0.0
          %8550 = vmatprep.subr.mxu0 0.0
          %8551 = vmatpush1.msra.mxu0 0.0
          %8552 = vmatprep.subr.mxu0 0.0
          %8553 = vmatpush1.msra.mxu0 0.0
          %8554 = vmatprep.subr.mxu0 0.0
          %8555 = vmatpush1.msra.mxu0 0.0
          %8556 = vmatprep.subr.mxu0 0.0
          %8557 = vmatpush1.msra.mxu0 0.0
          %8558 = vmatprep.subr.mxu0 0.0
          %8559 = vmatpush1.msra.mxu0 0.0
          %8560 = vmatprep.subr.mxu0 0.0
          %8561 = vmatpush1.msra.mxu0 0.0
          %8562 = vmatprep.subr.mxu0 0.0
          %8563 = vmatpush1.msra.mxu0 0.0
          %8564 = vmatprep.mubr.f32.mxu0 0.0
          %v8565 = vand.u32 %v7964, 4294901760
          %8566 = vmatmul.mubr.f32.gmra.mrb[0].mxu0 %v8565
          %v8567 = vpop.f32.mrb[0].mxu0
          %v8568 = vadd.f32 %v8107, %v8567
          %v8569 = vpop.f32.mrb[0].mxu0
          %8570 = vmatprep.mubr.f32.mxu0 0.0
          %v8571 = vand.u32 %v7965, 4294901760
          %8572 = vmatmul.mubr.f32.gmra.mrb[0].mxu0 %v8571
          %v8573 = vpop.f32.mrb[0].mxu0
          %v8574 = vadd.f32 %v8117, %v8573
          %v8575 = vpop.f32.mrb[0].mxu0
          %8576 = vmatprep.mubr.f32.mxu0 0.0
          %v8577 = vand.u32 %v7966, 4294901760
          %8578 = vmatmul.mubr.f32.gmra.mrb[0].mxu0 %v8577
          %v8579 = vpop.f32.mrb[0].mxu0
          %v8580 = vadd.f32 %v8127, %v8579
          %v8581 = vpop.f32.mrb[0].mxu0
          %8582 = vmatprep.mubr.f32.mxu0 0.0
          %v8583 = vand.u32 %v7967, 4294901760
          %8584 = vmatmul.mubr.f32.gmra.mrb[0].mxu0 %v8583
          %v8585 = vpop.f32.mrb[0].mxu0
          %v8586 = vadd.f32 %v8137, %v8585
          %v8587 = vpop.f32.mrb[0].mxu0
          %8588 = vmatprep.mubr.f32.mxu0 0.0
          %v8589 = vand.u32 %v7968, 4294901760
          %8590 = vmatmul.mubr.f32.gmra.mrb[0].mxu0 %v8589
          %v8591 = vpop.f32.mrb[0].mxu0
          %v8592 = vadd.f32 %v8147, %v8591
          %v8593 = vpop.f32.mrb[0].mxu0
          %8594 = vmatprep.mubr.f32.mxu0 0.0
          %v8595 = vand.u32 %v7969, 4294901760
          %8596 = vmatmul.mubr.f32.gmra.mrb[0].mxu0 %v8595
          %v8597 = vpop.f32.mrb[0].mxu0
          %v8598 = vadd.f32 %v8157, %v8597
          %v8599 = vpop.f32.mrb[0].mxu0
          %8600 = vmatprep.mubr.f32.mxu0 0.0
          %v8601 = vand.u32 %v7970, 4294901760
          %8602 = vmatmul.mubr.f32.gmra.mrb[0].mxu0 %v8601
          %v8603 = vpop.f32.mrb[0].mxu0
          %v8604 = vadd.f32 %v8167, %v8603
          %v8605 = vpop.f32.mrb[0].mxu0
          %8606 = vmatprep.mubr.f32.mxu0 0.0
          %v8607 = vand.u32 %v7971, 4294901760
          %8608 = vmatmul.mubr.f32.gmra.mrb[0].mxu0 %v8607
          %v8609 = vpop.f32.mrb[0].mxu0
          %v8610 = vadd.f32 %v8177, %v8609
          %v8611 = vpop.f32.mrb[0].mxu0
          %8612 = vmatprep.mubr.f32.mxu0 0.0
          %v8613 = vand.u32 %v7972, 4294901760
          %8614 = vmatmul.mubr.f32.gmra.mrb[0].mxu0 %v8613
          %v8615 = vpop.f32.mrb[0].mxu0
          %v8616 = vadd.f32 %v8187, %v8615
          %v8617 = vpop.f32.mrb[0].mxu0
          %8618 = vmatprep.mubr.f32.mxu0 0.0
          %v8619 = vand.u32 %v7973, 4294901760
          %8620 = vmatmul.mubr.f32.gmra.mrb[0].mxu0 %v8619
          %v8621 = vpop.f32.mrb[0].mxu0
          %v8622 = vadd.f32 %v8197, %v8621
          %v8623 = vpop.f32.mrb[0].mxu0
          %8624 = vmatprep.mubr.f32.mxu0 0.0
          %v8625 = vand.u32 %v7974, 4294901760
          %8626 = vmatmul.mubr.f32.gmra.mrb[0].mxu0 %v8625
          %v8627 = vpop.f32.mrb[0].mxu0
          %v8628 = vadd.f32 %v8207, %v8627
          %v8629 = vpop.f32.mrb[0].mxu0
          %8630 = vmatprep.mubr.f32.mxu0 0.0
          %v8631 = vand.u32 %v7975, 4294901760
          %8632 = vmatmul.mubr.f32.gmra.mrb[0].mxu0 %v8631
          %v8633 = vpop.f32.mrb[0].mxu0
          %v8634 = vadd.f32 %v8217, %v8633
          %v8635 = vpop.f32.mrb[0].mxu0
          %8636 = vmatprep.mubr.f32.mxu0 0.0
          %v8637 = vand.u32 %v7976, 4294901760
          %8638 = vmatmul.mubr.f32.gmra.mrb[0].mxu0 %v8637
          %v8639 = vpop.f32.mrb[0].mxu0
          %v8640 = vadd.f32 %v8227, %v8639
          %v8641 = vpop.f32.mrb[0].mxu0
          %8642 = vmatprep.mubr.f32.mxu0 0.0
          %v8643 = vand.u32 %v7977, 4294901760
          %8644 = vmatmul.mubr.f32.gmra.mrb[0].mxu0 %v8643
          %v8645 = vpop.f32.mrb[0].mxu0
          %v8646 = vadd.f32 %v8237, %v8645
          %v8647 = vpop.f32.mrb[0].mxu0
          %8648 = vmatprep.mubr.f32.mxu0 0.0
          %v8649 = vand.u32 %v7978, 4294901760
          %8650 = vmatmul.mubr.f32.gmra.mrb[0].mxu0 %v8649
          %v8651 = vpop.f32.mrb[0].mxu0
          %v8652 = vadd.f32 %v8247, %v8651
          %v8653 = vpop.f32.mrb[0].mxu0
          %8654 = vmatprep.mubr.f32.mxu0 0.0
          %v8655 = vand.u32 %v7979, 4294901760
          %8656 = vmatmul.mubr.f32.gmra.mrb[0].mxu0 %v8655
          %v8657 = vpop.f32.mrb[0].mxu0
          %v8658 = vadd.f32 %v8257, %v8657
          %v8659 = vpop.f32.mrb[0].mxu0
          %8660 = vmatprep.mubr.f32.mxu0 0.0
          %v8661 = vand.u32 %v7980, 4294901760
          %8662 = vmatmul.mubr.f32.gmra.mrb[0].mxu0 %v8661
          %v8663 = vpop.f32.mrb[0].mxu0
          %v8664 = vadd.f32 %v8267, %v8663
          %v8665 = vpop.f32.mrb[0].mxu0
          %8666 = vmatprep.mubr.f32.mxu0 0.0
          %v8667 = vand.u32 %v7981, 4294901760
          %8668 = vmatmul.mubr.f32.gmra.mrb[0].mxu0 %v8667
          %v8669 = vpop.f32.mrb[0].mxu0
          %v8670 = vadd.f32 %v8277, %v8669
          %v8671 = vpop.f32.mrb[0].mxu0
          %8672 = vmatprep.mubr.f32.mxu0 0.0
          %v8673 = vand.u32 %v7982, 4294901760
          %8674 = vmatmul.mubr.f32.gmra.mrb[0].mxu0 %v8673
          %v8675 = vpop.f32.mrb[0].mxu0
          %v8676 = vadd.f32 %v8287, %v8675
          %v8677 = vpop.f32.mrb[0].mxu0
          %8678 = vmatprep.mubr.f32.mxu0 0.0
          %v8679 = vand.u32 %v7983, 4294901760
          %8680 = vmatmul.mubr.f32.gmra.mrb[0].mxu0 %v8679
          %v8681 = vpop.f32.mrb[0].mxu0
          %v8682 = vadd.f32 %v8297, %v8681
          %v8683 = vpop.f32.mrb[0].mxu0
          %8684 = vmatprep.mubr.f32.mxu0 0.0
          %v8685 = vand.u32 %v7984, 4294901760
          %8686 = vmatmul.mubr.f32.gmra.mrb[0].mxu0 %v8685
          %v8687 = vpop.f32.mrb[0].mxu0
          %v8688 = vadd.f32 %v8307, %v8687
          %v8689 = vpop.f32.mrb[0].mxu0
          %8690 = vmatprep.mubr.f32.mxu0 0.0
          %v8691 = vand.u32 %v7985, 4294901760
          %8692 = vmatmul.mubr.f32.gmra.mrb[0].mxu0 %v8691
          %v8693 = vpop.f32.mrb[0].mxu0
          %v8694 = vadd.f32 %v8317, %v8693
          %v8695 = vpop.f32.mrb[0].mxu0
          %8696 = vmatprep.mubr.f32.mxu0 0.0
          %v8697 = vand.u32 %v7986, 4294901760
          %8698 = vmatmul.mubr.f32.gmra.mrb[0].mxu0 %v8697
          %v8699 = vpop.f32.mrb[0].mxu0
          %v8700 = vadd.f32 %v8327, %v8699
          %v8701 = vpop.f32.mrb[0].mxu0
          %8702 = vmatprep.mubr.f32.mxu0 0.0
          %v8703 = vand.u32 %v7987, 4294901760
          %8704 = vmatmul.mubr.f32.gmra.mrb[0].mxu0 %v8703
          %v8705 = vpop.f32.mrb[0].mxu0
          %v8706 = vadd.f32 %v8337, %v8705
          %v8707 = vpop.f32.mrb[0].mxu0
          %8708 = vmatprep.mubr.f32.mxu0 0.0
          %v8709 = vand.u32 %v7988, 4294901760
          %8710 = vmatmul.mubr.f32.gmra.mrb[0].mxu0 %v8709
          %v8711 = vpop.f32.mrb[0].mxu0
          %v8712 = vadd.f32 %v8347, %v8711
          %v8713 = vpop.f32.mrb[0].mxu0
          %8714 = vmatprep.mubr.f32.mxu0 0.0
          %v8715 = vand.u32 %v7989, 4294901760
          %8716 = vmatmul.mubr.f32.gmra.mrb[0].mxu0 %v8715
          %v8717 = vpop.f32.mrb[0].mxu0
          %v8718 = vadd.f32 %v8357, %v8717
          %v8719 = vpop.f32.mrb[0].mxu0
          %8720 = vmatprep.mubr.f32.mxu0 0.0
          %v8721 = vand.u32 %v7990, 4294901760
          %8722 = vmatmul.mubr.f32.gmra.mrb[0].mxu0 %v8721
          %v8723 = vpop.f32.mrb[0].mxu0
          %v8724 = vadd.f32 %v8367, %v8723
          %v8725 = vpop.f32.mrb[0].mxu0
          %8726 = vmatprep.mubr.f32.mxu0 0.0
          %v8727 = vand.u32 %v7991, 4294901760
          %8728 = vmatmul.mubr.f32.gmra.mrb[0].mxu0 %v8727
          %v8729 = vpop.f32.mrb[0].mxu0
          %v8730 = vadd.f32 %v8377, %v8729
          %v8731 = vpop.f32.mrb[0].mxu0
          %8732 = vmatprep.mubr.f32.mxu0 0.0
          %v8733 = vand.u32 %v7992, 4294901760
          %8734 = vmatmul.mubr.f32.gmra.mrb[0].mxu0 %v8733
          %v8735 = vpop.f32.mrb[0].mxu0
          %v8736 = vadd.f32 %v8387, %v8735
          %v8737 = vpop.f32.mrb[0].mxu0
          %8738 = vmatprep.mubr.f32.mxu0 0.0
          %v8739 = vand.u32 %v7993, 4294901760
          %8740 = vmatmul.mubr.f32.gmra.mrb[0].mxu0 %v8739
          %v8741 = vpop.f32.mrb[0].mxu0
          %v8742 = vadd.f32 %v8397, %v8741
          %v8743 = vpop.f32.mrb[0].mxu0
          %8744 = vmatprep.mubr.f32.mxu0 0.0
          %v8745 = vand.u32 %v7994, 4294901760
          %8746 = vmatmul.mubr.f32.gmra.mrb[0].mxu0 %v8745
          %v8747 = vpop.f32.mrb[0].mxu0
          %v8748 = vadd.f32 %v8407, %v8747
          %v8749 = vpop.f32.mrb[0].mxu0
          %8750 = vmatprep.mubr.f32.mxu0 0.0
          %v8751 = vand.u32 %v7995, 4294901760
          %8752 = vmatmul.mubr.f32.gmra.mrb[0].mxu0 %v8751
          %v8753 = vpop.f32.mrb[0].mxu0
          %v8754 = vadd.f32 %v8417, %v8753
          %v8755 = vpop.f32.mrb[0].mxu0
          %8756 = vdwg.mxu0
          %8757 = vmatprep.subr.mxu0 0.0
          %v8758 = vand.u32 %v7996, 4294901760
          %v8759 = vsub.f32 %v7996, %v8758
          %8760 = vmatpush1.msra.mxu0 %v8759
          %8761 = vmatprep.subr.mxu0 0.0
          %v8762 = vand.u32 %v7997, 4294901760
          %v8763 = vsub.f32 %v7997, %v8762
          %8764 = vmatpush1.msra.mxu0 %v8763
          %8765 = vmatprep.subr.mxu0 0.0
          %v8766 = vand.u32 %v7998, 4294901760
          %v8767 = vsub.f32 %v7998, %v8766
          %8768 = vmatpush1.msra.mxu0 %v8767
          %8769 = vmatprep.subr.mxu0 0.0
          %v8770 = vand.u32 %v7999, 4294901760
          %v8771 = vsub.f32 %v7999, %v8770
          %8772 = vmatpush1.msra.mxu0 %v8771
          %8773 = vmatprep.subr.mxu0 0.0
          %v8774 = vand.u32 %v8000, 4294901760
          %v8775 = vsub.f32 %v8000, %v8774
          %8776 = vmatpush1.msra.mxu0 %v8775
          %8777 = vmatprep.subr.mxu0 0.0
          %v8778 = vand.u32 %v8001, 4294901760
          %v8779 = vsub.f32 %v8001, %v8778
          %8780 = vmatpush1.msra.mxu0 %v8779
          %8781 = vmatprep.subr.mxu0 0.0
          %v8782 = vand.u32 %v8002, 4294901760
          %v8783 = vsub.f32 %v8002, %v8782
          %8784 = vmatpush1.msra.mxu0 %v8783
          %8785 = vmatprep.subr.mxu0 0.0
          %v8786 = vand.u32 %v8003, 4294901760
          %v8787 = vsub.f32 %v8003, %v8786
          %8788 = vmatpush1.msra.mxu0 %v8787
          %8789 = vmatprep.subr.mxu0 0.0
          %v8790 = vand.u32 %v8004, 4294901760
          %v8791 = vsub.f32 %v8004, %v8790
          %8792 = vmatpush1.msra.mxu0 %v8791
          %8793 = vmatprep.subr.mxu0 0.0
          %v8794 = vand.u32 %v8005, 4294901760
          %v8795 = vsub.f32 %v8005, %v8794
          %8796 = vmatpush1.msra.mxu0 %v8795
          %8797 = vmatprep.subr.mxu0 0.0
          %v8798 = vand.u32 %v8006, 4294901760
          %v8799 = vsub.f32 %v8006, %v8798
          %8800 = vmatpush1.msra.mxu0 %v8799
          %8801 = vmatprep.subr.mxu0 0.0
          %v8802 = vand.u32 %v8007, 4294901760
          %v8803 = vsub.f32 %v8007, %v8802
          %8804 = vmatpush1.msra.mxu0 %v8803
          %8805 = vmatprep.subr.mxu0 0.0
          %v8806 = vand.u32 %v8008, 4294901760
          %v8807 = vsub.f32 %v8008, %v8806
          %8808 = vmatpush1.msra.mxu0 %v8807
          %8809 = vmatprep.subr.mxu0 0.0
          %v8810 = vand.u32 %v8009, 4294901760
          %v8811 = vsub.f32 %v8009, %v8810
          %8812 = vmatpush1.msra.mxu0 %v8811
          %8813 = vmatprep.subr.mxu0 0.0
          %v8814 = vand.u32 %v8010, 4294901760
          %v8815 = vsub.f32 %v8010, %v8814
          %8816 = vmatpush1.msra.mxu0 %v8815
          %8817 = vmatprep.subr.mxu0 0.0
          %v8818 = vand.u32 %v8011, 4294901760
          %v8819 = vsub.f32 %v8011, %v8818
          %8820 = vmatpush1.msra.mxu0 %v8819
          %8821 = vmatprep.subr.mxu0 0.0
          %8822 = vmatpush1.msra.mxu0 0.0
          %8823 = vmatprep.subr.mxu0 0.0
          %8824 = vmatpush1.msra.mxu0 0.0
          %8825 = vmatprep.subr.mxu0 0.0
          %8826 = vmatpush1.msra.mxu0 0.0
          %8827 = vmatprep.subr.mxu0 0.0
          %8828 = vmatpush1.msra.mxu0 0.0
          %8829 = vmatprep.subr.mxu0 0.0
          %8830 = vmatpush1.msra.mxu0 0.0
          %8831 = vmatprep.subr.mxu0 0.0
          %8832 = vmatpush1.msra.mxu0 0.0
          %8833 = vmatprep.subr.mxu0 0.0
          %8834 = vmatpush1.msra.mxu0 0.0
          %8835 = vmatprep.subr.mxu0 0.0
          %8836 = vmatpush1.msra.mxu0 0.0
          %8837 = vmatprep.subr.mxu0 0.0
          %8838 = vmatpush1.msra.mxu0 0.0
          %8839 = vmatprep.subr.mxu0 0.0
          %8840 = vmatpush1.msra.mxu0 0.0
          %8841 = vmatprep.subr.mxu0 0.0
          %8842 = vmatpush1.msra.mxu0 0.0
          %8843 = vmatprep.subr.mxu0 0.0
          %8844 = vmatpush1.msra.mxu0 0.0
          %8845 = vmatprep.subr.mxu0 0.0
          %8846 = vmatpush1.msra.mxu0 0.0
          %8847 = vmatprep.subr.mxu0 0.0
          %8848 = vmatpush1.msra.mxu0 0.0
          %8849 = vmatprep.subr.mxu0 0.0
          %8850 = vmatpush1.msra.mxu0 0.0
          %8851 = vmatprep.subr.mxu0 0.0
          %8852 = vmatpush1.msra.mxu0 0.0
          %8853 = vmatprep.mubr.f32.mxu0 0.0
          %v8854 = vand.u32 %v7964, 4294901760
          %v8855 = vsub.f32 %v7964, %v8854
          %8856 = vmatmul.mubr.f32.gmra.mrb[0].mxu0 %v8855
          %v8857 = vpop.f32.mrb[0].mxu0
          %v8858 = vadd.f32 %v8568, %v8857
          %v8859 = vpop.f32.mrb[0].mxu0
          %8860 = vmatprep.mubr.f32.mxu0 0.0
          %v8861 = vand.u32 %v7965, 4294901760
          %v8862 = vsub.f32 %v7965, %v8861
          %8863 = vmatmul.mubr.f32.gmra.mrb[0].mxu0 %v8862
          %v8864 = vpop.f32.mrb[0].mxu0
          %v8865 = vadd.f32 %v8574, %v8864
          %v8866 = vpop.f32.mrb[0].mxu0
          %8867 = vmatprep.mubr.f32.mxu0 0.0
          %v8868 = vand.u32 %v7966, 4294901760
          %v8869 = vsub.f32 %v7966, %v8868
          %8870 = vmatmul.mubr.f32.gmra.mrb[0].mxu0 %v8869
          %v8871 = vpop.f32.mrb[0].mxu0
          %v8872 = vadd.f32 %v8580, %v8871
          %v8873 = vpop.f32.mrb[0].mxu0
          %8874 = vmatprep.mubr.f32.mxu0 0.0
          %v8875 = vand.u32 %v7967, 4294901760
          %v8876 = vsub.f32 %v7967, %v8875
          %8877 = vmatmul.mubr.f32.gmra.mrb[0].mxu0 %v8876
          %v8878 = vpop.f32.mrb[0].mxu0
          %v8879 = vadd.f32 %v8586, %v8878
          %v8880 = vpop.f32.mrb[0].mxu0
          %8881 = vmatprep.mubr.f32.mxu0 0.0
          %v8882 = vand.u32 %v7968, 4294901760
          %v8883 = vsub.f32 %v7968, %v8882
          %8884 = vmatmul.mubr.f32.gmra.mrb[0].mxu0 %v8883
          %v8885 = vpop.f32.mrb[0].mxu0
          %v8886 = vadd.f32 %v8592, %v8885
          %v8887 = vpop.f32.mrb[0].mxu0
          %8888 = vmatprep.mubr.f32.mxu0 0.0
          %v8889 = vand.u32 %v7969, 4294901760
          %v8890 = vsub.f32 %v7969, %v8889
          %8891 = vmatmul.mubr.f32.gmra.mrb[0].mxu0 %v8890
          %v8892 = vpop.f32.mrb[0].mxu0
          %v8893 = vadd.f32 %v8598, %v8892
          %v8894 = vpop.f32.mrb[0].mxu0
          %8895 = vmatprep.mubr.f32.mxu0 0.0
          %v8896 = vand.u32 %v7970, 4294901760
          %v8897 = vsub.f32 %v7970, %v8896
          %8898 = vmatmul.mubr.f32.gmra.mrb[0].mxu0 %v8897
          %v8899 = vpop.f32.mrb[0].mxu0
          %v8900 = vadd.f32 %v8604, %v8899
          %v8901 = vpop.f32.mrb[0].mxu0
          %8902 = vmatprep.mubr.f32.mxu0 0.0
          %v8903 = vand.u32 %v7971, 4294901760
          %v8904 = vsub.f32 %v7971, %v8903
          %8905 = vmatmul.mubr.f32.gmra.mrb[0].mxu0 %v8904
          %v8906 = vpop.f32.mrb[0].mxu0
          %v8907 = vadd.f32 %v8610, %v8906
          %v8908 = vpop.f32.mrb[0].mxu0
          %8909 = vmatprep.mubr.f32.mxu0 0.0
          %v8910 = vand.u32 %v7972, 4294901760
          %v8911 = vsub.f32 %v7972, %v8910
          %8912 = vmatmul.mubr.f32.gmra.mrb[0].mxu0 %v8911
          %v8913 = vpop.f32.mrb[0].mxu0
          %v8914 = vadd.f32 %v8616, %v8913
          %v8915 = vpop.f32.mrb[0].mxu0
          %8916 = vmatprep.mubr.f32.mxu0 0.0
          %v8917 = vand.u32 %v7973, 4294901760
          %v8918 = vsub.f32 %v7973, %v8917
          %8919 = vmatmul.mubr.f32.gmra.mrb[0].mxu0 %v8918
          %v8920 = vpop.f32.mrb[0].mxu0
          %v8921 = vadd.f32 %v8622, %v8920
          %v8922 = vpop.f32.mrb[0].mxu0
          %8923 = vmatprep.mubr.f32.mxu0 0.0
          %v8924 = vand.u32 %v7974, 4294901760
          %v8925 = vsub.f32 %v7974, %v8924
          %8926 = vmatmul.mubr.f32.gmra.mrb[0].mxu0 %v8925
          %v8927 = vpop.f32.mrb[0].mxu0
          %v8928 = vadd.f32 %v8628, %v8927
          %v8929 = vpop.f32.mrb[0].mxu0
          %8930 = vmatprep.mubr.f32.mxu0 0.0
          %v8931 = vand.u32 %v7975, 4294901760
          %v8932 = vsub.f32 %v7975, %v8931
          %8933 = vmatmul.mubr.f32.gmra.mrb[0].mxu0 %v8932
          %v8934 = vpop.f32.mrb[0].mxu0
          %v8935 = vadd.f32 %v8634, %v8934
          %v8936 = vpop.f32.mrb[0].mxu0
          %8937 = vmatprep.mubr.f32.mxu0 0.0
          %v8938 = vand.u32 %v7976, 4294901760
          %v8939 = vsub.f32 %v7976, %v8938
          %8940 = vmatmul.mubr.f32.gmra.mrb[0].mxu0 %v8939
          %v8941 = vpop.f32.mrb[0].mxu0
          %v8942 = vadd.f32 %v8640, %v8941
          %v8943 = vpop.f32.mrb[0].mxu0
          %8944 = vmatprep.mubr.f32.mxu0 0.0
          %v8945 = vand.u32 %v7977, 4294901760
          %v8946 = vsub.f32 %v7977, %v8945
          %8947 = vmatmul.mubr.f32.gmra.mrb[0].mxu0 %v8946
          %v8948 = vpop.f32.mrb[0].mxu0
          %v8949 = vadd.f32 %v8646, %v8948
          %v8950 = vpop.f32.mrb[0].mxu0
          %8951 = vmatprep.mubr.f32.mxu0 0.0
          %v8952 = vand.u32 %v7978, 4294901760
          %v8953 = vsub.f32 %v7978, %v8952
          %8954 = vmatmul.mubr.f32.gmra.mrb[0].mxu0 %v8953
          %v8955 = vpop.f32.mrb[0].mxu0
          %v8956 = vadd.f32 %v8652, %v8955
          %v8957 = vpop.f32.mrb[0].mxu0
          %8958 = vmatprep.mubr.f32.mxu0 0.0
          %v8959 = vand.u32 %v7979, 4294901760
          %v8960 = vsub.f32 %v7979, %v8959
          %8961 = vmatmul.mubr.f32.gmra.mrb[0].mxu0 %v8960
          %v8962 = vpop.f32.mrb[0].mxu0
          %v8963 = vadd.f32 %v8658, %v8962
          %v8964 = vpop.f32.mrb[0].mxu0
          %8965 = vmatprep.mubr.f32.mxu0 0.0
          %v8966 = vand.u32 %v7980, 4294901760
          %v8967 = vsub.f32 %v7980, %v8966
          %8968 = vmatmul.mubr.f32.gmra.mrb[0].mxu0 %v8967
          %v8969 = vpop.f32.mrb[0].mxu0
          %v8970 = vadd.f32 %v8664, %v8969
          %v8971 = vpop.f32.mrb[0].mxu0
          %8972 = vmatprep.mubr.f32.mxu0 0.0
          %v8973 = vand.u32 %v7981, 4294901760
          %v8974 = vsub.f32 %v7981, %v8973
          %8975 = vmatmul.mubr.f32.gmra.mrb[0].mxu0 %v8974
          %v8976 = vpop.f32.mrb[0].mxu0
          %v8977 = vadd.f32 %v8670, %v8976
          %v8978 = vpop.f32.mrb[0].mxu0
          %8979 = vmatprep.mubr.f32.mxu0 0.0
          %v8980 = vand.u32 %v7982, 4294901760
          %v8981 = vsub.f32 %v7982, %v8980
          %8982 = vmatmul.mubr.f32.gmra.mrb[0].mxu0 %v8981
          %v8983 = vpop.f32.mrb[0].mxu0
          %v8984 = vadd.f32 %v8676, %v8983
          %v8985 = vpop.f32.mrb[0].mxu0
          %8986 = vmatprep.mubr.f32.mxu0 0.0
          %v8987 = vand.u32 %v7983, 4294901760
          %v8988 = vsub.f32 %v7983, %v8987
          %8989 = vmatmul.mubr.f32.gmra.mrb[0].mxu0 %v8988
          %v8990 = vpop.f32.mrb[0].mxu0
          %v8991 = vadd.f32 %v8682, %v8990
          %v8992 = vpop.f32.mrb[0].mxu0
          %8993 = vmatprep.mubr.f32.mxu0 0.0
          %v8994 = vand.u32 %v7984, 4294901760
          %v8995 = vsub.f32 %v7984, %v8994
          %8996 = vmatmul.mubr.f32.gmra.mrb[0].mxu0 %v8995
          %v8997 = vpop.f32.mrb[0].mxu0
          %v8998 = vadd.f32 %v8688, %v8997
          %v8999 = vpop.f32.mrb[0].mxu0
          %9000 = vmatprep.mubr.f32.mxu0 0.0
          %v9001 = vand.u32 %v7985, 4294901760
          %v9002 = vsub.f32 %v7985, %v9001
          %9003 = vmatmul.mubr.f32.gmra.mrb[0].mxu0 %v9002
          %v9004 = vpop.f32.mrb[0].mxu0
          %v9005 = vadd.f32 %v8694, %v9004
          %v9006 = vpop.f32.mrb[0].mxu0
          %9007 = vmatprep.mubr.f32.mxu0 0.0
          %v9008 = vand.u32 %v7986, 4294901760
          %v9009 = vsub.f32 %v7986, %v9008
          %9010 = vmatmul.mubr.f32.gmra.mrb[0].mxu0 %v9009
          %v9011 = vpop.f32.mrb[0].mxu0
          %v9012 = vadd.f32 %v8700, %v9011
          %v9013 = vpop.f32.mrb[0].mxu0
          %9014 = vmatprep.mubr.f32.mxu0 0.0
          %v9015 = vand.u32 %v7987, 4294901760
          %v9016 = vsub.f32 %v7987, %v9015
          %9017 = vmatmul.mubr.f32.gmra.mrb[0].mxu0 %v9016
          %v9018 = vpop.f32.mrb[0].mxu0
          %v9019 = vadd.f32 %v8706, %v9018
          %v9020 = vpop.f32.mrb[0].mxu0
          %9021 = vmatprep.mubr.f32.mxu0 0.0
          %v9022 = vand.u32 %v7988, 4294901760
          %v9023 = vsub.f32 %v7988, %v9022
          %9024 = vmatmul.mubr.f32.gmra.mrb[0].mxu0 %v9023
          %v9025 = vpop.f32.mrb[0].mxu0
          %v9026 = vadd.f32 %v8712, %v9025
          %v9027 = vpop.f32.mrb[0].mxu0
          %9028 = vmatprep.mubr.f32.mxu0 0.0
          %v9029 = vand.u32 %v7989, 4294901760
          %v9030 = vsub.f32 %v7989, %v9029
          %9031 = vmatmul.mubr.f32.gmra.mrb[0].mxu0 %v9030
          %v9032 = vpop.f32.mrb[0].mxu0
          %v9033 = vadd.f32 %v8718, %v9032
          %v9034 = vpop.f32.mrb[0].mxu0
          %9035 = vmatprep.mubr.f32.mxu0 0.0
          %v9036 = vand.u32 %v7990, 4294901760
          %v9037 = vsub.f32 %v7990, %v9036
          %9038 = vmatmul.mubr.f32.gmra.mrb[0].mxu0 %v9037
          %v9039 = vpop.f32.mrb[0].mxu0
          %v9040 = vadd.f32 %v8724, %v9039
          %v9041 = vpop.f32.mrb[0].mxu0
          %9042 = vmatprep.mubr.f32.mxu0 0.0
          %v9043 = vand.u32 %v7991, 4294901760
          %v9044 = vsub.f32 %v7991, %v9043
          %9045 = vmatmul.mubr.f32.gmra.mrb[0].mxu0 %v9044
          %v9046 = vpop.f32.mrb[0].mxu0
          %v9047 = vadd.f32 %v8730, %v9046
          %v9048 = vpop.f32.mrb[0].mxu0
          %9049 = vmatprep.mubr.f32.mxu0 0.0
          %v9050 = vand.u32 %v7992, 4294901760
          %v9051 = vsub.f32 %v7992, %v9050
          %9052 = vmatmul.mubr.f32.gmra.mrb[0].mxu0 %v9051
          %v9053 = vpop.f32.mrb[0].mxu0
          %v9054 = vadd.f32 %v8736, %v9053
          %v9055 = vpop.f32.mrb[0].mxu0
          %9056 = vmatprep.mubr.f32.mxu0 0.0
          %v9057 = vand.u32 %v7993, 4294901760
          %v9058 = vsub.f32 %v7993, %v9057
          %9059 = vmatmul.mubr.f32.gmra.mrb[0].mxu0 %v9058
          %v9060 = vpop.f32.mrb[0].mxu0
          %v9061 = vadd.f32 %v8742, %v9060
          %v9062 = vpop.f32.mrb[0].mxu0
          %9063 = vmatprep.mubr.f32.mxu0 0.0
          %v9064 = vand.u32 %v7994, 4294901760
          %v9065 = vsub.f32 %v7994, %v9064
          %9066 = vmatmul.mubr.f32.gmra.mrb[0].mxu0 %v9065
          %v9067 = vpop.f32.mrb[0].mxu0
          %v9068 = vadd.f32 %v8748, %v9067
          %v9069 = vpop.f32.mrb[0].mxu0
          %9070 = vmatprep.mubr.f32.mxu0 0.0
          %v9071 = vand.u32 %v7995, 4294901760
          %v9072 = vsub.f32 %v7995, %v9071
          %9073 = vmatmul.mubr.f32.gmra.mrb[0].mxu0 %v9072
          %v9074 = vpop.f32.mrb[0].mxu0
          %v9075 = vadd.f32 %v8754, %v9074
          %v9076 = vpop.f32.mrb[0].mxu0
          %9077 = vdwg.mxu0
          %9078 = vmatprep.subr.mxu0 0.0
          %v9079 = vand.u32 %v7996, 4294901760
          %9080 = vmatpush1.msra.mxu0 %v9079
          %9081 = vmatprep.subr.mxu0 0.0
          %v9082 = vand.u32 %v7997, 4294901760
          %9083 = vmatpush1.msra.mxu0 %v9082
          %9084 = vmatprep.subr.mxu0 0.0
          %v9085 = vand.u32 %v7998, 4294901760
          %9086 = vmatpush1.msra.mxu0 %v9085
          %9087 = vmatprep.subr.mxu0 0.0
          %v9088 = vand.u32 %v7999, 4294901760
          %9089 = vmatpush1.msra.mxu0 %v9088
          %9090 = vmatprep.subr.mxu0 0.0
          %v9091 = vand.u32 %v8000, 4294901760
          %9092 = vmatpush1.msra.mxu0 %v9091
          %9093 = vmatprep.subr.mxu0 0.0
          %v9094 = vand.u32 %v8001, 4294901760
          %9095 = vmatpush1.msra.mxu0 %v9094
          %9096 = vmatprep.subr.mxu0 0.0
          %v9097 = vand.u32 %v8002, 4294901760
          %9098 = vmatpush1.msra.mxu0 %v9097
          %9099 = vmatprep.subr.mxu0 0.0
          %v9100 = vand.u32 %v8003, 4294901760
          %9101 = vmatpush1.msra.mxu0 %v9100
          %9102 = vmatprep.subr.mxu0 0.0
          %v9103 = vand.u32 %v8004, 4294901760
          %9104 = vmatpush1.msra.mxu0 %v9103
          %9105 = vmatprep.subr.mxu0 0.0
          %v9106 = vand.u32 %v8005, 4294901760
          %9107 = vmatpush1.msra.mxu0 %v9106
          %9108 = vmatprep.subr.mxu0 0.0
          %v9109 = vand.u32 %v8006, 4294901760
          %9110 = vmatpush1.msra.mxu0 %v9109
          %9111 = vmatprep.subr.mxu0 0.0
          %v9112 = vand.u32 %v8007, 4294901760
          %9113 = vmatpush1.msra.mxu0 %v9112
          %9114 = vmatprep.subr.mxu0 0.0
          %v9115 = vand.u32 %v8008, 4294901760
          %9116 = vmatpush1.msra.mxu0 %v9115
          %9117 = vmatprep.subr.mxu0 0.0
          %v9118 = vand.u32 %v8009, 4294901760
          %9119 = vmatpush1.msra.mxu0 %v9118
          %9120 = vmatprep.subr.mxu0 0.0
          %v9121 = vand.u32 %v8010, 4294901760
          %9122 = vmatpush1.msra.mxu0 %v9121
          %9123 = vmatprep.subr.mxu0 0.0
          %v9124 = vand.u32 %v8011, 4294901760
          %9125 = vmatpush1.msra.mxu0 %v9124
          %9126 = vmatprep.subr.mxu0 0.0
          %9127 = vmatpush1.msra.mxu0 0.0
          %9128 = vmatprep.subr.mxu0 0.0
          %9129 = vmatpush1.msra.mxu0 0.0
          %9130 = vmatprep.subr.mxu0 0.0
          %9131 = vmatpush1.msra.mxu0 0.0
          %9132 = vmatprep.subr.mxu0 0.0
          %9133 = vmatpush1.msra.mxu0 0.0
          %9134 = vmatprep.subr.mxu0 0.0
          %9135 = vmatpush1.msra.mxu0 0.0
          %9136 = vmatprep.subr.mxu0 0.0
          %9137 = vmatpush1.msra.mxu0 0.0
          %9138 = vmatprep.subr.mxu0 0.0
          %9139 = vmatpush1.msra.mxu0 0.0
          %9140 = vmatprep.subr.mxu0 0.0
          %9141 = vmatpush1.msra.mxu0 0.0
          %9142 = vmatprep.subr.mxu0 0.0
          %9143 = vmatpush1.msra.mxu0 0.0
          %9144 = vmatprep.subr.mxu0 0.0
          %9145 = vmatpush1.msra.mxu0 0.0
          %9146 = vmatprep.subr.mxu0 0.0
          %9147 = vmatpush1.msra.mxu0 0.0
          %9148 = vmatprep.subr.mxu0 0.0
          %9149 = vmatpush1.msra.mxu0 0.0
          %9150 = vmatprep.subr.mxu0 0.0
          %9151 = vmatpush1.msra.mxu0 0.0
          %9152 = vmatprep.subr.mxu0 0.0
          %9153 = vmatpush1.msra.mxu0 0.0
          %9154 = vmatprep.subr.mxu0 0.0
          %9155 = vmatpush1.msra.mxu0 0.0
          %9156 = vmatprep.subr.mxu0 0.0
          %9157 = vmatpush1.msra.mxu0 0.0
          %9158 = vmatprep.mubr.f32.mxu0 0.0
          %v9159 = vand.u32 %v7964, 4294901760
          %v9160 = vsub.f32 %v7964, %v9159
          %v9161 = vand.u32 %v9160, 4294901760
          %9162 = vmatmul.mubr.f32.gmra.mrb[0].mxu0 %v9161
          %v9163 = vpop.f32.mrb[0].mxu0
          %v9164 = vadd.f32 %v8858, %v9163
          %v9165 = vpop.f32.mrb[0].mxu0
          %9166 = vmatprep.mubr.f32.mxu0 0.0
          %v9167 = vand.u32 %v7965, 4294901760
          %v9168 = vsub.f32 %v7965, %v9167
          %v9169 = vand.u32 %v9168, 4294901760
          %9170 = vmatmul.mubr.f32.gmra.mrb[0].mxu0 %v9169
          %v9171 = vpop.f32.mrb[0].mxu0
          %v9172 = vadd.f32 %v8865, %v9171
          %v9173 = vpop.f32.mrb[0].mxu0
          %9174 = vmatprep.mubr.f32.mxu0 0.0
          %v9175 = vand.u32 %v7966, 4294901760
          %v9176 = vsub.f32 %v7966, %v9175
          %v9177 = vand.u32 %v9176, 4294901760
          %9178 = vmatmul.mubr.f32.gmra.mrb[0].mxu0 %v9177
          %v9179 = vpop.f32.mrb[0].mxu0
          %v9180 = vadd.f32 %v8872, %v9179
          %v9181 = vpop.f32.mrb[0].mxu0
          %9182 = vmatprep.mubr.f32.mxu0 0.0
          %v9183 = vand.u32 %v7967, 4294901760
          %v9184 = vsub.f32 %v7967, %v9183
          %v9185 = vand.u32 %v9184, 4294901760
          %9186 = vmatmul.mubr.f32.gmra.mrb[0].mxu0 %v9185
          %v9187 = vpop.f32.mrb[0].mxu0
          %v9188 = vadd.f32 %v8879, %v9187
          %v9189 = vpop.f32.mrb[0].mxu0
          %9190 = vmatprep.mubr.f32.mxu0 0.0
          %v9191 = vand.u32 %v7968, 4294901760
          %v9192 = vsub.f32 %v7968, %v9191
          %v9193 = vand.u32 %v9192, 4294901760
          %9194 = vmatmul.mubr.f32.gmra.mrb[0].mxu0 %v9193
          %v9195 = vpop.f32.mrb[0].mxu0
          %v9196 = vadd.f32 %v8886, %v9195
          %v9197 = vpop.f32.mrb[0].mxu0
          %9198 = vmatprep.mubr.f32.mxu0 0.0
          %v9199 = vand.u32 %v7969, 4294901760
          %v9200 = vsub.f32 %v7969, %v9199
          %v9201 = vand.u32 %v9200, 4294901760
          %9202 = vmatmul.mubr.f32.gmra.mrb[0].mxu0 %v9201
          %v9203 = vpop.f32.mrb[0].mxu0
          %v9204 = vadd.f32 %v8893, %v9203
          %v9205 = vpop.f32.mrb[0].mxu0
          %9206 = vmatprep.mubr.f32.mxu0 0.0
          %v9207 = vand.u32 %v7970, 4294901760
          %v9208 = vsub.f32 %v7970, %v9207
          %v9209 = vand.u32 %v9208, 4294901760
          %9210 = vmatmul.mubr.f32.gmra.mrb[0].mxu0 %v9209
          %v9211 = vpop.f32.mrb[0].mxu0
          %v9212 = vadd.f32 %v8900, %v9211
          %v9213 = vpop.f32.mrb[0].mxu0
          %9214 = vmatprep.mubr.f32.mxu0 0.0
          %v9215 = vand.u32 %v7971, 4294901760
          %v9216 = vsub.f32 %v7971, %v9215
          %v9217 = vand.u32 %v9216, 4294901760
          %9218 = vmatmul.mubr.f32.gmra.mrb[0].mxu0 %v9217
          %v9219 = vpop.f32.mrb[0].mxu0
          %v9220 = vadd.f32 %v8907, %v9219
          %v9221 = vpop.f32.mrb[0].mxu0
          %9222 = vmatprep.mubr.f32.mxu0 0.0
          %v9223 = vand.u32 %v7972, 4294901760
          %v9224 = vsub.f32 %v7972, %v9223
          %v9225 = vand.u32 %v9224, 4294901760
          %9226 = vmatmul.mubr.f32.gmra.mrb[0].mxu0 %v9225
          %v9227 = vpop.f32.mrb[0].mxu0
          %v9228 = vadd.f32 %v8914, %v9227
          %v9229 = vpop.f32.mrb[0].mxu0
          %9230 = vmatprep.mubr.f32.mxu0 0.0
          %v9231 = vand.u32 %v7973, 4294901760
          %v9232 = vsub.f32 %v7973, %v9231
          %v9233 = vand.u32 %v9232, 4294901760
          %9234 = vmatmul.mubr.f32.gmra.mrb[0].mxu0 %v9233
          %v9235 = vpop.f32.mrb[0].mxu0
          %v9236 = vadd.f32 %v8921, %v9235
          %v9237 = vpop.f32.mrb[0].mxu0
          %9238 = vmatprep.mubr.f32.mxu0 0.0
          %v9239 = vand.u32 %v7974, 4294901760
          %v9240 = vsub.f32 %v7974, %v9239
          %v9241 = vand.u32 %v9240, 4294901760
          %9242 = vmatmul.mubr.f32.gmra.mrb[0].mxu0 %v9241
          %v9243 = vpop.f32.mrb[0].mxu0
          %v9244 = vadd.f32 %v8928, %v9243
          %v9245 = vpop.f32.mrb[0].mxu0
          %9246 = vmatprep.mubr.f32.mxu0 0.0
          %v9247 = vand.u32 %v7975, 4294901760
          %v9248 = vsub.f32 %v7975, %v9247
          %v9249 = vand.u32 %v9248, 4294901760
          %9250 = vmatmul.mubr.f32.gmra.mrb[0].mxu0 %v9249
          %v9251 = vpop.f32.mrb[0].mxu0
          %v9252 = vadd.f32 %v8935, %v9251
          %v9253 = vpop.f32.mrb[0].mxu0
          %9254 = vmatprep.mubr.f32.mxu0 0.0
          %v9255 = vand.u32 %v7976, 4294901760
          %v9256 = vsub.f32 %v7976, %v9255
          %v9257 = vand.u32 %v9256, 4294901760
          %9258 = vmatmul.mubr.f32.gmra.mrb[0].mxu0 %v9257
          %v9259 = vpop.f32.mrb[0].mxu0
          %v9260 = vadd.f32 %v8942, %v9259
          %v9261 = vpop.f32.mrb[0].mxu0
          %9262 = vmatprep.mubr.f32.mxu0 0.0
          %v9263 = vand.u32 %v7977, 4294901760
          %v9264 = vsub.f32 %v7977, %v9263
          %v9265 = vand.u32 %v9264, 4294901760
          %9266 = vmatmul.mubr.f32.gmra.mrb[0].mxu0 %v9265
          %v9267 = vpop.f32.mrb[0].mxu0
          %v9268 = vadd.f32 %v8949, %v9267
          %v9269 = vpop.f32.mrb[0].mxu0
          %9270 = vmatprep.mubr.f32.mxu0 0.0
          %v9271 = vand.u32 %v7978, 4294901760
          %v9272 = vsub.f32 %v7978, %v9271
          %v9273 = vand.u32 %v9272, 4294901760
          %9274 = vmatmul.mubr.f32.gmra.mrb[0].mxu0 %v9273
          %v9275 = vpop.f32.mrb[0].mxu0
          %v9276 = vadd.f32 %v8956, %v9275
          %v9277 = vpop.f32.mrb[0].mxu0
          %9278 = vmatprep.mubr.f32.mxu0 0.0
          %v9279 = vand.u32 %v7979, 4294901760
          %v9280 = vsub.f32 %v7979, %v9279
          %v9281 = vand.u32 %v9280, 4294901760
          %9282 = vmatmul.mubr.f32.gmra.mrb[0].mxu0 %v9281
          %v9283 = vpop.f32.mrb[0].mxu0
          %v9284 = vadd.f32 %v8963, %v9283
          %v9285 = vpop.f32.mrb[0].mxu0
          %9286 = vmatprep.mubr.f32.mxu0 0.0
          %v9287 = vand.u32 %v7980, 4294901760
          %v9288 = vsub.f32 %v7980, %v9287
          %v9289 = vand.u32 %v9288, 4294901760
          %9290 = vmatmul.mubr.f32.gmra.mrb[0].mxu0 %v9289
          %v9291 = vpop.f32.mrb[0].mxu0
          %v9292 = vadd.f32 %v8970, %v9291
          %v9293 = vpop.f32.mrb[0].mxu0
          %9294 = vmatprep.mubr.f32.mxu0 0.0
          %v9295 = vand.u32 %v7981, 4294901760
          %v9296 = vsub.f32 %v7981, %v9295
          %v9297 = vand.u32 %v9296, 4294901760
          %9298 = vmatmul.mubr.f32.gmra.mrb[0].mxu0 %v9297
          %v9299 = vpop.f32.mrb[0].mxu0
          %v9300 = vadd.f32 %v8977, %v9299
          %v9301 = vpop.f32.mrb[0].mxu0
          %9302 = vmatprep.mubr.f32.mxu0 0.0
          %v9303 = vand.u32 %v7982, 4294901760
          %v9304 = vsub.f32 %v7982, %v9303
          %v9305 = vand.u32 %v9304, 4294901760
          %9306 = vmatmul.mubr.f32.gmra.mrb[0].mxu0 %v9305
          %v9307 = vpop.f32.mrb[0].mxu0
          %v9308 = vadd.f32 %v8984, %v9307
          %v9309 = vpop.f32.mrb[0].mxu0
          %9310 = vmatprep.mubr.f32.mxu0 0.0
          %v9311 = vand.u32 %v7983, 4294901760
          %v9312 = vsub.f32 %v7983, %v9311
          %v9313 = vand.u32 %v9312, 4294901760
          %9314 = vmatmul.mubr.f32.gmra.mrb[0].mxu0 %v9313
          %v9315 = vpop.f32.mrb[0].mxu0
          %v9316 = vadd.f32 %v8991, %v9315
          %v9317 = vpop.f32.mrb[0].mxu0
          %9318 = vmatprep.mubr.f32.mxu0 0.0
          %v9319 = vand.u32 %v7984, 4294901760
          %v9320 = vsub.f32 %v7984, %v9319
          %v9321 = vand.u32 %v9320, 4294901760
          %9322 = vmatmul.mubr.f32.gmra.mrb[0].mxu0 %v9321
          %v9323 = vpop.f32.mrb[0].mxu0
          %v9324 = vadd.f32 %v8998, %v9323
          %v9325 = vpop.f32.mrb[0].mxu0
          %9326 = vmatprep.mubr.f32.mxu0 0.0
          %v9327 = vand.u32 %v7985, 4294901760
          %v9328 = vsub.f32 %v7985, %v9327
          %v9329 = vand.u32 %v9328, 4294901760
          %9330 = vmatmul.mubr.f32.gmra.mrb[0].mxu0 %v9329
          %v9331 = vpop.f32.mrb[0].mxu0
          %v9332 = vadd.f32 %v9005, %v9331
          %v9333 = vpop.f32.mrb[0].mxu0
          %9334 = vmatprep.mubr.f32.mxu0 0.0
          %v9335 = vand.u32 %v7986, 4294901760
          %v9336 = vsub.f32 %v7986, %v9335
          %v9337 = vand.u32 %v9336, 4294901760
          %9338 = vmatmul.mubr.f32.gmra.mrb[0].mxu0 %v9337
          %v9339 = vpop.f32.mrb[0].mxu0
          %v9340 = vadd.f32 %v9012, %v9339
          %v9341 = vpop.f32.mrb[0].mxu0
          %9342 = vmatprep.mubr.f32.mxu0 0.0
          %v9343 = vand.u32 %v7987, 4294901760
          %v9344 = vsub.f32 %v7987, %v9343
          %v9345 = vand.u32 %v9344, 4294901760
          %9346 = vmatmul.mubr.f32.gmra.mrb[0].mxu0 %v9345
          %v9347 = vpop.f32.mrb[0].mxu0
          %v9348 = vadd.f32 %v9019, %v9347
          %v9349 = vpop.f32.mrb[0].mxu0
          %9350 = vmatprep.mubr.f32.mxu0 0.0
          %v9351 = vand.u32 %v7988, 4294901760
          %v9352 = vsub.f32 %v7988, %v9351
          %v9353 = vand.u32 %v9352, 4294901760
          %9354 = vmatmul.mubr.f32.gmra.mrb[0].mxu0 %v9353
          %v9355 = vpop.f32.mrb[0].mxu0
          %v9356 = vadd.f32 %v9026, %v9355
          %v9357 = vpop.f32.mrb[0].mxu0
          %9358 = vmatprep.mubr.f32.mxu0 0.0
          %v9359 = vand.u32 %v7989, 4294901760
          %v9360 = vsub.f32 %v7989, %v9359
          %v9361 = vand.u32 %v9360, 4294901760
          %9362 = vmatmul.mubr.f32.gmra.mrb[0].mxu0 %v9361
          %v9363 = vpop.f32.mrb[0].mxu0
          %v9364 = vadd.f32 %v9033, %v9363
          %v9365 = vpop.f32.mrb[0].mxu0
          %9366 = vmatprep.mubr.f32.mxu0 0.0
          %v9367 = vand.u32 %v7990, 4294901760
          %v9368 = vsub.f32 %v7990, %v9367
          %v9369 = vand.u32 %v9368, 4294901760
          %9370 = vmatmul.mubr.f32.gmra.mrb[0].mxu0 %v9369
          %v9371 = vpop.f32.mrb[0].mxu0
          %v9372 = vadd.f32 %v9040, %v9371
          %v9373 = vpop.f32.mrb[0].mxu0
          %9374 = vmatprep.mubr.f32.mxu0 0.0
          %v9375 = vand.u32 %v7991, 4294901760
          %v9376 = vsub.f32 %v7991, %v9375
          %v9377 = vand.u32 %v9376, 4294901760
          %9378 = vmatmul.mubr.f32.gmra.mrb[0].mxu0 %v9377
          %v9379 = vpop.f32.mrb[0].mxu0
          %v9380 = vadd.f32 %v9047, %v9379
          %v9381 = vpop.f32.mrb[0].mxu0
          %9382 = vmatprep.mubr.f32.mxu0 0.0
          %v9383 = vand.u32 %v7992, 4294901760
          %v9384 = vsub.f32 %v7992, %v9383
          %v9385 = vand.u32 %v9384, 4294901760
          %9386 = vmatmul.mubr.f32.gmra.mrb[0].mxu0 %v9385
          %v9387 = vpop.f32.mrb[0].mxu0
          %v9388 = vadd.f32 %v9054, %v9387
          %v9389 = vpop.f32.mrb[0].mxu0
          %9390 = vmatprep.mubr.f32.mxu0 0.0
          %v9391 = vand.u32 %v7993, 4294901760
          %v9392 = vsub.f32 %v7993, %v9391
          %v9393 = vand.u32 %v9392, 4294901760
          %9394 = vmatmul.mubr.f32.gmra.mrb[0].mxu0 %v9393
          %v9395 = vpop.f32.mrb[0].mxu0
          %v9396 = vadd.f32 %v9061, %v9395
          %v9397 = vpop.f32.mrb[0].mxu0
          %9398 = vmatprep.mubr.f32.mxu0 0.0
          %v9399 = vand.u32 %v7994, 4294901760
          %v9400 = vsub.f32 %v7994, %v9399
          %v9401 = vand.u32 %v9400, 4294901760
          %9402 = vmatmul.mubr.f32.gmra.mrb[0].mxu0 %v9401
          %v9403 = vpop.f32.mrb[0].mxu0
          %v9404 = vadd.f32 %v9068, %v9403
          %v9405 = vpop.f32.mrb[0].mxu0
          %9406 = vmatprep.mubr.f32.mxu0 0.0
          %v9407 = vand.u32 %v7995, 4294901760
          %v9408 = vsub.f32 %v7995, %v9407
          %v9409 = vand.u32 %v9408, 4294901760
          %9410 = vmatmul.mubr.f32.gmra.mrb[0].mxu0 %v9409
          %v9411 = vpop.f32.mrb[0].mxu0
          %v9412 = vadd.f32 %v9075, %v9411
          %v9413 = vpop.f32.mrb[0].mxu0
          %9414 = vdwg.mxu0
          %9415 = vmatprep.subr.mxu0 0.0
          %v9416 = vand.u32 %v7996, 4294901760
          %v9417 = vsub.f32 %v7996, %v9416
          %v9418 = vand.u32 %v9417, 4294901760
          %9419 = vmatpush1.msra.mxu0 %v9418
          %9420 = vmatprep.subr.mxu0 0.0
          %v9421 = vand.u32 %v7997, 4294901760
          %v9422 = vsub.f32 %v7997, %v9421
          %v9423 = vand.u32 %v9422, 4294901760
          %9424 = vmatpush1.msra.mxu0 %v9423
          %9425 = vmatprep.subr.mxu0 0.0
          %v9426 = vand.u32 %v7998, 4294901760
          %v9427 = vsub.f32 %v7998, %v9426
          %v9428 = vand.u32 %v9427, 4294901760
          %9429 = vmatpush1.msra.mxu0 %v9428
          %9430 = vmatprep.subr.mxu0 0.0
          %v9431 = vand.u32 %v7999, 4294901760
          %v9432 = vsub.f32 %v7999, %v9431
          %v9433 = vand.u32 %v9432, 4294901760
          %9434 = vmatpush1.msra.mxu0 %v9433
          %9435 = vmatprep.subr.mxu0 0.0
          %v9436 = vand.u32 %v8000, 4294901760
          %v9437 = vsub.f32 %v8000, %v9436
          %v9438 = vand.u32 %v9437, 4294901760
          %9439 = vmatpush1.msra.mxu0 %v9438
          %9440 = vmatprep.subr.mxu0 0.0
          %v9441 = vand.u32 %v8001, 4294901760
          %v9442 = vsub.f32 %v8001, %v9441
          %v9443 = vand.u32 %v9442, 4294901760
          %9444 = vmatpush1.msra.mxu0 %v9443
          %9445 = vmatprep.subr.mxu0 0.0
          %v9446 = vand.u32 %v8002, 4294901760
          %v9447 = vsub.f32 %v8002, %v9446
          %v9448 = vand.u32 %v9447, 4294901760
          %9449 = vmatpush1.msra.mxu0 %v9448
          %9450 = vmatprep.subr.mxu0 0.0
          %v9451 = vand.u32 %v8003, 4294901760
          %v9452 = vsub.f32 %v8003, %v9451
          %v9453 = vand.u32 %v9452, 4294901760
          %9454 = vmatpush1.msra.mxu0 %v9453
          %9455 = vmatprep.subr.mxu0 0.0
          %v9456 = vand.u32 %v8004, 4294901760
          %v9457 = vsub.f32 %v8004, %v9456
          %v9458 = vand.u32 %v9457, 4294901760
          %9459 = vmatpush1.msra.mxu0 %v9458
          %9460 = vmatprep.subr.mxu0 0.0
          %v9461 = vand.u32 %v8005, 4294901760
          %v9462 = vsub.f32 %v8005, %v9461
          %v9463 = vand.u32 %v9462, 4294901760
          %9464 = vmatpush1.msra.mxu0 %v9463
          %9465 = vmatprep.subr.mxu0 0.0
          %v9466 = vand.u32 %v8006, 4294901760
          %v9467 = vsub.f32 %v8006, %v9466
          %v9468 = vand.u32 %v9467, 4294901760
          %9469 = vmatpush1.msra.mxu0 %v9468
          %9470 = vmatprep.subr.mxu0 0.0
          %v9471 = vand.u32 %v8007, 4294901760
          %v9472 = vsub.f32 %v8007, %v9471
          %v9473 = vand.u32 %v9472, 4294901760
          %9474 = vmatpush1.msra.mxu0 %v9473
          %9475 = vmatprep.subr.mxu0 0.0
          %v9476 = vand.u32 %v8008, 4294901760
          %v9477 = vsub.f32 %v8008, %v9476
          %v9478 = vand.u32 %v9477, 4294901760
          %9479 = vmatpush1.msra.mxu0 %v9478
          %9480 = vmatprep.subr.mxu0 0.0
          %v9481 = vand.u32 %v8009, 4294901760
          %v9482 = vsub.f32 %v8009, %v9481
          %v9483 = vand.u32 %v9482, 4294901760
          %9484 = vmatpush1.msra.mxu0 %v9483
          %9485 = vmatprep.subr.mxu0 0.0
          %v9486 = vand.u32 %v8010, 4294901760
          %v9487 = vsub.f32 %v8010, %v9486
          %v9488 = vand.u32 %v9487, 4294901760
          %9489 = vmatpush1.msra.mxu0 %v9488
          %9490 = vmatprep.subr.mxu0 0.0
          %v9491 = vand.u32 %v8011, 4294901760
          %v9492 = vsub.f32 %v8011, %v9491
          %v9493 = vand.u32 %v9492, 4294901760
          %9494 = vmatpush1.msra.mxu0 %v9493
          %9495 = vmatprep.subr.mxu0 0.0
          %9496 = vmatpush1.msra.mxu0 0.0
          %9497 = vmatprep.subr.mxu0 0.0
          %9498 = vmatpush1.msra.mxu0 0.0
          %9499 = vmatprep.subr.mxu0 0.0
          %9500 = vmatpush1.msra.mxu0 0.0
          %9501 = vmatprep.subr.mxu0 0.0
          %9502 = vmatpush1.msra.mxu0 0.0
          %9503 = vmatprep.subr.mxu0 0.0
          %9504 = vmatpush1.msra.mxu0 0.0
          %9505 = vmatprep.subr.mxu0 0.0
          %9506 = vmatpush1.msra.mxu0 0.0
          %9507 = vmatprep.subr.mxu0 0.0
          %9508 = vmatpush1.msra.mxu0 0.0
          %9509 = vmatprep.subr.mxu0 0.0
          %9510 = vmatpush1.msra.mxu0 0.0
          %9511 = vmatprep.subr.mxu0 0.0
          %9512 = vmatpush1.msra.mxu0 0.0
          %9513 = vmatprep.subr.mxu0 0.0
          %9514 = vmatpush1.msra.mxu0 0.0
          %9515 = vmatprep.subr.mxu0 0.0
          %9516 = vmatpush1.msra.mxu0 0.0
          %9517 = vmatprep.subr.mxu0 0.0
          %9518 = vmatpush1.msra.mxu0 0.0
          %9519 = vmatprep.subr.mxu0 0.0
          %9520 = vmatpush1.msra.mxu0 0.0
          %9521 = vmatprep.subr.mxu0 0.0
          %9522 = vmatpush1.msra.mxu0 0.0
          %9523 = vmatprep.subr.mxu0 0.0
          %9524 = vmatpush1.msra.mxu0 0.0
          %9525 = vmatprep.subr.mxu0 0.0
          %9526 = vmatpush1.msra.mxu0 0.0
          %9527 = vmatprep.mubr.f32.mxu0 0.0
          %v9528 = vand.u32 %v7964, 4294901760
          %9529 = vmatmul.mubr.f32.gmra.mrb[0].mxu0 %v9528
          %v9530 = vpop.f32.mrb[0].mxu0
          %v9531 = vadd.f32 %v9164, %v9530
          %v9532 = vpop.f32.mrb[0].mxu0
          %9533 = vmatprep.mubr.f32.mxu0 0.0
          %v9534 = vand.u32 %v7965, 4294901760
          %9535 = vmatmul.mubr.f32.gmra.mrb[0].mxu0 %v9534
          %v9536 = vpop.f32.mrb[0].mxu0
          %v9537 = vadd.f32 %v9172, %v9536
          %v9538 = vpop.f32.mrb[0].mxu0
          %9539 = vmatprep.mubr.f32.mxu0 0.0
          %v9540 = vand.u32 %v7966, 4294901760
          %9541 = vmatmul.mubr.f32.gmra.mrb[0].mxu0 %v9540
          %v9542 = vpop.f32.mrb[0].mxu0
          %v9543 = vadd.f32 %v9180, %v9542
          %v9544 = vpop.f32.mrb[0].mxu0
          %9545 = vmatprep.mubr.f32.mxu0 0.0
          %v9546 = vand.u32 %v7967, 4294901760
          %9547 = vmatmul.mubr.f32.gmra.mrb[0].mxu0 %v9546
          %v9548 = vpop.f32.mrb[0].mxu0
          %v9549 = vadd.f32 %v9188, %v9548
          %v9550 = vpop.f32.mrb[0].mxu0
          %9551 = vmatprep.mubr.f32.mxu0 0.0
          %v9552 = vand.u32 %v7968, 4294901760
          %9553 = vmatmul.mubr.f32.gmra.mrb[0].mxu0 %v9552
          %v9554 = vpop.f32.mrb[0].mxu0
          %v9555 = vadd.f32 %v9196, %v9554
          %v9556 = vpop.f32.mrb[0].mxu0
          %9557 = vmatprep.mubr.f32.mxu0 0.0
          %v9558 = vand.u32 %v7969, 4294901760
          %9559 = vmatmul.mubr.f32.gmra.mrb[0].mxu0 %v9558
          %v9560 = vpop.f32.mrb[0].mxu0
          %v9561 = vadd.f32 %v9204, %v9560
          %v9562 = vpop.f32.mrb[0].mxu0
          %9563 = vmatprep.mubr.f32.mxu0 0.0
          %v9564 = vand.u32 %v7970, 4294901760
          %9565 = vmatmul.mubr.f32.gmra.mrb[0].mxu0 %v9564
          %v9566 = vpop.f32.mrb[0].mxu0
          %v9567 = vadd.f32 %v9212, %v9566
          %v9568 = vpop.f32.mrb[0].mxu0
          %9569 = vmatprep.mubr.f32.mxu0 0.0
          %v9570 = vand.u32 %v7971, 4294901760
          %9571 = vmatmul.mubr.f32.gmra.mrb[0].mxu0 %v9570
          %v9572 = vpop.f32.mrb[0].mxu0
          %v9573 = vadd.f32 %v9220, %v9572
          %v9574 = vpop.f32.mrb[0].mxu0
          %9575 = vmatprep.mubr.f32.mxu0 0.0
          %v9576 = vand.u32 %v7972, 4294901760
          %9577 = vmatmul.mubr.f32.gmra.mrb[0].mxu0 %v9576
          %v9578 = vpop.f32.mrb[0].mxu0
          %v9579 = vadd.f32 %v9228, %v9578
          %v9580 = vpop.f32.mrb[0].mxu0
          %9581 = vmatprep.mubr.f32.mxu0 0.0
          %v9582 = vand.u32 %v7973, 4294901760
          %9583 = vmatmul.mubr.f32.gmra.mrb[0].mxu0 %v9582
          %v9584 = vpop.f32.mrb[0].mxu0
          %v9585 = vadd.f32 %v9236, %v9584
          %v9586 = vpop.f32.mrb[0].mxu0
          %9587 = vmatprep.mubr.f32.mxu0 0.0
          %v9588 = vand.u32 %v7974, 4294901760
          %9589 = vmatmul.mubr.f32.gmra.mrb[0].mxu0 %v9588
          %v9590 = vpop.f32.mrb[0].mxu0
          %v9591 = vadd.f32 %v9244, %v9590
          %v9592 = vpop.f32.mrb[0].mxu0
          %9593 = vmatprep.mubr.f32.mxu0 0.0
          %v9594 = vand.u32 %v7975, 4294901760
          %9595 = vmatmul.mubr.f32.gmra.mrb[0].mxu0 %v9594
          %v9596 = vpop.f32.mrb[0].mxu0
          %v9597 = vadd.f32 %v9252, %v9596
          %v9598 = vpop.f32.mrb[0].mxu0
          %9599 = vmatprep.mubr.f32.mxu0 0.0
          %v9600 = vand.u32 %v7976, 4294901760
          %9601 = vmatmul.mubr.f32.gmra.mrb[0].mxu0 %v9600
          %v9602 = vpop.f32.mrb[0].mxu0
          %v9603 = vadd.f32 %v9260, %v9602
          %v9604 = vpop.f32.mrb[0].mxu0
          %9605 = vmatprep.mubr.f32.mxu0 0.0
          %v9606 = vand.u32 %v7977, 4294901760
          %9607 = vmatmul.mubr.f32.gmra.mrb[0].mxu0 %v9606
          %v9608 = vpop.f32.mrb[0].mxu0
          %v9609 = vadd.f32 %v9268, %v9608
          %v9610 = vpop.f32.mrb[0].mxu0
          %9611 = vmatprep.mubr.f32.mxu0 0.0
          %v9612 = vand.u32 %v7978, 4294901760
          %9613 = vmatmul.mubr.f32.gmra.mrb[0].mxu0 %v9612
          %v9614 = vpop.f32.mrb[0].mxu0
          %v9615 = vadd.f32 %v9276, %v9614
          %v9616 = vpop.f32.mrb[0].mxu0
          %9617 = vmatprep.mubr.f32.mxu0 0.0
          %v9618 = vand.u32 %v7979, 4294901760
          %9619 = vmatmul.mubr.f32.gmra.mrb[0].mxu0 %v9618
          %v9620 = vpop.f32.mrb[0].mxu0
          %v9621 = vadd.f32 %v9284, %v9620
          %v9622 = vpop.f32.mrb[0].mxu0
          %9623 = vmatprep.mubr.f32.mxu0 0.0
          %v9624 = vand.u32 %v7980, 4294901760
          %9625 = vmatmul.mubr.f32.gmra.mrb[0].mxu0 %v9624
          %v9626 = vpop.f32.mrb[0].mxu0
          %v9627 = vadd.f32 %v9292, %v9626
          %v9628 = vpop.f32.mrb[0].mxu0
          %9629 = vmatprep.mubr.f32.mxu0 0.0
          %v9630 = vand.u32 %v7981, 4294901760
          %9631 = vmatmul.mubr.f32.gmra.mrb[0].mxu0 %v9630
          %v9632 = vpop.f32.mrb[0].mxu0
          %v9633 = vadd.f32 %v9300, %v9632
          %v9634 = vpop.f32.mrb[0].mxu0
          %9635 = vmatprep.mubr.f32.mxu0 0.0
          %v9636 = vand.u32 %v7982, 4294901760
          %9637 = vmatmul.mubr.f32.gmra.mrb[0].mxu0 %v9636
          %v9638 = vpop.f32.mrb[0].mxu0
          %v9639 = vadd.f32 %v9308, %v9638
          %v9640 = vpop.f32.mrb[0].mxu0
          %9641 = vmatprep.mubr.f32.mxu0 0.0
          %v9642 = vand.u32 %v7983, 4294901760
          %9643 = vmatmul.mubr.f32.gmra.mrb[0].mxu0 %v9642
          %v9644 = vpop.f32.mrb[0].mxu0
          %v9645 = vadd.f32 %v9316, %v9644
          %v9646 = vpop.f32.mrb[0].mxu0
          %9647 = vmatprep.mubr.f32.mxu0 0.0
          %v9648 = vand.u32 %v7984, 4294901760
          %9649 = vmatmul.mubr.f32.gmra.mrb[0].mxu0 %v9648
          %v9650 = vpop.f32.mrb[0].mxu0
          %v9651 = vadd.f32 %v9324, %v9650
          %v9652 = vpop.f32.mrb[0].mxu0
          %9653 = vmatprep.mubr.f32.mxu0 0.0
          %v9654 = vand.u32 %v7985, 4294901760
          %9655 = vmatmul.mubr.f32.gmra.mrb[0].mxu0 %v9654
          %v9656 = vpop.f32.mrb[0].mxu0
          %v9657 = vadd.f32 %v9332, %v9656
          %v9658 = vpop.f32.mrb[0].mxu0
          %9659 = vmatprep.mubr.f32.mxu0 0.0
          %v9660 = vand.u32 %v7986, 4294901760
          %9661 = vmatmul.mubr.f32.gmra.mrb[0].mxu0 %v9660
          %v9662 = vpop.f32.mrb[0].mxu0
          %v9663 = vadd.f32 %v9340, %v9662
          %v9664 = vpop.f32.mrb[0].mxu0
          %9665 = vmatprep.mubr.f32.mxu0 0.0
          %v9666 = vand.u32 %v7987, 4294901760
          %9667 = vmatmul.mubr.f32.gmra.mrb[0].mxu0 %v9666
          %v9668 = vpop.f32.mrb[0].mxu0
          %v9669 = vadd.f32 %v9348, %v9668
          %v9670 = vpop.f32.mrb[0].mxu0
          %9671 = vmatprep.mubr.f32.mxu0 0.0
          %v9672 = vand.u32 %v7988, 4294901760
          %9673 = vmatmul.mubr.f32.gmra.mrb[0].mxu0 %v9672
          %v9674 = vpop.f32.mrb[0].mxu0
          %v9675 = vadd.f32 %v9356, %v9674
          %v9676 = vpop.f32.mrb[0].mxu0
          %9677 = vmatprep.mubr.f32.mxu0 0.0
          %v9678 = vand.u32 %v7989, 4294901760
          %9679 = vmatmul.mubr.f32.gmra.mrb[0].mxu0 %v9678
          %v9680 = vpop.f32.mrb[0].mxu0
          %v9681 = vadd.f32 %v9364, %v9680
          %v9682 = vpop.f32.mrb[0].mxu0
          %9683 = vmatprep.mubr.f32.mxu0 0.0
          %v9684 = vand.u32 %v7990, 4294901760
          %9685 = vmatmul.mubr.f32.gmra.mrb[0].mxu0 %v9684
          %v9686 = vpop.f32.mrb[0].mxu0
          %v9687 = vadd.f32 %v9372, %v9686
          %v9688 = vpop.f32.mrb[0].mxu0
          %9689 = vmatprep.mubr.f32.mxu0 0.0
          %v9690 = vand.u32 %v7991, 4294901760
          %9691 = vmatmul.mubr.f32.gmra.mrb[0].mxu0 %v9690
          %v9692 = vpop.f32.mrb[0].mxu0
          %v9693 = vadd.f32 %v9380, %v9692
          %v9694 = vpop.f32.mrb[0].mxu0
          %9695 = vmatprep.mubr.f32.mxu0 0.0
          %v9696 = vand.u32 %v7992, 4294901760
          %9697 = vmatmul.mubr.f32.gmra.mrb[0].mxu0 %v9696
          %v9698 = vpop.f32.mrb[0].mxu0
          %v9699 = vadd.f32 %v9388, %v9698
          %v9700 = vpop.f32.mrb[0].mxu0
          %9701 = vmatprep.mubr.f32.mxu0 0.0
          %v9702 = vand.u32 %v7993, 4294901760
          %9703 = vmatmul.mubr.f32.gmra.mrb[0].mxu0 %v9702
          %v9704 = vpop.f32.mrb[0].mxu0
          %v9705 = vadd.f32 %v9396, %v9704
          %v9706 = vpop.f32.mrb[0].mxu0
          %9707 = vmatprep.mubr.f32.mxu0 0.0
          %v9708 = vand.u32 %v7994, 4294901760
          %9709 = vmatmul.mubr.f32.gmra.mrb[0].mxu0 %v9708
          %v9710 = vpop.f32.mrb[0].mxu0
          %v9711 = vadd.f32 %v9404, %v9710
          %v9712 = vpop.f32.mrb[0].mxu0
          %9713 = vmatprep.mubr.f32.mxu0 0.0
          %v9714 = vand.u32 %v7995, 4294901760
          %9715 = vmatmul.mubr.f32.gmra.mrb[0].mxu0 %v9714
          %v9716 = vpop.f32.mrb[0].mxu0
          %v9717 = vadd.f32 %v9412, %v9716
          %v9718 = vpop.f32.mrb[0].mxu0
          %9719 = vdwg.mxu0
          %9720 = vmatprep.subr.mxu0 0.0
          %v9721 = vand.u32 %v7996, 4294901760
          %9722 = vmatpush1.msra.mxu0 %v9721
          %9723 = vmatprep.subr.mxu0 0.0
          %v9724 = vand.u32 %v7997, 4294901760
          %9725 = vmatpush1.msra.mxu0 %v9724
          %9726 = vmatprep.subr.mxu0 0.0
          %v9727 = vand.u32 %v7998, 4294901760
          %9728 = vmatpush1.msra.mxu0 %v9727
          %9729 = vmatprep.subr.mxu0 0.0
          %v9730 = vand.u32 %v7999, 4294901760
          %9731 = vmatpush1.msra.mxu0 %v9730
          %9732 = vmatprep.subr.mxu0 0.0
          %v9733 = vand.u32 %v8000, 4294901760
          %9734 = vmatpush1.msra.mxu0 %v9733
          %9735 = vmatprep.subr.mxu0 0.0
          %v9736 = vand.u32 %v8001, 4294901760
          %9737 = vmatpush1.msra.mxu0 %v9736
          %9738 = vmatprep.subr.mxu0 0.0
          %v9739 = vand.u32 %v8002, 4294901760
          %9740 = vmatpush1.msra.mxu0 %v9739
          %9741 = vmatprep.subr.mxu0 0.0
          %v9742 = vand.u32 %v8003, 4294901760
          %9743 = vmatpush1.msra.mxu0 %v9742
          %9744 = vmatprep.subr.mxu0 0.0
          %v9745 = vand.u32 %v8004, 4294901760
          %9746 = vmatpush1.msra.mxu0 %v9745
          %9747 = vmatprep.subr.mxu0 0.0
          %v9748 = vand.u32 %v8005, 4294901760
          %9749 = vmatpush1.msra.mxu0 %v9748
          %9750 = vmatprep.subr.mxu0 0.0
          %v9751 = vand.u32 %v8006, 4294901760
          %9752 = vmatpush1.msra.mxu0 %v9751
          %9753 = vmatprep.subr.mxu0 0.0
          %v9754 = vand.u32 %v8007, 4294901760
          %9755 = vmatpush1.msra.mxu0 %v9754
          %9756 = vmatprep.subr.mxu0 0.0
          %v9757 = vand.u32 %v8008, 4294901760
          %9758 = vmatpush1.msra.mxu0 %v9757
          %9759 = vmatprep.subr.mxu0 0.0
          %v9760 = vand.u32 %v8009, 4294901760
          %9761 = vmatpush1.msra.mxu0 %v9760
          %9762 = vmatprep.subr.mxu0 0.0
          %v9763 = vand.u32 %v8010, 4294901760
          %9764 = vmatpush1.msra.mxu0 %v9763
          %9765 = vmatprep.subr.mxu0 0.0
          %v9766 = vand.u32 %v8011, 4294901760
          %9767 = vmatpush1.msra.mxu0 %v9766
          %9768 = vmatprep.subr.mxu0 0.0
          %9769 = vmatpush1.msra.mxu0 0.0
          %9770 = vmatprep.subr.mxu0 0.0
          %9771 = vmatpush1.msra.mxu0 0.0
          %9772 = vmatprep.subr.mxu0 0.0
          %9773 = vmatpush1.msra.mxu0 0.0
          %9774 = vmatprep.subr.mxu0 0.0
          %9775 = vmatpush1.msra.mxu0 0.0
          %9776 = vmatprep.subr.mxu0 0.0
          %9777 = vmatpush1.msra.mxu0 0.0
          %9778 = vmatprep.subr.mxu0 0.0
          %9779 = vmatpush1.msra.mxu0 0.0
          %9780 = vmatprep.subr.mxu0 0.0
          %9781 = vmatpush1.msra.mxu0 0.0
          %9782 = vmatprep.subr.mxu0 0.0
          %9783 = vmatpush1.msra.mxu0 0.0
          %9784 = vmatprep.subr.mxu0 0.0
          %9785 = vmatpush1.msra.mxu0 0.0
          %9786 = vmatprep.subr.mxu0 0.0
          %9787 = vmatpush1.msra.mxu0 0.0
          %9788 = vmatprep.subr.mxu0 0.0
          %9789 = vmatpush1.msra.mxu0 0.0
          %9790 = vmatprep.subr.mxu0 0.0
          %9791 = vmatpush1.msra.mxu0 0.0
          %9792 = vmatprep.subr.mxu0 0.0
          %9793 = vmatpush1.msra.mxu0 0.0
          %9794 = vmatprep.subr.mxu0 0.0
          %9795 = vmatpush1.msra.mxu0 0.0
          %9796 = vmatprep.subr.mxu0 0.0
          %9797 = vmatpush1.msra.mxu0 0.0
          %9798 = vmatprep.subr.mxu0 0.0
          %9799 = vmatpush1.msra.mxu0 0.0
          %9800 = vmatprep.mubr.f32.mxu0 0.0
          %v9801 = vand.u32 %v7964, 4294901760
          %9802 = vmatmul.mubr.f32.gmra.mrb[0].mxu0 %v9801
          %v9803 = vpop.f32.mrb[0].mxu0
          %v9804 = vadd.f32 %v9531, %v9803
          %v9805 = vpop.f32.mrb[0].mxu0
          %9806 = vmatprep.mubr.f32.mxu0 0.0
          %v9807 = vand.u32 %v7965, 4294901760
          %9808 = vmatmul.mubr.f32.gmra.mrb[0].mxu0 %v9807
          %v9809 = vpop.f32.mrb[0].mxu0
          %v9810 = vadd.f32 %v9537, %v9809
          %v9811 = vpop.f32.mrb[0].mxu0
          %9812 = vmatprep.mubr.f32.mxu0 0.0
          %v9813 = vand.u32 %v7966, 4294901760
          %9814 = vmatmul.mubr.f32.gmra.mrb[0].mxu0 %v9813
          %v9815 = vpop.f32.mrb[0].mxu0
          %v9816 = vadd.f32 %v9543, %v9815
          %v9817 = vpop.f32.mrb[0].mxu0
          %9818 = vmatprep.mubr.f32.mxu0 0.0
          %v9819 = vand.u32 %v7967, 4294901760
          %9820 = vmatmul.mubr.f32.gmra.mrb[0].mxu0 %v9819
          %v9821 = vpop.f32.mrb[0].mxu0
          %v9822 = vadd.f32 %v9549, %v9821
          %v9823 = vpop.f32.mrb[0].mxu0
          %9824 = vmatprep.mubr.f32.mxu0 0.0
          %v9825 = vand.u32 %v7968, 4294901760
          %9826 = vmatmul.mubr.f32.gmra.mrb[0].mxu0 %v9825
          %v9827 = vpop.f32.mrb[0].mxu0
          %v9828 = vadd.f32 %v9555, %v9827
          %v9829 = vpop.f32.mrb[0].mxu0
          %9830 = vmatprep.mubr.f32.mxu0 0.0
          %v9831 = vand.u32 %v7969, 4294901760
          %9832 = vmatmul.mubr.f32.gmra.mrb[0].mxu0 %v9831
          %v9833 = vpop.f32.mrb[0].mxu0
          %v9834 = vadd.f32 %v9561, %v9833
          %v9835 = vpop.f32.mrb[0].mxu0
          %9836 = vmatprep.mubr.f32.mxu0 0.0
          %v9837 = vand.u32 %v7970, 4294901760
          %9838 = vmatmul.mubr.f32.gmra.mrb[0].mxu0 %v9837
          %v9839 = vpop.f32.mrb[0].mxu0
          %v9840 = vadd.f32 %v9567, %v9839
          %v9841 = vpop.f32.mrb[0].mxu0
          %9842 = vmatprep.mubr.f32.mxu0 0.0
          %v9843 = vand.u32 %v7971, 4294901760
          %9844 = vmatmul.mubr.f32.gmra.mrb[0].mxu0 %v9843
          %v9845 = vpop.f32.mrb[0].mxu0
          %v9846 = vadd.f32 %v9573, %v9845
          %v9847 = vpop.f32.mrb[0].mxu0
          %9848 = vmatprep.mubr.f32.mxu0 0.0
          %v9849 = vand.u32 %v7972, 4294901760
          %9850 = vmatmul.mubr.f32.gmra.mrb[0].mxu0 %v9849
          %v9851 = vpop.f32.mrb[0].mxu0
          %v9852 = vadd.f32 %v9579, %v9851
          %v9853 = vpop.f32.mrb[0].mxu0
          %9854 = vmatprep.mubr.f32.mxu0 0.0
          %v9855 = vand.u32 %v7973, 4294901760
          %9856 = vmatmul.mubr.f32.gmra.mrb[0].mxu0 %v9855
          %v9857 = vpop.f32.mrb[0].mxu0
          %v9858 = vadd.f32 %v9585, %v9857
          %v9859 = vpop.f32.mrb[0].mxu0
          %9860 = vmatprep.mubr.f32.mxu0 0.0
          %v9861 = vand.u32 %v7974, 4294901760
          %9862 = vmatmul.mubr.f32.gmra.mrb[0].mxu0 %v9861
          %v9863 = vpop.f32.mrb[0].mxu0
          %v9864 = vadd.f32 %v9591, %v9863
          %v9865 = vpop.f32.mrb[0].mxu0
          %9866 = vmatprep.mubr.f32.mxu0 0.0
          %v9867 = vand.u32 %v7975, 4294901760
          %9868 = vmatmul.mubr.f32.gmra.mrb[0].mxu0 %v9867
          %v9869 = vpop.f32.mrb[0].mxu0
          %v9870 = vadd.f32 %v9597, %v9869
          %v9871 = vpop.f32.mrb[0].mxu0
          %9872 = vmatprep.mubr.f32.mxu0 0.0
          %v9873 = vand.u32 %v7976, 4294901760
          %9874 = vmatmul.mubr.f32.gmra.mrb[0].mxu0 %v9873
          %v9875 = vpop.f32.mrb[0].mxu0
          %v9876 = vadd.f32 %v9603, %v9875
          %v9877 = vpop.f32.mrb[0].mxu0
          %9878 = vmatprep.mubr.f32.mxu0 0.0
          %v9879 = vand.u32 %v7977, 4294901760
          %9880 = vmatmul.mubr.f32.gmra.mrb[0].mxu0 %v9879
          %v9881 = vpop.f32.mrb[0].mxu0
          %v9882 = vadd.f32 %v9609, %v9881
          %v9883 = vpop.f32.mrb[0].mxu0
          %9884 = vmatprep.mubr.f32.mxu0 0.0
          %v9885 = vand.u32 %v7978, 4294901760
          %9886 = vmatmul.mubr.f32.gmra.mrb[0].mxu0 %v9885
          %v9887 = vpop.f32.mrb[0].mxu0
          %v9888 = vadd.f32 %v9615, %v9887
          %v9889 = vpop.f32.mrb[0].mxu0
          %9890 = vmatprep.mubr.f32.mxu0 0.0
          %v9891 = vand.u32 %v7979, 4294901760
          %9892 = vmatmul.mubr.f32.gmra.mrb[0].mxu0 %v9891
          %v9893 = vpop.f32.mrb[0].mxu0
          %v9894 = vadd.f32 %v9621, %v9893
          %v9895 = vpop.f32.mrb[0].mxu0
          %9896 = vmatprep.mubr.f32.mxu0 0.0
          %v9897 = vand.u32 %v7980, 4294901760
          %9898 = vmatmul.mubr.f32.gmra.mrb[0].mxu0 %v9897
          %v9899 = vpop.f32.mrb[0].mxu0
          %v9900 = vadd.f32 %v9627, %v9899
          %v9901 = vpop.f32.mrb[0].mxu0
          %9902 = vmatprep.mubr.f32.mxu0 0.0
          %v9903 = vand.u32 %v7981, 4294901760
          %9904 = vmatmul.mubr.f32.gmra.mrb[0].mxu0 %v9903
          %v9905 = vpop.f32.mrb[0].mxu0
          %v9906 = vadd.f32 %v9633, %v9905
          %v9907 = vpop.f32.mrb[0].mxu0
          %9908 = vmatprep.mubr.f32.mxu0 0.0
          %v9909 = vand.u32 %v7982, 4294901760
          %9910 = vmatmul.mubr.f32.gmra.mrb[0].mxu0 %v9909
          %v9911 = vpop.f32.mrb[0].mxu0
          %v9912 = vadd.f32 %v9639, %v9911
          %v9913 = vpop.f32.mrb[0].mxu0
          %9914 = vmatprep.mubr.f32.mxu0 0.0
          %v9915 = vand.u32 %v7983, 4294901760
          %9916 = vmatmul.mubr.f32.gmra.mrb[0].mxu0 %v9915
          %v9917 = vpop.f32.mrb[0].mxu0
          %v9918 = vadd.f32 %v9645, %v9917
          %v9919 = vpop.f32.mrb[0].mxu0
          %9920 = vmatprep.mubr.f32.mxu0 0.0
          %v9921 = vand.u32 %v7984, 4294901760
          %9922 = vmatmul.mubr.f32.gmra.mrb[0].mxu0 %v9921
          %v9923 = vpop.f32.mrb[0].mxu0
          %v9924 = vadd.f32 %v9651, %v9923
          %v9925 = vpop.f32.mrb[0].mxu0
          %9926 = vmatprep.mubr.f32.mxu0 0.0
          %v9927 = vand.u32 %v7985, 4294901760
          %9928 = vmatmul.mubr.f32.gmra.mrb[0].mxu0 %v9927
          %v9929 = vpop.f32.mrb[0].mxu0
          %v9930 = vadd.f32 %v9657, %v9929
          %v9931 = vpop.f32.mrb[0].mxu0
          %9932 = vmatprep.mubr.f32.mxu0 0.0
          %v9933 = vand.u32 %v7986, 4294901760
          %9934 = vmatmul.mubr.f32.gmra.mrb[0].mxu0 %v9933
          %v9935 = vpop.f32.mrb[0].mxu0
          %v9936 = vadd.f32 %v9663, %v9935
          %v9937 = vpop.f32.mrb[0].mxu0
          %9938 = vmatprep.mubr.f32.mxu0 0.0
          %v9939 = vand.u32 %v7987, 4294901760
          %9940 = vmatmul.mubr.f32.gmra.mrb[0].mxu0 %v9939
          %v9941 = vpop.f32.mrb[0].mxu0
          %v9942 = vadd.f32 %v9669, %v9941
          %v9943 = vpop.f32.mrb[0].mxu0
          %9944 = vmatprep.mubr.f32.mxu0 0.0
          %v9945 = vand.u32 %v7988, 4294901760
          %9946 = vmatmul.mubr.f32.gmra.mrb[0].mxu0 %v9945
          %v9947 = vpop.f32.mrb[0].mxu0
          %v9948 = vadd.f32 %v9675, %v9947
          %v9949 = vpop.f32.mrb[0].mxu0
          %9950 = vmatprep.mubr.f32.mxu0 0.0
          %v9951 = vand.u32 %v7989, 4294901760
          %9952 = vmatmul.mubr.f32.gmra.mrb[0].mxu0 %v9951
          %v9953 = vpop.f32.mrb[0].mxu0
          %v9954 = vadd.f32 %v9681, %v9953
          %v9955 = vpop.f32.mrb[0].mxu0
          %9956 = vmatprep.mubr.f32.mxu0 0.0
          %v9957 = vand.u32 %v7990, 4294901760
          %9958 = vmatmul.mubr.f32.gmra.mrb[0].mxu0 %v9957
          %v9959 = vpop.f32.mrb[0].mxu0
          %v9960 = vadd.f32 %v9687, %v9959
          %v9961 = vpop.f32.mrb[0].mxu0
          %9962 = vmatprep.mubr.f32.mxu0 0.0
          %v9963 = vand.u32 %v7991, 4294901760
          %9964 = vmatmul.mubr.f32.gmra.mrb[0].mxu0 %v9963
          %v9965 = vpop.f32.mrb[0].mxu0
          %v9966 = vadd.f32 %v9693, %v9965
          %v9967 = vpop.f32.mrb[0].mxu0
          %9968 = vmatprep.mubr.f32.mxu0 0.0
          %v9969 = vand.u32 %v7992, 4294901760
          %9970 = vmatmul.mubr.f32.gmra.mrb[0].mxu0 %v9969
          %v9971 = vpop.f32.mrb[0].mxu0
          %v9972 = vadd.f32 %v9699, %v9971
          %v9973 = vpop.f32.mrb[0].mxu0
          %9974 = vmatprep.mubr.f32.mxu0 0.0
          %v9975 = vand.u32 %v7993, 4294901760
          %9976 = vmatmul.mubr.f32.gmra.mrb[0].mxu0 %v9975
          %v9977 = vpop.f32.mrb[0].mxu0
          %v9978 = vadd.f32 %v9705, %v9977
          %v9979 = vpop.f32.mrb[0].mxu0
          %9980 = vmatprep.mubr.f32.mxu0 0.0
          %v9981 = vand.u32 %v7994, 4294901760
          %9982 = vmatmul.mubr.f32.gmra.mrb[0].mxu0 %v9981
          %v9983 = vpop.f32.mrb[0].mxu0
          %v9984 = vadd.f32 %v9711, %v9983
          %v9985 = vpop.f32.mrb[0].mxu0
          %9986 = vmatprep.mubr.f32.mxu0 0.0
          %v9987 = vand.u32 %v7995, 4294901760
          %9988 = vmatmul.mubr.f32.gmra.mrb[0].mxu0 %v9987
          %v9989 = vpop.f32.mrb[0].mxu0
          %v9990 = vadd.f32 %v9717, %v9989
          %v9991 = vpop.f32.mrb[0].mxu0
          %9992 = vdwg.mxu0
          %9993 = vst [vmem:[%s390] sm:$0xff] %v9804
          %9994 = vst [vmem:[%s390 + $0x8] sm:$0xff] %v9810
          %9995 = vst [vmem:[%s390 + $0x10] sm:$0xff] %v9816
          %9996 = vst [vmem:[%s390 + $0x18] sm:$0xff] %v9822
          %9997 = vst [vmem:[%s390 + $0x20] sm:$0xff] %v9828
          %9998 = vst [vmem:[%s390 + $0x28] sm:$0xff] %v9834
          %9999 = vst [vmem:[%s390 + $0x30] sm:$0xff] %v9840
          %10000 = vst [vmem:[%s390 + $0x38] sm:$0xff] %v9846
          %10001 = vst [vmem:[%s390 + $0x40] sm:$0xff] %v9852
          %10002 = vst [vmem:[%s390 + $0x48] sm:$0xff] %v9858
          %10003 = vst [vmem:[%s390 + $0x50] sm:$0xff] %v9864
          %10004 = vst [vmem:[%s390 + $0x58] sm:$0xff] %v9870
          %10005 = vst [vmem:[%s390 + $0x60] sm:$0xff] %v9876
          %10006 = vst [vmem:[%s390 + $0x68] sm:$0xff] %v9882
          %10007 = vst [vmem:[%s390 + $0x70] sm:$0xff] %v9888
          %10008 = vst [vmem:[%s390 + $0x78] sm:$0xff] %v9894
          %10009 = vst [vmem:[%s390 + $0x80] sm:$0xff] %v9900
          %10010 = vst [vmem:[%s390 + $0x88] sm:$0xff] %v9906
          %10011 = vst [vmem:[%s390 + $0x90] sm:$0xff] %v9912
          %10012 = vst [vmem:[%s390 + $0x98] sm:$0xff] %v9918
          %10013 = vst [vmem:[%s390 + $0xa0] sm:$0xff] %v9924
          %10014 = vst [vmem:[%s390 + $0xa8] sm:$0xff] %v9930
          %10015 = vst [vmem:[%s390 + $0xb0] sm:$0xff] %v9936
          %10016 = vst [vmem:[%s390 + $0xb8] sm:$0xff] %v9942
          %10017 = vst [vmem:[%s390 + $0xc0] sm:$0xff] %v9948
          %10018 = vst [vmem:[%s390 + $0xc8] sm:$0xff] %v9954
          %10019 = vst [vmem:[%s390 + $0xd0] sm:$0xff] %v9960
          %10020 = vst [vmem:[%s390 + $0xd8] sm:$0xff] %v9966
          %10021 = vst [vmem:[%s390 + $0xe0] sm:$0xff] %v9972
          %10022 = vst [vmem:[%s390 + $0xe8] sm:$0xff] %v9978
          %10023 = vst [vmem:[%s390 + $0xf0] sm:$0xff] %v9984
          %10024 = vst [vmem:[%s390 + $0xf8] sm:$0xff] %v9990
        $region80: #{tpu_custom_call.1} parent=51 // pred_fallthru
          _
        %s10025 = sand.u32 %s235, 1
        %s10026 = scalar_lea.sflag [#allocation11], %s10025
        %s10027 = sand.u32 %s235, 1
        %s10028 = smul.addr %s10027, 256
        %s10029 = scalar_lea.vmem [#allocation15], %s10028
        // Predicated region
        $region81: #{tpu_custom_call.1} parent=51 // pred_check
          %p10030 = pneg %p245
        $region82: #{tpu_custom_call.1} parent=51 // pred_check_branch
          %10032 = sbr.rel (%p10030) target = $region84
        $region83: #{tpu_custom_call.1} parent=51 // pred_region
          %s10033 = sld [smem:[#allocation6 + %s42]]
          %s10034 = smul.u32 32, %s10033
          %s10036 = ssub.s32 4096, 4096
          %10037 = vsyncadd %s10026, %s10036
          %s10038 = smul.addr %s10034, 128
          %s10039 = scalar_lea.hbm %s12, %s10038
          %s10040 = sshll.u32 %s10029, 4
          %s10041 = int_to_ptr.vmem [resolvable:$true] %s10040
          %10046 = dma.vmem_to_hbm [thread:$0]  %s10041, 4096, %s10039, %s10026, 128, 128, 8
        $region84: #{tpu_custom_call.1} parent=51 // pred_fallthru
          _
      $region52: #{tpu_custom_call.1} parent=5 // pred_fallthru
        _
      %p10047 = scmp.le.s32.totalorder 2, %s37
      // Predicated region
      $region85: #{tpu_custom_call.1} parent=5 // pred_check
        %p10048 = pneg %p10047
      $region86: #{tpu_custom_call.1} parent=5 // pred_check_branch
        %10050 = sbr.rel (%p10048) target = $region88
      $region87: #{tpu_custom_call.1} parent=5 // pred_region
        %s10051 = ssub.s32 %s37, 2
        // Predicated region
        $region89: #{tpu_custom_call.1} parent=87 // pred_check
          %p10052 = pneg %p251
        $region90: #{tpu_custom_call.1} parent=87 // pred_check_branch
          %10054 = sbr.rel (%p10052) target = $region92
        $region91: #{tpu_custom_call.1} parent=87 // pred_region
          %s10055 = sand.u32 %s236, 1
          %s10056 = scalar_lea.sflag [#allocation11], %s10055
          %s10057 = sand.u32 %s236, 1
          %s10058 = smul.addr %s10057, 256
          %s10059 = scalar_lea.vmem [#allocation15], %s10058
          %10060 = dma.done %s10056, 4096
        $region92: #{tpu_custom_call.1} parent=87 // pred_fallthru
          _
      $region88: #{tpu_custom_call.1} parent=5 // pred_fallthru
        _
    $region6: #{tpu_custom_call.1} parent=1 // loop_footer
      %s41 = sadd.s32 1, %s37
    $region7: #{tpu_custom_call.1} parent=1 // loop_footer_branch
      %36 = sbr.rel target = $region3
    $region8: #{tpu_custom_call.1} parent=1 // loop_exit
      _
    %10061 = vsyncpa [#allocation10], 1
    %s10062 = scalar_lea.sflag [#allocation10], 1
    %10063 = vsyncpa %s10062, 1
    %10064 = vsyncpa [#allocation13], 1
    %10065 = vsyncpa [#allocation11], 1
    %s10066 = scalar_lea.sflag [#allocation11], 1
    %10067 = vsyncpa %s10066, 1
  %10068 = vsyncmov [#allocation4]
  %s10069 = vpop.sfrf %10068
  %p10070 = scmp.eq.s32.totalorder %s10069, 0
  %p10071 = pneg %p10070
  %10073 = shalt.err (%p10071)

</llo_original>
